<compile_context>
chip_gen: v7x
topology: tpu7x:2x2x1
jax: 0.10.0
libtpu: 0.0.40
codegen_flags: <defaults>
</compile_context>

<pallas_src>
import functools

import jax
import jax.numpy as jnp
from jax.experimental import pallas as pl
from jax.experimental.pallas import tpu as pltpu


# ---------------------------------------------------------------------------
# Fused kernel: per pixel tile compute
#   out[p, o, w] = relu( bias[o] + sum_{j,c} W[j, o, c] * H_j[p, c, w] )
# with H_0 = x and H_{s,k} = x @ A_s^k (chained hops, same order as PyTorch).
# ---------------------------------------------------------------------------
def _gcn_fused_kernel(x_ref, a_ref, w_ref, b_ref, o_ref, *, order):
    # x_ref: (P, C, V)   tile of pixels (pixel = (batch, time)), all chans/nodes
    # a_ref: (S, V, V)   resident adjacency stack
    # w_ref: (K, O, C)   resident per-hop-term 1x1-conv weights, K = order*S + 1
    # b_ref: (1, O, 1)   resident bias
    # o_ref: (P, O, V)   output tile
    P, C, V = x_ref.shape
    S = a_ref.shape[0]
    K, O, _ = w_ref.shape

    x_t = x_ref[...]

    def channel_mix(term_idx, h):
        # out[p, o, v] = sum_c W[term, o, c] * h[p, c, v]
        w_b = jnp.broadcast_to(w_ref[term_idx], (P, O, C))
        return jnp.einsum('poc,pcv->pov', w_b, h,
                          preferred_element_type=jnp.float32)

    # term 0 of the channel concat: x itself
    acc = channel_mix(0, x_t)

    term = 1
    for s in range(S):                           # static unroll over supports
        a_b = jnp.broadcast_to(a_ref[s], (P, V, V))
        cur = x_t
        for _ in range(order):                   # static unroll over hops
            # nconv: cur[p, c, w] = sum_v cur[p, c, v] * A_s[v, w]
            cur = jnp.einsum('pcv,pvw->pcw', cur, a_b,
                             preferred_element_type=jnp.float32)
            acc = acc + channel_mix(term, cur)
            term += 1

    acc = acc + b_ref[...]
    # F.dropout is identity at inference; ReLU after it is exact.
    o_ref[...] = jnp.maximum(acc, 0.0).astype(o_ref.dtype)


# ---------------------------------------------------------------------------
# gcn.forward wrapper
# ---------------------------------------------------------------------------
def gcn_forward(x, support, mlp_w, mlp_b, mlp1_w, mlp1_b, order=2,
                dropout=0.3, tile_pixels=64, interpret=False):
    del dropout  # identity at inference time
    B, C, V, L = x.shape
    S = len(support)
    for a in support:
        if a.shape[0] != a.shape[1]:
            # TODO(synk): batched 'bfnl,bnd->bfdl' adjacency branch not implemented.
            raise NotImplementedError("only square (V, V) supports are supported")
        assert a.shape == (V, V)

    if S == 3:
        w2, bvec = mlp_w, mlp_b
    elif S == 2:
        w2, bvec = mlp1_w, mlp1_b
    else:
        # Reference module applies NO 1x1 conv in this case: relu(dropout(concat)).
        # TODO(synk): rare path kept in plain JAX (there are no conv weights to fuse).
        outs = [x]
        for a in support:
            x1 = jnp.einsum('ncvl,vw->ncwl', x, a)
            outs.append(x1)
            for _ in range(2, order + 1):
                x1 = jnp.einsum('ncvl,vw->ncwl', x1, a)
                outs.append(x1)
        return jnp.maximum(jnp.concatenate(outs, axis=1), 0.0)

    K = order * S + 1
    Cout, Ccat = w2.shape
    assert Ccat == K * C, (Ccat, K, C)

    M = B * L                                    # total pixels = (batch, time) pairs
    P = max(1, min(tile_pixels, M))              # pixel-tile size (row-tiled grid)
    Mp = ((M + P - 1) // P) * P                  # pad pixel count to tile multiple

    # One small layout pass: (B, C, V, L) -> (M, C, V); everything else is fused.
    xr = jnp.transpose(x, (0, 3, 1, 2)).reshape(M, C, V)
    if Mp != M:
        xr = jnp.pad(xr, ((0, Mp - M), (0, 0), (0, 0)))

    a_stack = jnp.stack(support, axis=0)                           # (S, V, V)
    w_terms = jnp.transpose(w2.reshape(Cout, K, C), (1, 0, 2))     # (K, Cout, C)
    bias3 = bvec.reshape(1, Cout, 1)

    itemsize = jnp.dtype(x.dtype).itemsize
    flops = 2 * Mp * (S * order * C * V * V + K * C * Cout * V)
    bytes_accessed = (xr.size + a_stack.size + w_terms.size + bias3.size
                      + Mp * Cout * V) * itemsize

    out = pl.pallas_call(
        functools.partial(_gcn_fused_kernel, order=order),
        out_shape=jax.ShapeDtypeStruct((Mp, Cout, V), x.dtype),
        grid=(Mp // P,),
        in_specs=[
            pl.BlockSpec((P, C, V), lambda i: (i, 0, 0)),       # pipelined x tiles
            pl.BlockSpec((S, V, V), lambda i: (0, 0, 0)),       # resident supports
            pl.BlockSpec((K, Cout, C), lambda i: (0, 0, 0)),    # resident weights
            pl.BlockSpec((1, Cout, 1), lambda i: (0, 0, 0)),    # resident bias
        ],
        out_specs=pl.BlockSpec((P, Cout, V), lambda i: (i, 0, 0)),
        compiler_params=pltpu.CompilerParams(
            dimension_semantics=("parallel",),
            vmem_limit_bytes=32 * 1024 * 1024,
        ),
        cost_estimate=pl.CostEstimate(
            flops=int(flops), transcendentals=0,
            bytes_accessed=int(bytes_accessed)),
        interpret=interpret,
    )(xr, a_stack, w_terms, bias3)

    out = out[:M].reshape(B, L, Cout, V)
    return jnp.transpose(out, (0, 2, 3, 1))      # (B, Cout, V, L)


# ---------------------------------------------------------------------------
# Pure-JAX reference (mirrors the PyTorch module, eval mode) for validation.
# ---------------------------------------------------------------------------
def gcn_reference(x, support, mlp_w, mlp_b, mlp1_w, mlp1_b, order=2):
    outs = [x]
    for a in support:
        x1 = jnp.einsum('ncvl,vw->ncwl', x, a)
        outs.append(x1)
        for _ in range(2, order + 1):
            x1 = jnp.einsum('ncvl,vw->ncwl', x1, a)
            outs.append(x1)
    h = jnp.concatenate(outs, axis=1)
    if len(support) == 3:
        w, b = mlp_w, mlp_b
    elif len(support) == 2:
        w, b = mlp1_w, mlp1_b
    else:
        return jnp.maximum(h, 0.0)
    h = jnp.einsum('oc,ncvl->novl', w, h) + b.reshape(1, -1, 1, 1)
    return jnp.maximum(h, 0.0)


if __name__ == "__main__":
    key = jax.random.PRNGKey(0)
    B, C, V, L = 2, 4, 16, 16
    c_out, order, support_len = 8, 2, 3
    c_in_full = (order * 3 + 1) * C              # 28 -> self.mlp   (len(support)==3)
    c_in_1 = (order * 2 + 1) * C                 # 20 -> self.mlp_1 (len(support)==2)

    ks = jax.random.split(key, 8)
    x = jax.random.normal(ks[0], (B, C, V, L), dtype=jnp.float32)
    support = [
        jax.nn.softmax(jax.random.normal(ks[1 + i], (V, V), jnp.float32), axis=-1)
        for i in range(support_len)
    ]
    mlp_w = 0.1 * jax.random.normal(ks[4], (c_out, c_in_full), jnp.float32)
    mlp_b = 0.1 * jax.random.normal(ks[5], (c_out,), jnp.float32)
    mlp1_w = 0.1 * jax.random.normal(ks[6], (c_out, c_in_1), jnp.float32)
    mlp1_b = 0.1 * jax.random.normal(ks[7], (c_out,), jnp.float32)

    # tile_pixels=8 -> 4 pipelined grid steps even at these small test shapes.
    out = gcn_forward(x, support, mlp_w, mlp_b, mlp1_w, mlp1_b,
                      order=order, tile_pixels=8)
    out = jax.block_until_ready(out)
    assert out.shape == (B, c_out, V, L)

    ref = gcn_reference(x, support, mlp_w, mlp_b, mlp1_w, mlp1_b, order=order)
    err = float(jnp.max(jnp.abs(out - ref)))
    assert jnp.allclose(out, ref, rtol=1e-4, atol=1e-4), f"max abs err {err}"
    print("KERNEL_OK")
</pallas_src>

<mosaic_0001>
module attributes {stable_mosaic.version = 11 : i64} {
  func.func @_gcn_fused_kernel(%arg0: i32, %arg1: memref<8x4x16xf32, #tpu.memory_space<vmem>>, %arg2: memref<3x16x16xf32, #tpu.memory_space<vmem>>, %arg3: memref<7x8x4xf32, #tpu.memory_space<vmem>>, %arg4: memref<1x8x1xf32, #tpu.memory_space<vmem>>, %arg5: memref<8x8x16xf32, #tpu.memory_space<vmem>>) attributes {dimension_semantics = [#tpu.dimension_semantics<parallel>], iteration_bounds = array<i64: 4>, scalar_prefetch = 0 : i64, scratch_operands = 0 : i64, tpu.core_type = #tpu.core_type<tc>, window_params = [{transform_indices = @transform_0, window_bounds = array<i64: 8, 4, 16>}, {pipeline_mode = #tpu.pipeline_mode<synchronous>, transform_indices = @transform_1, window_bounds = array<i64: 3, 16, 16>}, {pipeline_mode = #tpu.pipeline_mode<synchronous>, transform_indices = @transform_2, window_bounds = array<i64: 7, 8, 4>}, {pipeline_mode = #tpu.pipeline_mode<synchronous>, transform_indices = @transform_3, window_bounds = array<i64: 1, 8, 1>}, {transform_indices = @transform_4, window_bounds = array<i64: 8, 8, 16>}]} {
    %c0 = arith.constant 0 : index
    %c0_0 = arith.constant 0 : index
    %c0_1 = arith.constant 0 : index
    %0 = vector.load %arg1[%c0, %c0_0, %c0_1] : memref<8x4x16xf32, #tpu.memory_space<vmem>>, vector<8x4x16xf32>
    %c0_2 = arith.constant 0 : index
    %c0_3 = arith.constant 0 : index
    %c0_4 = arith.constant 0 : index
    %1 = vector.load %arg3[%c0_2, %c0_3, %c0_4] : memref<7x8x4xf32, #tpu.memory_space<vmem>>, vector<1x8x4xf32>
    %2 = vector.shape_cast %1 : vector<1x8x4xf32> to vector<8x4xf32>
    %3 = vector.shape_cast %2 : vector<8x4xf32> to vector<1x8x4xf32>
    %4 = vector.broadcast %3 : vector<1x8x4xf32> to vector<8x8x4xf32>
    "tpu.trace_start"() <{level = 10 : i32, message = "poc,pcv->pov"}> : () -> ()
    %cst = arith.constant dense<0.000000e+00> : vector<8x8x16xf32>
    %5 = tpu.matmul %4, %0, %cst {dimension_numbers = #tpu.dot_dimension_numbers<[2], [1], [1], [2], [0, 0, 0, 1, 1, 2], [0], [0]>} : vector<8x8x4xf32>, vector<8x4x16xf32>, vector<8x8x16xf32> -> vector<8x8x16xf32>
    "tpu.trace_stop"() : () -> ()
    %c0_5 = arith.constant 0 : index
    %c0_6 = arith.constant 0 : index
    %c0_7 = arith.constant 0 : index
    %6 = vector.load %arg2[%c0_5, %c0_6, %c0_7] : memref<3x16x16xf32, #tpu.memory_space<vmem>>, vector<1x16x16xf32>
    %7 = vector.shape_cast %6 : vector<1x16x16xf32> to vector<16x16xf32>
    %8 = vector.shape_cast %7 : vector<16x16xf32> to vector<1x16x16xf32>
    %9 = vector.broadcast %8 : vector<1x16x16xf32> to vector<8x16x16xf32>
    "tpu.trace_start"() <{level = 10 : i32, message = "pcv,pvw->pcw"}> : () -> ()
    %cst_8 = arith.constant dense<0.000000e+00> : vector<8x4x16xf32>
    %10 = tpu.matmul %0, %9, %cst_8 {dimension_numbers = #tpu.dot_dimension_numbers<[2], [1], [1], [2], [0, 0, 0, 1, 1, 2], [0], [0]>} : vector<8x4x16xf32>, vector<8x16x16xf32>, vector<8x4x16xf32> -> vector<8x4x16xf32>
    "tpu.trace_stop"() : () -> ()
    %c1 = arith.constant 1 : index
    %c0_9 = arith.constant 0 : index
    %c0_10 = arith.constant 0 : index
    %11 = vector.load %arg3[%c1, %c0_9, %c0_10] : memref<7x8x4xf32, #tpu.memory_space<vmem>>, vector<1x8x4xf32>
    %12 = vector.shape_cast %11 : vector<1x8x4xf32> to vector<8x4xf32>
    %13 = vector.shape_cast %12 : vector<8x4xf32> to vector<1x8x4xf32>
    %14 = vector.broadcast %13 : vector<1x8x4xf32> to vector<8x8x4xf32>
    "tpu.trace_start"() <{level = 10 : i32, message = "poc,pcv->pov"}> : () -> ()
    %cst_11 = arith.constant dense<0.000000e+00> : vector<8x8x16xf32>
    %15 = tpu.matmul %14, %10, %cst_11 {dimension_numbers = #tpu.dot_dimension_numbers<[2], [1], [1], [2], [0, 0, 0, 1, 1, 2], [0], [0]>} : vector<8x8x4xf32>, vector<8x4x16xf32>, vector<8x8x16xf32> -> vector<8x8x16xf32>
    "tpu.trace_stop"() : () -> ()
    %16 = arith.addf %5, %15 : vector<8x8x16xf32>
    "tpu.trace_start"() <{level = 10 : i32, message = "pcv,pvw->pcw"}> : () -> ()
    %cst_12 = arith.constant dense<0.000000e+00> : vector<8x4x16xf32>
    %17 = tpu.matmul %10, %9, %cst_12 {dimension_numbers = #tpu.dot_dimension_numbers<[2], [1], [1], [2], [0, 0, 0, 1, 1, 2], [0], [0]>} : vector<8x4x16xf32>, vector<8x16x16xf32>, vector<8x4x16xf32> -> vector<8x4x16xf32>
    "tpu.trace_stop"() : () -> ()
    %c2 = arith.constant 2 : index
    %c0_13 = arith.constant 0 : index
    %c0_14 = arith.constant 0 : index
    %18 = vector.load %arg3[%c2, %c0_13, %c0_14] : memref<7x8x4xf32, #tpu.memory_space<vmem>>, vector<1x8x4xf32>
    %19 = vector.shape_cast %18 : vector<1x8x4xf32> to vector<8x4xf32>
    %20 = vector.shape_cast %19 : vector<8x4xf32> to vector<1x8x4xf32>
    %21 = vector.broadcast %20 : vector<1x8x4xf32> to vector<8x8x4xf32>
    "tpu.trace_start"() <{level = 10 : i32, message = "poc,pcv->pov"}> : () -> ()
    %cst_15 = arith.constant dense<0.000000e+00> : vector<8x8x16xf32>
    %22 = tpu.matmul %21, %17, %cst_15 {dimension_numbers = #tpu.dot_dimension_numbers<[2], [1], [1], [2], [0, 0, 0, 1, 1, 2], [0], [0]>} : vector<8x8x4xf32>, vector<8x4x16xf32>, vector<8x8x16xf32> -> vector<8x8x16xf32>
    "tpu.trace_stop"() : () -> ()
    %23 = arith.addf %16, %22 : vector<8x8x16xf32>
    %c1_16 = arith.constant 1 : index
    %c0_17 = arith.constant 0 : index
    %c0_18 = arith.constant 0 : index
    %24 = vector.load %arg2[%c1_16, %c0_17, %c0_18] : memref<3x16x16xf32, #tpu.memory_space<vmem>>, vector<1x16x16xf32>
    %25 = vector.shape_cast %24 : vector<1x16x16xf32> to vector<16x16xf32>
    %26 = vector.shape_cast %25 : vector<16x16xf32> to vector<1x16x16xf32>
    %27 = vector.broadcast %26 : vector<1x16x16xf32> to vector<8x16x16xf32>
    "tpu.trace_start"() <{level = 10 : i32, message = "pcv,pvw->pcw"}> : () -> ()
    %cst_19 = arith.constant dense<0.000000e+00> : vector<8x4x16xf32>
    %28 = tpu.matmul %0, %27, %cst_19 {dimension_numbers = #tpu.dot_dimension_numbers<[2], [1], [1], [2], [0, 0, 0, 1, 1, 2], [0], [0]>} : vector<8x4x16xf32>, vector<8x16x16xf32>, vector<8x4x16xf32> -> vector<8x4x16xf32>
    "tpu.trace_stop"() : () -> ()
    %c3 = arith.constant 3 : index
    %c0_20 = arith.constant 0 : index
    %c0_21 = arith.constant 0 : index
    %29 = vector.load %arg3[%c3, %c0_20, %c0_21] : memref<7x8x4xf32, #tpu.memory_space<vmem>>, vector<1x8x4xf32>
    %30 = vector.shape_cast %29 : vector<1x8x4xf32> to vector<8x4xf32>
    %31 = vector.shape_cast %30 : vector<8x4xf32> to vector<1x8x4xf32>
    %32 = vector.broadcast %31 : vector<1x8x4xf32> to vector<8x8x4xf32>
    "tpu.trace_start"() <{level = 10 : i32, message = "poc,pcv->pov"}> : () -> ()
    %cst_22 = arith.constant dense<0.000000e+00> : vector<8x8x16xf32>
    %33 = tpu.matmul %32, %28, %cst_22 {dimension_numbers = #tpu.dot_dimension_numbers<[2], [1], [1], [2], [0, 0, 0, 1, 1, 2], [0], [0]>} : vector<8x8x4xf32>, vector<8x4x16xf32>, vector<8x8x16xf32> -> vector<8x8x16xf32>
    "tpu.trace_stop"() : () -> ()
    %34 = arith.addf %23, %33 : vector<8x8x16xf32>
    "tpu.trace_start"() <{level = 10 : i32, message = "pcv,pvw->pcw"}> : () -> ()
    %cst_23 = arith.constant dense<0.000000e+00> : vector<8x4x16xf32>
    %35 = tpu.matmul %28, %27, %cst_23 {dimension_numbers = #tpu.dot_dimension_numbers<[2], [1], [1], [2], [0, 0, 0, 1, 1, 2], [0], [0]>} : vector<8x4x16xf32>, vector<8x16x16xf32>, vector<8x4x16xf32> -> vector<8x4x16xf32>
    "tpu.trace_stop"() : () -> ()
    %c4 = arith.constant 4 : index
    %c0_24 = arith.constant 0 : index
    %c0_25 = arith.constant 0 : index
    %36 = vector.load %arg3[%c4, %c0_24, %c0_25] : memref<7x8x4xf32, #tpu.memory_space<vmem>>, vector<1x8x4xf32>
    %37 = vector.shape_cast %36 : vector<1x8x4xf32> to vector<8x4xf32>
    %38 = vector.shape_cast %37 : vector<8x4xf32> to vector<1x8x4xf32>
    %39 = vector.broadcast %38 : vector<1x8x4xf32> to vector<8x8x4xf32>
    "tpu.trace_start"() <{level = 10 : i32, message = "poc,pcv->pov"}> : () -> ()
    %cst_26 = arith.constant dense<0.000000e+00> : vector<8x8x16xf32>
    %40 = tpu.matmul %39, %35, %cst_26 {dimension_numbers = #tpu.dot_dimension_numbers<[2], [1], [1], [2], [0, 0, 0, 1, 1, 2], [0], [0]>} : vector<8x8x4xf32>, vector<8x4x16xf32>, vector<8x8x16xf32> -> vector<8x8x16xf32>
    "tpu.trace_stop"() : () -> ()
    %41 = arith.addf %34, %40 : vector<8x8x16xf32>
    %c2_27 = arith.constant 2 : index
    %c0_28 = arith.constant 0 : index
    %c0_29 = arith.constant 0 : index
    %42 = vector.load %arg2[%c2_27, %c0_28, %c0_29] : memref<3x16x16xf32, #tpu.memory_space<vmem>>, vector<1x16x16xf32>
    %43 = vector.shape_cast %42 : vector<1x16x16xf32> to vector<16x16xf32>
    %44 = vector.shape_cast %43 : vector<16x16xf32> to vector<1x16x16xf32>
    %45 = vector.broadcast %44 : vector<1x16x16xf32> to vector<8x16x16xf32>
    "tpu.trace_start"() <{level = 10 : i32, message = "pcv,pvw->pcw"}> : () -> ()
    %cst_30 = arith.constant dense<0.000000e+00> : vector<8x4x16xf32>
    %46 = tpu.matmul %0, %45, %cst_30 {dimension_numbers = #tpu.dot_dimension_numbers<[2], [1], [1], [2], [0, 0, 0, 1, 1, 2], [0], [0]>} : vector<8x4x16xf32>, vector<8x16x16xf32>, vector<8x4x16xf32> -> vector<8x4x16xf32>
    "tpu.trace_stop"() : () -> ()
    %c5 = arith.constant 5 : index
    %c0_31 = arith.constant 0 : index
    %c0_32 = arith.constant 0 : index
    %47 = vector.load %arg3[%c5, %c0_31, %c0_32] : memref<7x8x4xf32, #tpu.memory_space<vmem>>, vector<1x8x4xf32>
    %48 = vector.shape_cast %47 : vector<1x8x4xf32> to vector<8x4xf32>
    %49 = vector.shape_cast %48 : vector<8x4xf32> to vector<1x8x4xf32>
    %50 = vector.broadcast %49 : vector<1x8x4xf32> to vector<8x8x4xf32>
    "tpu.trace_start"() <{level = 10 : i32, message = "poc,pcv->pov"}> : () -> ()
    %cst_33 = arith.constant dense<0.000000e+00> : vector<8x8x16xf32>
    %51 = tpu.matmul %50, %46, %cst_33 {dimension_numbers = #tpu.dot_dimension_numbers<[2], [1], [1], [2], [0, 0, 0, 1, 1, 2], [0], [0]>} : vector<8x8x4xf32>, vector<8x4x16xf32>, vector<8x8x16xf32> -> vector<8x8x16xf32>
    "tpu.trace_stop"() : () -> ()
    %52 = arith.addf %41, %51 : vector<8x8x16xf32>
    "tpu.trace_start"() <{level = 10 : i32, message = "pcv,pvw->pcw"}> : () -> ()
    %cst_34 = arith.constant dense<0.000000e+00> : vector<8x4x16xf32>
    %53 = tpu.matmul %46, %45, %cst_34 {dimension_numbers = #tpu.dot_dimension_numbers<[2], [1], [1], [2], [0, 0, 0, 1, 1, 2], [0], [0]>} : vector<8x4x16xf32>, vector<8x16x16xf32>, vector<8x4x16xf32> -> vector<8x4x16xf32>
    "tpu.trace_stop"() : () -> ()
    %c6 = arith.constant 6 : index
    %c0_35 = arith.constant 0 : index
    %c0_36 = arith.constant 0 : index
    %54 = vector.load %arg3[%c6, %c0_35, %c0_36] : memref<7x8x4xf32, #tpu.memory_space<vmem>>, vector<1x8x4xf32>
    %55 = vector.shape_cast %54 : vector<1x8x4xf32> to vector<8x4xf32>
    %56 = vector.shape_cast %55 : vector<8x4xf32> to vector<1x8x4xf32>
    %57 = vector.broadcast %56 : vector<1x8x4xf32> to vector<8x8x4xf32>
    "tpu.trace_start"() <{level = 10 : i32, message = "poc,pcv->pov"}> : () -> ()
    %cst_37 = arith.constant dense<0.000000e+00> : vector<8x8x16xf32>
    %58 = tpu.matmul %57, %53, %cst_37 {dimension_numbers = #tpu.dot_dimension_numbers<[2], [1], [1], [2], [0, 0, 0, 1, 1, 2], [0], [0]>} : vector<8x8x4xf32>, vector<8x4x16xf32>, vector<8x8x16xf32> -> vector<8x8x16xf32>
    "tpu.trace_stop"() : () -> ()
    %59 = arith.addf %52, %58 : vector<8x8x16xf32>
    %c0_38 = arith.constant 0 : index
    %c0_39 = arith.constant 0 : index
    %c0_40 = arith.constant 0 : index
    %60 = vector.load %arg4[%c0_38, %c0_39, %c0_40] : memref<1x8x1xf32, #tpu.memory_space<vmem>>, vector<1x8x1xf32>
    %61 = vector.broadcast %60 : vector<1x8x1xf32> to vector<8x8x16xf32>
    %62 = arith.addf %59, %61 : vector<8x8x16xf32>
    %cst_41 = arith.constant 0.000000e+00 : f32
    %63 = vector.broadcast %cst_41 : f32 to vector<8x8x16xf32>
    %64 = arith.maximumf %62, %63 : vector<8x8x16xf32>
    %c0_42 = arith.constant 0 : index
    %c0_43 = arith.constant 0 : index
    %c0_44 = arith.constant 0 : index
    %65 = vector.load %arg5[%c0_42, %c0_43, %c0_44] : memref<8x8x16xf32, #tpu.memory_space<vmem>>, vector<8x8x16xf32>
    tpu.vector_store %arg5[%c0_42, %c0_43, %c0_44], %64 {strides = array<i32>} : memref<8x8x16xf32, #tpu.memory_space<vmem>>, vector<8x8x16xf32>,
    return
  }
  func.func @transform_0(%arg0: i32) -> (i32, i32, i32) {
    %c0_i32 = arith.constant 0 : i32
    %c0_i32_0 = arith.constant 0 : i32
    %c0_i32_1 = arith.constant 0 : i32
    return %arg0, %c0_i32, %c0_i32_0 : i32, i32, i32
  }
  func.func @transform_1(%arg0: i32) -> (i32, i32, i32) {
    %c0_i32 = arith.constant 0 : i32
    %c0_i32_0 = arith.constant 0 : i32
    %c0_i32_1 = arith.constant 0 : i32
    %c0_i32_2 = arith.constant 0 : i32
    return %c0_i32, %c0_i32_0, %c0_i32_1 : i32, i32, i32
  }
  func.func @transform_2(%arg0: i32) -> (i32, i32, i32) {
    %c0_i32 = arith.constant 0 : i32
    %c0_i32_0 = arith.constant 0 : i32
    %c0_i32_1 = arith.constant 0 : i32
    %c0_i32_2 = arith.constant 0 : i32
    return %c0_i32, %c0_i32_0, %c0_i32_1 : i32, i32, i32
  }
  func.func @transform_3(%arg0: i32) -> (i32, i32, i32) {
    %c0_i32 = arith.constant 0 : i32
    %c0_i32_0 = arith.constant 0 : i32
    %c0_i32_1 = arith.constant 0 : i32
    %c0_i32_2 = arith.constant 0 : i32
    return %c0_i32, %c0_i32_0, %c0_i32_1 : i32, i32, i32
  }
  func.func @transform_4(%arg0: i32) -> (i32, i32, i32) {
    %c0_i32 = arith.constant 0 : i32
    %c0_i32_0 = arith.constant 0 : i32
    %c0_i32_1 = arith.constant 0 : i32
    return %arg0, %c0_i32, %c0_i32_0 : i32, i32, i32
  }
}

</mosaic_0001>

<llo_original>
// kernel: tpu_custom_call.1
$region0: #{tpu_custom_call.1}
  #allocation0 [shape = 'u32[]', space=smem, size = 0x4, offset = 0x4, fixed_abs, tag = 'smem constant byte address 0x4 - core index']
  #allocation1 [shape = 'u32[144,128]{1,0:T(1,128)}', space=vmem, size = 0x12000, scoped, tag = 'internal scratch']
  %s0 = inlined_call_operand.vmem [shape: f32[32,4,16], index: 0, kind: input, shape index: {}]
  %s1 = inlined_call_operand.vmem [shape: f32[3,16,16], index: 1, kind: input, shape index: {}]
  %s2 = inlined_call_operand.vmem [shape: f32[7,8,4], index: 2, kind: input, shape index: {}]
  %s3 = inlined_call_operand.vmem [shape: f32[1,8,1], index: 3, kind: input, shape index: {}]
  %s4 = inlined_call_operand.vmem [shape: f32[32,8,16], index: 4, kind: output, shape index: {}]
  %s5 = sld [smem:[#allocation0]]
  $region49: #{tpu_custom_call.1} parent=0
    _
  %s7 = ssub.s32 1, %s5
  %s8 = scalar_select 0, %s7, %s5
  loop: start=0, step=1, limit=6
  $region2: #{tpu_custom_call.1} parent=0 // loop_pre_header
    _
  $region3: #{tpu_custom_call.1} parent=0 // loop_header
    %s10 = sphi 0, %s14
    %p11 = scmp.ge.s32.totalorder %s10, 6
    %s20 = sphi 0, %s22
    %s23 = sphi 0, %s20
    %s24 = sphi 0, %s23
    %s40 = sphi 0, %s24
    %s44 = sphi 0, %s44
    %s46 = sphi 0, %s44
    %s47 = sphi 0, %s46
    %s61 = sphi 0, %s47
    %s65 = sphi 0, %s65
    %s67 = sphi 0, %s65
    %s68 = sphi 0, %s67
    %s82 = sphi 0, %s68
    %s86 = sphi 0, %s86
    %s88 = sphi 0, %s86
    %s89 = sphi 0, %s88
    %s103 = sphi 0, %s89
    %s109 = sphi 0, %s111
    %s112 = sphi 0, %s109
    %s113 = sphi 0, %s112
    %s129 = sphi 0, %s113
  $region4: #{tpu_custom_call.1} parent=0 // loop_header_branch
    %13 = sbr.rel (%p11) target = $region8
  $region5: #{tpu_custom_call.1} parent=0 // loop_body
    %s15 = ssub.s32 %s10, 1
    %s16 = ssub.s32 %s10, 2
    %s17 = sadd.s32 %s10, 1
    %s18 = ssub.s32 %s10, %s17
    %p19 = scmp.eq.s32.totalorder %s18, 0
    %s21 = sadd.s32 %s20, 1
    %s22 = scalar_select %p19, %s20, %s21
    %p25 = pneg %p19
    %p26 = scmp.eq.s32.totalorder %s10, 3
    %p27 = por %p25, %p26
    %p28 = scmp.ne.s32.totalorder %s20, %s23
    %p29 = scmp.eq.s32.totalorder %s10, 0
    %p30 = por %p28, %p29
    %p31 = scmp.ne.s32.totalorder %s20, %s23
    %p32 = scmp.eq.s32.totalorder %s15, 3
    %p33 = por %p31, %p32
    %p34 = scmp.ne.s32.totalorder %s23, %s24
    %p35 = scmp.eq.s32.totalorder %s15, 0
    %p36 = por %p34, %p35
    %p37 = scmp.ne.s32.totalorder %s23, %s24
    %p38 = scmp.eq.s32.totalorder %s16, 3
    %p39 = por %p37, %p38
    %p41 = scmp.ne.s32.totalorder %s24, %s40
    %p42 = scmp.eq.s32.totalorder %s16, 0
    %p43 = por %p41, %p42
    %s45 = sadd.s32 %s44, 1
    %p48 = scmp.eq.s32.totalorder %s10, 3
    %p49 = scmp.ne.s32.totalorder %s44, %s46
    %p50 = scmp.eq.s32.totalorder %s10, 0
    %p51 = por %p49, %p50
    %p52 = scmp.ne.s32.totalorder %s44, %s46
    %p53 = scmp.eq.s32.totalorder %s15, 3
    %p54 = por %p52, %p53
    %p55 = scmp.ne.s32.totalorder %s46, %s47
    %p56 = scmp.eq.s32.totalorder %s15, 0
    %p57 = por %p55, %p56
    %p58 = scmp.ne.s32.totalorder %s46, %s47
    %p59 = scmp.eq.s32.totalorder %s16, 3
    %p60 = por %p58, %p59
    %p62 = scmp.ne.s32.totalorder %s47, %s61
    %p63 = scmp.eq.s32.totalorder %s16, 0
    %p64 = por %p62, %p63
    %s66 = sadd.s32 %s65, 1
    %p69 = scmp.eq.s32.totalorder %s10, 3
    %p70 = scmp.ne.s32.totalorder %s65, %s67
    %p71 = scmp.eq.s32.totalorder %s10, 0
    %p72 = por %p70, %p71
    %p73 = scmp.ne.s32.totalorder %s65, %s67
    %p74 = scmp.eq.s32.totalorder %s15, 3
    %p75 = por %p73, %p74
    %p76 = scmp.ne.s32.totalorder %s67, %s68
    %p77 = scmp.eq.s32.totalorder %s15, 0
    %p78 = por %p76, %p77
    %p79 = scmp.ne.s32.totalorder %s67, %s68
    %p80 = scmp.eq.s32.totalorder %s16, 3
    %p81 = por %p79, %p80
    %p83 = scmp.ne.s32.totalorder %s68, %s82
    %p84 = scmp.eq.s32.totalorder %s16, 0
    %p85 = por %p83, %p84
    %s87 = sadd.s32 %s86, 1
    %p90 = scmp.eq.s32.totalorder %s10, 3
    %p91 = scmp.ne.s32.totalorder %s86, %s88
    %p92 = scmp.eq.s32.totalorder %s10, 0
    %p93 = por %p91, %p92
    %p94 = scmp.ne.s32.totalorder %s86, %s88
    %p95 = scmp.eq.s32.totalorder %s15, 3
    %p96 = por %p94, %p95
    %p97 = scmp.ne.s32.totalorder %s88, %s89
    %p98 = scmp.eq.s32.totalorder %s15, 0
    %p99 = por %p97, %p98
    %p100 = scmp.ne.s32.totalorder %s88, %s89
    %p101 = scmp.eq.s32.totalorder %s16, 3
    %p102 = por %p100, %p101
    %p104 = scmp.ne.s32.totalorder %s89, %s103
    %p105 = scmp.eq.s32.totalorder %s16, 0
    %p106 = por %p104, %p105
    %s107 = ssub.s32 %s10, %s17
    %p108 = scmp.eq.s32.totalorder %s107, 0
    %s110 = sadd.s32 %s109, 1
    %s111 = scalar_select %p108, %s109, %s110
    %p114 = pneg %p108
    %p115 = scmp.eq.s32.totalorder %s10, 3
    %p116 = por %p114, %p115
    %p117 = scmp.ne.s32.totalorder %s109, %s112
    %p118 = scmp.eq.s32.totalorder %s10, 0
    %p119 = por %p117, %p118
    %p120 = scmp.ne.s32.totalorder %s109, %s112
    %p121 = scmp.eq.s32.totalorder %s15, 3
    %p122 = por %p120, %p121
    %p123 = scmp.ne.s32.totalorder %s112, %s113
    %p124 = scmp.eq.s32.totalorder %s15, 0
    %p125 = por %p123, %p124
    %p126 = scmp.ne.s32.totalorder %s112, %s113
    %p127 = scmp.eq.s32.totalorder %s16, 3
    %p128 = por %p126, %p127
    %p130 = scmp.ne.s32.totalorder %s113, %s129
    %p131 = scmp.eq.s32.totalorder %s16, 0
    %p132 = por %p130, %p131
    %p133 = scmp.le.s32.totalorder 1, %s10
    %p134 = scmp.lt.s32.totalorder %s10, 5
    %p135 = pnand %p133, %p134
    %p136 = pneg %p135
    // Predicated region
    $region9: #{tpu_custom_call.1} parent=5 // pred_check
      _
    $region10: #{tpu_custom_call.1} parent=5 // pred_check_branch
      %138 = sbr.rel (%p135) target = $region12
    $region11: #{tpu_custom_call.1} parent=5 // pred_region
      %s139 = ssub.s32 %s10, 1
      // Predicated region
      $region13: #{tpu_custom_call.1} parent=11 // pred_check
        %p140 = pneg %p57
      $region14: #{tpu_custom_call.1} parent=11 // pred_check_branch
        %142 = sbr.rel (%p140) target = $region16
      $region15: #{tpu_custom_call.1} parent=11 // pred_region
        _
      $region16: #{tpu_custom_call.1} parent=11 // pred_fallthru
        _
      // Predicated region
      $region17: #{tpu_custom_call.1} parent=11 // pred_check
        %p143 = pneg %p78
      $region18: #{tpu_custom_call.1} parent=11 // pred_check_branch
        %145 = sbr.rel (%p143) target = $region20
      $region19: #{tpu_custom_call.1} parent=11 // pred_region
        _
      $region20: #{tpu_custom_call.1} parent=11 // pred_fallthru
        _
      // Predicated region
      $region21: #{tpu_custom_call.1} parent=11 // pred_check
        %p146 = pneg %p99
      $region22: #{tpu_custom_call.1} parent=11 // pred_check_branch
        %148 = sbr.rel (%p146) target = $region24
      $region23: #{tpu_custom_call.1} parent=11 // pred_region
        _
      $region24: #{tpu_custom_call.1} parent=11 // pred_fallthru
        _
    $region12: #{tpu_custom_call.1} parent=5 // pred_fallthru
      _
    %p149 = scmp.lt.s32.totalorder %s10, 4
    // Predicated region
    $region25: #{tpu_custom_call.1} parent=5 // pred_check
      %p150 = pneg %p149
    $region26: #{tpu_custom_call.1} parent=5 // pred_check_branch
      %152 = sbr.rel (%p150) target = $region28
    $region27: #{tpu_custom_call.1} parent=5 // pred_region
      // Predicated region
      $region29: #{tpu_custom_call.1} parent=27 // pred_check
        %p153 = pneg %p30
      $region30: #{tpu_custom_call.1} parent=27 // pred_check_branch
        %155 = sbr.rel (%p153) target = $region32
      $region31: #{tpu_custom_call.1} parent=27 // pred_region
        %s156 = smul.u32 8, %s10
        %p157 = scmp.lt.s32.totalorder %s156, 31
        %s158 = scalar_select %p157, %s156, 31
        %s159 = smul.addr %s158, 4
        %s160 = scalar_lea.vmem %s0, %s159
        %s161 = smul.u32 8, %s10
      $region32: #{tpu_custom_call.1} parent=27 // pred_fallthru
        _
    $region28: #{tpu_custom_call.1} parent=5 // pred_fallthru
      _
    %p162 = scmp.le.s32.totalorder 1, %s10
    %p163 = scmp.lt.s32.totalorder %s10, 5
    %p164 = pnand %p162, %p163
    %p165 = pneg %p164
    // Predicated region
    $region33: #{tpu_custom_call.1} parent=5 // pred_check
      _
    $region34: #{tpu_custom_call.1} parent=5 // pred_check_branch
      %167 = sbr.rel (%p164) target = $region36
    $region35: #{tpu_custom_call.1} parent=5 // pred_region
      %s168 = ssub.s32 %s10, 1
      %s169 = smul.u32 8, %s15
      %p170 = scmp.lt.s32.totalorder %s169, 31
      %s171 = scalar_select %p170, %s169, 31
      %s172 = smul.addr %s171, 4
      %s173 = scalar_lea.vmem %s0, %s172
      %p174 = pneg %p36
      %p175 = pneg %p33
      %p176 = pneg %p57
      %p177 = pneg %p54
      %p178 = pneg %p78
      %p179 = pneg %p75
      %p180 = pneg %p99
      %p181 = pneg %p96
      %p182 = pneg %p125
      %p183 = pneg %p122
      %s184 = smul.u32 8, %s15
      %p185 = scmp.lt.s32.totalorder %s184, 31
      %s186 = scalar_select %p185, %s184, 31
      %s187 = smul.addr %s186, 8
      %s188 = scalar_lea.vmem %s4, %s187
      %s189 = smul.u32 8, %s15
      %p190 = scmp.lt.s32.totalorder %s189, 31
      %s191 = scalar_select %p190, %s189, 31
      %s192 = smul.addr %s191, 4
      %s193 = scalar_lea.vmem %s0, %s192
      %s194 = smul.u32 8, %s15
      %s195 = smul.u32 8, %s15
      %p196 = scmp.lt.s32.totalorder %s195, 31
      %s197 = scalar_select %p196, %s195, 31
      %s198 = smul.addr %s197, 8
      %s199 = scalar_lea.vmem %s4, %s198
      %s200 = smul.u32 8, %s15
      %v201 = vld [vmem:[%s193] sm:$0xf]
      %v202 = vld [vmem:[%s193 + $0x4] sm:$0xf]
      %v203 = vld [vmem:[%s193 + $0x8] sm:$0xf]
      %v204 = vld [vmem:[%s193 + $0xc] sm:$0xf]
      %v205 = vld [vmem:[%s193 + $0x10] sm:$0xf]
      %v206 = vld [vmem:[%s193 + $0x14] sm:$0xf]
      %v207 = vld [vmem:[%s193 + $0x18] sm:$0xf]
      %v208 = vld [vmem:[%s193 + $0x1c] sm:$0xf]
      %v209 = vld [vmem:[%s2] sm:$0xff]
      %v210 = vld [vmem:[%s1] sm:$0xff]
      %v211 = vld [vmem:[%s1 + $0x8] sm:$0xff]
      %vm212 = vcmask 130048
      %v214 = vsel %vm212, %v201, 0
      %216 = vmatprep.subr.mxu0 0.0
      %217 = vmatpush1.msra.mxu0 %v210
      %218 = vmatprep.subr.mxu0 0.0
      %219 = vmatpush1.msra.mxu0 %v211
      %220 = vmatprep.subr.mxu0 0.0
      %221 = vmatpush1.msra.mxu0 0.0
      %222 = vmatprep.subr.mxu0 0.0
      %223 = vmatpush1.msra.mxu0 0.0
      %224 = vmatprep.subr.mxu0 0.0
      %225 = vmatpush1.msra.mxu0 0.0
      %226 = vmatprep.subr.mxu0 0.0
      %227 = vmatpush1.msra.mxu0 0.0
      %228 = vmatprep.subr.mxu0 0.0
      %229 = vmatpush1.msra.mxu0 0.0
      %230 = vmatprep.subr.mxu0 0.0
      %231 = vmatpush1.msra.mxu0 0.0
      %232 = vmatprep.subr.mxu0 0.0
      %233 = vmatpush1.msra.mxu0 0.0
      %234 = vmatprep.subr.mxu0 0.0
      %235 = vmatpush1.msra.mxu0 0.0
      %236 = vmatprep.subr.mxu0 0.0
      %237 = vmatpush1.msra.mxu0 0.0
      %238 = vmatprep.subr.mxu0 0.0
      %239 = vmatpush1.msra.mxu0 0.0
      %240 = vmatprep.subr.mxu0 0.0
      %241 = vmatpush1.msra.mxu0 0.0
      %242 = vmatprep.subr.mxu0 0.0
      %243 = vmatpush1.msra.mxu0 0.0
      %244 = vmatprep.subr.mxu0 0.0
      %245 = vmatpush1.msra.mxu0 0.0
      %246 = vmatprep.subr.mxu0 0.0
      %247 = vmatpush1.msra.mxu0 0.0
      %248 = vmatprep.subr.mxu0 0.0
      %249 = vmatpush1.msra.mxu0 0.0
      %250 = vmatprep.subr.mxu0 0.0
      %251 = vmatpush1.msra.mxu0 0.0
      %252 = vmatprep.subr.mxu0 0.0
      %253 = vmatpush1.msra.mxu0 0.0
      %254 = vmatprep.subr.mxu0 0.0
      %255 = vmatpush1.msra.mxu0 0.0
      %256 = vmatprep.subr.mxu0 0.0
      %257 = vmatpush1.msra.mxu0 0.0
      %258 = vmatprep.subr.mxu0 0.0
      %259 = vmatpush1.msra.mxu0 0.0
      %260 = vmatprep.subr.mxu0 0.0
      %261 = vmatpush1.msra.mxu0 0.0
      %262 = vmatprep.subr.mxu0 0.0
      %263 = vmatpush1.msra.mxu0 0.0
      %264 = vmatprep.subr.mxu0 0.0
      %265 = vmatpush1.msra.mxu0 0.0
      %266 = vmatprep.subr.mxu0 0.0
      %267 = vmatpush1.msra.mxu0 0.0
      %268 = vmatprep.subr.mxu0 0.0
      %269 = vmatpush1.msra.mxu0 0.0
      %270 = vmatprep.subr.mxu0 0.0
      %271 = vmatpush1.msra.mxu0 0.0
      %272 = vmatprep.subr.mxu0 0.0
      %273 = vmatpush1.msra.mxu0 0.0
      %274 = vmatprep.subr.mxu0 0.0
      %275 = vmatpush1.msra.mxu0 0.0
      %276 = vmatprep.subr.mxu0 0.0
      %277 = vmatpush1.msra.mxu0 0.0
      %278 = vmatprep.subr.mxu0 0.0
      %279 = vmatpush1.msra.mxu0 0.0
      %280 = vmatprep.mubr.f32.mxu0 0.0
      %281 = vmatmul.mubr.f32.gmra.mrb[0].mxu0 %v214
      %v282 = vpop.f32.mrb[0].mxu0
      %v283 = vadd.f32 0.0, %v282
      %v284 = vpop.f32.mrb[0].mxu0
      %285 = vdwg.mxu0
      %v287 = vsel %vm212, %v202, 0
      %289 = vmatprep.subr.mxu0 0.0
      %290 = vmatpush1.msra.mxu0 %v210
      %291 = vmatprep.subr.mxu0 0.0
      %292 = vmatpush1.msra.mxu0 %v211
      %293 = vmatprep.subr.mxu0 0.0
      %294 = vmatpush1.msra.mxu0 0.0
      %295 = vmatprep.subr.mxu0 0.0
      %296 = vmatpush1.msra.mxu0 0.0
      %297 = vmatprep.subr.mxu0 0.0
      %298 = vmatpush1.msra.mxu0 0.0
      %299 = vmatprep.subr.mxu0 0.0
      %300 = vmatpush1.msra.mxu0 0.0
      %301 = vmatprep.subr.mxu0 0.0
      %302 = vmatpush1.msra.mxu0 0.0
      %303 = vmatprep.subr.mxu0 0.0
      %304 = vmatpush1.msra.mxu0 0.0
      %305 = vmatprep.subr.mxu0 0.0
      %306 = vmatpush1.msra.mxu0 0.0
      %307 = vmatprep.subr.mxu0 0.0
      %308 = vmatpush1.msra.mxu0 0.0
      %309 = vmatprep.subr.mxu0 0.0
      %310 = vmatpush1.msra.mxu0 0.0
      %311 = vmatprep.subr.mxu0 0.0
      %312 = vmatpush1.msra.mxu0 0.0
      %313 = vmatprep.subr.mxu0 0.0
      %314 = vmatpush1.msra.mxu0 0.0
      %315 = vmatprep.subr.mxu0 0.0
      %316 = vmatpush1.msra.mxu0 0.0
      %317 = vmatprep.subr.mxu0 0.0
      %318 = vmatpush1.msra.mxu0 0.0
      %319 = vmatprep.subr.mxu0 0.0
      %320 = vmatpush1.msra.mxu0 0.0
      %321 = vmatprep.subr.mxu0 0.0
      %322 = vmatpush1.msra.mxu0 0.0
      %323 = vmatprep.subr.mxu0 0.0
      %324 = vmatpush1.msra.mxu0 0.0
      %325 = vmatprep.subr.mxu0 0.0
      %326 = vmatpush1.msra.mxu0 0.0
      %327 = vmatprep.subr.mxu0 0.0
      %328 = vmatpush1.msra.mxu0 0.0
      %329 = vmatprep.subr.mxu0 0.0
      %330 = vmatpush1.msra.mxu0 0.0
      %331 = vmatprep.subr.mxu0 0.0
      %332 = vmatpush1.msra.mxu0 0.0
      %333 = vmatprep.subr.mxu0 0.0
      %334 = vmatpush1.msra.mxu0 0.0
      %335 = vmatprep.subr.mxu0 0.0
      %336 = vmatpush1.msra.mxu0 0.0
      %337 = vmatprep.subr.mxu0 0.0
      %338 = vmatpush1.msra.mxu0 0.0
      %339 = vmatprep.subr.mxu0 0.0
      %340 = vmatpush1.msra.mxu0 0.0
      %341 = vmatprep.subr.mxu0 0.0
      %342 = vmatpush1.msra.mxu0 0.0
      %343 = vmatprep.subr.mxu0 0.0
      %344 = vmatpush1.msra.mxu0 0.0
      %345 = vmatprep.subr.mxu0 0.0
      %346 = vmatpush1.msra.mxu0 0.0
      %347 = vmatprep.subr.mxu0 0.0
      %348 = vmatpush1.msra.mxu0 0.0
      %349 = vmatprep.subr.mxu0 0.0
      %350 = vmatpush1.msra.mxu0 0.0
      %351 = vmatprep.subr.mxu0 0.0
      %352 = vmatpush1.msra.mxu0 0.0
      %353 = vmatprep.mubr.f32.mxu0 0.0
      %354 = vmatmul.mubr.f32.gmra.mrb[0].mxu0 %v287
      %v355 = vpop.f32.mrb[0].mxu0
      %v356 = vadd.f32 0.0, %v355
      %v357 = vpop.f32.mrb[0].mxu0
      %358 = vdwg.mxu0
      %v360 = vsel %vm212, %v203, 0
      %362 = vmatprep.subr.mxu0 0.0
      %363 = vmatpush1.msra.mxu0 %v210
      %364 = vmatprep.subr.mxu0 0.0
      %365 = vmatpush1.msra.mxu0 %v211
      %366 = vmatprep.subr.mxu0 0.0
      %367 = vmatpush1.msra.mxu0 0.0
      %368 = vmatprep.subr.mxu0 0.0
      %369 = vmatpush1.msra.mxu0 0.0
      %370 = vmatprep.subr.mxu0 0.0
      %371 = vmatpush1.msra.mxu0 0.0
      %372 = vmatprep.subr.mxu0 0.0
      %373 = vmatpush1.msra.mxu0 0.0
      %374 = vmatprep.subr.mxu0 0.0
      %375 = vmatpush1.msra.mxu0 0.0
      %376 = vmatprep.subr.mxu0 0.0
      %377 = vmatpush1.msra.mxu0 0.0
      %378 = vmatprep.subr.mxu0 0.0
      %379 = vmatpush1.msra.mxu0 0.0
      %380 = vmatprep.subr.mxu0 0.0
      %381 = vmatpush1.msra.mxu0 0.0
      %382 = vmatprep.subr.mxu0 0.0
      %383 = vmatpush1.msra.mxu0 0.0
      %384 = vmatprep.subr.mxu0 0.0
      %385 = vmatpush1.msra.mxu0 0.0
      %386 = vmatprep.subr.mxu0 0.0
      %387 = vmatpush1.msra.mxu0 0.0
      %388 = vmatprep.subr.mxu0 0.0
      %389 = vmatpush1.msra.mxu0 0.0
      %390 = vmatprep.subr.mxu0 0.0
      %391 = vmatpush1.msra.mxu0 0.0
      %392 = vmatprep.subr.mxu0 0.0
      %393 = vmatpush1.msra.mxu0 0.0
      %394 = vmatprep.subr.mxu0 0.0
      %395 = vmatpush1.msra.mxu0 0.0
      %396 = vmatprep.subr.mxu0 0.0
      %397 = vmatpush1.msra.mxu0 0.0
      %398 = vmatprep.subr.mxu0 0.0
      %399 = vmatpush1.msra.mxu0 0.0
      %400 = vmatprep.subr.mxu0 0.0
      %401 = vmatpush1.msra.mxu0 0.0
      %402 = vmatprep.subr.mxu0 0.0
      %403 = vmatpush1.msra.mxu0 0.0
      %404 = vmatprep.subr.mxu0 0.0
      %405 = vmatpush1.msra.mxu0 0.0
      %406 = vmatprep.subr.mxu0 0.0
      %407 = vmatpush1.msra.mxu0 0.0
      %408 = vmatprep.subr.mxu0 0.0
      %409 = vmatpush1.msra.mxu0 0.0
      %410 = vmatprep.subr.mxu0 0.0
      %411 = vmatpush1.msra.mxu0 0.0
      %412 = vmatprep.subr.mxu0 0.0
      %413 = vmatpush1.msra.mxu0 0.0
      %414 = vmatprep.subr.mxu0 0.0
      %415 = vmatpush1.msra.mxu0 0.0
      %416 = vmatprep.subr.mxu0 0.0
      %417 = vmatpush1.msra.mxu0 0.0
      %418 = vmatprep.subr.mxu0 0.0
      %419 = vmatpush1.msra.mxu0 0.0
      %420 = vmatprep.subr.mxu0 0.0
      %421 = vmatpush1.msra.mxu0 0.0
      %422 = vmatprep.subr.mxu0 0.0
      %423 = vmatpush1.msra.mxu0 0.0
      %424 = vmatprep.subr.mxu0 0.0
      %425 = vmatpush1.msra.mxu0 0.0
      %426 = vmatprep.mubr.f32.mxu0 0.0
      %427 = vmatmul.mubr.f32.gmra.mrb[0].mxu0 %v360
      %v428 = vpop.f32.mrb[0].mxu0
      %v429 = vadd.f32 0.0, %v428
      %v430 = vpop.f32.mrb[0].mxu0
      %431 = vdwg.mxu0
      %v433 = vsel %vm212, %v204, 0
      %435 = vmatprep.subr.mxu0 0.0
      %436 = vmatpush1.msra.mxu0 %v210
      %437 = vmatprep.subr.mxu0 0.0
      %438 = vmatpush1.msra.mxu0 %v211
      %439 = vmatprep.subr.mxu0 0.0
      %440 = vmatpush1.msra.mxu0 0.0
      %441 = vmatprep.subr.mxu0 0.0
      %442 = vmatpush1.msra.mxu0 0.0
      %443 = vmatprep.subr.mxu0 0.0
      %444 = vmatpush1.msra.mxu0 0.0
      %445 = vmatprep.subr.mxu0 0.0
      %446 = vmatpush1.msra.mxu0 0.0
      %447 = vmatprep.subr.mxu0 0.0
      %448 = vmatpush1.msra.mxu0 0.0
      %449 = vmatprep.subr.mxu0 0.0
      %450 = vmatpush1.msra.mxu0 0.0
      %451 = vmatprep.subr.mxu0 0.0
      %452 = vmatpush1.msra.mxu0 0.0
      %453 = vmatprep.subr.mxu0 0.0
      %454 = vmatpush1.msra.mxu0 0.0
      %455 = vmatprep.subr.mxu0 0.0
      %456 = vmatpush1.msra.mxu0 0.0
      %457 = vmatprep.subr.mxu0 0.0
      %458 = vmatpush1.msra.mxu0 0.0
      %459 = vmatprep.subr.mxu0 0.0
      %460 = vmatpush1.msra.mxu0 0.0
      %461 = vmatprep.subr.mxu0 0.0
      %462 = vmatpush1.msra.mxu0 0.0
      %463 = vmatprep.subr.mxu0 0.0
      %464 = vmatpush1.msra.mxu0 0.0
      %465 = vmatprep.subr.mxu0 0.0
      %466 = vmatpush1.msra.mxu0 0.0
      %467 = vmatprep.subr.mxu0 0.0
      %468 = vmatpush1.msra.mxu0 0.0
      %469 = vmatprep.subr.mxu0 0.0
      %470 = vmatpush1.msra.mxu0 0.0
      %471 = vmatprep.subr.mxu0 0.0
      %472 = vmatpush1.msra.mxu0 0.0
      %473 = vmatprep.subr.mxu0 0.0
      %474 = vmatpush1.msra.mxu0 0.0
      %475 = vmatprep.subr.mxu0 0.0
      %476 = vmatpush1.msra.mxu0 0.0
      %477 = vmatprep.subr.mxu0 0.0
      %478 = vmatpush1.msra.mxu0 0.0
      %479 = vmatprep.subr.mxu0 0.0
      %480 = vmatpush1.msra.mxu0 0.0
      %481 = vmatprep.subr.mxu0 0.0
      %482 = vmatpush1.msra.mxu0 0.0
      %483 = vmatprep.subr.mxu0 0.0
      %484 = vmatpush1.msra.mxu0 0.0
      %485 = vmatprep.subr.mxu0 0.0
      %486 = vmatpush1.msra.mxu0 0.0
      %487 = vmatprep.subr.mxu0 0.0
      %488 = vmatpush1.msra.mxu0 0.0
      %489 = vmatprep.subr.mxu0 0.0
      %490 = vmatpush1.msra.mxu0 0.0
      %491 = vmatprep.subr.mxu0 0.0
      %492 = vmatpush1.msra.mxu0 0.0
      %493 = vmatprep.subr.mxu0 0.0
      %494 = vmatpush1.msra.mxu0 0.0
      %495 = vmatprep.subr.mxu0 0.0
      %496 = vmatpush1.msra.mxu0 0.0
      %497 = vmatprep.subr.mxu0 0.0
      %498 = vmatpush1.msra.mxu0 0.0
      %499 = vmatprep.mubr.f32.mxu0 0.0
      %500 = vmatmul.mubr.f32.gmra.mrb[0].mxu0 %v433
      %v501 = vpop.f32.mrb[0].mxu0
      %v502 = vadd.f32 0.0, %v501
      %v503 = vpop.f32.mrb[0].mxu0
      %504 = vdwg.mxu0
      %v506 = vsel %vm212, %v205, 0
      %508 = vmatprep.subr.mxu0 0.0
      %509 = vmatpush1.msra.mxu0 %v210
      %510 = vmatprep.subr.mxu0 0.0
      %511 = vmatpush1.msra.mxu0 %v211
      %512 = vmatprep.subr.mxu0 0.0
      %513 = vmatpush1.msra.mxu0 0.0
      %514 = vmatprep.subr.mxu0 0.0
      %515 = vmatpush1.msra.mxu0 0.0
      %516 = vmatprep.subr.mxu0 0.0
      %517 = vmatpush1.msra.mxu0 0.0
      %518 = vmatprep.subr.mxu0 0.0
      %519 = vmatpush1.msra.mxu0 0.0
      %520 = vmatprep.subr.mxu0 0.0
      %521 = vmatpush1.msra.mxu0 0.0
      %522 = vmatprep.subr.mxu0 0.0
      %523 = vmatpush1.msra.mxu0 0.0
      %524 = vmatprep.subr.mxu0 0.0
      %525 = vmatpush1.msra.mxu0 0.0
      %526 = vmatprep.subr.mxu0 0.0
      %527 = vmatpush1.msra.mxu0 0.0
      %528 = vmatprep.subr.mxu0 0.0
      %529 = vmatpush1.msra.mxu0 0.0
      %530 = vmatprep.subr.mxu0 0.0
      %531 = vmatpush1.msra.mxu0 0.0
      %532 = vmatprep.subr.mxu0 0.0
      %533 = vmatpush1.msra.mxu0 0.0
      %534 = vmatprep.subr.mxu0 0.0
      %535 = vmatpush1.msra.mxu0 0.0
      %536 = vmatprep.subr.mxu0 0.0
      %537 = vmatpush1.msra.mxu0 0.0
      %538 = vmatprep.subr.mxu0 0.0
      %539 = vmatpush1.msra.mxu0 0.0
      %540 = vmatprep.subr.mxu0 0.0
      %541 = vmatpush1.msra.mxu0 0.0
      %542 = vmatprep.subr.mxu0 0.0
      %543 = vmatpush1.msra.mxu0 0.0
      %544 = vmatprep.subr.mxu0 0.0
      %545 = vmatpush1.msra.mxu0 0.0
      %546 = vmatprep.subr.mxu0 0.0
      %547 = vmatpush1.msra.mxu0 0.0
      %548 = vmatprep.subr.mxu0 0.0
      %549 = vmatpush1.msra.mxu0 0.0
      %550 = vmatprep.subr.mxu0 0.0
      %551 = vmatpush1.msra.mxu0 0.0
      %552 = vmatprep.subr.mxu0 0.0
      %553 = vmatpush1.msra.mxu0 0.0
      %554 = vmatprep.subr.mxu0 0.0
      %555 = vmatpush1.msra.mxu0 0.0
      %556 = vmatprep.subr.mxu0 0.0
      %557 = vmatpush1.msra.mxu0 0.0
      %558 = vmatprep.subr.mxu0 0.0
      %559 = vmatpush1.msra.mxu0 0.0
      %560 = vmatprep.subr.mxu0 0.0
      %561 = vmatpush1.msra.mxu0 0.0
      %562 = vmatprep.subr.mxu0 0.0
      %563 = vmatpush1.msra.mxu0 0.0
      %564 = vmatprep.subr.mxu0 0.0
      %565 = vmatpush1.msra.mxu0 0.0
      %566 = vmatprep.subr.mxu0 0.0
      %567 = vmatpush1.msra.mxu0 0.0
      %568 = vmatprep.subr.mxu0 0.0
      %569 = vmatpush1.msra.mxu0 0.0
      %570 = vmatprep.subr.mxu0 0.0
      %571 = vmatpush1.msra.mxu0 0.0
      %572 = vmatprep.mubr.f32.mxu0 0.0
      %573 = vmatmul.mubr.f32.gmra.mrb[0].mxu0 %v506
      %v574 = vpop.f32.mrb[0].mxu0
      %v575 = vadd.f32 0.0, %v574
      %v576 = vpop.f32.mrb[0].mxu0
      %577 = vdwg.mxu0
      %v579 = vsel %vm212, %v206, 0
      %581 = vmatprep.subr.mxu0 0.0
      %582 = vmatpush1.msra.mxu0 %v210
      %583 = vmatprep.subr.mxu0 0.0
      %584 = vmatpush1.msra.mxu0 %v211
      %585 = vmatprep.subr.mxu0 0.0
      %586 = vmatpush1.msra.mxu0 0.0
      %587 = vmatprep.subr.mxu0 0.0
      %588 = vmatpush1.msra.mxu0 0.0
      %589 = vmatprep.subr.mxu0 0.0
      %590 = vmatpush1.msra.mxu0 0.0
      %591 = vmatprep.subr.mxu0 0.0
      %592 = vmatpush1.msra.mxu0 0.0
      %593 = vmatprep.subr.mxu0 0.0
      %594 = vmatpush1.msra.mxu0 0.0
      %595 = vmatprep.subr.mxu0 0.0
      %596 = vmatpush1.msra.mxu0 0.0
      %597 = vmatprep.subr.mxu0 0.0
      %598 = vmatpush1.msra.mxu0 0.0
      %599 = vmatprep.subr.mxu0 0.0
      %600 = vmatpush1.msra.mxu0 0.0
      %601 = vmatprep.subr.mxu0 0.0
      %602 = vmatpush1.msra.mxu0 0.0
      %603 = vmatprep.subr.mxu0 0.0
      %604 = vmatpush1.msra.mxu0 0.0
      %605 = vmatprep.subr.mxu0 0.0
      %606 = vmatpush1.msra.mxu0 0.0
      %607 = vmatprep.subr.mxu0 0.0
      %608 = vmatpush1.msra.mxu0 0.0
      %609 = vmatprep.subr.mxu0 0.0
      %610 = vmatpush1.msra.mxu0 0.0
      %611 = vmatprep.subr.mxu0 0.0
      %612 = vmatpush1.msra.mxu0 0.0
      %613 = vmatprep.subr.mxu0 0.0
      %614 = vmatpush1.msra.mxu0 0.0
      %615 = vmatprep.subr.mxu0 0.0
      %616 = vmatpush1.msra.mxu0 0.0
      %617 = vmatprep.subr.mxu0 0.0
      %618 = vmatpush1.msra.mxu0 0.0
      %619 = vmatprep.subr.mxu0 0.0
      %620 = vmatpush1.msra.mxu0 0.0
      %621 = vmatprep.subr.mxu0 0.0
      %622 = vmatpush1.msra.mxu0 0.0
      %623 = vmatprep.subr.mxu0 0.0
      %624 = vmatpush1.msra.mxu0 0.0
      %625 = vmatprep.subr.mxu0 0.0
      %626 = vmatpush1.msra.mxu0 0.0
      %627 = vmatprep.subr.mxu0 0.0
      %628 = vmatpush1.msra.mxu0 0.0
      %629 = vmatprep.subr.mxu0 0.0
      %630 = vmatpush1.msra.mxu0 0.0
      %631 = vmatprep.subr.mxu0 0.0
      %632 = vmatpush1.msra.mxu0 0.0
      %633 = vmatprep.subr.mxu0 0.0
      %634 = vmatpush1.msra.mxu0 0.0
      %635 = vmatprep.subr.mxu0 0.0
      %636 = vmatpush1.msra.mxu0 0.0
      %637 = vmatprep.subr.mxu0 0.0
      %638 = vmatpush1.msra.mxu0 0.0
      %639 = vmatprep.subr.mxu0 0.0
      %640 = vmatpush1.msra.mxu0 0.0
      %641 = vmatprep.subr.mxu0 0.0
      %642 = vmatpush1.msra.mxu0 0.0
      %643 = vmatprep.subr.mxu0 0.0
      %644 = vmatpush1.msra.mxu0 0.0
      %645 = vmatprep.mubr.f32.mxu0 0.0
      %646 = vmatmul.mubr.f32.gmra.mrb[0].mxu0 %v579
      %v647 = vpop.f32.mrb[0].mxu0
      %v648 = vadd.f32 0.0, %v647
      %v649 = vpop.f32.mrb[0].mxu0
      %650 = vdwg.mxu0
      %v652 = vsel %vm212, %v207, 0
      %654 = vmatprep.subr.mxu0 0.0
      %655 = vmatpush1.msra.mxu0 %v210
      %656 = vmatprep.subr.mxu0 0.0
      %657 = vmatpush1.msra.mxu0 %v211
      %658 = vmatprep.subr.mxu0 0.0
      %659 = vmatpush1.msra.mxu0 0.0
      %660 = vmatprep.subr.mxu0 0.0
      %661 = vmatpush1.msra.mxu0 0.0
      %662 = vmatprep.subr.mxu0 0.0
      %663 = vmatpush1.msra.mxu0 0.0
      %664 = vmatprep.subr.mxu0 0.0
      %665 = vmatpush1.msra.mxu0 0.0
      %666 = vmatprep.subr.mxu0 0.0
      %667 = vmatpush1.msra.mxu0 0.0
      %668 = vmatprep.subr.mxu0 0.0
      %669 = vmatpush1.msra.mxu0 0.0
      %670 = vmatprep.subr.mxu0 0.0
      %671 = vmatpush1.msra.mxu0 0.0
      %672 = vmatprep.subr.mxu0 0.0
      %673 = vmatpush1.msra.mxu0 0.0
      %674 = vmatprep.subr.mxu0 0.0
      %675 = vmatpush1.msra.mxu0 0.0
      %676 = vmatprep.subr.mxu0 0.0
      %677 = vmatpush1.msra.mxu0 0.0
      %678 = vmatprep.subr.mxu0 0.0
      %679 = vmatpush1.msra.mxu0 0.0
      %680 = vmatprep.subr.mxu0 0.0
      %681 = vmatpush1.msra.mxu0 0.0
      %682 = vmatprep.subr.mxu0 0.0
      %683 = vmatpush1.msra.mxu0 0.0
      %684 = vmatprep.subr.mxu0 0.0
      %685 = vmatpush1.msra.mxu0 0.0
      %686 = vmatprep.subr.mxu0 0.0
      %687 = vmatpush1.msra.mxu0 0.0
      %688 = vmatprep.subr.mxu0 0.0
      %689 = vmatpush1.msra.mxu0 0.0
      %690 = vmatprep.subr.mxu0 0.0
      %691 = vmatpush1.msra.mxu0 0.0
      %692 = vmatprep.subr.mxu0 0.0
      %693 = vmatpush1.msra.mxu0 0.0
      %694 = vmatprep.subr.mxu0 0.0
      %695 = vmatpush1.msra.mxu0 0.0
      %696 = vmatprep.subr.mxu0 0.0
      %697 = vmatpush1.msra.mxu0 0.0
      %698 = vmatprep.subr.mxu0 0.0
      %699 = vmatpush1.msra.mxu0 0.0
      %700 = vmatprep.subr.mxu0 0.0
      %701 = vmatpush1.msra.mxu0 0.0
      %702 = vmatprep.subr.mxu0 0.0
      %703 = vmatpush1.msra.mxu0 0.0
      %704 = vmatprep.subr.mxu0 0.0
      %705 = vmatpush1.msra.mxu0 0.0
      %706 = vmatprep.subr.mxu0 0.0
      %707 = vmatpush1.msra.mxu0 0.0
      %708 = vmatprep.subr.mxu0 0.0
      %709 = vmatpush1.msra.mxu0 0.0
      %710 = vmatprep.subr.mxu0 0.0
      %711 = vmatpush1.msra.mxu0 0.0
      %712 = vmatprep.subr.mxu0 0.0
      %713 = vmatpush1.msra.mxu0 0.0
      %714 = vmatprep.subr.mxu0 0.0
      %715 = vmatpush1.msra.mxu0 0.0
      %716 = vmatprep.subr.mxu0 0.0
      %717 = vmatpush1.msra.mxu0 0.0
      %718 = vmatprep.mubr.f32.mxu0 0.0
      %719 = vmatmul.mubr.f32.gmra.mrb[0].mxu0 %v652
      %v720 = vpop.f32.mrb[0].mxu0
      %v721 = vadd.f32 0.0, %v720
      %v722 = vpop.f32.mrb[0].mxu0
      %723 = vdwg.mxu0
      %v725 = vsel %vm212, %v208, 0
      %727 = vmatprep.subr.mxu0 0.0
      %728 = vmatpush1.msra.mxu0 %v210
      %729 = vmatprep.subr.mxu0 0.0
      %730 = vmatpush1.msra.mxu0 %v211
      %731 = vmatprep.subr.mxu0 0.0
      %732 = vmatpush1.msra.mxu0 0.0
      %733 = vmatprep.subr.mxu0 0.0
      %734 = vmatpush1.msra.mxu0 0.0
      %735 = vmatprep.subr.mxu0 0.0
      %736 = vmatpush1.msra.mxu0 0.0
      %737 = vmatprep.subr.mxu0 0.0
      %738 = vmatpush1.msra.mxu0 0.0
      %739 = vmatprep.subr.mxu0 0.0
      %740 = vmatpush1.msra.mxu0 0.0
      %741 = vmatprep.subr.mxu0 0.0
      %742 = vmatpush1.msra.mxu0 0.0
      %743 = vmatprep.subr.mxu0 0.0
      %744 = vmatpush1.msra.mxu0 0.0
      %745 = vmatprep.subr.mxu0 0.0
      %746 = vmatpush1.msra.mxu0 0.0
      %747 = vmatprep.subr.mxu0 0.0
      %748 = vmatpush1.msra.mxu0 0.0
      %749 = vmatprep.subr.mxu0 0.0
      %750 = vmatpush1.msra.mxu0 0.0
      %751 = vmatprep.subr.mxu0 0.0
      %752 = vmatpush1.msra.mxu0 0.0
      %753 = vmatprep.subr.mxu0 0.0
      %754 = vmatpush1.msra.mxu0 0.0
      %755 = vmatprep.subr.mxu0 0.0
      %756 = vmatpush1.msra.mxu0 0.0
      %757 = vmatprep.subr.mxu0 0.0
      %758 = vmatpush1.msra.mxu0 0.0
      %759 = vmatprep.subr.mxu0 0.0
      %760 = vmatpush1.msra.mxu0 0.0
      %761 = vmatprep.subr.mxu0 0.0
      %762 = vmatpush1.msra.mxu0 0.0
      %763 = vmatprep.subr.mxu0 0.0
      %764 = vmatpush1.msra.mxu0 0.0
      %765 = vmatprep.subr.mxu0 0.0
      %766 = vmatpush1.msra.mxu0 0.0
      %767 = vmatprep.subr.mxu0 0.0
      %768 = vmatpush1.msra.mxu0 0.0
      %769 = vmatprep.subr.mxu0 0.0
      %770 = vmatpush1.msra.mxu0 0.0
      %771 = vmatprep.subr.mxu0 0.0
      %772 = vmatpush1.msra.mxu0 0.0
      %773 = vmatprep.subr.mxu0 0.0
      %774 = vmatpush1.msra.mxu0 0.0
      %775 = vmatprep.subr.mxu0 0.0
      %776 = vmatpush1.msra.mxu0 0.0
      %777 = vmatprep.subr.mxu0 0.0
      %778 = vmatpush1.msra.mxu0 0.0
      %779 = vmatprep.subr.mxu0 0.0
      %780 = vmatpush1.msra.mxu0 0.0
      %781 = vmatprep.subr.mxu0 0.0
      %782 = vmatpush1.msra.mxu0 0.0
      %783 = vmatprep.subr.mxu0 0.0
      %784 = vmatpush1.msra.mxu0 0.0
      %785 = vmatprep.subr.mxu0 0.0
      %786 = vmatpush1.msra.mxu0 0.0
      %787 = vmatprep.subr.mxu0 0.0
      %788 = vmatpush1.msra.mxu0 0.0
      %789 = vmatprep.subr.mxu0 0.0
      %790 = vmatpush1.msra.mxu0 0.0
      %791 = vmatprep.mubr.f32.mxu0 0.0
      %792 = vmatmul.mubr.f32.gmra.mrb[0].mxu0 %v725
      %v793 = vpop.f32.mrb[0].mxu0
      %v794 = vadd.f32 0.0, %v793
      %v795 = vpop.f32.mrb[0].mxu0
      %796 = vdwg.mxu0
      %s797 = scalar_lea.vmem %s2, 8
      %v798 = vld [vmem:[%s797] sm:$0xff]
      %vm799 = vcmask 31744
      %v801 = vsel %vm799, %v798, 0
      %vm803 = vcmask 1043456
      %v805 = vsel %vm803, %v283, 0
      %807 = vmatprep.subr.mxu0 0.0
      %808 = vmatpush1.msra.mxu0 %v805
      %809 = vmatprep.subr.mxu0 0.0
      %810 = vmatpush1.msra.mxu0 0.0
      %811 = vmatprep.subr.mxu0 0.0
      %812 = vmatpush1.msra.mxu0 0.0
      %813 = vmatprep.subr.mxu0 0.0
      %814 = vmatpush1.msra.mxu0 0.0
      %815 = vmatprep.subr.mxu0 0.0
      %816 = vmatpush1.msra.mxu0 0.0
      %817 = vmatprep.subr.mxu0 0.0
      %818 = vmatpush1.msra.mxu0 0.0
      %819 = vmatprep.subr.mxu0 0.0
      %820 = vmatpush1.msra.mxu0 0.0
      %821 = vmatprep.subr.mxu0 0.0
      %822 = vmatpush1.msra.mxu0 0.0
      %823 = vmatprep.subr.mxu0 0.0
      %824 = vmatpush1.msra.mxu0 0.0
      %825 = vmatprep.subr.mxu0 0.0
      %826 = vmatpush1.msra.mxu0 0.0
      %827 = vmatprep.subr.mxu0 0.0
      %828 = vmatpush1.msra.mxu0 0.0
      %829 = vmatprep.subr.mxu0 0.0
      %830 = vmatpush1.msra.mxu0 0.0
      %831 = vmatprep.subr.mxu0 0.0
      %832 = vmatpush1.msra.mxu0 0.0
      %833 = vmatprep.subr.mxu0 0.0
      %834 = vmatpush1.msra.mxu0 0.0
      %835 = vmatprep.subr.mxu0 0.0
      %836 = vmatpush1.msra.mxu0 0.0
      %837 = vmatprep.subr.mxu0 0.0
      %838 = vmatpush1.msra.mxu0 0.0
      %839 = vmatprep.subr.mxu0 0.0
      %840 = vmatpush1.msra.mxu0 0.0
      %841 = vmatprep.subr.mxu0 0.0
      %842 = vmatpush1.msra.mxu0 0.0
      %843 = vmatprep.subr.mxu0 0.0
      %844 = vmatpush1.msra.mxu0 0.0
      %845 = vmatprep.subr.mxu0 0.0
      %846 = vmatpush1.msra.mxu0 0.0
      %847 = vmatprep.subr.mxu0 0.0
      %848 = vmatpush1.msra.mxu0 0.0
      %849 = vmatprep.subr.mxu0 0.0
      %850 = vmatpush1.msra.mxu0 0.0
      %851 = vmatprep.subr.mxu0 0.0
      %852 = vmatpush1.msra.mxu0 0.0
      %853 = vmatprep.subr.mxu0 0.0
      %854 = vmatpush1.msra.mxu0 0.0
      %855 = vmatprep.subr.mxu0 0.0
      %856 = vmatpush1.msra.mxu0 0.0
      %857 = vmatprep.subr.mxu0 0.0
      %858 = vmatpush1.msra.mxu0 0.0
      %859 = vmatprep.subr.mxu0 0.0
      %860 = vmatpush1.msra.mxu0 0.0
      %861 = vmatprep.subr.mxu0 0.0
      %862 = vmatpush1.msra.mxu0 0.0
      %863 = vmatprep.subr.mxu0 0.0
      %864 = vmatpush1.msra.mxu0 0.0
      %865 = vmatprep.subr.mxu0 0.0
      %866 = vmatpush1.msra.mxu0 0.0
      %867 = vmatprep.subr.mxu0 0.0
      %868 = vmatpush1.msra.mxu0 0.0
      %869 = vmatprep.subr.mxu0 0.0
      %870 = vmatpush1.msra.mxu0 0.0
      %871 = vmatprep.mubr.f32.mxu0 0.0
      %872 = vmatmul.mubr.f32.gmra.mrb[0].mxu0 %v801
      %v873 = vpop.f32.mrb[0].mxu0
      %v874 = vadd.f32 0.0, %v873
      %v875 = vpop.f32.mrb[0].mxu0
      %876 = vdwg.mxu0
      %v878 = vsel %vm803, %v356, 0
      %880 = vmatprep.subr.mxu0 0.0
      %881 = vmatpush1.msra.mxu0 %v878
      %882 = vmatprep.subr.mxu0 0.0
      %883 = vmatpush1.msra.mxu0 0.0
      %884 = vmatprep.subr.mxu0 0.0
      %885 = vmatpush1.msra.mxu0 0.0
      %886 = vmatprep.subr.mxu0 0.0
      %887 = vmatpush1.msra.mxu0 0.0
      %888 = vmatprep.subr.mxu0 0.0
      %889 = vmatpush1.msra.mxu0 0.0
      %890 = vmatprep.subr.mxu0 0.0
      %891 = vmatpush1.msra.mxu0 0.0
      %892 = vmatprep.subr.mxu0 0.0
      %893 = vmatpush1.msra.mxu0 0.0
      %894 = vmatprep.subr.mxu0 0.0
      %895 = vmatpush1.msra.mxu0 0.0
      %896 = vmatprep.subr.mxu0 0.0
      %897 = vmatpush1.msra.mxu0 0.0
      %898 = vmatprep.subr.mxu0 0.0
      %899 = vmatpush1.msra.mxu0 0.0
      %900 = vmatprep.subr.mxu0 0.0
      %901 = vmatpush1.msra.mxu0 0.0
      %902 = vmatprep.subr.mxu0 0.0
      %903 = vmatpush1.msra.mxu0 0.0
      %904 = vmatprep.subr.mxu0 0.0
      %905 = vmatpush1.msra.mxu0 0.0
      %906 = vmatprep.subr.mxu0 0.0
      %907 = vmatpush1.msra.mxu0 0.0
      %908 = vmatprep.subr.mxu0 0.0
      %909 = vmatpush1.msra.mxu0 0.0
      %910 = vmatprep.subr.mxu0 0.0
      %911 = vmatpush1.msra.mxu0 0.0
      %912 = vmatprep.subr.mxu0 0.0
      %913 = vmatpush1.msra.mxu0 0.0
      %914 = vmatprep.subr.mxu0 0.0
      %915 = vmatpush1.msra.mxu0 0.0
      %916 = vmatprep.subr.mxu0 0.0
      %917 = vmatpush1.msra.mxu0 0.0
      %918 = vmatprep.subr.mxu0 0.0
      %919 = vmatpush1.msra.mxu0 0.0
      %920 = vmatprep.subr.mxu0 0.0
      %921 = vmatpush1.msra.mxu0 0.0
      %922 = vmatprep.subr.mxu0 0.0
      %923 = vmatpush1.msra.mxu0 0.0
      %924 = vmatprep.subr.mxu0 0.0
      %925 = vmatpush1.msra.mxu0 0.0
      %926 = vmatprep.subr.mxu0 0.0
      %927 = vmatpush1.msra.mxu0 0.0
      %928 = vmatprep.subr.mxu0 0.0
      %929 = vmatpush1.msra.mxu0 0.0
      %930 = vmatprep.subr.mxu0 0.0
      %931 = vmatpush1.msra.mxu0 0.0
      %932 = vmatprep.subr.mxu0 0.0
      %933 = vmatpush1.msra.mxu0 0.0
      %934 = vmatprep.subr.mxu0 0.0
      %935 = vmatpush1.msra.mxu0 0.0
      %936 = vmatprep.subr.mxu0 0.0
      %937 = vmatpush1.msra.mxu0 0.0
      %938 = vmatprep.subr.mxu0 0.0
      %939 = vmatpush1.msra.mxu0 0.0
      %940 = vmatprep.subr.mxu0 0.0
      %941 = vmatpush1.msra.mxu0 0.0
      %942 = vmatprep.subr.mxu0 0.0
      %943 = vmatpush1.msra.mxu0 0.0
      %944 = vmatprep.mubr.f32.mxu0 0.0
      %945 = vmatmul.mubr.f32.gmra.mrb[0].mxu0 %v801
      %v946 = vpop.f32.mrb[0].mxu0
      %v947 = vadd.f32 0.0, %v946
      %v948 = vpop.f32.mrb[0].mxu0
      %949 = vdwg.mxu0
      %v951 = vsel %vm803, %v429, 0
      %953 = vmatprep.subr.mxu0 0.0
      %954 = vmatpush1.msra.mxu0 %v951
      %955 = vmatprep.subr.mxu0 0.0
      %956 = vmatpush1.msra.mxu0 0.0
      %957 = vmatprep.subr.mxu0 0.0
      %958 = vmatpush1.msra.mxu0 0.0
      %959 = vmatprep.subr.mxu0 0.0
      %960 = vmatpush1.msra.mxu0 0.0
      %961 = vmatprep.subr.mxu0 0.0
      %962 = vmatpush1.msra.mxu0 0.0
      %963 = vmatprep.subr.mxu0 0.0
      %964 = vmatpush1.msra.mxu0 0.0
      %965 = vmatprep.subr.mxu0 0.0
      %966 = vmatpush1.msra.mxu0 0.0
      %967 = vmatprep.subr.mxu0 0.0
      %968 = vmatpush1.msra.mxu0 0.0
      %969 = vmatprep.subr.mxu0 0.0
      %970 = vmatpush1.msra.mxu0 0.0
      %971 = vmatprep.subr.mxu0 0.0
      %972 = vmatpush1.msra.mxu0 0.0
      %973 = vmatprep.subr.mxu0 0.0
      %974 = vmatpush1.msra.mxu0 0.0
      %975 = vmatprep.subr.mxu0 0.0
      %976 = vmatpush1.msra.mxu0 0.0
      %977 = vmatprep.subr.mxu0 0.0
      %978 = vmatpush1.msra.mxu0 0.0
      %979 = vmatprep.subr.mxu0 0.0
      %980 = vmatpush1.msra.mxu0 0.0
      %981 = vmatprep.subr.mxu0 0.0
      %982 = vmatpush1.msra.mxu0 0.0
      %983 = vmatprep.subr.mxu0 0.0
      %984 = vmatpush1.msra.mxu0 0.0
      %985 = vmatprep.subr.mxu0 0.0
      %986 = vmatpush1.msra.mxu0 0.0
      %987 = vmatprep.subr.mxu0 0.0
      %988 = vmatpush1.msra.mxu0 0.0
      %989 = vmatprep.subr.mxu0 0.0
      %990 = vmatpush1.msra.mxu0 0.0
      %991 = vmatprep.subr.mxu0 0.0
      %992 = vmatpush1.msra.mxu0 0.0
      %993 = vmatprep.subr.mxu0 0.0
      %994 = vmatpush1.msra.mxu0 0.0
      %995 = vmatprep.subr.mxu0 0.0
      %996 = vmatpush1.msra.mxu0 0.0
      %997 = vmatprep.subr.mxu0 0.0
      %998 = vmatpush1.msra.mxu0 0.0
      %999 = vmatprep.subr.mxu0 0.0
      %1000 = vmatpush1.msra.mxu0 0.0
      %1001 = vmatprep.subr.mxu0 0.0
      %1002 = vmatpush1.msra.mxu0 0.0
      %1003 = vmatprep.subr.mxu0 0.0
      %1004 = vmatpush1.msra.mxu0 0.0
      %1005 = vmatprep.subr.mxu0 0.0
      %1006 = vmatpush1.msra.mxu0 0.0
      %1007 = vmatprep.subr.mxu0 0.0
      %1008 = vmatpush1.msra.mxu0 0.0
      %1009 = vmatprep.subr.mxu0 0.0
      %1010 = vmatpush1.msra.mxu0 0.0
      %1011 = vmatprep.subr.mxu0 0.0
      %1012 = vmatpush1.msra.mxu0 0.0
      %1013 = vmatprep.subr.mxu0 0.0
      %1014 = vmatpush1.msra.mxu0 0.0
      %1015 = vmatprep.subr.mxu0 0.0
      %1016 = vmatpush1.msra.mxu0 0.0
      %1017 = vmatprep.mubr.f32.mxu0 0.0
      %1018 = vmatmul.mubr.f32.gmra.mrb[0].mxu0 %v801
      %v1019 = vpop.f32.mrb[0].mxu0
      %v1020 = vadd.f32 0.0, %v1019
      %v1021 = vpop.f32.mrb[0].mxu0
      %1022 = vdwg.mxu0
      %v1024 = vsel %vm803, %v502, 0
      %1026 = vmatprep.subr.mxu0 0.0
      %1027 = vmatpush1.msra.mxu0 %v1024
      %1028 = vmatprep.subr.mxu0 0.0
      %1029 = vmatpush1.msra.mxu0 0.0
      %1030 = vmatprep.subr.mxu0 0.0
      %1031 = vmatpush1.msra.mxu0 0.0
      %1032 = vmatprep.subr.mxu0 0.0
      %1033 = vmatpush1.msra.mxu0 0.0
      %1034 = vmatprep.subr.mxu0 0.0
      %1035 = vmatpush1.msra.mxu0 0.0
      %1036 = vmatprep.subr.mxu0 0.0
      %1037 = vmatpush1.msra.mxu0 0.0
      %1038 = vmatprep.subr.mxu0 0.0
      %1039 = vmatpush1.msra.mxu0 0.0
      %1040 = vmatprep.subr.mxu0 0.0
      %1041 = vmatpush1.msra.mxu0 0.0
      %1042 = vmatprep.subr.mxu0 0.0
      %1043 = vmatpush1.msra.mxu0 0.0
      %1044 = vmatprep.subr.mxu0 0.0
      %1045 = vmatpush1.msra.mxu0 0.0
      %1046 = vmatprep.subr.mxu0 0.0
      %1047 = vmatpush1.msra.mxu0 0.0
      %1048 = vmatprep.subr.mxu0 0.0
      %1049 = vmatpush1.msra.mxu0 0.0
      %1050 = vmatprep.subr.mxu0 0.0
      %1051 = vmatpush1.msra.mxu0 0.0
      %1052 = vmatprep.subr.mxu0 0.0
      %1053 = vmatpush1.msra.mxu0 0.0
      %1054 = vmatprep.subr.mxu0 0.0
      %1055 = vmatpush1.msra.mxu0 0.0
      %1056 = vmatprep.subr.mxu0 0.0
      %1057 = vmatpush1.msra.mxu0 0.0
      %1058 = vmatprep.subr.mxu0 0.0
      %1059 = vmatpush1.msra.mxu0 0.0
      %1060 = vmatprep.subr.mxu0 0.0
      %1061 = vmatpush1.msra.mxu0 0.0
      %1062 = vmatprep.subr.mxu0 0.0
      %1063 = vmatpush1.msra.mxu0 0.0
      %1064 = vmatprep.subr.mxu0 0.0
      %1065 = vmatpush1.msra.mxu0 0.0
      %1066 = vmatprep.subr.mxu0 0.0
      %1067 = vmatpush1.msra.mxu0 0.0
      %1068 = vmatprep.subr.mxu0 0.0
      %1069 = vmatpush1.msra.mxu0 0.0
      %1070 = vmatprep.subr.mxu0 0.0
      %1071 = vmatpush1.msra.mxu0 0.0
      %1072 = vmatprep.subr.mxu0 0.0
      %1073 = vmatpush1.msra.mxu0 0.0
      %1074 = vmatprep.subr.mxu0 0.0
      %1075 = vmatpush1.msra.mxu0 0.0
      %1076 = vmatprep.subr.mxu0 0.0
      %1077 = vmatpush1.msra.mxu0 0.0
      %1078 = vmatprep.subr.mxu0 0.0
      %1079 = vmatpush1.msra.mxu0 0.0
      %1080 = vmatprep.subr.mxu0 0.0
      %1081 = vmatpush1.msra.mxu0 0.0
      %1082 = vmatprep.subr.mxu0 0.0
      %1083 = vmatpush1.msra.mxu0 0.0
      %1084 = vmatprep.subr.mxu0 0.0
      %1085 = vmatpush1.msra.mxu0 0.0
      %1086 = vmatprep.subr.mxu0 0.0
      %1087 = vmatpush1.msra.mxu0 0.0
      %1088 = vmatprep.subr.mxu0 0.0
      %1089 = vmatpush1.msra.mxu0 0.0
      %1090 = vmatprep.mubr.f32.mxu0 0.0
      %1091 = vmatmul.mubr.f32.gmra.mrb[0].mxu0 %v801
      %v1092 = vpop.f32.mrb[0].mxu0
      %v1093 = vadd.f32 0.0, %v1092
      %v1094 = vpop.f32.mrb[0].mxu0
      %1095 = vdwg.mxu0
      %v1097 = vsel %vm803, %v575, 0
      %1099 = vmatprep.subr.mxu0 0.0
      %1100 = vmatpush1.msra.mxu0 %v1097
      %1101 = vmatprep.subr.mxu0 0.0
      %1102 = vmatpush1.msra.mxu0 0.0
      %1103 = vmatprep.subr.mxu0 0.0
      %1104 = vmatpush1.msra.mxu0 0.0
      %1105 = vmatprep.subr.mxu0 0.0
      %1106 = vmatpush1.msra.mxu0 0.0
      %1107 = vmatprep.subr.mxu0 0.0
      %1108 = vmatpush1.msra.mxu0 0.0
      %1109 = vmatprep.subr.mxu0 0.0
      %1110 = vmatpush1.msra.mxu0 0.0
      %1111 = vmatprep.subr.mxu0 0.0
      %1112 = vmatpush1.msra.mxu0 0.0
      %1113 = vmatprep.subr.mxu0 0.0
      %1114 = vmatpush1.msra.mxu0 0.0
      %1115 = vmatprep.subr.mxu0 0.0
      %1116 = vmatpush1.msra.mxu0 0.0
      %1117 = vmatprep.subr.mxu0 0.0
      %1118 = vmatpush1.msra.mxu0 0.0
      %1119 = vmatprep.subr.mxu0 0.0
      %1120 = vmatpush1.msra.mxu0 0.0
      %1121 = vmatprep.subr.mxu0 0.0
      %1122 = vmatpush1.msra.mxu0 0.0
      %1123 = vmatprep.subr.mxu0 0.0
      %1124 = vmatpush1.msra.mxu0 0.0
      %1125 = vmatprep.subr.mxu0 0.0
      %1126 = vmatpush1.msra.mxu0 0.0
      %1127 = vmatprep.subr.mxu0 0.0
      %1128 = vmatpush1.msra.mxu0 0.0
      %1129 = vmatprep.subr.mxu0 0.0
      %1130 = vmatpush1.msra.mxu0 0.0
      %1131 = vmatprep.subr.mxu0 0.0
      %1132 = vmatpush1.msra.mxu0 0.0
      %1133 = vmatprep.subr.mxu0 0.0
      %1134 = vmatpush1.msra.mxu0 0.0
      %1135 = vmatprep.subr.mxu0 0.0
      %1136 = vmatpush1.msra.mxu0 0.0
      %1137 = vmatprep.subr.mxu0 0.0
      %1138 = vmatpush1.msra.mxu0 0.0
      %1139 = vmatprep.subr.mxu0 0.0
      %1140 = vmatpush1.msra.mxu0 0.0
      %1141 = vmatprep.subr.mxu0 0.0
      %1142 = vmatpush1.msra.mxu0 0.0
      %1143 = vmatprep.subr.mxu0 0.0
      %1144 = vmatpush1.msra.mxu0 0.0
      %1145 = vmatprep.subr.mxu0 0.0
      %1146 = vmatpush1.msra.mxu0 0.0
      %1147 = vmatprep.subr.mxu0 0.0
      %1148 = vmatpush1.msra.mxu0 0.0
      %1149 = vmatprep.subr.mxu0 0.0
      %1150 = vmatpush1.msra.mxu0 0.0
      %1151 = vmatprep.subr.mxu0 0.0
      %1152 = vmatpush1.msra.mxu0 0.0
      %1153 = vmatprep.subr.mxu0 0.0
      %1154 = vmatpush1.msra.mxu0 0.0
      %1155 = vmatprep.subr.mxu0 0.0
      %1156 = vmatpush1.msra.mxu0 0.0
      %1157 = vmatprep.subr.mxu0 0.0
      %1158 = vmatpush1.msra.mxu0 0.0
      %1159 = vmatprep.subr.mxu0 0.0
      %1160 = vmatpush1.msra.mxu0 0.0
      %1161 = vmatprep.subr.mxu0 0.0
      %1162 = vmatpush1.msra.mxu0 0.0
      %1163 = vmatprep.mubr.f32.mxu0 0.0
      %1164 = vmatmul.mubr.f32.gmra.mrb[0].mxu0 %v801
      %v1165 = vpop.f32.mrb[0].mxu0
      %v1166 = vadd.f32 0.0, %v1165
      %v1167 = vpop.f32.mrb[0].mxu0
      %1168 = vdwg.mxu0
      %v1170 = vsel %vm803, %v648, 0
      %1172 = vmatprep.subr.mxu0 0.0
      %1173 = vmatpush1.msra.mxu0 %v1170
      %1174 = vmatprep.subr.mxu0 0.0
      %1175 = vmatpush1.msra.mxu0 0.0
      %1176 = vmatprep.subr.mxu0 0.0
      %1177 = vmatpush1.msra.mxu0 0.0
      %1178 = vmatprep.subr.mxu0 0.0
      %1179 = vmatpush1.msra.mxu0 0.0
      %1180 = vmatprep.subr.mxu0 0.0
      %1181 = vmatpush1.msra.mxu0 0.0
      %1182 = vmatprep.subr.mxu0 0.0
      %1183 = vmatpush1.msra.mxu0 0.0
      %1184 = vmatprep.subr.mxu0 0.0
      %1185 = vmatpush1.msra.mxu0 0.0
      %1186 = vmatprep.subr.mxu0 0.0
      %1187 = vmatpush1.msra.mxu0 0.0
      %1188 = vmatprep.subr.mxu0 0.0
      %1189 = vmatpush1.msra.mxu0 0.0
      %1190 = vmatprep.subr.mxu0 0.0
      %1191 = vmatpush1.msra.mxu0 0.0
      %1192 = vmatprep.subr.mxu0 0.0
      %1193 = vmatpush1.msra.mxu0 0.0
      %1194 = vmatprep.subr.mxu0 0.0
      %1195 = vmatpush1.msra.mxu0 0.0
      %1196 = vmatprep.subr.mxu0 0.0
      %1197 = vmatpush1.msra.mxu0 0.0
      %1198 = vmatprep.subr.mxu0 0.0
      %1199 = vmatpush1.msra.mxu0 0.0
      %1200 = vmatprep.subr.mxu0 0.0
      %1201 = vmatpush1.msra.mxu0 0.0
      %1202 = vmatprep.subr.mxu0 0.0
      %1203 = vmatpush1.msra.mxu0 0.0
      %1204 = vmatprep.subr.mxu0 0.0
      %1205 = vmatpush1.msra.mxu0 0.0
      %1206 = vmatprep.subr.mxu0 0.0
      %1207 = vmatpush1.msra.mxu0 0.0
      %1208 = vmatprep.subr.mxu0 0.0
      %1209 = vmatpush1.msra.mxu0 0.0
      %1210 = vmatprep.subr.mxu0 0.0
      %1211 = vmatpush1.msra.mxu0 0.0
      %1212 = vmatprep.subr.mxu0 0.0
      %1213 = vmatpush1.msra.mxu0 0.0
      %1214 = vmatprep.subr.mxu0 0.0
      %1215 = vmatpush1.msra.mxu0 0.0
      %1216 = vmatprep.subr.mxu0 0.0
      %1217 = vmatpush1.msra.mxu0 0.0
      %1218 = vmatprep.subr.mxu0 0.0
      %1219 = vmatpush1.msra.mxu0 0.0
      %1220 = vmatprep.subr.mxu0 0.0
      %1221 = vmatpush1.msra.mxu0 0.0
      %1222 = vmatprep.subr.mxu0 0.0
      %1223 = vmatpush1.msra.mxu0 0.0
      %1224 = vmatprep.subr.mxu0 0.0
      %1225 = vmatpush1.msra.mxu0 0.0
      %1226 = vmatprep.subr.mxu0 0.0
      %1227 = vmatpush1.msra.mxu0 0.0
      %1228 = vmatprep.subr.mxu0 0.0
      %1229 = vmatpush1.msra.mxu0 0.0
      %1230 = vmatprep.subr.mxu0 0.0
      %1231 = vmatpush1.msra.mxu0 0.0
      %1232 = vmatprep.subr.mxu0 0.0
      %1233 = vmatpush1.msra.mxu0 0.0
      %1234 = vmatprep.subr.mxu0 0.0
      %1235 = vmatpush1.msra.mxu0 0.0
      %1236 = vmatprep.mubr.f32.mxu0 0.0
      %1237 = vmatmul.mubr.f32.gmra.mrb[0].mxu0 %v801
      %v1238 = vpop.f32.mrb[0].mxu0
      %v1239 = vadd.f32 0.0, %v1238
      %v1240 = vpop.f32.mrb[0].mxu0
      %1241 = vdwg.mxu0
      %v1243 = vsel %vm803, %v721, 0
      %1245 = vmatprep.subr.mxu0 0.0
      %1246 = vmatpush1.msra.mxu0 %v1243
      %1247 = vmatprep.subr.mxu0 0.0
      %1248 = vmatpush1.msra.mxu0 0.0
      %1249 = vmatprep.subr.mxu0 0.0
      %1250 = vmatpush1.msra.mxu0 0.0
      %1251 = vmatprep.subr.mxu0 0.0
      %1252 = vmatpush1.msra.mxu0 0.0
      %1253 = vmatprep.subr.mxu0 0.0
      %1254 = vmatpush1.msra.mxu0 0.0
      %1255 = vmatprep.subr.mxu0 0.0
      %1256 = vmatpush1.msra.mxu0 0.0
      %1257 = vmatprep.subr.mxu0 0.0
      %1258 = vmatpush1.msra.mxu0 0.0
      %1259 = vmatprep.subr.mxu0 0.0
      %1260 = vmatpush1.msra.mxu0 0.0
      %1261 = vmatprep.subr.mxu0 0.0
      %1262 = vmatpush1.msra.mxu0 0.0
      %1263 = vmatprep.subr.mxu0 0.0
      %1264 = vmatpush1.msra.mxu0 0.0
      %1265 = vmatprep.subr.mxu0 0.0
      %1266 = vmatpush1.msra.mxu0 0.0
      %1267 = vmatprep.subr.mxu0 0.0
      %1268 = vmatpush1.msra.mxu0 0.0
      %1269 = vmatprep.subr.mxu0 0.0
      %1270 = vmatpush1.msra.mxu0 0.0
      %1271 = vmatprep.subr.mxu0 0.0
      %1272 = vmatpush1.msra.mxu0 0.0
      %1273 = vmatprep.subr.mxu0 0.0
      %1274 = vmatpush1.msra.mxu0 0.0
      %1275 = vmatprep.subr.mxu0 0.0
      %1276 = vmatpush1.msra.mxu0 0.0
      %1277 = vmatprep.subr.mxu0 0.0
      %1278 = vmatpush1.msra.mxu0 0.0
      %1279 = vmatprep.subr.mxu0 0.0
      %1280 = vmatpush1.msra.mxu0 0.0
      %1281 = vmatprep.subr.mxu0 0.0
      %1282 = vmatpush1.msra.mxu0 0.0
      %1283 = vmatprep.subr.mxu0 0.0
      %1284 = vmatpush1.msra.mxu0 0.0
      %1285 = vmatprep.subr.mxu0 0.0
      %1286 = vmatpush1.msra.mxu0 0.0
      %1287 = vmatprep.subr.mxu0 0.0
      %1288 = vmatpush1.msra.mxu0 0.0
      %1289 = vmatprep.subr.mxu0 0.0
      %1290 = vmatpush1.msra.mxu0 0.0
      %1291 = vmatprep.subr.mxu0 0.0
      %1292 = vmatpush1.msra.mxu0 0.0
      %1293 = vmatprep.subr.mxu0 0.0
      %1294 = vmatpush1.msra.mxu0 0.0
      %1295 = vmatprep.subr.mxu0 0.0
      %1296 = vmatpush1.msra.mxu0 0.0
      %1297 = vmatprep.subr.mxu0 0.0
      %1298 = vmatpush1.msra.mxu0 0.0
      %1299 = vmatprep.subr.mxu0 0.0
      %1300 = vmatpush1.msra.mxu0 0.0
      %1301 = vmatprep.subr.mxu0 0.0
      %1302 = vmatpush1.msra.mxu0 0.0
      %1303 = vmatprep.subr.mxu0 0.0
      %1304 = vmatpush1.msra.mxu0 0.0
      %1305 = vmatprep.subr.mxu0 0.0
      %1306 = vmatpush1.msra.mxu0 0.0
      %1307 = vmatprep.subr.mxu0 0.0
      %1308 = vmatpush1.msra.mxu0 0.0
      %1309 = vmatprep.mubr.f32.mxu0 0.0
      %1310 = vmatmul.mubr.f32.gmra.mrb[0].mxu0 %v801
      %v1311 = vpop.f32.mrb[0].mxu0
      %v1312 = vadd.f32 0.0, %v1311
      %v1313 = vpop.f32.mrb[0].mxu0
      %1314 = vdwg.mxu0
      %v1316 = vsel %vm803, %v794, 0
      %1318 = vmatprep.subr.mxu0 0.0
      %1319 = vmatpush1.msra.mxu0 %v1316
      %1320 = vmatprep.subr.mxu0 0.0
      %1321 = vmatpush1.msra.mxu0 0.0
      %1322 = vmatprep.subr.mxu0 0.0
      %1323 = vmatpush1.msra.mxu0 0.0
      %1324 = vmatprep.subr.mxu0 0.0
      %1325 = vmatpush1.msra.mxu0 0.0
      %1326 = vmatprep.subr.mxu0 0.0
      %1327 = vmatpush1.msra.mxu0 0.0
      %1328 = vmatprep.subr.mxu0 0.0
      %1329 = vmatpush1.msra.mxu0 0.0
      %1330 = vmatprep.subr.mxu0 0.0
      %1331 = vmatpush1.msra.mxu0 0.0
      %1332 = vmatprep.subr.mxu0 0.0
      %1333 = vmatpush1.msra.mxu0 0.0
      %1334 = vmatprep.subr.mxu0 0.0
      %1335 = vmatpush1.msra.mxu0 0.0
      %1336 = vmatprep.subr.mxu0 0.0
      %1337 = vmatpush1.msra.mxu0 0.0
      %1338 = vmatprep.subr.mxu0 0.0
      %1339 = vmatpush1.msra.mxu0 0.0
      %1340 = vmatprep.subr.mxu0 0.0
      %1341 = vmatpush1.msra.mxu0 0.0
      %1342 = vmatprep.subr.mxu0 0.0
      %1343 = vmatpush1.msra.mxu0 0.0
      %1344 = vmatprep.subr.mxu0 0.0
      %1345 = vmatpush1.msra.mxu0 0.0
      %1346 = vmatprep.subr.mxu0 0.0
      %1347 = vmatpush1.msra.mxu0 0.0
      %1348 = vmatprep.subr.mxu0 0.0
      %1349 = vmatpush1.msra.mxu0 0.0
      %1350 = vmatprep.subr.mxu0 0.0
      %1351 = vmatpush1.msra.mxu0 0.0
      %1352 = vmatprep.subr.mxu0 0.0
      %1353 = vmatpush1.msra.mxu0 0.0
      %1354 = vmatprep.subr.mxu0 0.0
      %1355 = vmatpush1.msra.mxu0 0.0
      %1356 = vmatprep.subr.mxu0 0.0
      %1357 = vmatpush1.msra.mxu0 0.0
      %1358 = vmatprep.subr.mxu0 0.0
      %1359 = vmatpush1.msra.mxu0 0.0
      %1360 = vmatprep.subr.mxu0 0.0
      %1361 = vmatpush1.msra.mxu0 0.0
      %1362 = vmatprep.subr.mxu0 0.0
      %1363 = vmatpush1.msra.mxu0 0.0
      %1364 = vmatprep.subr.mxu0 0.0
      %1365 = vmatpush1.msra.mxu0 0.0
      %1366 = vmatprep.subr.mxu0 0.0
      %1367 = vmatpush1.msra.mxu0 0.0
      %1368 = vmatprep.subr.mxu0 0.0
      %1369 = vmatpush1.msra.mxu0 0.0
      %1370 = vmatprep.subr.mxu0 0.0
      %1371 = vmatpush1.msra.mxu0 0.0
      %1372 = vmatprep.subr.mxu0 0.0
      %1373 = vmatpush1.msra.mxu0 0.0
      %1374 = vmatprep.subr.mxu0 0.0
      %1375 = vmatpush1.msra.mxu0 0.0
      %1376 = vmatprep.subr.mxu0 0.0
      %1377 = vmatpush1.msra.mxu0 0.0
      %1378 = vmatprep.subr.mxu0 0.0
      %1379 = vmatpush1.msra.mxu0 0.0
      %1380 = vmatprep.subr.mxu0 0.0
      %1381 = vmatpush1.msra.mxu0 0.0
      %1382 = vmatprep.mubr.f32.mxu0 0.0
      %1383 = vmatmul.mubr.f32.gmra.mrb[0].mxu0 %v801
      %v1384 = vpop.f32.mrb[0].mxu0
      %v1385 = vadd.f32 0.0, %v1384
      %v1386 = vpop.f32.mrb[0].mxu0
      %1387 = vdwg.mxu0
      %v1389 = vsel %vm799, %v209, 0
      %v1391 = vsel %vm803, %v201, 0
      %1393 = vmatprep.subr.mxu0 0.0
      %1394 = vmatpush1.msra.mxu0 %v1391
      %1395 = vmatprep.subr.mxu0 0.0
      %1396 = vmatpush1.msra.mxu0 0.0
      %1397 = vmatprep.subr.mxu0 0.0
      %1398 = vmatpush1.msra.mxu0 0.0
      %1399 = vmatprep.subr.mxu0 0.0
      %1400 = vmatpush1.msra.mxu0 0.0
      %1401 = vmatprep.subr.mxu0 0.0
      %1402 = vmatpush1.msra.mxu0 0.0
      %1403 = vmatprep.subr.mxu0 0.0
      %1404 = vmatpush1.msra.mxu0 0.0
      %1405 = vmatprep.subr.mxu0 0.0
      %1406 = vmatpush1.msra.mxu0 0.0
      %1407 = vmatprep.subr.mxu0 0.0
      %1408 = vmatpush1.msra.mxu0 0.0
      %1409 = vmatprep.subr.mxu0 0.0
      %1410 = vmatpush1.msra.mxu0 0.0
      %1411 = vmatprep.subr.mxu0 0.0
      %1412 = vmatpush1.msra.mxu0 0.0
      %1413 = vmatprep.subr.mxu0 0.0
      %1414 = vmatpush1.msra.mxu0 0.0
      %1415 = vmatprep.subr.mxu0 0.0
      %1416 = vmatpush1.msra.mxu0 0.0
      %1417 = vmatprep.subr.mxu0 0.0
      %1418 = vmatpush1.msra.mxu0 0.0
      %1419 = vmatprep.subr.mxu0 0.0
      %1420 = vmatpush1.msra.mxu0 0.0
      %1421 = vmatprep.subr.mxu0 0.0
      %1422 = vmatpush1.msra.mxu0 0.0
      %1423 = vmatprep.subr.mxu0 0.0
      %1424 = vmatpush1.msra.mxu0 0.0
      %1425 = vmatprep.subr.mxu0 0.0
      %1426 = vmatpush1.msra.mxu0 0.0
      %1427 = vmatprep.subr.mxu0 0.0
      %1428 = vmatpush1.msra.mxu0 0.0
      %1429 = vmatprep.subr.mxu0 0.0
      %1430 = vmatpush1.msra.mxu0 0.0
      %1431 = vmatprep.subr.mxu0 0.0
      %1432 = vmatpush1.msra.mxu0 0.0
      %1433 = vmatprep.subr.mxu0 0.0
      %1434 = vmatpush1.msra.mxu0 0.0
      %1435 = vmatprep.subr.mxu0 0.0
      %1436 = vmatpush1.msra.mxu0 0.0
      %1437 = vmatprep.subr.mxu0 0.0
      %1438 = vmatpush1.msra.mxu0 0.0
      %1439 = vmatprep.subr.mxu0 0.0
      %1440 = vmatpush1.msra.mxu0 0.0
      %1441 = vmatprep.subr.mxu0 0.0
      %1442 = vmatpush1.msra.mxu0 0.0
      %1443 = vmatprep.subr.mxu0 0.0
      %1444 = vmatpush1.msra.mxu0 0.0
      %1445 = vmatprep.subr.mxu0 0.0
      %1446 = vmatpush1.msra.mxu0 0.0
      %1447 = vmatprep.subr.mxu0 0.0
      %1448 = vmatpush1.msra.mxu0 0.0
      %1449 = vmatprep.subr.mxu0 0.0
      %1450 = vmatpush1.msra.mxu0 0.0
      %1451 = vmatprep.subr.mxu0 0.0
      %1452 = vmatpush1.msra.mxu0 0.0
      %1453 = vmatprep.subr.mxu0 0.0
      %1454 = vmatpush1.msra.mxu0 0.0
      %1455 = vmatprep.subr.mxu0 0.0
      %1456 = vmatpush1.msra.mxu0 0.0
      %1457 = vmatprep.mubr.f32.mxu0 0.0
      %1458 = vmatmul.mubr.f32.gmra.mrb[0].mxu0 %v1389
      %v1459 = vpop.f32.mrb[0].mxu0
      %v1460 = vadd.f32 %v874, %v1459
      %v1461 = vpop.f32.mrb[0].mxu0
      %1462 = vdwg.mxu0
      %v1463 = vsel %vm803, %v202, 0
      %1465 = vmatprep.subr.mxu0 0.0
      %1466 = vmatpush1.msra.mxu0 %v1463
      %1467 = vmatprep.subr.mxu0 0.0
      %1468 = vmatpush1.msra.mxu0 0.0
      %1469 = vmatprep.subr.mxu0 0.0
      %1470 = vmatpush1.msra.mxu0 0.0
      %1471 = vmatprep.subr.mxu0 0.0
      %1472 = vmatpush1.msra.mxu0 0.0
      %1473 = vmatprep.subr.mxu0 0.0
      %1474 = vmatpush1.msra.mxu0 0.0
      %1475 = vmatprep.subr.mxu0 0.0
      %1476 = vmatpush1.msra.mxu0 0.0
      %1477 = vmatprep.subr.mxu0 0.0
      %1478 = vmatpush1.msra.mxu0 0.0
      %1479 = vmatprep.subr.mxu0 0.0
      %1480 = vmatpush1.msra.mxu0 0.0
      %1481 = vmatprep.subr.mxu0 0.0
      %1482 = vmatpush1.msra.mxu0 0.0
      %1483 = vmatprep.subr.mxu0 0.0
      %1484 = vmatpush1.msra.mxu0 0.0
      %1485 = vmatprep.subr.mxu0 0.0
      %1486 = vmatpush1.msra.mxu0 0.0
      %1487 = vmatprep.subr.mxu0 0.0
      %1488 = vmatpush1.msra.mxu0 0.0
      %1489 = vmatprep.subr.mxu0 0.0
      %1490 = vmatpush1.msra.mxu0 0.0
      %1491 = vmatprep.subr.mxu0 0.0
      %1492 = vmatpush1.msra.mxu0 0.0
      %1493 = vmatprep.subr.mxu0 0.0
      %1494 = vmatpush1.msra.mxu0 0.0
      %1495 = vmatprep.subr.mxu0 0.0
      %1496 = vmatpush1.msra.mxu0 0.0
      %1497 = vmatprep.subr.mxu0 0.0
      %1498 = vmatpush1.msra.mxu0 0.0
      %1499 = vmatprep.subr.mxu0 0.0
      %1500 = vmatpush1.msra.mxu0 0.0
      %1501 = vmatprep.subr.mxu0 0.0
      %1502 = vmatpush1.msra.mxu0 0.0
      %1503 = vmatprep.subr.mxu0 0.0
      %1504 = vmatpush1.msra.mxu0 0.0
      %1505 = vmatprep.subr.mxu0 0.0
      %1506 = vmatpush1.msra.mxu0 0.0
      %1507 = vmatprep.subr.mxu0 0.0
      %1508 = vmatpush1.msra.mxu0 0.0
      %1509 = vmatprep.subr.mxu0 0.0
      %1510 = vmatpush1.msra.mxu0 0.0
      %1511 = vmatprep.subr.mxu0 0.0
      %1512 = vmatpush1.msra.mxu0 0.0
      %1513 = vmatprep.subr.mxu0 0.0
      %1514 = vmatpush1.msra.mxu0 0.0
      %1515 = vmatprep.subr.mxu0 0.0
      %1516 = vmatpush1.msra.mxu0 0.0
      %1517 = vmatprep.subr.mxu0 0.0
      %1518 = vmatpush1.msra.mxu0 0.0
      %1519 = vmatprep.subr.mxu0 0.0
      %1520 = vmatpush1.msra.mxu0 0.0
      %1521 = vmatprep.subr.mxu0 0.0
      %1522 = vmatpush1.msra.mxu0 0.0
      %1523 = vmatprep.subr.mxu0 0.0
      %1524 = vmatpush1.msra.mxu0 0.0
      %1525 = vmatprep.subr.mxu0 0.0
      %1526 = vmatpush1.msra.mxu0 0.0
      %1527 = vmatprep.subr.mxu0 0.0
      %1528 = vmatpush1.msra.mxu0 0.0
      %1529 = vmatprep.mubr.f32.mxu0 0.0
      %1530 = vmatmul.mubr.f32.gmra.mrb[0].mxu0 %v1389
      %v1531 = vpop.f32.mrb[0].mxu0
      %v1532 = vadd.f32 %v947, %v1531
      %v1533 = vpop.f32.mrb[0].mxu0
      %1534 = vdwg.mxu0
      %v1535 = vsel %vm803, %v203, 0
      %1537 = vmatprep.subr.mxu0 0.0
      %1538 = vmatpush1.msra.mxu0 %v1535
      %1539 = vmatprep.subr.mxu0 0.0
      %1540 = vmatpush1.msra.mxu0 0.0
      %1541 = vmatprep.subr.mxu0 0.0
      %1542 = vmatpush1.msra.mxu0 0.0
      %1543 = vmatprep.subr.mxu0 0.0
      %1544 = vmatpush1.msra.mxu0 0.0
      %1545 = vmatprep.subr.mxu0 0.0
      %1546 = vmatpush1.msra.mxu0 0.0
      %1547 = vmatprep.subr.mxu0 0.0
      %1548 = vmatpush1.msra.mxu0 0.0
      %1549 = vmatprep.subr.mxu0 0.0
      %1550 = vmatpush1.msra.mxu0 0.0
      %1551 = vmatprep.subr.mxu0 0.0
      %1552 = vmatpush1.msra.mxu0 0.0
      %1553 = vmatprep.subr.mxu0 0.0
      %1554 = vmatpush1.msra.mxu0 0.0
      %1555 = vmatprep.subr.mxu0 0.0
      %1556 = vmatpush1.msra.mxu0 0.0
      %1557 = vmatprep.subr.mxu0 0.0
      %1558 = vmatpush1.msra.mxu0 0.0
      %1559 = vmatprep.subr.mxu0 0.0
      %1560 = vmatpush1.msra.mxu0 0.0
      %1561 = vmatprep.subr.mxu0 0.0
      %1562 = vmatpush1.msra.mxu0 0.0
      %1563 = vmatprep.subr.mxu0 0.0
      %1564 = vmatpush1.msra.mxu0 0.0
      %1565 = vmatprep.subr.mxu0 0.0
      %1566 = vmatpush1.msra.mxu0 0.0
      %1567 = vmatprep.subr.mxu0 0.0
      %1568 = vmatpush1.msra.mxu0 0.0
      %1569 = vmatprep.subr.mxu0 0.0
      %1570 = vmatpush1.msra.mxu0 0.0
      %1571 = vmatprep.subr.mxu0 0.0
      %1572 = vmatpush1.msra.mxu0 0.0
      %1573 = vmatprep.subr.mxu0 0.0
      %1574 = vmatpush1.msra.mxu0 0.0
      %1575 = vmatprep.subr.mxu0 0.0
      %1576 = vmatpush1.msra.mxu0 0.0
      %1577 = vmatprep.subr.mxu0 0.0
      %1578 = vmatpush1.msra.mxu0 0.0
      %1579 = vmatprep.subr.mxu0 0.0
      %1580 = vmatpush1.msra.mxu0 0.0
      %1581 = vmatprep.subr.mxu0 0.0
      %1582 = vmatpush1.msra.mxu0 0.0
      %1583 = vmatprep.subr.mxu0 0.0
      %1584 = vmatpush1.msra.mxu0 0.0
      %1585 = vmatprep.subr.mxu0 0.0
      %1586 = vmatpush1.msra.mxu0 0.0
      %1587 = vmatprep.subr.mxu0 0.0
      %1588 = vmatpush1.msra.mxu0 0.0
      %1589 = vmatprep.subr.mxu0 0.0
      %1590 = vmatpush1.msra.mxu0 0.0
      %1591 = vmatprep.subr.mxu0 0.0
      %1592 = vmatpush1.msra.mxu0 0.0
      %1593 = vmatprep.subr.mxu0 0.0
      %1594 = vmatpush1.msra.mxu0 0.0
      %1595 = vmatprep.subr.mxu0 0.0
      %1596 = vmatpush1.msra.mxu0 0.0
      %1597 = vmatprep.subr.mxu0 0.0
      %1598 = vmatpush1.msra.mxu0 0.0
      %1599 = vmatprep.subr.mxu0 0.0
      %1600 = vmatpush1.msra.mxu0 0.0
      %1601 = vmatprep.mubr.f32.mxu0 0.0
      %1602 = vmatmul.mubr.f32.gmra.mrb[0].mxu0 %v1389
      %v1603 = vpop.f32.mrb[0].mxu0
      %v1604 = vadd.f32 %v1020, %v1603
      %v1605 = vpop.f32.mrb[0].mxu0
      %1606 = vdwg.mxu0
      %v1607 = vsel %vm803, %v204, 0
      %1609 = vmatprep.subr.mxu0 0.0
      %1610 = vmatpush1.msra.mxu0 %v1607
      %1611 = vmatprep.subr.mxu0 0.0
      %1612 = vmatpush1.msra.mxu0 0.0
      %1613 = vmatprep.subr.mxu0 0.0
      %1614 = vmatpush1.msra.mxu0 0.0
      %1615 = vmatprep.subr.mxu0 0.0
      %1616 = vmatpush1.msra.mxu0 0.0
      %1617 = vmatprep.subr.mxu0 0.0
      %1618 = vmatpush1.msra.mxu0 0.0
      %1619 = vmatprep.subr.mxu0 0.0
      %1620 = vmatpush1.msra.mxu0 0.0
      %1621 = vmatprep.subr.mxu0 0.0
      %1622 = vmatpush1.msra.mxu0 0.0
      %1623 = vmatprep.subr.mxu0 0.0
      %1624 = vmatpush1.msra.mxu0 0.0
      %1625 = vmatprep.subr.mxu0 0.0
      %1626 = vmatpush1.msra.mxu0 0.0
      %1627 = vmatprep.subr.mxu0 0.0
      %1628 = vmatpush1.msra.mxu0 0.0
      %1629 = vmatprep.subr.mxu0 0.0
      %1630 = vmatpush1.msra.mxu0 0.0
      %1631 = vmatprep.subr.mxu0 0.0
      %1632 = vmatpush1.msra.mxu0 0.0
      %1633 = vmatprep.subr.mxu0 0.0
      %1634 = vmatpush1.msra.mxu0 0.0
      %1635 = vmatprep.subr.mxu0 0.0
      %1636 = vmatpush1.msra.mxu0 0.0
      %1637 = vmatprep.subr.mxu0 0.0
      %1638 = vmatpush1.msra.mxu0 0.0
      %1639 = vmatprep.subr.mxu0 0.0
      %1640 = vmatpush1.msra.mxu0 0.0
      %1641 = vmatprep.subr.mxu0 0.0
      %1642 = vmatpush1.msra.mxu0 0.0
      %1643 = vmatprep.subr.mxu0 0.0
      %1644 = vmatpush1.msra.mxu0 0.0
      %1645 = vmatprep.subr.mxu0 0.0
      %1646 = vmatpush1.msra.mxu0 0.0
      %1647 = vmatprep.subr.mxu0 0.0
      %1648 = vmatpush1.msra.mxu0 0.0
      %1649 = vmatprep.subr.mxu0 0.0
      %1650 = vmatpush1.msra.mxu0 0.0
      %1651 = vmatprep.subr.mxu0 0.0
      %1652 = vmatpush1.msra.mxu0 0.0
      %1653 = vmatprep.subr.mxu0 0.0
      %1654 = vmatpush1.msra.mxu0 0.0
      %1655 = vmatprep.subr.mxu0 0.0
      %1656 = vmatpush1.msra.mxu0 0.0
      %1657 = vmatprep.subr.mxu0 0.0
      %1658 = vmatpush1.msra.mxu0 0.0
      %1659 = vmatprep.subr.mxu0 0.0
      %1660 = vmatpush1.msra.mxu0 0.0
      %1661 = vmatprep.subr.mxu0 0.0
      %1662 = vmatpush1.msra.mxu0 0.0
      %1663 = vmatprep.subr.mxu0 0.0
      %1664 = vmatpush1.msra.mxu0 0.0
      %1665 = vmatprep.subr.mxu0 0.0
      %1666 = vmatpush1.msra.mxu0 0.0
      %1667 = vmatprep.subr.mxu0 0.0
      %1668 = vmatpush1.msra.mxu0 0.0
      %1669 = vmatprep.subr.mxu0 0.0
      %1670 = vmatpush1.msra.mxu0 0.0
      %1671 = vmatprep.subr.mxu0 0.0
      %1672 = vmatpush1.msra.mxu0 0.0
      %1673 = vmatprep.mubr.f32.mxu0 0.0
      %1674 = vmatmul.mubr.f32.gmra.mrb[0].mxu0 %v1389
      %v1675 = vpop.f32.mrb[0].mxu0
      %v1676 = vadd.f32 %v1093, %v1675
      %v1677 = vpop.f32.mrb[0].mxu0
      %1678 = vdwg.mxu0
      %v1679 = vsel %vm803, %v205, 0
      %1681 = vmatprep.subr.mxu0 0.0
      %1682 = vmatpush1.msra.mxu0 %v1679
      %1683 = vmatprep.subr.mxu0 0.0
      %1684 = vmatpush1.msra.mxu0 0.0
      %1685 = vmatprep.subr.mxu0 0.0
      %1686 = vmatpush1.msra.mxu0 0.0
      %1687 = vmatprep.subr.mxu0 0.0
      %1688 = vmatpush1.msra.mxu0 0.0
      %1689 = vmatprep.subr.mxu0 0.0
      %1690 = vmatpush1.msra.mxu0 0.0
      %1691 = vmatprep.subr.mxu0 0.0
      %1692 = vmatpush1.msra.mxu0 0.0
      %1693 = vmatprep.subr.mxu0 0.0
      %1694 = vmatpush1.msra.mxu0 0.0
      %1695 = vmatprep.subr.mxu0 0.0
      %1696 = vmatpush1.msra.mxu0 0.0
      %1697 = vmatprep.subr.mxu0 0.0
      %1698 = vmatpush1.msra.mxu0 0.0
      %1699 = vmatprep.subr.mxu0 0.0
      %1700 = vmatpush1.msra.mxu0 0.0
      %1701 = vmatprep.subr.mxu0 0.0
      %1702 = vmatpush1.msra.mxu0 0.0
      %1703 = vmatprep.subr.mxu0 0.0
      %1704 = vmatpush1.msra.mxu0 0.0
      %1705 = vmatprep.subr.mxu0 0.0
      %1706 = vmatpush1.msra.mxu0 0.0
      %1707 = vmatprep.subr.mxu0 0.0
      %1708 = vmatpush1.msra.mxu0 0.0
      %1709 = vmatprep.subr.mxu0 0.0
      %1710 = vmatpush1.msra.mxu0 0.0
      %1711 = vmatprep.subr.mxu0 0.0
      %1712 = vmatpush1.msra.mxu0 0.0
      %1713 = vmatprep.subr.mxu0 0.0
      %1714 = vmatpush1.msra.mxu0 0.0
      %1715 = vmatprep.subr.mxu0 0.0
      %1716 = vmatpush1.msra.mxu0 0.0
      %1717 = vmatprep.subr.mxu0 0.0
      %1718 = vmatpush1.msra.mxu0 0.0
      %1719 = vmatprep.subr.mxu0 0.0
      %1720 = vmatpush1.msra.mxu0 0.0
      %1721 = vmatprep.subr.mxu0 0.0
      %1722 = vmatpush1.msra.mxu0 0.0
      %1723 = vmatprep.subr.mxu0 0.0
      %1724 = vmatpush1.msra.mxu0 0.0
      %1725 = vmatprep.subr.mxu0 0.0
      %1726 = vmatpush1.msra.mxu0 0.0
      %1727 = vmatprep.subr.mxu0 0.0
      %1728 = vmatpush1.msra.mxu0 0.0
      %1729 = vmatprep.subr.mxu0 0.0
      %1730 = vmatpush1.msra.mxu0 0.0
      %1731 = vmatprep.subr.mxu0 0.0
      %1732 = vmatpush1.msra.mxu0 0.0
      %1733 = vmatprep.subr.mxu0 0.0
      %1734 = vmatpush1.msra.mxu0 0.0
      %1735 = vmatprep.subr.mxu0 0.0
      %1736 = vmatpush1.msra.mxu0 0.0
      %1737 = vmatprep.subr.mxu0 0.0
      %1738 = vmatpush1.msra.mxu0 0.0
      %1739 = vmatprep.subr.mxu0 0.0
      %1740 = vmatpush1.msra.mxu0 0.0
      %1741 = vmatprep.subr.mxu0 0.0
      %1742 = vmatpush1.msra.mxu0 0.0
      %1743 = vmatprep.subr.mxu0 0.0
      %1744 = vmatpush1.msra.mxu0 0.0
      %1745 = vmatprep.mubr.f32.mxu0 0.0
      %1746 = vmatmul.mubr.f32.gmra.mrb[0].mxu0 %v1389
      %v1747 = vpop.f32.mrb[0].mxu0
      %v1748 = vadd.f32 %v1166, %v1747
      %v1749 = vpop.f32.mrb[0].mxu0
      %1750 = vdwg.mxu0
      %v1751 = vsel %vm803, %v206, 0
      %1753 = vmatprep.subr.mxu0 0.0
      %1754 = vmatpush1.msra.mxu0 %v1751
      %1755 = vmatprep.subr.mxu0 0.0
      %1756 = vmatpush1.msra.mxu0 0.0
      %1757 = vmatprep.subr.mxu0 0.0
      %1758 = vmatpush1.msra.mxu0 0.0
      %1759 = vmatprep.subr.mxu0 0.0
      %1760 = vmatpush1.msra.mxu0 0.0
      %1761 = vmatprep.subr.mxu0 0.0
      %1762 = vmatpush1.msra.mxu0 0.0
      %1763 = vmatprep.subr.mxu0 0.0
      %1764 = vmatpush1.msra.mxu0 0.0
      %1765 = vmatprep.subr.mxu0 0.0
      %1766 = vmatpush1.msra.mxu0 0.0
      %1767 = vmatprep.subr.mxu0 0.0
      %1768 = vmatpush1.msra.mxu0 0.0
      %1769 = vmatprep.subr.mxu0 0.0
      %1770 = vmatpush1.msra.mxu0 0.0
      %1771 = vmatprep.subr.mxu0 0.0
      %1772 = vmatpush1.msra.mxu0 0.0
      %1773 = vmatprep.subr.mxu0 0.0
      %1774 = vmatpush1.msra.mxu0 0.0
      %1775 = vmatprep.subr.mxu0 0.0
      %1776 = vmatpush1.msra.mxu0 0.0
      %1777 = vmatprep.subr.mxu0 0.0
      %1778 = vmatpush1.msra.mxu0 0.0
      %1779 = vmatprep.subr.mxu0 0.0
      %1780 = vmatpush1.msra.mxu0 0.0
      %1781 = vmatprep.subr.mxu0 0.0
      %1782 = vmatpush1.msra.mxu0 0.0
      %1783 = vmatprep.subr.mxu0 0.0
      %1784 = vmatpush1.msra.mxu0 0.0
      %1785 = vmatprep.subr.mxu0 0.0
      %1786 = vmatpush1.msra.mxu0 0.0
      %1787 = vmatprep.subr.mxu0 0.0
      %1788 = vmatpush1.msra.mxu0 0.0
      %1789 = vmatprep.subr.mxu0 0.0
      %1790 = vmatpush1.msra.mxu0 0.0
      %1791 = vmatprep.subr.mxu0 0.0
      %1792 = vmatpush1.msra.mxu0 0.0
      %1793 = vmatprep.subr.mxu0 0.0
      %1794 = vmatpush1.msra.mxu0 0.0
      %1795 = vmatprep.subr.mxu0 0.0
      %1796 = vmatpush1.msra.mxu0 0.0
      %1797 = vmatprep.subr.mxu0 0.0
      %1798 = vmatpush1.msra.mxu0 0.0
      %1799 = vmatprep.subr.mxu0 0.0
      %1800 = vmatpush1.msra.mxu0 0.0
      %1801 = vmatprep.subr.mxu0 0.0
      %1802 = vmatpush1.msra.mxu0 0.0
      %1803 = vmatprep.subr.mxu0 0.0
      %1804 = vmatpush1.msra.mxu0 0.0
      %1805 = vmatprep.subr.mxu0 0.0
      %1806 = vmatpush1.msra.mxu0 0.0
      %1807 = vmatprep.subr.mxu0 0.0
      %1808 = vmatpush1.msra.mxu0 0.0
      %1809 = vmatprep.subr.mxu0 0.0
      %1810 = vmatpush1.msra.mxu0 0.0
      %1811 = vmatprep.subr.mxu0 0.0
      %1812 = vmatpush1.msra.mxu0 0.0
      %1813 = vmatprep.subr.mxu0 0.0
      %1814 = vmatpush1.msra.mxu0 0.0
      %1815 = vmatprep.subr.mxu0 0.0
      %1816 = vmatpush1.msra.mxu0 0.0
      %1817 = vmatprep.mubr.f32.mxu0 0.0
      %1818 = vmatmul.mubr.f32.gmra.mrb[0].mxu0 %v1389
      %v1819 = vpop.f32.mrb[0].mxu0
      %v1820 = vadd.f32 %v1239, %v1819
      %v1821 = vpop.f32.mrb[0].mxu0
      %1822 = vdwg.mxu0
      %v1823 = vsel %vm803, %v207, 0
      %1825 = vmatprep.subr.mxu0 0.0
      %1826 = vmatpush1.msra.mxu0 %v1823
      %1827 = vmatprep.subr.mxu0 0.0
      %1828 = vmatpush1.msra.mxu0 0.0
      %1829 = vmatprep.subr.mxu0 0.0
      %1830 = vmatpush1.msra.mxu0 0.0
      %1831 = vmatprep.subr.mxu0 0.0
      %1832 = vmatpush1.msra.mxu0 0.0
      %1833 = vmatprep.subr.mxu0 0.0
      %1834 = vmatpush1.msra.mxu0 0.0
      %1835 = vmatprep.subr.mxu0 0.0
      %1836 = vmatpush1.msra.mxu0 0.0
      %1837 = vmatprep.subr.mxu0 0.0
      %1838 = vmatpush1.msra.mxu0 0.0
      %1839 = vmatprep.subr.mxu0 0.0
      %1840 = vmatpush1.msra.mxu0 0.0
      %1841 = vmatprep.subr.mxu0 0.0
      %1842 = vmatpush1.msra.mxu0 0.0
      %1843 = vmatprep.subr.mxu0 0.0
      %1844 = vmatpush1.msra.mxu0 0.0
      %1845 = vmatprep.subr.mxu0 0.0
      %1846 = vmatpush1.msra.mxu0 0.0
      %1847 = vmatprep.subr.mxu0 0.0
      %1848 = vmatpush1.msra.mxu0 0.0
      %1849 = vmatprep.subr.mxu0 0.0
      %1850 = vmatpush1.msra.mxu0 0.0
      %1851 = vmatprep.subr.mxu0 0.0
      %1852 = vmatpush1.msra.mxu0 0.0
      %1853 = vmatprep.subr.mxu0 0.0
      %1854 = vmatpush1.msra.mxu0 0.0
      %1855 = vmatprep.subr.mxu0 0.0
      %1856 = vmatpush1.msra.mxu0 0.0
      %1857 = vmatprep.subr.mxu0 0.0
      %1858 = vmatpush1.msra.mxu0 0.0
      %1859 = vmatprep.subr.mxu0 0.0
      %1860 = vmatpush1.msra.mxu0 0.0
      %1861 = vmatprep.subr.mxu0 0.0
      %1862 = vmatpush1.msra.mxu0 0.0
      %1863 = vmatprep.subr.mxu0 0.0
      %1864 = vmatpush1.msra.mxu0 0.0
      %1865 = vmatprep.subr.mxu0 0.0
      %1866 = vmatpush1.msra.mxu0 0.0
      %1867 = vmatprep.subr.mxu0 0.0
      %1868 = vmatpush1.msra.mxu0 0.0
      %1869 = vmatprep.subr.mxu0 0.0
      %1870 = vmatpush1.msra.mxu0 0.0
      %1871 = vmatprep.subr.mxu0 0.0
      %1872 = vmatpush1.msra.mxu0 0.0
      %1873 = vmatprep.subr.mxu0 0.0
      %1874 = vmatpush1.msra.mxu0 0.0
      %1875 = vmatprep.subr.mxu0 0.0
      %1876 = vmatpush1.msra.mxu0 0.0
      %1877 = vmatprep.subr.mxu0 0.0
      %1878 = vmatpush1.msra.mxu0 0.0
      %1879 = vmatprep.subr.mxu0 0.0
      %1880 = vmatpush1.msra.mxu0 0.0
      %1881 = vmatprep.subr.mxu0 0.0
      %1882 = vmatpush1.msra.mxu0 0.0
      %1883 = vmatprep.subr.mxu0 0.0
      %1884 = vmatpush1.msra.mxu0 0.0
      %1885 = vmatprep.subr.mxu0 0.0
      %1886 = vmatpush1.msra.mxu0 0.0
      %1887 = vmatprep.subr.mxu0 0.0
      %1888 = vmatpush1.msra.mxu0 0.0
      %1889 = vmatprep.mubr.f32.mxu0 0.0
      %1890 = vmatmul.mubr.f32.gmra.mrb[0].mxu0 %v1389
      %v1891 = vpop.f32.mrb[0].mxu0
      %v1892 = vadd.f32 %v1312, %v1891
      %v1893 = vpop.f32.mrb[0].mxu0
      %1894 = vdwg.mxu0
      %v1895 = vsel %vm803, %v208, 0
      %1897 = vmatprep.subr.mxu0 0.0
      %1898 = vmatpush1.msra.mxu0 %v1895
      %1899 = vmatprep.subr.mxu0 0.0
      %1900 = vmatpush1.msra.mxu0 0.0
      %1901 = vmatprep.subr.mxu0 0.0
      %1902 = vmatpush1.msra.mxu0 0.0
      %1903 = vmatprep.subr.mxu0 0.0
      %1904 = vmatpush1.msra.mxu0 0.0
      %1905 = vmatprep.subr.mxu0 0.0
      %1906 = vmatpush1.msra.mxu0 0.0
      %1907 = vmatprep.subr.mxu0 0.0
      %1908 = vmatpush1.msra.mxu0 0.0
      %1909 = vmatprep.subr.mxu0 0.0
      %1910 = vmatpush1.msra.mxu0 0.0
      %1911 = vmatprep.subr.mxu0 0.0
      %1912 = vmatpush1.msra.mxu0 0.0
      %1913 = vmatprep.subr.mxu0 0.0
      %1914 = vmatpush1.msra.mxu0 0.0
      %1915 = vmatprep.subr.mxu0 0.0
      %1916 = vmatpush1.msra.mxu0 0.0
      %1917 = vmatprep.subr.mxu0 0.0
      %1918 = vmatpush1.msra.mxu0 0.0
      %1919 = vmatprep.subr.mxu0 0.0
      %1920 = vmatpush1.msra.mxu0 0.0
      %1921 = vmatprep.subr.mxu0 0.0
      %1922 = vmatpush1.msra.mxu0 0.0
      %1923 = vmatprep.subr.mxu0 0.0
      %1924 = vmatpush1.msra.mxu0 0.0
      %1925 = vmatprep.subr.mxu0 0.0
      %1926 = vmatpush1.msra.mxu0 0.0
      %1927 = vmatprep.subr.mxu0 0.0
      %1928 = vmatpush1.msra.mxu0 0.0
      %1929 = vmatprep.subr.mxu0 0.0
      %1930 = vmatpush1.msra.mxu0 0.0
      %1931 = vmatprep.subr.mxu0 0.0
      %1932 = vmatpush1.msra.mxu0 0.0
      %1933 = vmatprep.subr.mxu0 0.0
      %1934 = vmatpush1.msra.mxu0 0.0
      %1935 = vmatprep.subr.mxu0 0.0
      %1936 = vmatpush1.msra.mxu0 0.0
      %1937 = vmatprep.subr.mxu0 0.0
      %1938 = vmatpush1.msra.mxu0 0.0
      %1939 = vmatprep.subr.mxu0 0.0
      %1940 = vmatpush1.msra.mxu0 0.0
      %1941 = vmatprep.subr.mxu0 0.0
      %1942 = vmatpush1.msra.mxu0 0.0
      %1943 = vmatprep.subr.mxu0 0.0
      %1944 = vmatpush1.msra.mxu0 0.0
      %1945 = vmatprep.subr.mxu0 0.0
      %1946 = vmatpush1.msra.mxu0 0.0
      %1947 = vmatprep.subr.mxu0 0.0
      %1948 = vmatpush1.msra.mxu0 0.0
      %1949 = vmatprep.subr.mxu0 0.0
      %1950 = vmatpush1.msra.mxu0 0.0
      %1951 = vmatprep.subr.mxu0 0.0
      %1952 = vmatpush1.msra.mxu0 0.0
      %1953 = vmatprep.subr.mxu0 0.0
      %1954 = vmatpush1.msra.mxu0 0.0
      %1955 = vmatprep.subr.mxu0 0.0
      %1956 = vmatpush1.msra.mxu0 0.0
      %1957 = vmatprep.subr.mxu0 0.0
      %1958 = vmatpush1.msra.mxu0 0.0
      %1959 = vmatprep.subr.mxu0 0.0
      %1960 = vmatpush1.msra.mxu0 0.0
      %1961 = vmatprep.mubr.f32.mxu0 0.0
      %1962 = vmatmul.mubr.f32.gmra.mrb[0].mxu0 %v1389
      %v1963 = vpop.f32.mrb[0].mxu0
      %v1964 = vadd.f32 %v1385, %v1963
      %v1965 = vpop.f32.mrb[0].mxu0
      %1966 = vdwg.mxu0
      %v1967 = vsel %vm212, %v283, 0
      %1969 = vmatprep.subr.mxu0 0.0
      %1970 = vmatpush1.msra.mxu0 %v210
      %1971 = vmatprep.subr.mxu0 0.0
      %1972 = vmatpush1.msra.mxu0 %v211
      %1973 = vmatprep.subr.mxu0 0.0
      %1974 = vmatpush1.msra.mxu0 0.0
      %1975 = vmatprep.subr.mxu0 0.0
      %1976 = vmatpush1.msra.mxu0 0.0
      %1977 = vmatprep.subr.mxu0 0.0
      %1978 = vmatpush1.msra.mxu0 0.0
      %1979 = vmatprep.subr.mxu0 0.0
      %1980 = vmatpush1.msra.mxu0 0.0
      %1981 = vmatprep.subr.mxu0 0.0
      %1982 = vmatpush1.msra.mxu0 0.0
      %1983 = vmatprep.subr.mxu0 0.0
      %1984 = vmatpush1.msra.mxu0 0.0
      %1985 = vmatprep.subr.mxu0 0.0
      %1986 = vmatpush1.msra.mxu0 0.0
      %1987 = vmatprep.subr.mxu0 0.0
      %1988 = vmatpush1.msra.mxu0 0.0
      %1989 = vmatprep.subr.mxu0 0.0
      %1990 = vmatpush1.msra.mxu0 0.0
      %1991 = vmatprep.subr.mxu0 0.0
      %1992 = vmatpush1.msra.mxu0 0.0
      %1993 = vmatprep.subr.mxu0 0.0
      %1994 = vmatpush1.msra.mxu0 0.0
      %1995 = vmatprep.subr.mxu0 0.0
      %1996 = vmatpush1.msra.mxu0 0.0
      %1997 = vmatprep.subr.mxu0 0.0
      %1998 = vmatpush1.msra.mxu0 0.0
      %1999 = vmatprep.subr.mxu0 0.0
      %2000 = vmatpush1.msra.mxu0 0.0
      %2001 = vmatprep.subr.mxu0 0.0
      %2002 = vmatpush1.msra.mxu0 0.0
      %2003 = vmatprep.subr.mxu0 0.0
      %2004 = vmatpush1.msra.mxu0 0.0
      %2005 = vmatprep.subr.mxu0 0.0
      %2006 = vmatpush1.msra.mxu0 0.0
      %2007 = vmatprep.subr.mxu0 0.0
      %2008 = vmatpush1.msra.mxu0 0.0
      %2009 = vmatprep.subr.mxu0 0.0
      %2010 = vmatpush1.msra.mxu0 0.0
      %2011 = vmatprep.subr.mxu0 0.0
      %2012 = vmatpush1.msra.mxu0 0.0
      %2013 = vmatprep.subr.mxu0 0.0
      %2014 = vmatpush1.msra.mxu0 0.0
      %2015 = vmatprep.subr.mxu0 0.0
      %2016 = vmatpush1.msra.mxu0 0.0
      %2017 = vmatprep.subr.mxu0 0.0
      %2018 = vmatpush1.msra.mxu0 0.0
      %2019 = vmatprep.subr.mxu0 0.0
      %2020 = vmatpush1.msra.mxu0 0.0
      %2021 = vmatprep.subr.mxu0 0.0
      %2022 = vmatpush1.msra.mxu0 0.0
      %2023 = vmatprep.subr.mxu0 0.0
      %2024 = vmatpush1.msra.mxu0 0.0
      %2025 = vmatprep.subr.mxu0 0.0
      %2026 = vmatpush1.msra.mxu0 0.0
      %2027 = vmatprep.subr.mxu0 0.0
      %2028 = vmatpush1.msra.mxu0 0.0
      %2029 = vmatprep.subr.mxu0 0.0
      %2030 = vmatpush1.msra.mxu0 0.0
      %2031 = vmatprep.subr.mxu0 0.0
      %2032 = vmatpush1.msra.mxu0 0.0
      %2033 = vmatprep.mubr.f32.mxu0 0.0
      %2034 = vmatmul.mubr.f32.gmra.mrb[0].mxu0 %v1967
      %v2035 = vpop.f32.mrb[0].mxu0
      %v2036 = vadd.f32 0.0, %v2035
      %v2037 = vpop.f32.mrb[0].mxu0
      %2038 = vdwg.mxu0
      %v2039 = vsel %vm212, %v356, 0
      %2041 = vmatprep.subr.mxu0 0.0
      %2042 = vmatpush1.msra.mxu0 %v210
      %2043 = vmatprep.subr.mxu0 0.0
      %2044 = vmatpush1.msra.mxu0 %v211
      %2045 = vmatprep.subr.mxu0 0.0
      %2046 = vmatpush1.msra.mxu0 0.0
      %2047 = vmatprep.subr.mxu0 0.0
      %2048 = vmatpush1.msra.mxu0 0.0
      %2049 = vmatprep.subr.mxu0 0.0
      %2050 = vmatpush1.msra.mxu0 0.0
      %2051 = vmatprep.subr.mxu0 0.0
      %2052 = vmatpush1.msra.mxu0 0.0
      %2053 = vmatprep.subr.mxu0 0.0
      %2054 = vmatpush1.msra.mxu0 0.0
      %2055 = vmatprep.subr.mxu0 0.0
      %2056 = vmatpush1.msra.mxu0 0.0
      %2057 = vmatprep.subr.mxu0 0.0
      %2058 = vmatpush1.msra.mxu0 0.0
      %2059 = vmatprep.subr.mxu0 0.0
      %2060 = vmatpush1.msra.mxu0 0.0
      %2061 = vmatprep.subr.mxu0 0.0
      %2062 = vmatpush1.msra.mxu0 0.0
      %2063 = vmatprep.subr.mxu0 0.0
      %2064 = vmatpush1.msra.mxu0 0.0
      %2065 = vmatprep.subr.mxu0 0.0
      %2066 = vmatpush1.msra.mxu0 0.0
      %2067 = vmatprep.subr.mxu0 0.0
      %2068 = vmatpush1.msra.mxu0 0.0
      %2069 = vmatprep.subr.mxu0 0.0
      %2070 = vmatpush1.msra.mxu0 0.0
      %2071 = vmatprep.subr.mxu0 0.0
      %2072 = vmatpush1.msra.mxu0 0.0
      %2073 = vmatprep.subr.mxu0 0.0
      %2074 = vmatpush1.msra.mxu0 0.0
      %2075 = vmatprep.subr.mxu0 0.0
      %2076 = vmatpush1.msra.mxu0 0.0
      %2077 = vmatprep.subr.mxu0 0.0
      %2078 = vmatpush1.msra.mxu0 0.0
      %2079 = vmatprep.subr.mxu0 0.0
      %2080 = vmatpush1.msra.mxu0 0.0
      %2081 = vmatprep.subr.mxu0 0.0
      %2082 = vmatpush1.msra.mxu0 0.0
      %2083 = vmatprep.subr.mxu0 0.0
      %2084 = vmatpush1.msra.mxu0 0.0
      %2085 = vmatprep.subr.mxu0 0.0
      %2086 = vmatpush1.msra.mxu0 0.0
      %2087 = vmatprep.subr.mxu0 0.0
      %2088 = vmatpush1.msra.mxu0 0.0
      %2089 = vmatprep.subr.mxu0 0.0
      %2090 = vmatpush1.msra.mxu0 0.0
      %2091 = vmatprep.subr.mxu0 0.0
      %2092 = vmatpush1.msra.mxu0 0.0
      %2093 = vmatprep.subr.mxu0 0.0
      %2094 = vmatpush1.msra.mxu0 0.0
      %2095 = vmatprep.subr.mxu0 0.0
      %2096 = vmatpush1.msra.mxu0 0.0
      %2097 = vmatprep.subr.mxu0 0.0
      %2098 = vmatpush1.msra.mxu0 0.0
      %2099 = vmatprep.subr.mxu0 0.0
      %2100 = vmatpush1.msra.mxu0 0.0
      %2101 = vmatprep.subr.mxu0 0.0
      %2102 = vmatpush1.msra.mxu0 0.0
      %2103 = vmatprep.subr.mxu0 0.0
      %2104 = vmatpush1.msra.mxu0 0.0
      %2105 = vmatprep.mubr.f32.mxu0 0.0
      %2106 = vmatmul.mubr.f32.gmra.mrb[0].mxu0 %v2039
      %v2107 = vpop.f32.mrb[0].mxu0
      %v2108 = vadd.f32 0.0, %v2107
      %v2109 = vpop.f32.mrb[0].mxu0
      %2110 = vdwg.mxu0
      %v2111 = vsel %vm212, %v429, 0
      %2113 = vmatprep.subr.mxu0 0.0
      %2114 = vmatpush1.msra.mxu0 %v210
      %2115 = vmatprep.subr.mxu0 0.0
      %2116 = vmatpush1.msra.mxu0 %v211
      %2117 = vmatprep.subr.mxu0 0.0
      %2118 = vmatpush1.msra.mxu0 0.0
      %2119 = vmatprep.subr.mxu0 0.0
      %2120 = vmatpush1.msra.mxu0 0.0
      %2121 = vmatprep.subr.mxu0 0.0
      %2122 = vmatpush1.msra.mxu0 0.0
      %2123 = vmatprep.subr.mxu0 0.0
      %2124 = vmatpush1.msra.mxu0 0.0
      %2125 = vmatprep.subr.mxu0 0.0
      %2126 = vmatpush1.msra.mxu0 0.0
      %2127 = vmatprep.subr.mxu0 0.0
      %2128 = vmatpush1.msra.mxu0 0.0
      %2129 = vmatprep.subr.mxu0 0.0
      %2130 = vmatpush1.msra.mxu0 0.0
      %2131 = vmatprep.subr.mxu0 0.0
      %2132 = vmatpush1.msra.mxu0 0.0
      %2133 = vmatprep.subr.mxu0 0.0
      %2134 = vmatpush1.msra.mxu0 0.0
      %2135 = vmatprep.subr.mxu0 0.0
      %2136 = vmatpush1.msra.mxu0 0.0
      %2137 = vmatprep.subr.mxu0 0.0
      %2138 = vmatpush1.msra.mxu0 0.0
      %2139 = vmatprep.subr.mxu0 0.0
      %2140 = vmatpush1.msra.mxu0 0.0
      %2141 = vmatprep.subr.mxu0 0.0
      %2142 = vmatpush1.msra.mxu0 0.0
      %2143 = vmatprep.subr.mxu0 0.0
      %2144 = vmatpush1.msra.mxu0 0.0
      %2145 = vmatprep.subr.mxu0 0.0
      %2146 = vmatpush1.msra.mxu0 0.0
      %2147 = vmatprep.subr.mxu0 0.0
      %2148 = vmatpush1.msra.mxu0 0.0
      %2149 = vmatprep.subr.mxu0 0.0
      %2150 = vmatpush1.msra.mxu0 0.0
      %2151 = vmatprep.subr.mxu0 0.0
      %2152 = vmatpush1.msra.mxu0 0.0
      %2153 = vmatprep.subr.mxu0 0.0
      %2154 = vmatpush1.msra.mxu0 0.0
      %2155 = vmatprep.subr.mxu0 0.0
      %2156 = vmatpush1.msra.mxu0 0.0
      %2157 = vmatprep.subr.mxu0 0.0
      %2158 = vmatpush1.msra.mxu0 0.0
      %2159 = vmatprep.subr.mxu0 0.0
      %2160 = vmatpush1.msra.mxu0 0.0
      %2161 = vmatprep.subr.mxu0 0.0
      %2162 = vmatpush1.msra.mxu0 0.0
      %2163 = vmatprep.subr.mxu0 0.0
      %2164 = vmatpush1.msra.mxu0 0.0
      %2165 = vmatprep.subr.mxu0 0.0
      %2166 = vmatpush1.msra.mxu0 0.0
      %2167 = vmatprep.subr.mxu0 0.0
      %2168 = vmatpush1.msra.mxu0 0.0
      %2169 = vmatprep.subr.mxu0 0.0
      %2170 = vmatpush1.msra.mxu0 0.0
      %2171 = vmatprep.subr.mxu0 0.0
      %2172 = vmatpush1.msra.mxu0 0.0
      %2173 = vmatprep.subr.mxu0 0.0
      %2174 = vmatpush1.msra.mxu0 0.0
      %2175 = vmatprep.subr.mxu0 0.0
      %2176 = vmatpush1.msra.mxu0 0.0
      %2177 = vmatprep.mubr.f32.mxu0 0.0
      %2178 = vmatmul.mubr.f32.gmra.mrb[0].mxu0 %v2111
      %v2179 = vpop.f32.mrb[0].mxu0
      %v2180 = vadd.f32 0.0, %v2179
      %v2181 = vpop.f32.mrb[0].mxu0
      %2182 = vdwg.mxu0
      %v2183 = vsel %vm212, %v502, 0
      %2185 = vmatprep.subr.mxu0 0.0
      %2186 = vmatpush1.msra.mxu0 %v210
      %2187 = vmatprep.subr.mxu0 0.0
      %2188 = vmatpush1.msra.mxu0 %v211
      %2189 = vmatprep.subr.mxu0 0.0
      %2190 = vmatpush1.msra.mxu0 0.0
      %2191 = vmatprep.subr.mxu0 0.0
      %2192 = vmatpush1.msra.mxu0 0.0
      %2193 = vmatprep.subr.mxu0 0.0
      %2194 = vmatpush1.msra.mxu0 0.0
      %2195 = vmatprep.subr.mxu0 0.0
      %2196 = vmatpush1.msra.mxu0 0.0
      %2197 = vmatprep.subr.mxu0 0.0
      %2198 = vmatpush1.msra.mxu0 0.0
      %2199 = vmatprep.subr.mxu0 0.0
      %2200 = vmatpush1.msra.mxu0 0.0
      %2201 = vmatprep.subr.mxu0 0.0
      %2202 = vmatpush1.msra.mxu0 0.0
      %2203 = vmatprep.subr.mxu0 0.0
      %2204 = vmatpush1.msra.mxu0 0.0
      %2205 = vmatprep.subr.mxu0 0.0
      %2206 = vmatpush1.msra.mxu0 0.0
      %2207 = vmatprep.subr.mxu0 0.0
      %2208 = vmatpush1.msra.mxu0 0.0
      %2209 = vmatprep.subr.mxu0 0.0
      %2210 = vmatpush1.msra.mxu0 0.0
      %2211 = vmatprep.subr.mxu0 0.0
      %2212 = vmatpush1.msra.mxu0 0.0
      %2213 = vmatprep.subr.mxu0 0.0
      %2214 = vmatpush1.msra.mxu0 0.0
      %2215 = vmatprep.subr.mxu0 0.0
      %2216 = vmatpush1.msra.mxu0 0.0
      %2217 = vmatprep.subr.mxu0 0.0
      %2218 = vmatpush1.msra.mxu0 0.0
      %2219 = vmatprep.subr.mxu0 0.0
      %2220 = vmatpush1.msra.mxu0 0.0
      %2221 = vmatprep.subr.mxu0 0.0
      %2222 = vmatpush1.msra.mxu0 0.0
      %2223 = vmatprep.subr.mxu0 0.0
      %2224 = vmatpush1.msra.mxu0 0.0
      %2225 = vmatprep.subr.mxu0 0.0
      %2226 = vmatpush1.msra.mxu0 0.0
      %2227 = vmatprep.subr.mxu0 0.0
      %2228 = vmatpush1.msra.mxu0 0.0
      %2229 = vmatprep.subr.mxu0 0.0
      %2230 = vmatpush1.msra.mxu0 0.0
      %2231 = vmatprep.subr.mxu0 0.0
      %2232 = vmatpush1.msra.mxu0 0.0
      %2233 = vmatprep.subr.mxu0 0.0
      %2234 = vmatpush1.msra.mxu0 0.0
      %2235 = vmatprep.subr.mxu0 0.0
      %2236 = vmatpush1.msra.mxu0 0.0
      %2237 = vmatprep.subr.mxu0 0.0
      %2238 = vmatpush1.msra.mxu0 0.0
      %2239 = vmatprep.subr.mxu0 0.0
      %2240 = vmatpush1.msra.mxu0 0.0
      %2241 = vmatprep.subr.mxu0 0.0
      %2242 = vmatpush1.msra.mxu0 0.0
      %2243 = vmatprep.subr.mxu0 0.0
      %2244 = vmatpush1.msra.mxu0 0.0
      %2245 = vmatprep.subr.mxu0 0.0
      %2246 = vmatpush1.msra.mxu0 0.0
      %2247 = vmatprep.subr.mxu0 0.0
      %2248 = vmatpush1.msra.mxu0 0.0
      %2249 = vmatprep.mubr.f32.mxu0 0.0
      %2250 = vmatmul.mubr.f32.gmra.mrb[0].mxu0 %v2183
      %v2251 = vpop.f32.mrb[0].mxu0
      %v2252 = vadd.f32 0.0, %v2251
      %v2253 = vpop.f32.mrb[0].mxu0
      %2254 = vdwg.mxu0
      %v2255 = vsel %vm212, %v575, 0
      %2257 = vmatprep.subr.mxu0 0.0
      %2258 = vmatpush1.msra.mxu0 %v210
      %2259 = vmatprep.subr.mxu0 0.0
      %2260 = vmatpush1.msra.mxu0 %v211
      %2261 = vmatprep.subr.mxu0 0.0
      %2262 = vmatpush1.msra.mxu0 0.0
      %2263 = vmatprep.subr.mxu0 0.0
      %2264 = vmatpush1.msra.mxu0 0.0
      %2265 = vmatprep.subr.mxu0 0.0
      %2266 = vmatpush1.msra.mxu0 0.0
      %2267 = vmatprep.subr.mxu0 0.0
      %2268 = vmatpush1.msra.mxu0 0.0
      %2269 = vmatprep.subr.mxu0 0.0
      %2270 = vmatpush1.msra.mxu0 0.0
      %2271 = vmatprep.subr.mxu0 0.0
      %2272 = vmatpush1.msra.mxu0 0.0
      %2273 = vmatprep.subr.mxu0 0.0
      %2274 = vmatpush1.msra.mxu0 0.0
      %2275 = vmatprep.subr.mxu0 0.0
      %2276 = vmatpush1.msra.mxu0 0.0
      %2277 = vmatprep.subr.mxu0 0.0
      %2278 = vmatpush1.msra.mxu0 0.0
      %2279 = vmatprep.subr.mxu0 0.0
      %2280 = vmatpush1.msra.mxu0 0.0
      %2281 = vmatprep.subr.mxu0 0.0
      %2282 = vmatpush1.msra.mxu0 0.0
      %2283 = vmatprep.subr.mxu0 0.0
      %2284 = vmatpush1.msra.mxu0 0.0
      %2285 = vmatprep.subr.mxu0 0.0
      %2286 = vmatpush1.msra.mxu0 0.0
      %2287 = vmatprep.subr.mxu0 0.0
      %2288 = vmatpush1.msra.mxu0 0.0
      %2289 = vmatprep.subr.mxu0 0.0
      %2290 = vmatpush1.msra.mxu0 0.0
      %2291 = vmatprep.subr.mxu0 0.0
      %2292 = vmatpush1.msra.mxu0 0.0
      %2293 = vmatprep.subr.mxu0 0.0
      %2294 = vmatpush1.msra.mxu0 0.0
      %2295 = vmatprep.subr.mxu0 0.0
      %2296 = vmatpush1.msra.mxu0 0.0
      %2297 = vmatprep.subr.mxu0 0.0
      %2298 = vmatpush1.msra.mxu0 0.0
      %2299 = vmatprep.subr.mxu0 0.0
      %2300 = vmatpush1.msra.mxu0 0.0
      %2301 = vmatprep.subr.mxu0 0.0
      %2302 = vmatpush1.msra.mxu0 0.0
      %2303 = vmatprep.subr.mxu0 0.0
      %2304 = vmatpush1.msra.mxu0 0.0
      %2305 = vmatprep.subr.mxu0 0.0
      %2306 = vmatpush1.msra.mxu0 0.0
      %2307 = vmatprep.subr.mxu0 0.0
      %2308 = vmatpush1.msra.mxu0 0.0
      %2309 = vmatprep.subr.mxu0 0.0
      %2310 = vmatpush1.msra.mxu0 0.0
      %2311 = vmatprep.subr.mxu0 0.0
      %2312 = vmatpush1.msra.mxu0 0.0
      %2313 = vmatprep.subr.mxu0 0.0
      %2314 = vmatpush1.msra.mxu0 0.0
      %2315 = vmatprep.subr.mxu0 0.0
      %2316 = vmatpush1.msra.mxu0 0.0
      %2317 = vmatprep.subr.mxu0 0.0
      %2318 = vmatpush1.msra.mxu0 0.0
      %2319 = vmatprep.subr.mxu0 0.0
      %2320 = vmatpush1.msra.mxu0 0.0
      %2321 = vmatprep.mubr.f32.mxu0 0.0
      %2322 = vmatmul.mubr.f32.gmra.mrb[0].mxu0 %v2255
      %v2323 = vpop.f32.mrb[0].mxu0
      %v2324 = vadd.f32 0.0, %v2323
      %v2325 = vpop.f32.mrb[0].mxu0
      %2326 = vdwg.mxu0
      %v2327 = vsel %vm212, %v648, 0
      %2329 = vmatprep.subr.mxu0 0.0
      %2330 = vmatpush1.msra.mxu0 %v210
      %2331 = vmatprep.subr.mxu0 0.0
      %2332 = vmatpush1.msra.mxu0 %v211
      %2333 = vmatprep.subr.mxu0 0.0
      %2334 = vmatpush1.msra.mxu0 0.0
      %2335 = vmatprep.subr.mxu0 0.0
      %2336 = vmatpush1.msra.mxu0 0.0
      %2337 = vmatprep.subr.mxu0 0.0
      %2338 = vmatpush1.msra.mxu0 0.0
      %2339 = vmatprep.subr.mxu0 0.0
      %2340 = vmatpush1.msra.mxu0 0.0
      %2341 = vmatprep.subr.mxu0 0.0
      %2342 = vmatpush1.msra.mxu0 0.0
      %2343 = vmatprep.subr.mxu0 0.0
      %2344 = vmatpush1.msra.mxu0 0.0
      %2345 = vmatprep.subr.mxu0 0.0
      %2346 = vmatpush1.msra.mxu0 0.0
      %2347 = vmatprep.subr.mxu0 0.0
      %2348 = vmatpush1.msra.mxu0 0.0
      %2349 = vmatprep.subr.mxu0 0.0
      %2350 = vmatpush1.msra.mxu0 0.0
      %2351 = vmatprep.subr.mxu0 0.0
      %2352 = vmatpush1.msra.mxu0 0.0
      %2353 = vmatprep.subr.mxu0 0.0
      %2354 = vmatpush1.msra.mxu0 0.0
      %2355 = vmatprep.subr.mxu0 0.0
      %2356 = vmatpush1.msra.mxu0 0.0
      %2357 = vmatprep.subr.mxu0 0.0
      %2358 = vmatpush1.msra.mxu0 0.0
      %2359 = vmatprep.subr.mxu0 0.0
      %2360 = vmatpush1.msra.mxu0 0.0
      %2361 = vmatprep.subr.mxu0 0.0
      %2362 = vmatpush1.msra.mxu0 0.0
      %2363 = vmatprep.subr.mxu0 0.0
      %2364 = vmatpush1.msra.mxu0 0.0
      %2365 = vmatprep.subr.mxu0 0.0
      %2366 = vmatpush1.msra.mxu0 0.0
      %2367 = vmatprep.subr.mxu0 0.0
      %2368 = vmatpush1.msra.mxu0 0.0
      %2369 = vmatprep.subr.mxu0 0.0
      %2370 = vmatpush1.msra.mxu0 0.0
      %2371 = vmatprep.subr.mxu0 0.0
      %2372 = vmatpush1.msra.mxu0 0.0
      %2373 = vmatprep.subr.mxu0 0.0
      %2374 = vmatpush1.msra.mxu0 0.0
      %2375 = vmatprep.subr.mxu0 0.0
      %2376 = vmatpush1.msra.mxu0 0.0
      %2377 = vmatprep.subr.mxu0 0.0
      %2378 = vmatpush1.msra.mxu0 0.0
      %2379 = vmatprep.subr.mxu0 0.0
      %2380 = vmatpush1.msra.mxu0 0.0
      %2381 = vmatprep.subr.mxu0 0.0
      %2382 = vmatpush1.msra.mxu0 0.0
      %2383 = vmatprep.subr.mxu0 0.0
      %2384 = vmatpush1.msra.mxu0 0.0
      %2385 = vmatprep.subr.mxu0 0.0
      %2386 = vmatpush1.msra.mxu0 0.0
      %2387 = vmatprep.subr.mxu0 0.0
      %2388 = vmatpush1.msra.mxu0 0.0
      %2389 = vmatprep.subr.mxu0 0.0
      %2390 = vmatpush1.msra.mxu0 0.0
      %2391 = vmatprep.subr.mxu0 0.0
      %2392 = vmatpush1.msra.mxu0 0.0
      %2393 = vmatprep.mubr.f32.mxu0 0.0
      %2394 = vmatmul.mubr.f32.gmra.mrb[0].mxu0 %v2327
      %v2395 = vpop.f32.mrb[0].mxu0
      %v2396 = vadd.f32 0.0, %v2395
      %v2397 = vpop.f32.mrb[0].mxu0
      %2398 = vdwg.mxu0
      %v2399 = vsel %vm212, %v721, 0
      %2401 = vmatprep.subr.mxu0 0.0
      %2402 = vmatpush1.msra.mxu0 %v210
      %2403 = vmatprep.subr.mxu0 0.0
      %2404 = vmatpush1.msra.mxu0 %v211
      %2405 = vmatprep.subr.mxu0 0.0
      %2406 = vmatpush1.msra.mxu0 0.0
      %2407 = vmatprep.subr.mxu0 0.0
      %2408 = vmatpush1.msra.mxu0 0.0
      %2409 = vmatprep.subr.mxu0 0.0
      %2410 = vmatpush1.msra.mxu0 0.0
      %2411 = vmatprep.subr.mxu0 0.0
      %2412 = vmatpush1.msra.mxu0 0.0
      %2413 = vmatprep.subr.mxu0 0.0
      %2414 = vmatpush1.msra.mxu0 0.0
      %2415 = vmatprep.subr.mxu0 0.0
      %2416 = vmatpush1.msra.mxu0 0.0
      %2417 = vmatprep.subr.mxu0 0.0
      %2418 = vmatpush1.msra.mxu0 0.0
      %2419 = vmatprep.subr.mxu0 0.0
      %2420 = vmatpush1.msra.mxu0 0.0
      %2421 = vmatprep.subr.mxu0 0.0
      %2422 = vmatpush1.msra.mxu0 0.0
      %2423 = vmatprep.subr.mxu0 0.0
      %2424 = vmatpush1.msra.mxu0 0.0
      %2425 = vmatprep.subr.mxu0 0.0
      %2426 = vmatpush1.msra.mxu0 0.0
      %2427 = vmatprep.subr.mxu0 0.0
      %2428 = vmatpush1.msra.mxu0 0.0
      %2429 = vmatprep.subr.mxu0 0.0
      %2430 = vmatpush1.msra.mxu0 0.0
      %2431 = vmatprep.subr.mxu0 0.0
      %2432 = vmatpush1.msra.mxu0 0.0
      %2433 = vmatprep.subr.mxu0 0.0
      %2434 = vmatpush1.msra.mxu0 0.0
      %2435 = vmatprep.subr.mxu0 0.0
      %2436 = vmatpush1.msra.mxu0 0.0
      %2437 = vmatprep.subr.mxu0 0.0
      %2438 = vmatpush1.msra.mxu0 0.0
      %2439 = vmatprep.subr.mxu0 0.0
      %2440 = vmatpush1.msra.mxu0 0.0
      %2441 = vmatprep.subr.mxu0 0.0
      %2442 = vmatpush1.msra.mxu0 0.0
      %2443 = vmatprep.subr.mxu0 0.0
      %2444 = vmatpush1.msra.mxu0 0.0
      %2445 = vmatprep.subr.mxu0 0.0
      %2446 = vmatpush1.msra.mxu0 0.0
      %2447 = vmatprep.subr.mxu0 0.0
      %2448 = vmatpush1.msra.mxu0 0.0
      %2449 = vmatprep.subr.mxu0 0.0
      %2450 = vmatpush1.msra.mxu0 0.0
      %2451 = vmatprep.subr.mxu0 0.0
      %2452 = vmatpush1.msra.mxu0 0.0
      %2453 = vmatprep.subr.mxu0 0.0
      %2454 = vmatpush1.msra.mxu0 0.0
      %2455 = vmatprep.subr.mxu0 0.0
      %2456 = vmatpush1.msra.mxu0 0.0
      %2457 = vmatprep.subr.mxu0 0.0
      %2458 = vmatpush1.msra.mxu0 0.0
      %2459 = vmatprep.subr.mxu0 0.0
      %2460 = vmatpush1.msra.mxu0 0.0
      %2461 = vmatprep.subr.mxu0 0.0
      %2462 = vmatpush1.msra.mxu0 0.0
      %2463 = vmatprep.subr.mxu0 0.0
      %2464 = vmatpush1.msra.mxu0 0.0
      %2465 = vmatprep.mubr.f32.mxu0 0.0
      %2466 = vmatmul.mubr.f32.gmra.mrb[0].mxu0 %v2399
      %v2467 = vpop.f32.mrb[0].mxu0
      %v2468 = vadd.f32 0.0, %v2467
      %v2469 = vpop.f32.mrb[0].mxu0
      %2470 = vdwg.mxu0
      %v2471 = vsel %vm212, %v794, 0
      %2473 = vmatprep.subr.mxu0 0.0
      %2474 = vmatpush1.msra.mxu0 %v210
      %2475 = vmatprep.subr.mxu0 0.0
      %2476 = vmatpush1.msra.mxu0 %v211
      %2477 = vmatprep.subr.mxu0 0.0
      %2478 = vmatpush1.msra.mxu0 0.0
      %2479 = vmatprep.subr.mxu0 0.0
      %2480 = vmatpush1.msra.mxu0 0.0
      %2481 = vmatprep.subr.mxu0 0.0
      %2482 = vmatpush1.msra.mxu0 0.0
      %2483 = vmatprep.subr.mxu0 0.0
      %2484 = vmatpush1.msra.mxu0 0.0
      %2485 = vmatprep.subr.mxu0 0.0
      %2486 = vmatpush1.msra.mxu0 0.0
      %2487 = vmatprep.subr.mxu0 0.0
      %2488 = vmatpush1.msra.mxu0 0.0
      %2489 = vmatprep.subr.mxu0 0.0
      %2490 = vmatpush1.msra.mxu0 0.0
      %2491 = vmatprep.subr.mxu0 0.0
      %2492 = vmatpush1.msra.mxu0 0.0
      %2493 = vmatprep.subr.mxu0 0.0
      %2494 = vmatpush1.msra.mxu0 0.0
      %2495 = vmatprep.subr.mxu0 0.0
      %2496 = vmatpush1.msra.mxu0 0.0
      %2497 = vmatprep.subr.mxu0 0.0
      %2498 = vmatpush1.msra.mxu0 0.0
      %2499 = vmatprep.subr.mxu0 0.0
      %2500 = vmatpush1.msra.mxu0 0.0
      %2501 = vmatprep.subr.mxu0 0.0
      %2502 = vmatpush1.msra.mxu0 0.0
      %2503 = vmatprep.subr.mxu0 0.0
      %2504 = vmatpush1.msra.mxu0 0.0
      %2505 = vmatprep.subr.mxu0 0.0
      %2506 = vmatpush1.msra.mxu0 0.0
      %2507 = vmatprep.subr.mxu0 0.0
      %2508 = vmatpush1.msra.mxu0 0.0
      %2509 = vmatprep.subr.mxu0 0.0
      %2510 = vmatpush1.msra.mxu0 0.0
      %2511 = vmatprep.subr.mxu0 0.0
      %2512 = vmatpush1.msra.mxu0 0.0
      %2513 = vmatprep.subr.mxu0 0.0
      %2514 = vmatpush1.msra.mxu0 0.0
      %2515 = vmatprep.subr.mxu0 0.0
      %2516 = vmatpush1.msra.mxu0 0.0
      %2517 = vmatprep.subr.mxu0 0.0
      %2518 = vmatpush1.msra.mxu0 0.0
      %2519 = vmatprep.subr.mxu0 0.0
      %2520 = vmatpush1.msra.mxu0 0.0
      %2521 = vmatprep.subr.mxu0 0.0
      %2522 = vmatpush1.msra.mxu0 0.0
      %2523 = vmatprep.subr.mxu0 0.0
      %2524 = vmatpush1.msra.mxu0 0.0
      %2525 = vmatprep.subr.mxu0 0.0
      %2526 = vmatpush1.msra.mxu0 0.0
      %2527 = vmatprep.subr.mxu0 0.0
      %2528 = vmatpush1.msra.mxu0 0.0
      %2529 = vmatprep.subr.mxu0 0.0
      %2530 = vmatpush1.msra.mxu0 0.0
      %2531 = vmatprep.subr.mxu0 0.0
      %2532 = vmatpush1.msra.mxu0 0.0
      %2533 = vmatprep.subr.mxu0 0.0
      %2534 = vmatpush1.msra.mxu0 0.0
      %2535 = vmatprep.subr.mxu0 0.0
      %2536 = vmatpush1.msra.mxu0 0.0
      %2537 = vmatprep.mubr.f32.mxu0 0.0
      %2538 = vmatmul.mubr.f32.gmra.mrb[0].mxu0 %v2471
      %v2539 = vpop.f32.mrb[0].mxu0
      %v2540 = vadd.f32 0.0, %v2539
      %v2541 = vpop.f32.mrb[0].mxu0
      %2542 = vdwg.mxu0
      %s2543 = scalar_lea.vmem %s2, 16
      %v2544 = vld [vmem:[%s2543] sm:$0xff]
      %v2546 = vsel %vm799, %v2544, 0
      %v2549 = vsel %vm803, %v2036, 0
      %2551 = vmatprep.subr.mxu0 0.0
      %2552 = vmatpush1.msra.mxu0 %v2549
      %2553 = vmatprep.subr.mxu0 0.0
      %2554 = vmatpush1.msra.mxu0 0.0
      %2555 = vmatprep.subr.mxu0 0.0
      %2556 = vmatpush1.msra.mxu0 0.0
      %2557 = vmatprep.subr.mxu0 0.0
      %2558 = vmatpush1.msra.mxu0 0.0
      %2559 = vmatprep.subr.mxu0 0.0
      %2560 = vmatpush1.msra.mxu0 0.0
      %2561 = vmatprep.subr.mxu0 0.0
      %2562 = vmatpush1.msra.mxu0 0.0
      %2563 = vmatprep.subr.mxu0 0.0
      %2564 = vmatpush1.msra.mxu0 0.0
      %2565 = vmatprep.subr.mxu0 0.0
      %2566 = vmatpush1.msra.mxu0 0.0
      %2567 = vmatprep.subr.mxu0 0.0
      %2568 = vmatpush1.msra.mxu0 0.0
      %2569 = vmatprep.subr.mxu0 0.0
      %2570 = vmatpush1.msra.mxu0 0.0
      %2571 = vmatprep.subr.mxu0 0.0
      %2572 = vmatpush1.msra.mxu0 0.0
      %2573 = vmatprep.subr.mxu0 0.0
      %2574 = vmatpush1.msra.mxu0 0.0
      %2575 = vmatprep.subr.mxu0 0.0
      %2576 = vmatpush1.msra.mxu0 0.0
      %2577 = vmatprep.subr.mxu0 0.0
      %2578 = vmatpush1.msra.mxu0 0.0
      %2579 = vmatprep.subr.mxu0 0.0
      %2580 = vmatpush1.msra.mxu0 0.0
      %2581 = vmatprep.subr.mxu0 0.0
      %2582 = vmatpush1.msra.mxu0 0.0
      %2583 = vmatprep.subr.mxu0 0.0
      %2584 = vmatpush1.msra.mxu0 0.0
      %2585 = vmatprep.subr.mxu0 0.0
      %2586 = vmatpush1.msra.mxu0 0.0
      %2587 = vmatprep.subr.mxu0 0.0
      %2588 = vmatpush1.msra.mxu0 0.0
      %2589 = vmatprep.subr.mxu0 0.0
      %2590 = vmatpush1.msra.mxu0 0.0
      %2591 = vmatprep.subr.mxu0 0.0
      %2592 = vmatpush1.msra.mxu0 0.0
      %2593 = vmatprep.subr.mxu0 0.0
      %2594 = vmatpush1.msra.mxu0 0.0
      %2595 = vmatprep.subr.mxu0 0.0
      %2596 = vmatpush1.msra.mxu0 0.0
      %2597 = vmatprep.subr.mxu0 0.0
      %2598 = vmatpush1.msra.mxu0 0.0
      %2599 = vmatprep.subr.mxu0 0.0
      %2600 = vmatpush1.msra.mxu0 0.0
      %2601 = vmatprep.subr.mxu0 0.0
      %2602 = vmatpush1.msra.mxu0 0.0
      %2603 = vmatprep.subr.mxu0 0.0
      %2604 = vmatpush1.msra.mxu0 0.0
      %2605 = vmatprep.subr.mxu0 0.0
      %2606 = vmatpush1.msra.mxu0 0.0
      %2607 = vmatprep.subr.mxu0 0.0
      %2608 = vmatpush1.msra.mxu0 0.0
      %2609 = vmatprep.subr.mxu0 0.0
      %2610 = vmatpush1.msra.mxu0 0.0
      %2611 = vmatprep.subr.mxu0 0.0
      %2612 = vmatpush1.msra.mxu0 0.0
      %2613 = vmatprep.subr.mxu0 0.0
      %2614 = vmatpush1.msra.mxu0 0.0
      %2615 = vmatprep.mubr.f32.mxu0 0.0
      %2616 = vmatmul.mubr.f32.gmra.mrb[0].mxu0 %v2546
      %v2617 = vpop.f32.mrb[0].mxu0
      %v2618 = vadd.f32 0.0, %v2617
      %v2619 = vpop.f32.mrb[0].mxu0
      %2620 = vdwg.mxu0
      %v2622 = vsel %vm803, %v2108, 0
      %2624 = vmatprep.subr.mxu0 0.0
      %2625 = vmatpush1.msra.mxu0 %v2622
      %2626 = vmatprep.subr.mxu0 0.0
      %2627 = vmatpush1.msra.mxu0 0.0
      %2628 = vmatprep.subr.mxu0 0.0
      %2629 = vmatpush1.msra.mxu0 0.0
      %2630 = vmatprep.subr.mxu0 0.0
      %2631 = vmatpush1.msra.mxu0 0.0
      %2632 = vmatprep.subr.mxu0 0.0
      %2633 = vmatpush1.msra.mxu0 0.0
      %2634 = vmatprep.subr.mxu0 0.0
      %2635 = vmatpush1.msra.mxu0 0.0
      %2636 = vmatprep.subr.mxu0 0.0
      %2637 = vmatpush1.msra.mxu0 0.0
      %2638 = vmatprep.subr.mxu0 0.0
      %2639 = vmatpush1.msra.mxu0 0.0
      %2640 = vmatprep.subr.mxu0 0.0
      %2641 = vmatpush1.msra.mxu0 0.0
      %2642 = vmatprep.subr.mxu0 0.0
      %2643 = vmatpush1.msra.mxu0 0.0
      %2644 = vmatprep.subr.mxu0 0.0
      %2645 = vmatpush1.msra.mxu0 0.0
      %2646 = vmatprep.subr.mxu0 0.0
      %2647 = vmatpush1.msra.mxu0 0.0
      %2648 = vmatprep.subr.mxu0 0.0
      %2649 = vmatpush1.msra.mxu0 0.0
      %2650 = vmatprep.subr.mxu0 0.0
      %2651 = vmatpush1.msra.mxu0 0.0
      %2652 = vmatprep.subr.mxu0 0.0
      %2653 = vmatpush1.msra.mxu0 0.0
      %2654 = vmatprep.subr.mxu0 0.0
      %2655 = vmatpush1.msra.mxu0 0.0
      %2656 = vmatprep.subr.mxu0 0.0
      %2657 = vmatpush1.msra.mxu0 0.0
      %2658 = vmatprep.subr.mxu0 0.0
      %2659 = vmatpush1.msra.mxu0 0.0
      %2660 = vmatprep.subr.mxu0 0.0
      %2661 = vmatpush1.msra.mxu0 0.0
      %2662 = vmatprep.subr.mxu0 0.0
      %2663 = vmatpush1.msra.mxu0 0.0
      %2664 = vmatprep.subr.mxu0 0.0
      %2665 = vmatpush1.msra.mxu0 0.0
      %2666 = vmatprep.subr.mxu0 0.0
      %2667 = vmatpush1.msra.mxu0 0.0
      %2668 = vmatprep.subr.mxu0 0.0
      %2669 = vmatpush1.msra.mxu0 0.0
      %2670 = vmatprep.subr.mxu0 0.0
      %2671 = vmatpush1.msra.mxu0 0.0
      %2672 = vmatprep.subr.mxu0 0.0
      %2673 = vmatpush1.msra.mxu0 0.0
      %2674 = vmatprep.subr.mxu0 0.0
      %2675 = vmatpush1.msra.mxu0 0.0
      %2676 = vmatprep.subr.mxu0 0.0
      %2677 = vmatpush1.msra.mxu0 0.0
      %2678 = vmatprep.subr.mxu0 0.0
      %2679 = vmatpush1.msra.mxu0 0.0
      %2680 = vmatprep.subr.mxu0 0.0
      %2681 = vmatpush1.msra.mxu0 0.0
      %2682 = vmatprep.subr.mxu0 0.0
      %2683 = vmatpush1.msra.mxu0 0.0
      %2684 = vmatprep.subr.mxu0 0.0
      %2685 = vmatpush1.msra.mxu0 0.0
      %2686 = vmatprep.subr.mxu0 0.0
      %2687 = vmatpush1.msra.mxu0 0.0
      %2688 = vmatprep.mubr.f32.mxu0 0.0
      %2689 = vmatmul.mubr.f32.gmra.mrb[0].mxu0 %v2546
      %v2690 = vpop.f32.mrb[0].mxu0
      %v2691 = vadd.f32 0.0, %v2690
      %v2692 = vpop.f32.mrb[0].mxu0
      %2693 = vdwg.mxu0
      %v2695 = vsel %vm803, %v2180, 0
      %2697 = vmatprep.subr.mxu0 0.0
      %2698 = vmatpush1.msra.mxu0 %v2695
      %2699 = vmatprep.subr.mxu0 0.0
      %2700 = vmatpush1.msra.mxu0 0.0
      %2701 = vmatprep.subr.mxu0 0.0
      %2702 = vmatpush1.msra.mxu0 0.0
      %2703 = vmatprep.subr.mxu0 0.0
      %2704 = vmatpush1.msra.mxu0 0.0
      %2705 = vmatprep.subr.mxu0 0.0
      %2706 = vmatpush1.msra.mxu0 0.0
      %2707 = vmatprep.subr.mxu0 0.0
      %2708 = vmatpush1.msra.mxu0 0.0
      %2709 = vmatprep.subr.mxu0 0.0
      %2710 = vmatpush1.msra.mxu0 0.0
      %2711 = vmatprep.subr.mxu0 0.0
      %2712 = vmatpush1.msra.mxu0 0.0
      %2713 = vmatprep.subr.mxu0 0.0
      %2714 = vmatpush1.msra.mxu0 0.0
      %2715 = vmatprep.subr.mxu0 0.0
      %2716 = vmatpush1.msra.mxu0 0.0
      %2717 = vmatprep.subr.mxu0 0.0
      %2718 = vmatpush1.msra.mxu0 0.0
      %2719 = vmatprep.subr.mxu0 0.0
      %2720 = vmatpush1.msra.mxu0 0.0
      %2721 = vmatprep.subr.mxu0 0.0
      %2722 = vmatpush1.msra.mxu0 0.0
      %2723 = vmatprep.subr.mxu0 0.0
      %2724 = vmatpush1.msra.mxu0 0.0
      %2725 = vmatprep.subr.mxu0 0.0
      %2726 = vmatpush1.msra.mxu0 0.0
      %2727 = vmatprep.subr.mxu0 0.0
      %2728 = vmatpush1.msra.mxu0 0.0
      %2729 = vmatprep.subr.mxu0 0.0
      %2730 = vmatpush1.msra.mxu0 0.0
      %2731 = vmatprep.subr.mxu0 0.0
      %2732 = vmatpush1.msra.mxu0 0.0
      %2733 = vmatprep.subr.mxu0 0.0
      %2734 = vmatpush1.msra.mxu0 0.0
      %2735 = vmatprep.subr.mxu0 0.0
      %2736 = vmatpush1.msra.mxu0 0.0
      %2737 = vmatprep.subr.mxu0 0.0
      %2738 = vmatpush1.msra.mxu0 0.0
      %2739 = vmatprep.subr.mxu0 0.0
      %2740 = vmatpush1.msra.mxu0 0.0
      %2741 = vmatprep.subr.mxu0 0.0
      %2742 = vmatpush1.msra.mxu0 0.0
      %2743 = vmatprep.subr.mxu0 0.0
      %2744 = vmatpush1.msra.mxu0 0.0
      %2745 = vmatprep.subr.mxu0 0.0
      %2746 = vmatpush1.msra.mxu0 0.0
      %2747 = vmatprep.subr.mxu0 0.0
      %2748 = vmatpush1.msra.mxu0 0.0
      %2749 = vmatprep.subr.mxu0 0.0
      %2750 = vmatpush1.msra.mxu0 0.0
      %2751 = vmatprep.subr.mxu0 0.0
      %2752 = vmatpush1.msra.mxu0 0.0
      %2753 = vmatprep.subr.mxu0 0.0
      %2754 = vmatpush1.msra.mxu0 0.0
      %2755 = vmatprep.subr.mxu0 0.0
      %2756 = vmatpush1.msra.mxu0 0.0
      %2757 = vmatprep.subr.mxu0 0.0
      %2758 = vmatpush1.msra.mxu0 0.0
      %2759 = vmatprep.subr.mxu0 0.0
      %2760 = vmatpush1.msra.mxu0 0.0
      %2761 = vmatprep.mubr.f32.mxu0 0.0
      %2762 = vmatmul.mubr.f32.gmra.mrb[0].mxu0 %v2546
      %v2763 = vpop.f32.mrb[0].mxu0
      %v2764 = vadd.f32 0.0, %v2763
      %v2765 = vpop.f32.mrb[0].mxu0
      %2766 = vdwg.mxu0
      %v2768 = vsel %vm803, %v2252, 0
      %2770 = vmatprep.subr.mxu0 0.0
      %2771 = vmatpush1.msra.mxu0 %v2768
      %2772 = vmatprep.subr.mxu0 0.0
      %2773 = vmatpush1.msra.mxu0 0.0
      %2774 = vmatprep.subr.mxu0 0.0
      %2775 = vmatpush1.msra.mxu0 0.0
      %2776 = vmatprep.subr.mxu0 0.0
      %2777 = vmatpush1.msra.mxu0 0.0
      %2778 = vmatprep.subr.mxu0 0.0
      %2779 = vmatpush1.msra.mxu0 0.0
      %2780 = vmatprep.subr.mxu0 0.0
      %2781 = vmatpush1.msra.mxu0 0.0
      %2782 = vmatprep.subr.mxu0 0.0
      %2783 = vmatpush1.msra.mxu0 0.0
      %2784 = vmatprep.subr.mxu0 0.0
      %2785 = vmatpush1.msra.mxu0 0.0
      %2786 = vmatprep.subr.mxu0 0.0
      %2787 = vmatpush1.msra.mxu0 0.0
      %2788 = vmatprep.subr.mxu0 0.0
      %2789 = vmatpush1.msra.mxu0 0.0
      %2790 = vmatprep.subr.mxu0 0.0
      %2791 = vmatpush1.msra.mxu0 0.0
      %2792 = vmatprep.subr.mxu0 0.0
      %2793 = vmatpush1.msra.mxu0 0.0
      %2794 = vmatprep.subr.mxu0 0.0
      %2795 = vmatpush1.msra.mxu0 0.0
      %2796 = vmatprep.subr.mxu0 0.0
      %2797 = vmatpush1.msra.mxu0 0.0
      %2798 = vmatprep.subr.mxu0 0.0
      %2799 = vmatpush1.msra.mxu0 0.0
      %2800 = vmatprep.subr.mxu0 0.0
      %2801 = vmatpush1.msra.mxu0 0.0
      %2802 = vmatprep.subr.mxu0 0.0
      %2803 = vmatpush1.msra.mxu0 0.0
      %2804 = vmatprep.subr.mxu0 0.0
      %2805 = vmatpush1.msra.mxu0 0.0
      %2806 = vmatprep.subr.mxu0 0.0
      %2807 = vmatpush1.msra.mxu0 0.0
      %2808 = vmatprep.subr.mxu0 0.0
      %2809 = vmatpush1.msra.mxu0 0.0
      %2810 = vmatprep.subr.mxu0 0.0
      %2811 = vmatpush1.msra.mxu0 0.0
      %2812 = vmatprep.subr.mxu0 0.0
      %2813 = vmatpush1.msra.mxu0 0.0
      %2814 = vmatprep.subr.mxu0 0.0
      %2815 = vmatpush1.msra.mxu0 0.0
      %2816 = vmatprep.subr.mxu0 0.0
      %2817 = vmatpush1.msra.mxu0 0.0
      %2818 = vmatprep.subr.mxu0 0.0
      %2819 = vmatpush1.msra.mxu0 0.0
      %2820 = vmatprep.subr.mxu0 0.0
      %2821 = vmatpush1.msra.mxu0 0.0
      %2822 = vmatprep.subr.mxu0 0.0
      %2823 = vmatpush1.msra.mxu0 0.0
      %2824 = vmatprep.subr.mxu0 0.0
      %2825 = vmatpush1.msra.mxu0 0.0
      %2826 = vmatprep.subr.mxu0 0.0
      %2827 = vmatpush1.msra.mxu0 0.0
      %2828 = vmatprep.subr.mxu0 0.0
      %2829 = vmatpush1.msra.mxu0 0.0
      %2830 = vmatprep.subr.mxu0 0.0
      %2831 = vmatpush1.msra.mxu0 0.0
      %2832 = vmatprep.subr.mxu0 0.0
      %2833 = vmatpush1.msra.mxu0 0.0
      %2834 = vmatprep.mubr.f32.mxu0 0.0
      %2835 = vmatmul.mubr.f32.gmra.mrb[0].mxu0 %v2546
      %v2836 = vpop.f32.mrb[0].mxu0
      %v2837 = vadd.f32 0.0, %v2836
      %v2838 = vpop.f32.mrb[0].mxu0
      %2839 = vdwg.mxu0
      %v2841 = vsel %vm803, %v2324, 0
      %2843 = vmatprep.subr.mxu0 0.0
      %2844 = vmatpush1.msra.mxu0 %v2841
      %2845 = vmatprep.subr.mxu0 0.0
      %2846 = vmatpush1.msra.mxu0 0.0
      %2847 = vmatprep.subr.mxu0 0.0
      %2848 = vmatpush1.msra.mxu0 0.0
      %2849 = vmatprep.subr.mxu0 0.0
      %2850 = vmatpush1.msra.mxu0 0.0
      %2851 = vmatprep.subr.mxu0 0.0
      %2852 = vmatpush1.msra.mxu0 0.0
      %2853 = vmatprep.subr.mxu0 0.0
      %2854 = vmatpush1.msra.mxu0 0.0
      %2855 = vmatprep.subr.mxu0 0.0
      %2856 = vmatpush1.msra.mxu0 0.0
      %2857 = vmatprep.subr.mxu0 0.0
      %2858 = vmatpush1.msra.mxu0 0.0
      %2859 = vmatprep.subr.mxu0 0.0
      %2860 = vmatpush1.msra.mxu0 0.0
      %2861 = vmatprep.subr.mxu0 0.0
      %2862 = vmatpush1.msra.mxu0 0.0
      %2863 = vmatprep.subr.mxu0 0.0
      %2864 = vmatpush1.msra.mxu0 0.0
      %2865 = vmatprep.subr.mxu0 0.0
      %2866 = vmatpush1.msra.mxu0 0.0
      %2867 = vmatprep.subr.mxu0 0.0
      %2868 = vmatpush1.msra.mxu0 0.0
      %2869 = vmatprep.subr.mxu0 0.0
      %2870 = vmatpush1.msra.mxu0 0.0
      %2871 = vmatprep.subr.mxu0 0.0
      %2872 = vmatpush1.msra.mxu0 0.0
      %2873 = vmatprep.subr.mxu0 0.0
      %2874 = vmatpush1.msra.mxu0 0.0
      %2875 = vmatprep.subr.mxu0 0.0
      %2876 = vmatpush1.msra.mxu0 0.0
      %2877 = vmatprep.subr.mxu0 0.0
      %2878 = vmatpush1.msra.mxu0 0.0
      %2879 = vmatprep.subr.mxu0 0.0
      %2880 = vmatpush1.msra.mxu0 0.0
      %2881 = vmatprep.subr.mxu0 0.0
      %2882 = vmatpush1.msra.mxu0 0.0
      %2883 = vmatprep.subr.mxu0 0.0
      %2884 = vmatpush1.msra.mxu0 0.0
      %2885 = vmatprep.subr.mxu0 0.0
      %2886 = vmatpush1.msra.mxu0 0.0
      %2887 = vmatprep.subr.mxu0 0.0
      %2888 = vmatpush1.msra.mxu0 0.0
      %2889 = vmatprep.subr.mxu0 0.0
      %2890 = vmatpush1.msra.mxu0 0.0
      %2891 = vmatprep.subr.mxu0 0.0
      %2892 = vmatpush1.msra.mxu0 0.0
      %2893 = vmatprep.subr.mxu0 0.0
      %2894 = vmatpush1.msra.mxu0 0.0
      %2895 = vmatprep.subr.mxu0 0.0
      %2896 = vmatpush1.msra.mxu0 0.0
      %2897 = vmatprep.subr.mxu0 0.0
      %2898 = vmatpush1.msra.mxu0 0.0
      %2899 = vmatprep.subr.mxu0 0.0
      %2900 = vmatpush1.msra.mxu0 0.0
      %2901 = vmatprep.subr.mxu0 0.0
      %2902 = vmatpush1.msra.mxu0 0.0
      %2903 = vmatprep.subr.mxu0 0.0
      %2904 = vmatpush1.msra.mxu0 0.0
      %2905 = vmatprep.subr.mxu0 0.0
      %2906 = vmatpush1.msra.mxu0 0.0
      %2907 = vmatprep.mubr.f32.mxu0 0.0
      %2908 = vmatmul.mubr.f32.gmra.mrb[0].mxu0 %v2546
      %v2909 = vpop.f32.mrb[0].mxu0
      %v2910 = vadd.f32 0.0, %v2909
      %v2911 = vpop.f32.mrb[0].mxu0
      %2912 = vdwg.mxu0
      %v2914 = vsel %vm803, %v2396, 0
      %2916 = vmatprep.subr.mxu0 0.0
      %2917 = vmatpush1.msra.mxu0 %v2914
      %2918 = vmatprep.subr.mxu0 0.0
      %2919 = vmatpush1.msra.mxu0 0.0
      %2920 = vmatprep.subr.mxu0 0.0
      %2921 = vmatpush1.msra.mxu0 0.0
      %2922 = vmatprep.subr.mxu0 0.0
      %2923 = vmatpush1.msra.mxu0 0.0
      %2924 = vmatprep.subr.mxu0 0.0
      %2925 = vmatpush1.msra.mxu0 0.0
      %2926 = vmatprep.subr.mxu0 0.0
      %2927 = vmatpush1.msra.mxu0 0.0
      %2928 = vmatprep.subr.mxu0 0.0
      %2929 = vmatpush1.msra.mxu0 0.0
      %2930 = vmatprep.subr.mxu0 0.0
      %2931 = vmatpush1.msra.mxu0 0.0
      %2932 = vmatprep.subr.mxu0 0.0
      %2933 = vmatpush1.msra.mxu0 0.0
      %2934 = vmatprep.subr.mxu0 0.0
      %2935 = vmatpush1.msra.mxu0 0.0
      %2936 = vmatprep.subr.mxu0 0.0
      %2937 = vmatpush1.msra.mxu0 0.0
      %2938 = vmatprep.subr.mxu0 0.0
      %2939 = vmatpush1.msra.mxu0 0.0
      %2940 = vmatprep.subr.mxu0 0.0
      %2941 = vmatpush1.msra.mxu0 0.0
      %2942 = vmatprep.subr.mxu0 0.0
      %2943 = vmatpush1.msra.mxu0 0.0
      %2944 = vmatprep.subr.mxu0 0.0
      %2945 = vmatpush1.msra.mxu0 0.0
      %2946 = vmatprep.subr.mxu0 0.0
      %2947 = vmatpush1.msra.mxu0 0.0
      %2948 = vmatprep.subr.mxu0 0.0
      %2949 = vmatpush1.msra.mxu0 0.0
      %2950 = vmatprep.subr.mxu0 0.0
      %2951 = vmatpush1.msra.mxu0 0.0
      %2952 = vmatprep.subr.mxu0 0.0
      %2953 = vmatpush1.msra.mxu0 0.0
      %2954 = vmatprep.subr.mxu0 0.0
      %2955 = vmatpush1.msra.mxu0 0.0
      %2956 = vmatprep.subr.mxu0 0.0
      %2957 = vmatpush1.msra.mxu0 0.0
      %2958 = vmatprep.subr.mxu0 0.0
      %2959 = vmatpush1.msra.mxu0 0.0
      %2960 = vmatprep.subr.mxu0 0.0
      %2961 = vmatpush1.msra.mxu0 0.0
      %2962 = vmatprep.subr.mxu0 0.0
      %2963 = vmatpush1.msra.mxu0 0.0
      %2964 = vmatprep.subr.mxu0 0.0
      %2965 = vmatpush1.msra.mxu0 0.0
      %2966 = vmatprep.subr.mxu0 0.0
      %2967 = vmatpush1.msra.mxu0 0.0
      %2968 = vmatprep.subr.mxu0 0.0
      %2969 = vmatpush1.msra.mxu0 0.0
      %2970 = vmatprep.subr.mxu0 0.0
      %2971 = vmatpush1.msra.mxu0 0.0
      %2972 = vmatprep.subr.mxu0 0.0
      %2973 = vmatpush1.msra.mxu0 0.0
      %2974 = vmatprep.subr.mxu0 0.0
      %2975 = vmatpush1.msra.mxu0 0.0
      %2976 = vmatprep.subr.mxu0 0.0
      %2977 = vmatpush1.msra.mxu0 0.0
      %2978 = vmatprep.subr.mxu0 0.0
      %2979 = vmatpush1.msra.mxu0 0.0
      %2980 = vmatprep.mubr.f32.mxu0 0.0
      %2981 = vmatmul.mubr.f32.gmra.mrb[0].mxu0 %v2546
      %v2982 = vpop.f32.mrb[0].mxu0
      %v2983 = vadd.f32 0.0, %v2982
      %v2984 = vpop.f32.mrb[0].mxu0
      %2985 = vdwg.mxu0
      %v2987 = vsel %vm803, %v2468, 0
      %2989 = vmatprep.subr.mxu0 0.0
      %2990 = vmatpush1.msra.mxu0 %v2987
      %2991 = vmatprep.subr.mxu0 0.0
      %2992 = vmatpush1.msra.mxu0 0.0
      %2993 = vmatprep.subr.mxu0 0.0
      %2994 = vmatpush1.msra.mxu0 0.0
      %2995 = vmatprep.subr.mxu0 0.0
      %2996 = vmatpush1.msra.mxu0 0.0
      %2997 = vmatprep.subr.mxu0 0.0
      %2998 = vmatpush1.msra.mxu0 0.0
      %2999 = vmatprep.subr.mxu0 0.0
      %3000 = vmatpush1.msra.mxu0 0.0
      %3001 = vmatprep.subr.mxu0 0.0
      %3002 = vmatpush1.msra.mxu0 0.0
      %3003 = vmatprep.subr.mxu0 0.0
      %3004 = vmatpush1.msra.mxu0 0.0
      %3005 = vmatprep.subr.mxu0 0.0
      %3006 = vmatpush1.msra.mxu0 0.0
      %3007 = vmatprep.subr.mxu0 0.0
      %3008 = vmatpush1.msra.mxu0 0.0
      %3009 = vmatprep.subr.mxu0 0.0
      %3010 = vmatpush1.msra.mxu0 0.0
      %3011 = vmatprep.subr.mxu0 0.0
      %3012 = vmatpush1.msra.mxu0 0.0
      %3013 = vmatprep.subr.mxu0 0.0
      %3014 = vmatpush1.msra.mxu0 0.0
      %3015 = vmatprep.subr.mxu0 0.0
      %3016 = vmatpush1.msra.mxu0 0.0
      %3017 = vmatprep.subr.mxu0 0.0
      %3018 = vmatpush1.msra.mxu0 0.0
      %3019 = vmatprep.subr.mxu0 0.0
      %3020 = vmatpush1.msra.mxu0 0.0
      %3021 = vmatprep.subr.mxu0 0.0
      %3022 = vmatpush1.msra.mxu0 0.0
      %3023 = vmatprep.subr.mxu0 0.0
      %3024 = vmatpush1.msra.mxu0 0.0
      %3025 = vmatprep.subr.mxu0 0.0
      %3026 = vmatpush1.msra.mxu0 0.0
      %3027 = vmatprep.subr.mxu0 0.0
      %3028 = vmatpush1.msra.mxu0 0.0
      %3029 = vmatprep.subr.mxu0 0.0
      %3030 = vmatpush1.msra.mxu0 0.0
      %3031 = vmatprep.subr.mxu0 0.0
      %3032 = vmatpush1.msra.mxu0 0.0
      %3033 = vmatprep.subr.mxu0 0.0
      %3034 = vmatpush1.msra.mxu0 0.0
      %3035 = vmatprep.subr.mxu0 0.0
      %3036 = vmatpush1.msra.mxu0 0.0
      %3037 = vmatprep.subr.mxu0 0.0
      %3038 = vmatpush1.msra.mxu0 0.0
      %3039 = vmatprep.subr.mxu0 0.0
      %3040 = vmatpush1.msra.mxu0 0.0
      %3041 = vmatprep.subr.mxu0 0.0
      %3042 = vmatpush1.msra.mxu0 0.0
      %3043 = vmatprep.subr.mxu0 0.0
      %3044 = vmatpush1.msra.mxu0 0.0
      %3045 = vmatprep.subr.mxu0 0.0
      %3046 = vmatpush1.msra.mxu0 0.0
      %3047 = vmatprep.subr.mxu0 0.0
      %3048 = vmatpush1.msra.mxu0 0.0
      %3049 = vmatprep.subr.mxu0 0.0
      %3050 = vmatpush1.msra.mxu0 0.0
      %3051 = vmatprep.subr.mxu0 0.0
      %3052 = vmatpush1.msra.mxu0 0.0
      %3053 = vmatprep.mubr.f32.mxu0 0.0
      %3054 = vmatmul.mubr.f32.gmra.mrb[0].mxu0 %v2546
      %v3055 = vpop.f32.mrb[0].mxu0
      %v3056 = vadd.f32 0.0, %v3055
      %v3057 = vpop.f32.mrb[0].mxu0
      %3058 = vdwg.mxu0
      %v3060 = vsel %vm803, %v2540, 0
      %3062 = vmatprep.subr.mxu0 0.0
      %3063 = vmatpush1.msra.mxu0 %v3060
      %3064 = vmatprep.subr.mxu0 0.0
      %3065 = vmatpush1.msra.mxu0 0.0
      %3066 = vmatprep.subr.mxu0 0.0
      %3067 = vmatpush1.msra.mxu0 0.0
      %3068 = vmatprep.subr.mxu0 0.0
      %3069 = vmatpush1.msra.mxu0 0.0
      %3070 = vmatprep.subr.mxu0 0.0
      %3071 = vmatpush1.msra.mxu0 0.0
      %3072 = vmatprep.subr.mxu0 0.0
      %3073 = vmatpush1.msra.mxu0 0.0
      %3074 = vmatprep.subr.mxu0 0.0
      %3075 = vmatpush1.msra.mxu0 0.0
      %3076 = vmatprep.subr.mxu0 0.0
      %3077 = vmatpush1.msra.mxu0 0.0
      %3078 = vmatprep.subr.mxu0 0.0
      %3079 = vmatpush1.msra.mxu0 0.0
      %3080 = vmatprep.subr.mxu0 0.0
      %3081 = vmatpush1.msra.mxu0 0.0
      %3082 = vmatprep.subr.mxu0 0.0
      %3083 = vmatpush1.msra.mxu0 0.0
      %3084 = vmatprep.subr.mxu0 0.0
      %3085 = vmatpush1.msra.mxu0 0.0
      %3086 = vmatprep.subr.mxu0 0.0
      %3087 = vmatpush1.msra.mxu0 0.0
      %3088 = vmatprep.subr.mxu0 0.0
      %3089 = vmatpush1.msra.mxu0 0.0
      %3090 = vmatprep.subr.mxu0 0.0
      %3091 = vmatpush1.msra.mxu0 0.0
      %3092 = vmatprep.subr.mxu0 0.0
      %3093 = vmatpush1.msra.mxu0 0.0
      %3094 = vmatprep.subr.mxu0 0.0
      %3095 = vmatpush1.msra.mxu0 0.0
      %3096 = vmatprep.subr.mxu0 0.0
      %3097 = vmatpush1.msra.mxu0 0.0
      %3098 = vmatprep.subr.mxu0 0.0
      %3099 = vmatpush1.msra.mxu0 0.0
      %3100 = vmatprep.subr.mxu0 0.0
      %3101 = vmatpush1.msra.mxu0 0.0
      %3102 = vmatprep.subr.mxu0 0.0
      %3103 = vmatpush1.msra.mxu0 0.0
      %3104 = vmatprep.subr.mxu0 0.0
      %3105 = vmatpush1.msra.mxu0 0.0
      %3106 = vmatprep.subr.mxu0 0.0
      %3107 = vmatpush1.msra.mxu0 0.0
      %3108 = vmatprep.subr.mxu0 0.0
      %3109 = vmatpush1.msra.mxu0 0.0
      %3110 = vmatprep.subr.mxu0 0.0
      %3111 = vmatpush1.msra.mxu0 0.0
      %3112 = vmatprep.subr.mxu0 0.0
      %3113 = vmatpush1.msra.mxu0 0.0
      %3114 = vmatprep.subr.mxu0 0.0
      %3115 = vmatpush1.msra.mxu0 0.0
      %3116 = vmatprep.subr.mxu0 0.0
      %3117 = vmatpush1.msra.mxu0 0.0
      %3118 = vmatprep.subr.mxu0 0.0
      %3119 = vmatpush1.msra.mxu0 0.0
      %3120 = vmatprep.subr.mxu0 0.0
      %3121 = vmatpush1.msra.mxu0 0.0
      %3122 = vmatprep.subr.mxu0 0.0
      %3123 = vmatpush1.msra.mxu0 0.0
      %3124 = vmatprep.subr.mxu0 0.0
      %3125 = vmatpush1.msra.mxu0 0.0
      %3126 = vmatprep.mubr.f32.mxu0 0.0
      %3127 = vmatmul.mubr.f32.gmra.mrb[0].mxu0 %v2546
      %v3128 = vpop.f32.mrb[0].mxu0
      %v3129 = vadd.f32 0.0, %v3128
      %v3130 = vpop.f32.mrb[0].mxu0
      %3131 = vdwg.mxu0
      %v3132 = vadd.f32 %v1460, %v2618
      %v3133 = vadd.f32 %v1532, %v2691
      %v3134 = vadd.f32 %v1604, %v2764
      %v3135 = vadd.f32 %v1676, %v2837
      %v3136 = vadd.f32 %v1748, %v2910
      %v3137 = vadd.f32 %v1820, %v2983
      %v3138 = vadd.f32 %v1892, %v3056
      %v3139 = vadd.f32 %v1964, %v3129
      %s3140 = scalar_lea.vmem %s1, 16
      %v3141 = vld [vmem:[%s3140] sm:$0xff]
      %v3142 = vld [vmem:[%s3140 + $0x8] sm:$0xff]
      %3143 = vmatprep.subr.mxu0 0.0
      %3144 = vmatpush1.msra.mxu0 %v3141
      %3145 = vmatprep.subr.mxu0 0.0
      %3146 = vmatpush1.msra.mxu0 %v3142
      %3147 = vmatprep.subr.mxu0 0.0
      %3148 = vmatpush1.msra.mxu0 0.0
      %3149 = vmatprep.subr.mxu0 0.0
      %3150 = vmatpush1.msra.mxu0 0.0
      %3151 = vmatprep.subr.mxu0 0.0
      %3152 = vmatpush1.msra.mxu0 0.0
      %3153 = vmatprep.subr.mxu0 0.0
      %3154 = vmatpush1.msra.mxu0 0.0
      %3155 = vmatprep.subr.mxu0 0.0
      %3156 = vmatpush1.msra.mxu0 0.0
      %3157 = vmatprep.subr.mxu0 0.0
      %3158 = vmatpush1.msra.mxu0 0.0
      %3159 = vmatprep.subr.mxu0 0.0
      %3160 = vmatpush1.msra.mxu0 0.0
      %3161 = vmatprep.subr.mxu0 0.0
      %3162 = vmatpush1.msra.mxu0 0.0
      %3163 = vmatprep.subr.mxu0 0.0
      %3164 = vmatpush1.msra.mxu0 0.0
      %3165 = vmatprep.subr.mxu0 0.0
      %3166 = vmatpush1.msra.mxu0 0.0
      %3167 = vmatprep.subr.mxu0 0.0
      %3168 = vmatpush1.msra.mxu0 0.0
      %3169 = vmatprep.subr.mxu0 0.0
      %3170 = vmatpush1.msra.mxu0 0.0
      %3171 = vmatprep.subr.mxu0 0.0
      %3172 = vmatpush1.msra.mxu0 0.0
      %3173 = vmatprep.subr.mxu0 0.0
      %3174 = vmatpush1.msra.mxu0 0.0
      %3175 = vmatprep.subr.mxu0 0.0
      %3176 = vmatpush1.msra.mxu0 0.0
      %3177 = vmatprep.subr.mxu0 0.0
      %3178 = vmatpush1.msra.mxu0 0.0
      %3179 = vmatprep.subr.mxu0 0.0
      %3180 = vmatpush1.msra.mxu0 0.0
      %3181 = vmatprep.subr.mxu0 0.0
      %3182 = vmatpush1.msra.mxu0 0.0
      %3183 = vmatprep.subr.mxu0 0.0
      %3184 = vmatpush1.msra.mxu0 0.0
      %3185 = vmatprep.subr.mxu0 0.0
      %3186 = vmatpush1.msra.mxu0 0.0
      %3187 = vmatprep.subr.mxu0 0.0
      %3188 = vmatpush1.msra.mxu0 0.0
      %3189 = vmatprep.subr.mxu0 0.0
      %3190 = vmatpush1.msra.mxu0 0.0
      %3191 = vmatprep.subr.mxu0 0.0
      %3192 = vmatpush1.msra.mxu0 0.0
      %3193 = vmatprep.subr.mxu0 0.0
      %3194 = vmatpush1.msra.mxu0 0.0
      %3195 = vmatprep.subr.mxu0 0.0
      %3196 = vmatpush1.msra.mxu0 0.0
      %3197 = vmatprep.subr.mxu0 0.0
      %3198 = vmatpush1.msra.mxu0 0.0
      %3199 = vmatprep.subr.mxu0 0.0
      %3200 = vmatpush1.msra.mxu0 0.0
      %3201 = vmatprep.subr.mxu0 0.0
      %3202 = vmatpush1.msra.mxu0 0.0
      %3203 = vmatprep.subr.mxu0 0.0
      %3204 = vmatpush1.msra.mxu0 0.0
      %3205 = vmatprep.subr.mxu0 0.0
      %3206 = vmatpush1.msra.mxu0 0.0
      %3207 = vmatprep.mubr.f32.mxu0 0.0
      %3208 = vmatmul.mubr.f32.gmra.mrb[0].mxu0 %v214
      %v3209 = vpop.f32.mrb[0].mxu0
      %v3210 = vadd.f32 0.0, %v3209
      %v3211 = vpop.f32.mrb[0].mxu0
      %3212 = vdwg.mxu0
      %3213 = vmatprep.subr.mxu0 0.0
      %3214 = vmatpush1.msra.mxu0 %v3141
      %3215 = vmatprep.subr.mxu0 0.0
      %3216 = vmatpush1.msra.mxu0 %v3142
      %3217 = vmatprep.subr.mxu0 0.0
      %3218 = vmatpush1.msra.mxu0 0.0
      %3219 = vmatprep.subr.mxu0 0.0
      %3220 = vmatpush1.msra.mxu0 0.0
      %3221 = vmatprep.subr.mxu0 0.0
      %3222 = vmatpush1.msra.mxu0 0.0
      %3223 = vmatprep.subr.mxu0 0.0
      %3224 = vmatpush1.msra.mxu0 0.0
      %3225 = vmatprep.subr.mxu0 0.0
      %3226 = vmatpush1.msra.mxu0 0.0
      %3227 = vmatprep.subr.mxu0 0.0
      %3228 = vmatpush1.msra.mxu0 0.0
      %3229 = vmatprep.subr.mxu0 0.0
      %3230 = vmatpush1.msra.mxu0 0.0
      %3231 = vmatprep.subr.mxu0 0.0
      %3232 = vmatpush1.msra.mxu0 0.0
      %3233 = vmatprep.subr.mxu0 0.0
      %3234 = vmatpush1.msra.mxu0 0.0
      %3235 = vmatprep.subr.mxu0 0.0
      %3236 = vmatpush1.msra.mxu0 0.0
      %3237 = vmatprep.subr.mxu0 0.0
      %3238 = vmatpush1.msra.mxu0 0.0
      %3239 = vmatprep.subr.mxu0 0.0
      %3240 = vmatpush1.msra.mxu0 0.0
      %3241 = vmatprep.subr.mxu0 0.0
      %3242 = vmatpush1.msra.mxu0 0.0
      %3243 = vmatprep.subr.mxu0 0.0
      %3244 = vmatpush1.msra.mxu0 0.0
      %3245 = vmatprep.subr.mxu0 0.0
      %3246 = vmatpush1.msra.mxu0 0.0
      %3247 = vmatprep.subr.mxu0 0.0
      %3248 = vmatpush1.msra.mxu0 0.0
      %3249 = vmatprep.subr.mxu0 0.0
      %3250 = vmatpush1.msra.mxu0 0.0
      %3251 = vmatprep.subr.mxu0 0.0
      %3252 = vmatpush1.msra.mxu0 0.0
      %3253 = vmatprep.subr.mxu0 0.0
      %3254 = vmatpush1.msra.mxu0 0.0
      %3255 = vmatprep.subr.mxu0 0.0
      %3256 = vmatpush1.msra.mxu0 0.0
      %3257 = vmatprep.subr.mxu0 0.0
      %3258 = vmatpush1.msra.mxu0 0.0
      %3259 = vmatprep.subr.mxu0 0.0
      %3260 = vmatpush1.msra.mxu0 0.0
      %3261 = vmatprep.subr.mxu0 0.0
      %3262 = vmatpush1.msra.mxu0 0.0
      %3263 = vmatprep.subr.mxu0 0.0
      %3264 = vmatpush1.msra.mxu0 0.0
      %3265 = vmatprep.subr.mxu0 0.0
      %3266 = vmatpush1.msra.mxu0 0.0
      %3267 = vmatprep.subr.mxu0 0.0
      %3268 = vmatpush1.msra.mxu0 0.0
      %3269 = vmatprep.subr.mxu0 0.0
      %3270 = vmatpush1.msra.mxu0 0.0
      %3271 = vmatprep.subr.mxu0 0.0
      %3272 = vmatpush1.msra.mxu0 0.0
      %3273 = vmatprep.subr.mxu0 0.0
      %3274 = vmatpush1.msra.mxu0 0.0
      %3275 = vmatprep.subr.mxu0 0.0
      %3276 = vmatpush1.msra.mxu0 0.0
      %3277 = vmatprep.mubr.f32.mxu0 0.0
      %3278 = vmatmul.mubr.f32.gmra.mrb[0].mxu0 %v287
      %v3279 = vpop.f32.mrb[0].mxu0
      %v3280 = vadd.f32 0.0, %v3279
      %v3281 = vpop.f32.mrb[0].mxu0
      %3282 = vdwg.mxu0
      %3283 = vmatprep.subr.mxu0 0.0
      %3284 = vmatpush1.msra.mxu0 %v3141
      %3285 = vmatprep.subr.mxu0 0.0
      %3286 = vmatpush1.msra.mxu0 %v3142
      %3287 = vmatprep.subr.mxu0 0.0
      %3288 = vmatpush1.msra.mxu0 0.0
      %3289 = vmatprep.subr.mxu0 0.0
      %3290 = vmatpush1.msra.mxu0 0.0
      %3291 = vmatprep.subr.mxu0 0.0
      %3292 = vmatpush1.msra.mxu0 0.0
      %3293 = vmatprep.subr.mxu0 0.0
      %3294 = vmatpush1.msra.mxu0 0.0
      %3295 = vmatprep.subr.mxu0 0.0
      %3296 = vmatpush1.msra.mxu0 0.0
      %3297 = vmatprep.subr.mxu0 0.0
      %3298 = vmatpush1.msra.mxu0 0.0
      %3299 = vmatprep.subr.mxu0 0.0
      %3300 = vmatpush1.msra.mxu0 0.0
      %3301 = vmatprep.subr.mxu0 0.0
      %3302 = vmatpush1.msra.mxu0 0.0
      %3303 = vmatprep.subr.mxu0 0.0
      %3304 = vmatpush1.msra.mxu0 0.0
      %3305 = vmatprep.subr.mxu0 0.0
      %3306 = vmatpush1.msra.mxu0 0.0
      %3307 = vmatprep.subr.mxu0 0.0
      %3308 = vmatpush1.msra.mxu0 0.0
      %3309 = vmatprep.subr.mxu0 0.0
      %3310 = vmatpush1.msra.mxu0 0.0
      %3311 = vmatprep.subr.mxu0 0.0
      %3312 = vmatpush1.msra.mxu0 0.0
      %3313 = vmatprep.subr.mxu0 0.0
      %3314 = vmatpush1.msra.mxu0 0.0
      %3315 = vmatprep.subr.mxu0 0.0
      %3316 = vmatpush1.msra.mxu0 0.0
      %3317 = vmatprep.subr.mxu0 0.0
      %3318 = vmatpush1.msra.mxu0 0.0
      %3319 = vmatprep.subr.mxu0 0.0
      %3320 = vmatpush1.msra.mxu0 0.0
      %3321 = vmatprep.subr.mxu0 0.0
      %3322 = vmatpush1.msra.mxu0 0.0
      %3323 = vmatprep.subr.mxu0 0.0
      %3324 = vmatpush1.msra.mxu0 0.0
      %3325 = vmatprep.subr.mxu0 0.0
      %3326 = vmatpush1.msra.mxu0 0.0
      %3327 = vmatprep.subr.mxu0 0.0
      %3328 = vmatpush1.msra.mxu0 0.0
      %3329 = vmatprep.subr.mxu0 0.0
      %3330 = vmatpush1.msra.mxu0 0.0
      %3331 = vmatprep.subr.mxu0 0.0
      %3332 = vmatpush1.msra.mxu0 0.0
      %3333 = vmatprep.subr.mxu0 0.0
      %3334 = vmatpush1.msra.mxu0 0.0
      %3335 = vmatprep.subr.mxu0 0.0
      %3336 = vmatpush1.msra.mxu0 0.0
      %3337 = vmatprep.subr.mxu0 0.0
      %3338 = vmatpush1.msra.mxu0 0.0
      %3339 = vmatprep.subr.mxu0 0.0
      %3340 = vmatpush1.msra.mxu0 0.0
      %3341 = vmatprep.subr.mxu0 0.0
      %3342 = vmatpush1.msra.mxu0 0.0
      %3343 = vmatprep.subr.mxu0 0.0
      %3344 = vmatpush1.msra.mxu0 0.0
      %3345 = vmatprep.subr.mxu0 0.0
      %3346 = vmatpush1.msra.mxu0 0.0
      %3347 = vmatprep.mubr.f32.mxu0 0.0
      %3348 = vmatmul.mubr.f32.gmra.mrb[0].mxu0 %v360
      %v3349 = vpop.f32.mrb[0].mxu0
      %v3350 = vadd.f32 0.0, %v3349
      %v3351 = vpop.f32.mrb[0].mxu0
      %3352 = vdwg.mxu0
      %3353 = vmatprep.subr.mxu0 0.0
      %3354 = vmatpush1.msra.mxu0 %v3141
      %3355 = vmatprep.subr.mxu0 0.0
      %3356 = vmatpush1.msra.mxu0 %v3142
      %3357 = vmatprep.subr.mxu0 0.0
      %3358 = vmatpush1.msra.mxu0 0.0
      %3359 = vmatprep.subr.mxu0 0.0
      %3360 = vmatpush1.msra.mxu0 0.0
      %3361 = vmatprep.subr.mxu0 0.0
      %3362 = vmatpush1.msra.mxu0 0.0
      %3363 = vmatprep.subr.mxu0 0.0
      %3364 = vmatpush1.msra.mxu0 0.0
      %3365 = vmatprep.subr.mxu0 0.0
      %3366 = vmatpush1.msra.mxu0 0.0
      %3367 = vmatprep.subr.mxu0 0.0
      %3368 = vmatpush1.msra.mxu0 0.0
      %3369 = vmatprep.subr.mxu0 0.0
      %3370 = vmatpush1.msra.mxu0 0.0
      %3371 = vmatprep.subr.mxu0 0.0
      %3372 = vmatpush1.msra.mxu0 0.0
      %3373 = vmatprep.subr.mxu0 0.0
      %3374 = vmatpush1.msra.mxu0 0.0
      %3375 = vmatprep.subr.mxu0 0.0
      %3376 = vmatpush1.msra.mxu0 0.0
      %3377 = vmatprep.subr.mxu0 0.0
      %3378 = vmatpush1.msra.mxu0 0.0
      %3379 = vmatprep.subr.mxu0 0.0
      %3380 = vmatpush1.msra.mxu0 0.0
      %3381 = vmatprep.subr.mxu0 0.0
      %3382 = vmatpush1.msra.mxu0 0.0
      %3383 = vmatprep.subr.mxu0 0.0
      %3384 = vmatpush1.msra.mxu0 0.0
      %3385 = vmatprep.subr.mxu0 0.0
      %3386 = vmatpush1.msra.mxu0 0.0
      %3387 = vmatprep.subr.mxu0 0.0
      %3388 = vmatpush1.msra.mxu0 0.0
      %3389 = vmatprep.subr.mxu0 0.0
      %3390 = vmatpush1.msra.mxu0 0.0
      %3391 = vmatprep.subr.mxu0 0.0
      %3392 = vmatpush1.msra.mxu0 0.0
      %3393 = vmatprep.subr.mxu0 0.0
      %3394 = vmatpush1.msra.mxu0 0.0
      %3395 = vmatprep.subr.mxu0 0.0
      %3396 = vmatpush1.msra.mxu0 0.0
      %3397 = vmatprep.subr.mxu0 0.0
      %3398 = vmatpush1.msra.mxu0 0.0
      %3399 = vmatprep.subr.mxu0 0.0
      %3400 = vmatpush1.msra.mxu0 0.0
      %3401 = vmatprep.subr.mxu0 0.0
      %3402 = vmatpush1.msra.mxu0 0.0
      %3403 = vmatprep.subr.mxu0 0.0
      %3404 = vmatpush1.msra.mxu0 0.0
      %3405 = vmatprep.subr.mxu0 0.0
      %3406 = vmatpush1.msra.mxu0 0.0
      %3407 = vmatprep.subr.mxu0 0.0
      %3408 = vmatpush1.msra.mxu0 0.0
      %3409 = vmatprep.subr.mxu0 0.0
      %3410 = vmatpush1.msra.mxu0 0.0
      %3411 = vmatprep.subr.mxu0 0.0
      %3412 = vmatpush1.msra.mxu0 0.0
      %3413 = vmatprep.subr.mxu0 0.0
      %3414 = vmatpush1.msra.mxu0 0.0
      %3415 = vmatprep.subr.mxu0 0.0
      %3416 = vmatpush1.msra.mxu0 0.0
      %3417 = vmatprep.mubr.f32.mxu0 0.0
      %3418 = vmatmul.mubr.f32.gmra.mrb[0].mxu0 %v433
      %v3419 = vpop.f32.mrb[0].mxu0
      %v3420 = vadd.f32 0.0, %v3419
      %v3421 = vpop.f32.mrb[0].mxu0
      %3422 = vdwg.mxu0
      %3423 = vmatprep.subr.mxu0 0.0
      %3424 = vmatpush1.msra.mxu0 %v3141
      %3425 = vmatprep.subr.mxu0 0.0
      %3426 = vmatpush1.msra.mxu0 %v3142
      %3427 = vmatprep.subr.mxu0 0.0
      %3428 = vmatpush1.msra.mxu0 0.0
      %3429 = vmatprep.subr.mxu0 0.0
      %3430 = vmatpush1.msra.mxu0 0.0
      %3431 = vmatprep.subr.mxu0 0.0
      %3432 = vmatpush1.msra.mxu0 0.0
      %3433 = vmatprep.subr.mxu0 0.0
      %3434 = vmatpush1.msra.mxu0 0.0
      %3435 = vmatprep.subr.mxu0 0.0
      %3436 = vmatpush1.msra.mxu0 0.0
      %3437 = vmatprep.subr.mxu0 0.0
      %3438 = vmatpush1.msra.mxu0 0.0
      %3439 = vmatprep.subr.mxu0 0.0
      %3440 = vmatpush1.msra.mxu0 0.0
      %3441 = vmatprep.subr.mxu0 0.0
      %3442 = vmatpush1.msra.mxu0 0.0
      %3443 = vmatprep.subr.mxu0 0.0
      %3444 = vmatpush1.msra.mxu0 0.0
      %3445 = vmatprep.subr.mxu0 0.0
      %3446 = vmatpush1.msra.mxu0 0.0
      %3447 = vmatprep.subr.mxu0 0.0
      %3448 = vmatpush1.msra.mxu0 0.0
      %3449 = vmatprep.subr.mxu0 0.0
      %3450 = vmatpush1.msra.mxu0 0.0
      %3451 = vmatprep.subr.mxu0 0.0
      %3452 = vmatpush1.msra.mxu0 0.0
      %3453 = vmatprep.subr.mxu0 0.0
      %3454 = vmatpush1.msra.mxu0 0.0
      %3455 = vmatprep.subr.mxu0 0.0
      %3456 = vmatpush1.msra.mxu0 0.0
      %3457 = vmatprep.subr.mxu0 0.0
      %3458 = vmatpush1.msra.mxu0 0.0
      %3459 = vmatprep.subr.mxu0 0.0
      %3460 = vmatpush1.msra.mxu0 0.0
      %3461 = vmatprep.subr.mxu0 0.0
      %3462 = vmatpush1.msra.mxu0 0.0
      %3463 = vmatprep.subr.mxu0 0.0
      %3464 = vmatpush1.msra.mxu0 0.0
      %3465 = vmatprep.subr.mxu0 0.0
      %3466 = vmatpush1.msra.mxu0 0.0
      %3467 = vmatprep.subr.mxu0 0.0
      %3468 = vmatpush1.msra.mxu0 0.0
      %3469 = vmatprep.subr.mxu0 0.0
      %3470 = vmatpush1.msra.mxu0 0.0
      %3471 = vmatprep.subr.mxu0 0.0
      %3472 = vmatpush1.msra.mxu0 0.0
      %3473 = vmatprep.subr.mxu0 0.0
      %3474 = vmatpush1.msra.mxu0 0.0
      %3475 = vmatprep.subr.mxu0 0.0
      %3476 = vmatpush1.msra.mxu0 0.0
      %3477 = vmatprep.subr.mxu0 0.0
      %3478 = vmatpush1.msra.mxu0 0.0
      %3479 = vmatprep.subr.mxu0 0.0
      %3480 = vmatpush1.msra.mxu0 0.0
      %3481 = vmatprep.subr.mxu0 0.0
      %3482 = vmatpush1.msra.mxu0 0.0
      %3483 = vmatprep.subr.mxu0 0.0
      %3484 = vmatpush1.msra.mxu0 0.0
      %3485 = vmatprep.subr.mxu0 0.0
      %3486 = vmatpush1.msra.mxu0 0.0
      %3487 = vmatprep.mubr.f32.mxu0 0.0
      %3488 = vmatmul.mubr.f32.gmra.mrb[0].mxu0 %v506
      %v3489 = vpop.f32.mrb[0].mxu0
      %v3490 = vadd.f32 0.0, %v3489
      %v3491 = vpop.f32.mrb[0].mxu0
      %3492 = vdwg.mxu0
      %3493 = vmatprep.subr.mxu0 0.0
      %3494 = vmatpush1.msra.mxu0 %v3141
      %3495 = vmatprep.subr.mxu0 0.0
      %3496 = vmatpush1.msra.mxu0 %v3142
      %3497 = vmatprep.subr.mxu0 0.0
      %3498 = vmatpush1.msra.mxu0 0.0
      %3499 = vmatprep.subr.mxu0 0.0
      %3500 = vmatpush1.msra.mxu0 0.0
      %3501 = vmatprep.subr.mxu0 0.0
      %3502 = vmatpush1.msra.mxu0 0.0
      %3503 = vmatprep.subr.mxu0 0.0
      %3504 = vmatpush1.msra.mxu0 0.0
      %3505 = vmatprep.subr.mxu0 0.0
      %3506 = vmatpush1.msra.mxu0 0.0
      %3507 = vmatprep.subr.mxu0 0.0
      %3508 = vmatpush1.msra.mxu0 0.0
      %3509 = vmatprep.subr.mxu0 0.0
      %3510 = vmatpush1.msra.mxu0 0.0
      %3511 = vmatprep.subr.mxu0 0.0
      %3512 = vmatpush1.msra.mxu0 0.0
      %3513 = vmatprep.subr.mxu0 0.0
      %3514 = vmatpush1.msra.mxu0 0.0
      %3515 = vmatprep.subr.mxu0 0.0
      %3516 = vmatpush1.msra.mxu0 0.0
      %3517 = vmatprep.subr.mxu0 0.0
      %3518 = vmatpush1.msra.mxu0 0.0
      %3519 = vmatprep.subr.mxu0 0.0
      %3520 = vmatpush1.msra.mxu0 0.0
      %3521 = vmatprep.subr.mxu0 0.0
      %3522 = vmatpush1.msra.mxu0 0.0
      %3523 = vmatprep.subr.mxu0 0.0
      %3524 = vmatpush1.msra.mxu0 0.0
      %3525 = vmatprep.subr.mxu0 0.0
      %3526 = vmatpush1.msra.mxu0 0.0
      %3527 = vmatprep.subr.mxu0 0.0
      %3528 = vmatpush1.msra.mxu0 0.0
      %3529 = vmatprep.subr.mxu0 0.0
      %3530 = vmatpush1.msra.mxu0 0.0
      %3531 = vmatprep.subr.mxu0 0.0
      %3532 = vmatpush1.msra.mxu0 0.0
      %3533 = vmatprep.subr.mxu0 0.0
      %3534 = vmatpush1.msra.mxu0 0.0
      %3535 = vmatprep.subr.mxu0 0.0
      %3536 = vmatpush1.msra.mxu0 0.0
      %3537 = vmatprep.subr.mxu0 0.0
      %3538 = vmatpush1.msra.mxu0 0.0
      %3539 = vmatprep.subr.mxu0 0.0
      %3540 = vmatpush1.msra.mxu0 0.0
      %3541 = vmatprep.subr.mxu0 0.0
      %3542 = vmatpush1.msra.mxu0 0.0
      %3543 = vmatprep.subr.mxu0 0.0
      %3544 = vmatpush1.msra.mxu0 0.0
      %3545 = vmatprep.subr.mxu0 0.0
      %3546 = vmatpush1.msra.mxu0 0.0
      %3547 = vmatprep.subr.mxu0 0.0
      %3548 = vmatpush1.msra.mxu0 0.0
      %3549 = vmatprep.subr.mxu0 0.0
      %3550 = vmatpush1.msra.mxu0 0.0
      %3551 = vmatprep.subr.mxu0 0.0
      %3552 = vmatpush1.msra.mxu0 0.0
      %3553 = vmatprep.subr.mxu0 0.0
      %3554 = vmatpush1.msra.mxu0 0.0
      %3555 = vmatprep.subr.mxu0 0.0
      %3556 = vmatpush1.msra.mxu0 0.0
      %3557 = vmatprep.mubr.f32.mxu0 0.0
      %3558 = vmatmul.mubr.f32.gmra.mrb[0].mxu0 %v579
      %v3559 = vpop.f32.mrb[0].mxu0
      %v3560 = vadd.f32 0.0, %v3559
      %v3561 = vpop.f32.mrb[0].mxu0
      %3562 = vdwg.mxu0
      %3563 = vmatprep.subr.mxu0 0.0
      %3564 = vmatpush1.msra.mxu0 %v3141
      %3565 = vmatprep.subr.mxu0 0.0
      %3566 = vmatpush1.msra.mxu0 %v3142
      %3567 = vmatprep.subr.mxu0 0.0
      %3568 = vmatpush1.msra.mxu0 0.0
      %3569 = vmatprep.subr.mxu0 0.0
      %3570 = vmatpush1.msra.mxu0 0.0
      %3571 = vmatprep.subr.mxu0 0.0
      %3572 = vmatpush1.msra.mxu0 0.0
      %3573 = vmatprep.subr.mxu0 0.0
      %3574 = vmatpush1.msra.mxu0 0.0
      %3575 = vmatprep.subr.mxu0 0.0
      %3576 = vmatpush1.msra.mxu0 0.0
      %3577 = vmatprep.subr.mxu0 0.0
      %3578 = vmatpush1.msra.mxu0 0.0
      %3579 = vmatprep.subr.mxu0 0.0
      %3580 = vmatpush1.msra.mxu0 0.0
      %3581 = vmatprep.subr.mxu0 0.0
      %3582 = vmatpush1.msra.mxu0 0.0
      %3583 = vmatprep.subr.mxu0 0.0
      %3584 = vmatpush1.msra.mxu0 0.0
      %3585 = vmatprep.subr.mxu0 0.0
      %3586 = vmatpush1.msra.mxu0 0.0
      %3587 = vmatprep.subr.mxu0 0.0
      %3588 = vmatpush1.msra.mxu0 0.0
      %3589 = vmatprep.subr.mxu0 0.0
      %3590 = vmatpush1.msra.mxu0 0.0
      %3591 = vmatprep.subr.mxu0 0.0
      %3592 = vmatpush1.msra.mxu0 0.0
      %3593 = vmatprep.subr.mxu0 0.0
      %3594 = vmatpush1.msra.mxu0 0.0
      %3595 = vmatprep.subr.mxu0 0.0
      %3596 = vmatpush1.msra.mxu0 0.0
      %3597 = vmatprep.subr.mxu0 0.0
      %3598 = vmatpush1.msra.mxu0 0.0
      %3599 = vmatprep.subr.mxu0 0.0
      %3600 = vmatpush1.msra.mxu0 0.0
      %3601 = vmatprep.subr.mxu0 0.0
      %3602 = vmatpush1.msra.mxu0 0.0
      %3603 = vmatprep.subr.mxu0 0.0
      %3604 = vmatpush1.msra.mxu0 0.0
      %3605 = vmatprep.subr.mxu0 0.0
      %3606 = vmatpush1.msra.mxu0 0.0
      %3607 = vmatprep.subr.mxu0 0.0
      %3608 = vmatpush1.msra.mxu0 0.0
      %3609 = vmatprep.subr.mxu0 0.0
      %3610 = vmatpush1.msra.mxu0 0.0
      %3611 = vmatprep.subr.mxu0 0.0
      %3612 = vmatpush1.msra.mxu0 0.0
      %3613 = vmatprep.subr.mxu0 0.0
      %3614 = vmatpush1.msra.mxu0 0.0
      %3615 = vmatprep.subr.mxu0 0.0
      %3616 = vmatpush1.msra.mxu0 0.0
      %3617 = vmatprep.subr.mxu0 0.0
      %3618 = vmatpush1.msra.mxu0 0.0
      %3619 = vmatprep.subr.mxu0 0.0
      %3620 = vmatpush1.msra.mxu0 0.0
      %3621 = vmatprep.subr.mxu0 0.0
      %3622 = vmatpush1.msra.mxu0 0.0
      %3623 = vmatprep.subr.mxu0 0.0
      %3624 = vmatpush1.msra.mxu0 0.0
      %3625 = vmatprep.subr.mxu0 0.0
      %3626 = vmatpush1.msra.mxu0 0.0
      %3627 = vmatprep.mubr.f32.mxu0 0.0
      %3628 = vmatmul.mubr.f32.gmra.mrb[0].mxu0 %v652
      %v3629 = vpop.f32.mrb[0].mxu0
      %v3630 = vadd.f32 0.0, %v3629
      %v3631 = vpop.f32.mrb[0].mxu0
      %3632 = vdwg.mxu0
      %3633 = vmatprep.subr.mxu0 0.0
      %3634 = vmatpush1.msra.mxu0 %v3141
      %3635 = vmatprep.subr.mxu0 0.0
      %3636 = vmatpush1.msra.mxu0 %v3142
      %3637 = vmatprep.subr.mxu0 0.0
      %3638 = vmatpush1.msra.mxu0 0.0
      %3639 = vmatprep.subr.mxu0 0.0
      %3640 = vmatpush1.msra.mxu0 0.0
      %3641 = vmatprep.subr.mxu0 0.0
      %3642 = vmatpush1.msra.mxu0 0.0
      %3643 = vmatprep.subr.mxu0 0.0
      %3644 = vmatpush1.msra.mxu0 0.0
      %3645 = vmatprep.subr.mxu0 0.0
      %3646 = vmatpush1.msra.mxu0 0.0
      %3647 = vmatprep.subr.mxu0 0.0
      %3648 = vmatpush1.msra.mxu0 0.0
      %3649 = vmatprep.subr.mxu0 0.0
      %3650 = vmatpush1.msra.mxu0 0.0
      %3651 = vmatprep.subr.mxu0 0.0
      %3652 = vmatpush1.msra.mxu0 0.0
      %3653 = vmatprep.subr.mxu0 0.0
      %3654 = vmatpush1.msra.mxu0 0.0
      %3655 = vmatprep.subr.mxu0 0.0
      %3656 = vmatpush1.msra.mxu0 0.0
      %3657 = vmatprep.subr.mxu0 0.0
      %3658 = vmatpush1.msra.mxu0 0.0
      %3659 = vmatprep.subr.mxu0 0.0
      %3660 = vmatpush1.msra.mxu0 0.0
      %3661 = vmatprep.subr.mxu0 0.0
      %3662 = vmatpush1.msra.mxu0 0.0
      %3663 = vmatprep.subr.mxu0 0.0
      %3664 = vmatpush1.msra.mxu0 0.0
      %3665 = vmatprep.subr.mxu0 0.0
      %3666 = vmatpush1.msra.mxu0 0.0
      %3667 = vmatprep.subr.mxu0 0.0
      %3668 = vmatpush1.msra.mxu0 0.0
      %3669 = vmatprep.subr.mxu0 0.0
      %3670 = vmatpush1.msra.mxu0 0.0
      %3671 = vmatprep.subr.mxu0 0.0
      %3672 = vmatpush1.msra.mxu0 0.0
      %3673 = vmatprep.subr.mxu0 0.0
      %3674 = vmatpush1.msra.mxu0 0.0
      %3675 = vmatprep.subr.mxu0 0.0
      %3676 = vmatpush1.msra.mxu0 0.0
      %3677 = vmatprep.subr.mxu0 0.0
      %3678 = vmatpush1.msra.mxu0 0.0
      %3679 = vmatprep.subr.mxu0 0.0
      %3680 = vmatpush1.msra.mxu0 0.0
      %3681 = vmatprep.subr.mxu0 0.0
      %3682 = vmatpush1.msra.mxu0 0.0
      %3683 = vmatprep.subr.mxu0 0.0
      %3684 = vmatpush1.msra.mxu0 0.0
      %3685 = vmatprep.subr.mxu0 0.0
      %3686 = vmatpush1.msra.mxu0 0.0
      %3687 = vmatprep.subr.mxu0 0.0
      %3688 = vmatpush1.msra.mxu0 0.0
      %3689 = vmatprep.subr.mxu0 0.0
      %3690 = vmatpush1.msra.mxu0 0.0
      %3691 = vmatprep.subr.mxu0 0.0
      %3692 = vmatpush1.msra.mxu0 0.0
      %3693 = vmatprep.subr.mxu0 0.0
      %3694 = vmatpush1.msra.mxu0 0.0
      %3695 = vmatprep.subr.mxu0 0.0
      %3696 = vmatpush1.msra.mxu0 0.0
      %3697 = vmatprep.mubr.f32.mxu0 0.0
      %3698 = vmatmul.mubr.f32.gmra.mrb[0].mxu0 %v725
      %v3699 = vpop.f32.mrb[0].mxu0
      %v3700 = vadd.f32 0.0, %v3699
      %v3701 = vpop.f32.mrb[0].mxu0
      %3702 = vdwg.mxu0
      %s3703 = scalar_lea.vmem %s2, 24
      %v3704 = vld [vmem:[%s3703] sm:$0xff]
      %v3706 = vsel %vm799, %v3704, 0
      %v3709 = vsel %vm803, %v3210, 0
      %3711 = vmatprep.subr.mxu0 0.0
      %3712 = vmatpush1.msra.mxu0 %v3709
      %3713 = vmatprep.subr.mxu0 0.0
      %3714 = vmatpush1.msra.mxu0 0.0
      %3715 = vmatprep.subr.mxu0 0.0
      %3716 = vmatpush1.msra.mxu0 0.0
      %3717 = vmatprep.subr.mxu0 0.0
      %3718 = vmatpush1.msra.mxu0 0.0
      %3719 = vmatprep.subr.mxu0 0.0
      %3720 = vmatpush1.msra.mxu0 0.0
      %3721 = vmatprep.subr.mxu0 0.0
      %3722 = vmatpush1.msra.mxu0 0.0
      %3723 = vmatprep.subr.mxu0 0.0
      %3724 = vmatpush1.msra.mxu0 0.0
      %3725 = vmatprep.subr.mxu0 0.0
      %3726 = vmatpush1.msra.mxu0 0.0
      %3727 = vmatprep.subr.mxu0 0.0
      %3728 = vmatpush1.msra.mxu0 0.0
      %3729 = vmatprep.subr.mxu0 0.0
      %3730 = vmatpush1.msra.mxu0 0.0
      %3731 = vmatprep.subr.mxu0 0.0
      %3732 = vmatpush1.msra.mxu0 0.0
      %3733 = vmatprep.subr.mxu0 0.0
      %3734 = vmatpush1.msra.mxu0 0.0
      %3735 = vmatprep.subr.mxu0 0.0
      %3736 = vmatpush1.msra.mxu0 0.0
      %3737 = vmatprep.subr.mxu0 0.0
      %3738 = vmatpush1.msra.mxu0 0.0
      %3739 = vmatprep.subr.mxu0 0.0
      %3740 = vmatpush1.msra.mxu0 0.0
      %3741 = vmatprep.subr.mxu0 0.0
      %3742 = vmatpush1.msra.mxu0 0.0
      %3743 = vmatprep.subr.mxu0 0.0
      %3744 = vmatpush1.msra.mxu0 0.0
      %3745 = vmatprep.subr.mxu0 0.0
      %3746 = vmatpush1.msra.mxu0 0.0
      %3747 = vmatprep.subr.mxu0 0.0
      %3748 = vmatpush1.msra.mxu0 0.0
      %3749 = vmatprep.subr.mxu0 0.0
      %3750 = vmatpush1.msra.mxu0 0.0
      %3751 = vmatprep.subr.mxu0 0.0
      %3752 = vmatpush1.msra.mxu0 0.0
      %3753 = vmatprep.subr.mxu0 0.0
      %3754 = vmatpush1.msra.mxu0 0.0
      %3755 = vmatprep.subr.mxu0 0.0
      %3756 = vmatpush1.msra.mxu0 0.0
      %3757 = vmatprep.subr.mxu0 0.0
      %3758 = vmatpush1.msra.mxu0 0.0
      %3759 = vmatprep.subr.mxu0 0.0
      %3760 = vmatpush1.msra.mxu0 0.0
      %3761 = vmatprep.subr.mxu0 0.0
      %3762 = vmatpush1.msra.mxu0 0.0
      %3763 = vmatprep.subr.mxu0 0.0
      %3764 = vmatpush1.msra.mxu0 0.0
      %3765 = vmatprep.subr.mxu0 0.0
      %3766 = vmatpush1.msra.mxu0 0.0
      %3767 = vmatprep.subr.mxu0 0.0
      %3768 = vmatpush1.msra.mxu0 0.0
      %3769 = vmatprep.subr.mxu0 0.0
      %3770 = vmatpush1.msra.mxu0 0.0
      %3771 = vmatprep.subr.mxu0 0.0
      %3772 = vmatpush1.msra.mxu0 0.0
      %3773 = vmatprep.subr.mxu0 0.0
      %3774 = vmatpush1.msra.mxu0 0.0
      %3775 = vmatprep.mubr.f32.mxu0 0.0
      %3776 = vmatmul.mubr.f32.gmra.mrb[0].mxu0 %v3706
      %v3777 = vpop.f32.mrb[0].mxu0
      %v3778 = vadd.f32 0.0, %v3777
      %v3779 = vpop.f32.mrb[0].mxu0
      %3780 = vdwg.mxu0
      %v3782 = vsel %vm803, %v3280, 0
      %3784 = vmatprep.subr.mxu0 0.0
      %3785 = vmatpush1.msra.mxu0 %v3782
      %3786 = vmatprep.subr.mxu0 0.0
      %3787 = vmatpush1.msra.mxu0 0.0
      %3788 = vmatprep.subr.mxu0 0.0
      %3789 = vmatpush1.msra.mxu0 0.0
      %3790 = vmatprep.subr.mxu0 0.0
      %3791 = vmatpush1.msra.mxu0 0.0
      %3792 = vmatprep.subr.mxu0 0.0
      %3793 = vmatpush1.msra.mxu0 0.0
      %3794 = vmatprep.subr.mxu0 0.0
      %3795 = vmatpush1.msra.mxu0 0.0
      %3796 = vmatprep.subr.mxu0 0.0
      %3797 = vmatpush1.msra.mxu0 0.0
      %3798 = vmatprep.subr.mxu0 0.0
      %3799 = vmatpush1.msra.mxu0 0.0
      %3800 = vmatprep.subr.mxu0 0.0
      %3801 = vmatpush1.msra.mxu0 0.0
      %3802 = vmatprep.subr.mxu0 0.0
      %3803 = vmatpush1.msra.mxu0 0.0
      %3804 = vmatprep.subr.mxu0 0.0
      %3805 = vmatpush1.msra.mxu0 0.0
      %3806 = vmatprep.subr.mxu0 0.0
      %3807 = vmatpush1.msra.mxu0 0.0
      %3808 = vmatprep.subr.mxu0 0.0
      %3809 = vmatpush1.msra.mxu0 0.0
      %3810 = vmatprep.subr.mxu0 0.0
      %3811 = vmatpush1.msra.mxu0 0.0
      %3812 = vmatprep.subr.mxu0 0.0
      %3813 = vmatpush1.msra.mxu0 0.0
      %3814 = vmatprep.subr.mxu0 0.0
      %3815 = vmatpush1.msra.mxu0 0.0
      %3816 = vmatprep.subr.mxu0 0.0
      %3817 = vmatpush1.msra.mxu0 0.0
      %3818 = vmatprep.subr.mxu0 0.0
      %3819 = vmatpush1.msra.mxu0 0.0
      %3820 = vmatprep.subr.mxu0 0.0
      %3821 = vmatpush1.msra.mxu0 0.0
      %3822 = vmatprep.subr.mxu0 0.0
      %3823 = vmatpush1.msra.mxu0 0.0
      %3824 = vmatprep.subr.mxu0 0.0
      %3825 = vmatpush1.msra.mxu0 0.0
      %3826 = vmatprep.subr.mxu0 0.0
      %3827 = vmatpush1.msra.mxu0 0.0
      %3828 = vmatprep.subr.mxu0 0.0
      %3829 = vmatpush1.msra.mxu0 0.0
      %3830 = vmatprep.subr.mxu0 0.0
      %3831 = vmatpush1.msra.mxu0 0.0
      %3832 = vmatprep.subr.mxu0 0.0
      %3833 = vmatpush1.msra.mxu0 0.0
      %3834 = vmatprep.subr.mxu0 0.0
      %3835 = vmatpush1.msra.mxu0 0.0
      %3836 = vmatprep.subr.mxu0 0.0
      %3837 = vmatpush1.msra.mxu0 0.0
      %3838 = vmatprep.subr.mxu0 0.0
      %3839 = vmatpush1.msra.mxu0 0.0
      %3840 = vmatprep.subr.mxu0 0.0
      %3841 = vmatpush1.msra.mxu0 0.0
      %3842 = vmatprep.subr.mxu0 0.0
      %3843 = vmatpush1.msra.mxu0 0.0
      %3844 = vmatprep.subr.mxu0 0.0
      %3845 = vmatpush1.msra.mxu0 0.0
      %3846 = vmatprep.subr.mxu0 0.0
      %3847 = vmatpush1.msra.mxu0 0.0
      %3848 = vmatprep.mubr.f32.mxu0 0.0
      %3849 = vmatmul.mubr.f32.gmra.mrb[0].mxu0 %v3706
      %v3850 = vpop.f32.mrb[0].mxu0
      %v3851 = vadd.f32 0.0, %v3850
      %v3852 = vpop.f32.mrb[0].mxu0
      %3853 = vdwg.mxu0
      %v3855 = vsel %vm803, %v3350, 0
      %3857 = vmatprep.subr.mxu0 0.0
      %3858 = vmatpush1.msra.mxu0 %v3855
      %3859 = vmatprep.subr.mxu0 0.0
      %3860 = vmatpush1.msra.mxu0 0.0
      %3861 = vmatprep.subr.mxu0 0.0
      %3862 = vmatpush1.msra.mxu0 0.0
      %3863 = vmatprep.subr.mxu0 0.0
      %3864 = vmatpush1.msra.mxu0 0.0
      %3865 = vmatprep.subr.mxu0 0.0
      %3866 = vmatpush1.msra.mxu0 0.0
      %3867 = vmatprep.subr.mxu0 0.0
      %3868 = vmatpush1.msra.mxu0 0.0
      %3869 = vmatprep.subr.mxu0 0.0
      %3870 = vmatpush1.msra.mxu0 0.0
      %3871 = vmatprep.subr.mxu0 0.0
      %3872 = vmatpush1.msra.mxu0 0.0
      %3873 = vmatprep.subr.mxu0 0.0
      %3874 = vmatpush1.msra.mxu0 0.0
      %3875 = vmatprep.subr.mxu0 0.0
      %3876 = vmatpush1.msra.mxu0 0.0
      %3877 = vmatprep.subr.mxu0 0.0
      %3878 = vmatpush1.msra.mxu0 0.0
      %3879 = vmatprep.subr.mxu0 0.0
      %3880 = vmatpush1.msra.mxu0 0.0
      %3881 = vmatprep.subr.mxu0 0.0
      %3882 = vmatpush1.msra.mxu0 0.0
      %3883 = vmatprep.subr.mxu0 0.0
      %3884 = vmatpush1.msra.mxu0 0.0
      %3885 = vmatprep.subr.mxu0 0.0
      %3886 = vmatpush1.msra.mxu0 0.0
      %3887 = vmatprep.subr.mxu0 0.0
      %3888 = vmatpush1.msra.mxu0 0.0
      %3889 = vmatprep.subr.mxu0 0.0
      %3890 = vmatpush1.msra.mxu0 0.0
      %3891 = vmatprep.subr.mxu0 0.0
      %3892 = vmatpush1.msra.mxu0 0.0
      %3893 = vmatprep.subr.mxu0 0.0
      %3894 = vmatpush1.msra.mxu0 0.0
      %3895 = vmatprep.subr.mxu0 0.0
      %3896 = vmatpush1.msra.mxu0 0.0
      %3897 = vmatprep.subr.mxu0 0.0
      %3898 = vmatpush1.msra.mxu0 0.0
      %3899 = vmatprep.subr.mxu0 0.0
      %3900 = vmatpush1.msra.mxu0 0.0
      %3901 = vmatprep.subr.mxu0 0.0
      %3902 = vmatpush1.msra.mxu0 0.0
      %3903 = vmatprep.subr.mxu0 0.0
      %3904 = vmatpush1.msra.mxu0 0.0
      %3905 = vmatprep.subr.mxu0 0.0
      %3906 = vmatpush1.msra.mxu0 0.0
      %3907 = vmatprep.subr.mxu0 0.0
      %3908 = vmatpush1.msra.mxu0 0.0
      %3909 = vmatprep.subr.mxu0 0.0
      %3910 = vmatpush1.msra.mxu0 0.0
      %3911 = vmatprep.subr.mxu0 0.0
      %3912 = vmatpush1.msra.mxu0 0.0
      %3913 = vmatprep.subr.mxu0 0.0
      %3914 = vmatpush1.msra.mxu0 0.0
      %3915 = vmatprep.subr.mxu0 0.0
      %3916 = vmatpush1.msra.mxu0 0.0
      %3917 = vmatprep.subr.mxu0 0.0
      %3918 = vmatpush1.msra.mxu0 0.0
      %3919 = vmatprep.subr.mxu0 0.0
      %3920 = vmatpush1.msra.mxu0 0.0
      %3921 = vmatprep.mubr.f32.mxu0 0.0
      %3922 = vmatmul.mubr.f32.gmra.mrb[0].mxu0 %v3706
      %v3923 = vpop.f32.mrb[0].mxu0
      %v3924 = vadd.f32 0.0, %v3923
      %v3925 = vpop.f32.mrb[0].mxu0
      %3926 = vdwg.mxu0
      %v3928 = vsel %vm803, %v3420, 0
      %3930 = vmatprep.subr.mxu0 0.0
      %3931 = vmatpush1.msra.mxu0 %v3928
      %3932 = vmatprep.subr.mxu0 0.0
      %3933 = vmatpush1.msra.mxu0 0.0
      %3934 = vmatprep.subr.mxu0 0.0
      %3935 = vmatpush1.msra.mxu0 0.0
      %3936 = vmatprep.subr.mxu0 0.0
      %3937 = vmatpush1.msra.mxu0 0.0
      %3938 = vmatprep.subr.mxu0 0.0
      %3939 = vmatpush1.msra.mxu0 0.0
      %3940 = vmatprep.subr.mxu0 0.0
      %3941 = vmatpush1.msra.mxu0 0.0
      %3942 = vmatprep.subr.mxu0 0.0
      %3943 = vmatpush1.msra.mxu0 0.0
      %3944 = vmatprep.subr.mxu0 0.0
      %3945 = vmatpush1.msra.mxu0 0.0
      %3946 = vmatprep.subr.mxu0 0.0
      %3947 = vmatpush1.msra.mxu0 0.0
      %3948 = vmatprep.subr.mxu0 0.0
      %3949 = vmatpush1.msra.mxu0 0.0
      %3950 = vmatprep.subr.mxu0 0.0
      %3951 = vmatpush1.msra.mxu0 0.0
      %3952 = vmatprep.subr.mxu0 0.0
      %3953 = vmatpush1.msra.mxu0 0.0
      %3954 = vmatprep.subr.mxu0 0.0
      %3955 = vmatpush1.msra.mxu0 0.0
      %3956 = vmatprep.subr.mxu0 0.0
      %3957 = vmatpush1.msra.mxu0 0.0
      %3958 = vmatprep.subr.mxu0 0.0
      %3959 = vmatpush1.msra.mxu0 0.0
      %3960 = vmatprep.subr.mxu0 0.0
      %3961 = vmatpush1.msra.mxu0 0.0
      %3962 = vmatprep.subr.mxu0 0.0
      %3963 = vmatpush1.msra.mxu0 0.0
      %3964 = vmatprep.subr.mxu0 0.0
      %3965 = vmatpush1.msra.mxu0 0.0
      %3966 = vmatprep.subr.mxu0 0.0
      %3967 = vmatpush1.msra.mxu0 0.0
      %3968 = vmatprep.subr.mxu0 0.0
      %3969 = vmatpush1.msra.mxu0 0.0
      %3970 = vmatprep.subr.mxu0 0.0
      %3971 = vmatpush1.msra.mxu0 0.0
      %3972 = vmatprep.subr.mxu0 0.0
      %3973 = vmatpush1.msra.mxu0 0.0
      %3974 = vmatprep.subr.mxu0 0.0
      %3975 = vmatpush1.msra.mxu0 0.0
      %3976 = vmatprep.subr.mxu0 0.0
      %3977 = vmatpush1.msra.mxu0 0.0
      %3978 = vmatprep.subr.mxu0 0.0
      %3979 = vmatpush1.msra.mxu0 0.0
      %3980 = vmatprep.subr.mxu0 0.0
      %3981 = vmatpush1.msra.mxu0 0.0
      %3982 = vmatprep.subr.mxu0 0.0
      %3983 = vmatpush1.msra.mxu0 0.0
      %3984 = vmatprep.subr.mxu0 0.0
      %3985 = vmatpush1.msra.mxu0 0.0
      %3986 = vmatprep.subr.mxu0 0.0
      %3987 = vmatpush1.msra.mxu0 0.0
      %3988 = vmatprep.subr.mxu0 0.0
      %3989 = vmatpush1.msra.mxu0 0.0
      %3990 = vmatprep.subr.mxu0 0.0
      %3991 = vmatpush1.msra.mxu0 0.0
      %3992 = vmatprep.subr.mxu0 0.0
      %3993 = vmatpush1.msra.mxu0 0.0
      %3994 = vmatprep.mubr.f32.mxu0 0.0
      %3995 = vmatmul.mubr.f32.gmra.mrb[0].mxu0 %v3706
      %v3996 = vpop.f32.mrb[0].mxu0
      %v3997 = vadd.f32 0.0, %v3996
      %v3998 = vpop.f32.mrb[0].mxu0
      %3999 = vdwg.mxu0
      %v4001 = vsel %vm803, %v3490, 0
      %4003 = vmatprep.subr.mxu0 0.0
      %4004 = vmatpush1.msra.mxu0 %v4001
      %4005 = vmatprep.subr.mxu0 0.0
      %4006 = vmatpush1.msra.mxu0 0.0
      %4007 = vmatprep.subr.mxu0 0.0
      %4008 = vmatpush1.msra.mxu0 0.0
      %4009 = vmatprep.subr.mxu0 0.0
      %4010 = vmatpush1.msra.mxu0 0.0
      %4011 = vmatprep.subr.mxu0 0.0
      %4012 = vmatpush1.msra.mxu0 0.0
      %4013 = vmatprep.subr.mxu0 0.0
      %4014 = vmatpush1.msra.mxu0 0.0
      %4015 = vmatprep.subr.mxu0 0.0
      %4016 = vmatpush1.msra.mxu0 0.0
      %4017 = vmatprep.subr.mxu0 0.0
      %4018 = vmatpush1.msra.mxu0 0.0
      %4019 = vmatprep.subr.mxu0 0.0
      %4020 = vmatpush1.msra.mxu0 0.0
      %4021 = vmatprep.subr.mxu0 0.0
      %4022 = vmatpush1.msra.mxu0 0.0
      %4023 = vmatprep.subr.mxu0 0.0
      %4024 = vmatpush1.msra.mxu0 0.0
      %4025 = vmatprep.subr.mxu0 0.0
      %4026 = vmatpush1.msra.mxu0 0.0
      %4027 = vmatprep.subr.mxu0 0.0
      %4028 = vmatpush1.msra.mxu0 0.0
      %4029 = vmatprep.subr.mxu0 0.0
      %4030 = vmatpush1.msra.mxu0 0.0
      %4031 = vmatprep.subr.mxu0 0.0
      %4032 = vmatpush1.msra.mxu0 0.0
      %4033 = vmatprep.subr.mxu0 0.0
      %4034 = vmatpush1.msra.mxu0 0.0
      %4035 = vmatprep.subr.mxu0 0.0
      %4036 = vmatpush1.msra.mxu0 0.0
      %4037 = vmatprep.subr.mxu0 0.0
      %4038 = vmatpush1.msra.mxu0 0.0
      %4039 = vmatprep.subr.mxu0 0.0
      %4040 = vmatpush1.msra.mxu0 0.0
      %4041 = vmatprep.subr.mxu0 0.0
      %4042 = vmatpush1.msra.mxu0 0.0
      %4043 = vmatprep.subr.mxu0 0.0
      %4044 = vmatpush1.msra.mxu0 0.0
      %4045 = vmatprep.subr.mxu0 0.0
      %4046 = vmatpush1.msra.mxu0 0.0
      %4047 = vmatprep.subr.mxu0 0.0
      %4048 = vmatpush1.msra.mxu0 0.0
      %4049 = vmatprep.subr.mxu0 0.0
      %4050 = vmatpush1.msra.mxu0 0.0
      %4051 = vmatprep.subr.mxu0 0.0
      %4052 = vmatpush1.msra.mxu0 0.0
      %4053 = vmatprep.subr.mxu0 0.0
      %4054 = vmatpush1.msra.mxu0 0.0
      %4055 = vmatprep.subr.mxu0 0.0
      %4056 = vmatpush1.msra.mxu0 0.0
      %4057 = vmatprep.subr.mxu0 0.0
      %4058 = vmatpush1.msra.mxu0 0.0
      %4059 = vmatprep.subr.mxu0 0.0
      %4060 = vmatpush1.msra.mxu0 0.0
      %4061 = vmatprep.subr.mxu0 0.0
      %4062 = vmatpush1.msra.mxu0 0.0
      %4063 = vmatprep.subr.mxu0 0.0
      %4064 = vmatpush1.msra.mxu0 0.0
      %4065 = vmatprep.subr.mxu0 0.0
      %4066 = vmatpush1.msra.mxu0 0.0
      %4067 = vmatprep.mubr.f32.mxu0 0.0
      %4068 = vmatmul.mubr.f32.gmra.mrb[0].mxu0 %v3706
      %v4069 = vpop.f32.mrb[0].mxu0
      %v4070 = vadd.f32 0.0, %v4069
      %v4071 = vpop.f32.mrb[0].mxu0
      %4072 = vdwg.mxu0
      %v4074 = vsel %vm803, %v3560, 0
      %4076 = vmatprep.subr.mxu0 0.0
      %4077 = vmatpush1.msra.mxu0 %v4074
      %4078 = vmatprep.subr.mxu0 0.0
      %4079 = vmatpush1.msra.mxu0 0.0
      %4080 = vmatprep.subr.mxu0 0.0
      %4081 = vmatpush1.msra.mxu0 0.0
      %4082 = vmatprep.subr.mxu0 0.0
      %4083 = vmatpush1.msra.mxu0 0.0
      %4084 = vmatprep.subr.mxu0 0.0
      %4085 = vmatpush1.msra.mxu0 0.0
      %4086 = vmatprep.subr.mxu0 0.0
      %4087 = vmatpush1.msra.mxu0 0.0
      %4088 = vmatprep.subr.mxu0 0.0
      %4089 = vmatpush1.msra.mxu0 0.0
      %4090 = vmatprep.subr.mxu0 0.0
      %4091 = vmatpush1.msra.mxu0 0.0
      %4092 = vmatprep.subr.mxu0 0.0
      %4093 = vmatpush1.msra.mxu0 0.0
      %4094 = vmatprep.subr.mxu0 0.0
      %4095 = vmatpush1.msra.mxu0 0.0
      %4096 = vmatprep.subr.mxu0 0.0
      %4097 = vmatpush1.msra.mxu0 0.0
      %4098 = vmatprep.subr.mxu0 0.0
      %4099 = vmatpush1.msra.mxu0 0.0
      %4100 = vmatprep.subr.mxu0 0.0
      %4101 = vmatpush1.msra.mxu0 0.0
      %4102 = vmatprep.subr.mxu0 0.0
      %4103 = vmatpush1.msra.mxu0 0.0
      %4104 = vmatprep.subr.mxu0 0.0
      %4105 = vmatpush1.msra.mxu0 0.0
      %4106 = vmatprep.subr.mxu0 0.0
      %4107 = vmatpush1.msra.mxu0 0.0
      %4108 = vmatprep.subr.mxu0 0.0
      %4109 = vmatpush1.msra.mxu0 0.0
      %4110 = vmatprep.subr.mxu0 0.0
      %4111 = vmatpush1.msra.mxu0 0.0
      %4112 = vmatprep.subr.mxu0 0.0
      %4113 = vmatpush1.msra.mxu0 0.0
      %4114 = vmatprep.subr.mxu0 0.0
      %4115 = vmatpush1.msra.mxu0 0.0
      %4116 = vmatprep.subr.mxu0 0.0
      %4117 = vmatpush1.msra.mxu0 0.0
      %4118 = vmatprep.subr.mxu0 0.0
      %4119 = vmatpush1.msra.mxu0 0.0
      %4120 = vmatprep.subr.mxu0 0.0
      %4121 = vmatpush1.msra.mxu0 0.0
      %4122 = vmatprep.subr.mxu0 0.0
      %4123 = vmatpush1.msra.mxu0 0.0
      %4124 = vmatprep.subr.mxu0 0.0
      %4125 = vmatpush1.msra.mxu0 0.0
      %4126 = vmatprep.subr.mxu0 0.0
      %4127 = vmatpush1.msra.mxu0 0.0
      %4128 = vmatprep.subr.mxu0 0.0
      %4129 = vmatpush1.msra.mxu0 0.0
      %4130 = vmatprep.subr.mxu0 0.0
      %4131 = vmatpush1.msra.mxu0 0.0
      %4132 = vmatprep.subr.mxu0 0.0
      %4133 = vmatpush1.msra.mxu0 0.0
      %4134 = vmatprep.subr.mxu0 0.0
      %4135 = vmatpush1.msra.mxu0 0.0
      %4136 = vmatprep.subr.mxu0 0.0
      %4137 = vmatpush1.msra.mxu0 0.0
      %4138 = vmatprep.subr.mxu0 0.0
      %4139 = vmatpush1.msra.mxu0 0.0
      %4140 = vmatprep.mubr.f32.mxu0 0.0
      %4141 = vmatmul.mubr.f32.gmra.mrb[0].mxu0 %v3706
      %v4142 = vpop.f32.mrb[0].mxu0
      %v4143 = vadd.f32 0.0, %v4142
      %v4144 = vpop.f32.mrb[0].mxu0
      %4145 = vdwg.mxu0
      %v4147 = vsel %vm803, %v3630, 0
      %4149 = vmatprep.subr.mxu0 0.0
      %4150 = vmatpush1.msra.mxu0 %v4147
      %4151 = vmatprep.subr.mxu0 0.0
      %4152 = vmatpush1.msra.mxu0 0.0
      %4153 = vmatprep.subr.mxu0 0.0
      %4154 = vmatpush1.msra.mxu0 0.0
      %4155 = vmatprep.subr.mxu0 0.0
      %4156 = vmatpush1.msra.mxu0 0.0
      %4157 = vmatprep.subr.mxu0 0.0
      %4158 = vmatpush1.msra.mxu0 0.0
      %4159 = vmatprep.subr.mxu0 0.0
      %4160 = vmatpush1.msra.mxu0 0.0
      %4161 = vmatprep.subr.mxu0 0.0
      %4162 = vmatpush1.msra.mxu0 0.0
      %4163 = vmatprep.subr.mxu0 0.0
      %4164 = vmatpush1.msra.mxu0 0.0
      %4165 = vmatprep.subr.mxu0 0.0
      %4166 = vmatpush1.msra.mxu0 0.0
      %4167 = vmatprep.subr.mxu0 0.0
      %4168 = vmatpush1.msra.mxu0 0.0
      %4169 = vmatprep.subr.mxu0 0.0
      %4170 = vmatpush1.msra.mxu0 0.0
      %4171 = vmatprep.subr.mxu0 0.0
      %4172 = vmatpush1.msra.mxu0 0.0
      %4173 = vmatprep.subr.mxu0 0.0
      %4174 = vmatpush1.msra.mxu0 0.0
      %4175 = vmatprep.subr.mxu0 0.0
      %4176 = vmatpush1.msra.mxu0 0.0
      %4177 = vmatprep.subr.mxu0 0.0
      %4178 = vmatpush1.msra.mxu0 0.0
      %4179 = vmatprep.subr.mxu0 0.0
      %4180 = vmatpush1.msra.mxu0 0.0
      %4181 = vmatprep.subr.mxu0 0.0
      %4182 = vmatpush1.msra.mxu0 0.0
      %4183 = vmatprep.subr.mxu0 0.0
      %4184 = vmatpush1.msra.mxu0 0.0
      %4185 = vmatprep.subr.mxu0 0.0
      %4186 = vmatpush1.msra.mxu0 0.0
      %4187 = vmatprep.subr.mxu0 0.0
      %4188 = vmatpush1.msra.mxu0 0.0
      %4189 = vmatprep.subr.mxu0 0.0
      %4190 = vmatpush1.msra.mxu0 0.0
      %4191 = vmatprep.subr.mxu0 0.0
      %4192 = vmatpush1.msra.mxu0 0.0
      %4193 = vmatprep.subr.mxu0 0.0
      %4194 = vmatpush1.msra.mxu0 0.0
      %4195 = vmatprep.subr.mxu0 0.0
      %4196 = vmatpush1.msra.mxu0 0.0
      %4197 = vmatprep.subr.mxu0 0.0
      %4198 = vmatpush1.msra.mxu0 0.0
      %4199 = vmatprep.subr.mxu0 0.0
      %4200 = vmatpush1.msra.mxu0 0.0
      %4201 = vmatprep.subr.mxu0 0.0
      %4202 = vmatpush1.msra.mxu0 0.0
      %4203 = vmatprep.subr.mxu0 0.0
      %4204 = vmatpush1.msra.mxu0 0.0
      %4205 = vmatprep.subr.mxu0 0.0
      %4206 = vmatpush1.msra.mxu0 0.0
      %4207 = vmatprep.subr.mxu0 0.0
      %4208 = vmatpush1.msra.mxu0 0.0
      %4209 = vmatprep.subr.mxu0 0.0
      %4210 = vmatpush1.msra.mxu0 0.0
      %4211 = vmatprep.subr.mxu0 0.0
      %4212 = vmatpush1.msra.mxu0 0.0
      %4213 = vmatprep.mubr.f32.mxu0 0.0
      %4214 = vmatmul.mubr.f32.gmra.mrb[0].mxu0 %v3706
      %v4215 = vpop.f32.mrb[0].mxu0
      %v4216 = vadd.f32 0.0, %v4215
      %v4217 = vpop.f32.mrb[0].mxu0
      %4218 = vdwg.mxu0
      %v4220 = vsel %vm803, %v3700, 0
      %4222 = vmatprep.subr.mxu0 0.0
      %4223 = vmatpush1.msra.mxu0 %v4220
      %4224 = vmatprep.subr.mxu0 0.0
      %4225 = vmatpush1.msra.mxu0 0.0
      %4226 = vmatprep.subr.mxu0 0.0
      %4227 = vmatpush1.msra.mxu0 0.0
      %4228 = vmatprep.subr.mxu0 0.0
      %4229 = vmatpush1.msra.mxu0 0.0
      %4230 = vmatprep.subr.mxu0 0.0
      %4231 = vmatpush1.msra.mxu0 0.0
      %4232 = vmatprep.subr.mxu0 0.0
      %4233 = vmatpush1.msra.mxu0 0.0
      %4234 = vmatprep.subr.mxu0 0.0
      %4235 = vmatpush1.msra.mxu0 0.0
      %4236 = vmatprep.subr.mxu0 0.0
      %4237 = vmatpush1.msra.mxu0 0.0
      %4238 = vmatprep.subr.mxu0 0.0
      %4239 = vmatpush1.msra.mxu0 0.0
      %4240 = vmatprep.subr.mxu0 0.0
      %4241 = vmatpush1.msra.mxu0 0.0
      %4242 = vmatprep.subr.mxu0 0.0
      %4243 = vmatpush1.msra.mxu0 0.0
      %4244 = vmatprep.subr.mxu0 0.0
      %4245 = vmatpush1.msra.mxu0 0.0
      %4246 = vmatprep.subr.mxu0 0.0
      %4247 = vmatpush1.msra.mxu0 0.0
      %4248 = vmatprep.subr.mxu0 0.0
      %4249 = vmatpush1.msra.mxu0 0.0
      %4250 = vmatprep.subr.mxu0 0.0
      %4251 = vmatpush1.msra.mxu0 0.0
      %4252 = vmatprep.subr.mxu0 0.0
      %4253 = vmatpush1.msra.mxu0 0.0
      %4254 = vmatprep.subr.mxu0 0.0
      %4255 = vmatpush1.msra.mxu0 0.0
      %4256 = vmatprep.subr.mxu0 0.0
      %4257 = vmatpush1.msra.mxu0 0.0
      %4258 = vmatprep.subr.mxu0 0.0
      %4259 = vmatpush1.msra.mxu0 0.0
      %4260 = vmatprep.subr.mxu0 0.0
      %4261 = vmatpush1.msra.mxu0 0.0
      %4262 = vmatprep.subr.mxu0 0.0
      %4263 = vmatpush1.msra.mxu0 0.0
      %4264 = vmatprep.subr.mxu0 0.0
      %4265 = vmatpush1.msra.mxu0 0.0
      %4266 = vmatprep.subr.mxu0 0.0
      %4267 = vmatpush1.msra.mxu0 0.0
      %4268 = vmatprep.subr.mxu0 0.0
      %4269 = vmatpush1.msra.mxu0 0.0
      %4270 = vmatprep.subr.mxu0 0.0
      %4271 = vmatpush1.msra.mxu0 0.0
      %4272 = vmatprep.subr.mxu0 0.0
      %4273 = vmatpush1.msra.mxu0 0.0
      %4274 = vmatprep.subr.mxu0 0.0
      %4275 = vmatpush1.msra.mxu0 0.0
      %4276 = vmatprep.subr.mxu0 0.0
      %4277 = vmatpush1.msra.mxu0 0.0
      %4278 = vmatprep.subr.mxu0 0.0
      %4279 = vmatpush1.msra.mxu0 0.0
      %4280 = vmatprep.subr.mxu0 0.0
      %4281 = vmatpush1.msra.mxu0 0.0
      %4282 = vmatprep.subr.mxu0 0.0
      %4283 = vmatpush1.msra.mxu0 0.0
      %4284 = vmatprep.subr.mxu0 0.0
      %4285 = vmatpush1.msra.mxu0 0.0
      %4286 = vmatprep.mubr.f32.mxu0 0.0
      %4287 = vmatmul.mubr.f32.gmra.mrb[0].mxu0 %v3706
      %v4288 = vpop.f32.mrb[0].mxu0
      %v4289 = vadd.f32 0.0, %v4288
      %v4290 = vpop.f32.mrb[0].mxu0
      %4291 = vdwg.mxu0
      %v4292 = vadd.f32 %v3132, %v3778
      %v4293 = vadd.f32 %v3133, %v3851
      %v4294 = vadd.f32 %v3134, %v3924
      %v4295 = vadd.f32 %v3135, %v3997
      %v4296 = vadd.f32 %v3136, %v4070
      %v4297 = vadd.f32 %v3137, %v4143
      %v4298 = vadd.f32 %v3138, %v4216
      %v4299 = vadd.f32 %v3139, %v4289
      %v4300 = vsel %vm212, %v3210, 0
      %4302 = vmatprep.subr.mxu0 0.0
      %4303 = vmatpush1.msra.mxu0 %v3141
      %4304 = vmatprep.subr.mxu0 0.0
      %4305 = vmatpush1.msra.mxu0 %v3142
      %4306 = vmatprep.subr.mxu0 0.0
      %4307 = vmatpush1.msra.mxu0 0.0
      %4308 = vmatprep.subr.mxu0 0.0
      %4309 = vmatpush1.msra.mxu0 0.0
      %4310 = vmatprep.subr.mxu0 0.0
      %4311 = vmatpush1.msra.mxu0 0.0
      %4312 = vmatprep.subr.mxu0 0.0
      %4313 = vmatpush1.msra.mxu0 0.0
      %4314 = vmatprep.subr.mxu0 0.0
      %4315 = vmatpush1.msra.mxu0 0.0
      %4316 = vmatprep.subr.mxu0 0.0
      %4317 = vmatpush1.msra.mxu0 0.0
      %4318 = vmatprep.subr.mxu0 0.0
      %4319 = vmatpush1.msra.mxu0 0.0
      %4320 = vmatprep.subr.mxu0 0.0
      %4321 = vmatpush1.msra.mxu0 0.0
      %4322 = vmatprep.subr.mxu0 0.0
      %4323 = vmatpush1.msra.mxu0 0.0
      %4324 = vmatprep.subr.mxu0 0.0
      %4325 = vmatpush1.msra.mxu0 0.0
      %4326 = vmatprep.subr.mxu0 0.0
      %4327 = vmatpush1.msra.mxu0 0.0
      %4328 = vmatprep.subr.mxu0 0.0
      %4329 = vmatpush1.msra.mxu0 0.0
      %4330 = vmatprep.subr.mxu0 0.0
      %4331 = vmatpush1.msra.mxu0 0.0
      %4332 = vmatprep.subr.mxu0 0.0
      %4333 = vmatpush1.msra.mxu0 0.0
      %4334 = vmatprep.subr.mxu0 0.0
      %4335 = vmatpush1.msra.mxu0 0.0
      %4336 = vmatprep.subr.mxu0 0.0
      %4337 = vmatpush1.msra.mxu0 0.0
      %4338 = vmatprep.subr.mxu0 0.0
      %4339 = vmatpush1.msra.mxu0 0.0
      %4340 = vmatprep.subr.mxu0 0.0
      %4341 = vmatpush1.msra.mxu0 0.0
      %4342 = vmatprep.subr.mxu0 0.0
      %4343 = vmatpush1.msra.mxu0 0.0
      %4344 = vmatprep.subr.mxu0 0.0
      %4345 = vmatpush1.msra.mxu0 0.0
      %4346 = vmatprep.subr.mxu0 0.0
      %4347 = vmatpush1.msra.mxu0 0.0
      %4348 = vmatprep.subr.mxu0 0.0
      %4349 = vmatpush1.msra.mxu0 0.0
      %4350 = vmatprep.subr.mxu0 0.0
      %4351 = vmatpush1.msra.mxu0 0.0
      %4352 = vmatprep.subr.mxu0 0.0
      %4353 = vmatpush1.msra.mxu0 0.0
      %4354 = vmatprep.subr.mxu0 0.0
      %4355 = vmatpush1.msra.mxu0 0.0
      %4356 = vmatprep.subr.mxu0 0.0
      %4357 = vmatpush1.msra.mxu0 0.0
      %4358 = vmatprep.subr.mxu0 0.0
      %4359 = vmatpush1.msra.mxu0 0.0
      %4360 = vmatprep.subr.mxu0 0.0
      %4361 = vmatpush1.msra.mxu0 0.0
      %4362 = vmatprep.subr.mxu0 0.0
      %4363 = vmatpush1.msra.mxu0 0.0
      %4364 = vmatprep.subr.mxu0 0.0
      %4365 = vmatpush1.msra.mxu0 0.0
      %4366 = vmatprep.mubr.f32.mxu0 0.0
      %4367 = vmatmul.mubr.f32.gmra.mrb[0].mxu0 %v4300
      %v4368 = vpop.f32.mrb[0].mxu0
      %v4369 = vadd.f32 0.0, %v4368
      %v4370 = vpop.f32.mrb[0].mxu0
      %4371 = vdwg.mxu0
      %v4372 = vsel %vm212, %v3280, 0
      %4374 = vmatprep.subr.mxu0 0.0
      %4375 = vmatpush1.msra.mxu0 %v3141
      %4376 = vmatprep.subr.mxu0 0.0
      %4377 = vmatpush1.msra.mxu0 %v3142
      %4378 = vmatprep.subr.mxu0 0.0
      %4379 = vmatpush1.msra.mxu0 0.0
      %4380 = vmatprep.subr.mxu0 0.0
      %4381 = vmatpush1.msra.mxu0 0.0
      %4382 = vmatprep.subr.mxu0 0.0
      %4383 = vmatpush1.msra.mxu0 0.0
      %4384 = vmatprep.subr.mxu0 0.0
      %4385 = vmatpush1.msra.mxu0 0.0
      %4386 = vmatprep.subr.mxu0 0.0
      %4387 = vmatpush1.msra.mxu0 0.0
      %4388 = vmatprep.subr.mxu0 0.0
      %4389 = vmatpush1.msra.mxu0 0.0
      %4390 = vmatprep.subr.mxu0 0.0
      %4391 = vmatpush1.msra.mxu0 0.0
      %4392 = vmatprep.subr.mxu0 0.0
      %4393 = vmatpush1.msra.mxu0 0.0
      %4394 = vmatprep.subr.mxu0 0.0
      %4395 = vmatpush1.msra.mxu0 0.0
      %4396 = vmatprep.subr.mxu0 0.0
      %4397 = vmatpush1.msra.mxu0 0.0
      %4398 = vmatprep.subr.mxu0 0.0
      %4399 = vmatpush1.msra.mxu0 0.0
      %4400 = vmatprep.subr.mxu0 0.0
      %4401 = vmatpush1.msra.mxu0 0.0
      %4402 = vmatprep.subr.mxu0 0.0
      %4403 = vmatpush1.msra.mxu0 0.0
      %4404 = vmatprep.subr.mxu0 0.0
      %4405 = vmatpush1.msra.mxu0 0.0
      %4406 = vmatprep.subr.mxu0 0.0
      %4407 = vmatpush1.msra.mxu0 0.0
      %4408 = vmatprep.subr.mxu0 0.0
      %4409 = vmatpush1.msra.mxu0 0.0
      %4410 = vmatprep.subr.mxu0 0.0
      %4411 = vmatpush1.msra.mxu0 0.0
      %4412 = vmatprep.subr.mxu0 0.0
      %4413 = vmatpush1.msra.mxu0 0.0
      %4414 = vmatprep.subr.mxu0 0.0
      %4415 = vmatpush1.msra.mxu0 0.0
      %4416 = vmatprep.subr.mxu0 0.0
      %4417 = vmatpush1.msra.mxu0 0.0
      %4418 = vmatprep.subr.mxu0 0.0
      %4419 = vmatpush1.msra.mxu0 0.0
      %4420 = vmatprep.subr.mxu0 0.0
      %4421 = vmatpush1.msra.mxu0 0.0
      %4422 = vmatprep.subr.mxu0 0.0
      %4423 = vmatpush1.msra.mxu0 0.0
      %4424 = vmatprep.subr.mxu0 0.0
      %4425 = vmatpush1.msra.mxu0 0.0
      %4426 = vmatprep.subr.mxu0 0.0
      %4427 = vmatpush1.msra.mxu0 0.0
      %4428 = vmatprep.subr.mxu0 0.0
      %4429 = vmatpush1.msra.mxu0 0.0
      %4430 = vmatprep.subr.mxu0 0.0
      %4431 = vmatpush1.msra.mxu0 0.0
      %4432 = vmatprep.subr.mxu0 0.0
      %4433 = vmatpush1.msra.mxu0 0.0
      %4434 = vmatprep.subr.mxu0 0.0
      %4435 = vmatpush1.msra.mxu0 0.0
      %4436 = vmatprep.subr.mxu0 0.0
      %4437 = vmatpush1.msra.mxu0 0.0
      %4438 = vmatprep.mubr.f32.mxu0 0.0
      %4439 = vmatmul.mubr.f32.gmra.mrb[0].mxu0 %v4372
      %v4440 = vpop.f32.mrb[0].mxu0
      %v4441 = vadd.f32 0.0, %v4440
      %v4442 = vpop.f32.mrb[0].mxu0
      %4443 = vdwg.mxu0
      %v4444 = vsel %vm212, %v3350, 0
      %4446 = vmatprep.subr.mxu0 0.0
      %4447 = vmatpush1.msra.mxu0 %v3141
      %4448 = vmatprep.subr.mxu0 0.0
      %4449 = vmatpush1.msra.mxu0 %v3142
      %4450 = vmatprep.subr.mxu0 0.0
      %4451 = vmatpush1.msra.mxu0 0.0
      %4452 = vmatprep.subr.mxu0 0.0
      %4453 = vmatpush1.msra.mxu0 0.0
      %4454 = vmatprep.subr.mxu0 0.0
      %4455 = vmatpush1.msra.mxu0 0.0
      %4456 = vmatprep.subr.mxu0 0.0
      %4457 = vmatpush1.msra.mxu0 0.0
      %4458 = vmatprep.subr.mxu0 0.0
      %4459 = vmatpush1.msra.mxu0 0.0
      %4460 = vmatprep.subr.mxu0 0.0
      %4461 = vmatpush1.msra.mxu0 0.0
      %4462 = vmatprep.subr.mxu0 0.0
      %4463 = vmatpush1.msra.mxu0 0.0
      %4464 = vmatprep.subr.mxu0 0.0
      %4465 = vmatpush1.msra.mxu0 0.0
      %4466 = vmatprep.subr.mxu0 0.0
      %4467 = vmatpush1.msra.mxu0 0.0
      %4468 = vmatprep.subr.mxu0 0.0
      %4469 = vmatpush1.msra.mxu0 0.0
      %4470 = vmatprep.subr.mxu0 0.0
      %4471 = vmatpush1.msra.mxu0 0.0
      %4472 = vmatprep.subr.mxu0 0.0
      %4473 = vmatpush1.msra.mxu0 0.0
      %4474 = vmatprep.subr.mxu0 0.0
      %4475 = vmatpush1.msra.mxu0 0.0
      %4476 = vmatprep.subr.mxu0 0.0
      %4477 = vmatpush1.msra.mxu0 0.0
      %4478 = vmatprep.subr.mxu0 0.0
      %4479 = vmatpush1.msra.mxu0 0.0
      %4480 = vmatprep.subr.mxu0 0.0
      %4481 = vmatpush1.msra.mxu0 0.0
      %4482 = vmatprep.subr.mxu0 0.0
      %4483 = vmatpush1.msra.mxu0 0.0
      %4484 = vmatprep.subr.mxu0 0.0
      %4485 = vmatpush1.msra.mxu0 0.0
      %4486 = vmatprep.subr.mxu0 0.0
      %4487 = vmatpush1.msra.mxu0 0.0
      %4488 = vmatprep.subr.mxu0 0.0
      %4489 = vmatpush1.msra.mxu0 0.0
      %4490 = vmatprep.subr.mxu0 0.0
      %4491 = vmatpush1.msra.mxu0 0.0
      %4492 = vmatprep.subr.mxu0 0.0
      %4493 = vmatpush1.msra.mxu0 0.0
      %4494 = vmatprep.subr.mxu0 0.0
      %4495 = vmatpush1.msra.mxu0 0.0
      %4496 = vmatprep.subr.mxu0 0.0
      %4497 = vmatpush1.msra.mxu0 0.0
      %4498 = vmatprep.subr.mxu0 0.0
      %4499 = vmatpush1.msra.mxu0 0.0
      %4500 = vmatprep.subr.mxu0 0.0
      %4501 = vmatpush1.msra.mxu0 0.0
      %4502 = vmatprep.subr.mxu0 0.0
      %4503 = vmatpush1.msra.mxu0 0.0
      %4504 = vmatprep.subr.mxu0 0.0
      %4505 = vmatpush1.msra.mxu0 0.0
      %4506 = vmatprep.subr.mxu0 0.0
      %4507 = vmatpush1.msra.mxu0 0.0
      %4508 = vmatprep.subr.mxu0 0.0
      %4509 = vmatpush1.msra.mxu0 0.0
      %4510 = vmatprep.mubr.f32.mxu0 0.0
      %4511 = vmatmul.mubr.f32.gmra.mrb[0].mxu0 %v4444
      %v4512 = vpop.f32.mrb[0].mxu0
      %v4513 = vadd.f32 0.0, %v4512
      %v4514 = vpop.f32.mrb[0].mxu0
      %4515 = vdwg.mxu0
      %v4516 = vsel %vm212, %v3420, 0
      %4518 = vmatprep.subr.mxu0 0.0
      %4519 = vmatpush1.msra.mxu0 %v3141
      %4520 = vmatprep.subr.mxu0 0.0
      %4521 = vmatpush1.msra.mxu0 %v3142
      %4522 = vmatprep.subr.mxu0 0.0
      %4523 = vmatpush1.msra.mxu0 0.0
      %4524 = vmatprep.subr.mxu0 0.0
      %4525 = vmatpush1.msra.mxu0 0.0
      %4526 = vmatprep.subr.mxu0 0.0
      %4527 = vmatpush1.msra.mxu0 0.0
      %4528 = vmatprep.subr.mxu0 0.0
      %4529 = vmatpush1.msra.mxu0 0.0
      %4530 = vmatprep.subr.mxu0 0.0
      %4531 = vmatpush1.msra.mxu0 0.0
      %4532 = vmatprep.subr.mxu0 0.0
      %4533 = vmatpush1.msra.mxu0 0.0
      %4534 = vmatprep.subr.mxu0 0.0
      %4535 = vmatpush1.msra.mxu0 0.0
      %4536 = vmatprep.subr.mxu0 0.0
      %4537 = vmatpush1.msra.mxu0 0.0
      %4538 = vmatprep.subr.mxu0 0.0
      %4539 = vmatpush1.msra.mxu0 0.0
      %4540 = vmatprep.subr.mxu0 0.0
      %4541 = vmatpush1.msra.mxu0 0.0
      %4542 = vmatprep.subr.mxu0 0.0
      %4543 = vmatpush1.msra.mxu0 0.0
      %4544 = vmatprep.subr.mxu0 0.0
      %4545 = vmatpush1.msra.mxu0 0.0
      %4546 = vmatprep.subr.mxu0 0.0
      %4547 = vmatpush1.msra.mxu0 0.0
      %4548 = vmatprep.subr.mxu0 0.0
      %4549 = vmatpush1.msra.mxu0 0.0
      %4550 = vmatprep.subr.mxu0 0.0
      %4551 = vmatpush1.msra.mxu0 0.0
      %4552 = vmatprep.subr.mxu0 0.0
      %4553 = vmatpush1.msra.mxu0 0.0
      %4554 = vmatprep.subr.mxu0 0.0
      %4555 = vmatpush1.msra.mxu0 0.0
      %4556 = vmatprep.subr.mxu0 0.0
      %4557 = vmatpush1.msra.mxu0 0.0
      %4558 = vmatprep.subr.mxu0 0.0
      %4559 = vmatpush1.msra.mxu0 0.0
      %4560 = vmatprep.subr.mxu0 0.0
      %4561 = vmatpush1.msra.mxu0 0.0
      %4562 = vmatprep.subr.mxu0 0.0
      %4563 = vmatpush1.msra.mxu0 0.0
      %4564 = vmatprep.subr.mxu0 0.0
      %4565 = vmatpush1.msra.mxu0 0.0
      %4566 = vmatprep.subr.mxu0 0.0
      %4567 = vmatpush1.msra.mxu0 0.0
      %4568 = vmatprep.subr.mxu0 0.0
      %4569 = vmatpush1.msra.mxu0 0.0
      %4570 = vmatprep.subr.mxu0 0.0
      %4571 = vmatpush1.msra.mxu0 0.0
      %4572 = vmatprep.subr.mxu0 0.0
      %4573 = vmatpush1.msra.mxu0 0.0
      %4574 = vmatprep.subr.mxu0 0.0
      %4575 = vmatpush1.msra.mxu0 0.0
      %4576 = vmatprep.subr.mxu0 0.0
      %4577 = vmatpush1.msra.mxu0 0.0
      %4578 = vmatprep.subr.mxu0 0.0
      %4579 = vmatpush1.msra.mxu0 0.0
      %4580 = vmatprep.subr.mxu0 0.0
      %4581 = vmatpush1.msra.mxu0 0.0
      %4582 = vmatprep.mubr.f32.mxu0 0.0
      %4583 = vmatmul.mubr.f32.gmra.mrb[0].mxu0 %v4516
      %v4584 = vpop.f32.mrb[0].mxu0
      %v4585 = vadd.f32 0.0, %v4584
      %v4586 = vpop.f32.mrb[0].mxu0
      %4587 = vdwg.mxu0
      %v4588 = vsel %vm212, %v3490, 0
      %4590 = vmatprep.subr.mxu0 0.0
      %4591 = vmatpush1.msra.mxu0 %v3141
      %4592 = vmatprep.subr.mxu0 0.0
      %4593 = vmatpush1.msra.mxu0 %v3142
      %4594 = vmatprep.subr.mxu0 0.0
      %4595 = vmatpush1.msra.mxu0 0.0
      %4596 = vmatprep.subr.mxu0 0.0
      %4597 = vmatpush1.msra.mxu0 0.0
      %4598 = vmatprep.subr.mxu0 0.0
      %4599 = vmatpush1.msra.mxu0 0.0
      %4600 = vmatprep.subr.mxu0 0.0
      %4601 = vmatpush1.msra.mxu0 0.0
      %4602 = vmatprep.subr.mxu0 0.0
      %4603 = vmatpush1.msra.mxu0 0.0
      %4604 = vmatprep.subr.mxu0 0.0
      %4605 = vmatpush1.msra.mxu0 0.0
      %4606 = vmatprep.subr.mxu0 0.0
      %4607 = vmatpush1.msra.mxu0 0.0
      %4608 = vmatprep.subr.mxu0 0.0
      %4609 = vmatpush1.msra.mxu0 0.0
      %4610 = vmatprep.subr.mxu0 0.0
      %4611 = vmatpush1.msra.mxu0 0.0
      %4612 = vmatprep.subr.mxu0 0.0
      %4613 = vmatpush1.msra.mxu0 0.0
      %4614 = vmatprep.subr.mxu0 0.0
      %4615 = vmatpush1.msra.mxu0 0.0
      %4616 = vmatprep.subr.mxu0 0.0
      %4617 = vmatpush1.msra.mxu0 0.0
      %4618 = vmatprep.subr.mxu0 0.0
      %4619 = vmatpush1.msra.mxu0 0.0
      %4620 = vmatprep.subr.mxu0 0.0
      %4621 = vmatpush1.msra.mxu0 0.0
      %4622 = vmatprep.subr.mxu0 0.0
      %4623 = vmatpush1.msra.mxu0 0.0
      %4624 = vmatprep.subr.mxu0 0.0
      %4625 = vmatpush1.msra.mxu0 0.0
      %4626 = vmatprep.subr.mxu0 0.0
      %4627 = vmatpush1.msra.mxu0 0.0
      %4628 = vmatprep.subr.mxu0 0.0
      %4629 = vmatpush1.msra.mxu0 0.0
      %4630 = vmatprep.subr.mxu0 0.0
      %4631 = vmatpush1.msra.mxu0 0.0
      %4632 = vmatprep.subr.mxu0 0.0
      %4633 = vmatpush1.msra.mxu0 0.0
      %4634 = vmatprep.subr.mxu0 0.0
      %4635 = vmatpush1.msra.mxu0 0.0
      %4636 = vmatprep.subr.mxu0 0.0
      %4637 = vmatpush1.msra.mxu0 0.0
      %4638 = vmatprep.subr.mxu0 0.0
      %4639 = vmatpush1.msra.mxu0 0.0
      %4640 = vmatprep.subr.mxu0 0.0
      %4641 = vmatpush1.msra.mxu0 0.0
      %4642 = vmatprep.subr.mxu0 0.0
      %4643 = vmatpush1.msra.mxu0 0.0
      %4644 = vmatprep.subr.mxu0 0.0
      %4645 = vmatpush1.msra.mxu0 0.0
      %4646 = vmatprep.subr.mxu0 0.0
      %4647 = vmatpush1.msra.mxu0 0.0
      %4648 = vmatprep.subr.mxu0 0.0
      %4649 = vmatpush1.msra.mxu0 0.0
      %4650 = vmatprep.subr.mxu0 0.0
      %4651 = vmatpush1.msra.mxu0 0.0
      %4652 = vmatprep.subr.mxu0 0.0
      %4653 = vmatpush1.msra.mxu0 0.0
      %4654 = vmatprep.mubr.f32.mxu0 0.0
      %4655 = vmatmul.mubr.f32.gmra.mrb[0].mxu0 %v4588
      %v4656 = vpop.f32.mrb[0].mxu0
      %v4657 = vadd.f32 0.0, %v4656
      %v4658 = vpop.f32.mrb[0].mxu0
      %4659 = vdwg.mxu0
      %v4660 = vsel %vm212, %v3560, 0
      %4662 = vmatprep.subr.mxu0 0.0
      %4663 = vmatpush1.msra.mxu0 %v3141
      %4664 = vmatprep.subr.mxu0 0.0
      %4665 = vmatpush1.msra.mxu0 %v3142
      %4666 = vmatprep.subr.mxu0 0.0
      %4667 = vmatpush1.msra.mxu0 0.0
      %4668 = vmatprep.subr.mxu0 0.0
      %4669 = vmatpush1.msra.mxu0 0.0
      %4670 = vmatprep.subr.mxu0 0.0
      %4671 = vmatpush1.msra.mxu0 0.0
      %4672 = vmatprep.subr.mxu0 0.0
      %4673 = vmatpush1.msra.mxu0 0.0
      %4674 = vmatprep.subr.mxu0 0.0
      %4675 = vmatpush1.msra.mxu0 0.0
      %4676 = vmatprep.subr.mxu0 0.0
      %4677 = vmatpush1.msra.mxu0 0.0
      %4678 = vmatprep.subr.mxu0 0.0
      %4679 = vmatpush1.msra.mxu0 0.0
      %4680 = vmatprep.subr.mxu0 0.0
      %4681 = vmatpush1.msra.mxu0 0.0
      %4682 = vmatprep.subr.mxu0 0.0
      %4683 = vmatpush1.msra.mxu0 0.0
      %4684 = vmatprep.subr.mxu0 0.0
      %4685 = vmatpush1.msra.mxu0 0.0
      %4686 = vmatprep.subr.mxu0 0.0
      %4687 = vmatpush1.msra.mxu0 0.0
      %4688 = vmatprep.subr.mxu0 0.0
      %4689 = vmatpush1.msra.mxu0 0.0
      %4690 = vmatprep.subr.mxu0 0.0
      %4691 = vmatpush1.msra.mxu0 0.0
      %4692 = vmatprep.subr.mxu0 0.0
      %4693 = vmatpush1.msra.mxu0 0.0
      %4694 = vmatprep.subr.mxu0 0.0
      %4695 = vmatpush1.msra.mxu0 0.0
      %4696 = vmatprep.subr.mxu0 0.0
      %4697 = vmatpush1.msra.mxu0 0.0
      %4698 = vmatprep.subr.mxu0 0.0
      %4699 = vmatpush1.msra.mxu0 0.0
      %4700 = vmatprep.subr.mxu0 0.0
      %4701 = vmatpush1.msra.mxu0 0.0
      %4702 = vmatprep.subr.mxu0 0.0
      %4703 = vmatpush1.msra.mxu0 0.0
      %4704 = vmatprep.subr.mxu0 0.0
      %4705 = vmatpush1.msra.mxu0 0.0
      %4706 = vmatprep.subr.mxu0 0.0
      %4707 = vmatpush1.msra.mxu0 0.0
      %4708 = vmatprep.subr.mxu0 0.0
      %4709 = vmatpush1.msra.mxu0 0.0
      %4710 = vmatprep.subr.mxu0 0.0
      %4711 = vmatpush1.msra.mxu0 0.0
      %4712 = vmatprep.subr.mxu0 0.0
      %4713 = vmatpush1.msra.mxu0 0.0
      %4714 = vmatprep.subr.mxu0 0.0
      %4715 = vmatpush1.msra.mxu0 0.0
      %4716 = vmatprep.subr.mxu0 0.0
      %4717 = vmatpush1.msra.mxu0 0.0
      %4718 = vmatprep.subr.mxu0 0.0
      %4719 = vmatpush1.msra.mxu0 0.0
      %4720 = vmatprep.subr.mxu0 0.0
      %4721 = vmatpush1.msra.mxu0 0.0
      %4722 = vmatprep.subr.mxu0 0.0
      %4723 = vmatpush1.msra.mxu0 0.0
      %4724 = vmatprep.subr.mxu0 0.0
      %4725 = vmatpush1.msra.mxu0 0.0
      %4726 = vmatprep.mubr.f32.mxu0 0.0
      %4727 = vmatmul.mubr.f32.gmra.mrb[0].mxu0 %v4660
      %v4728 = vpop.f32.mrb[0].mxu0
      %v4729 = vadd.f32 0.0, %v4728
      %v4730 = vpop.f32.mrb[0].mxu0
      %4731 = vdwg.mxu0
      %v4732 = vsel %vm212, %v3630, 0
      %4734 = vmatprep.subr.mxu0 0.0
      %4735 = vmatpush1.msra.mxu0 %v3141
      %4736 = vmatprep.subr.mxu0 0.0
      %4737 = vmatpush1.msra.mxu0 %v3142
      %4738 = vmatprep.subr.mxu0 0.0
      %4739 = vmatpush1.msra.mxu0 0.0
      %4740 = vmatprep.subr.mxu0 0.0
      %4741 = vmatpush1.msra.mxu0 0.0
      %4742 = vmatprep.subr.mxu0 0.0
      %4743 = vmatpush1.msra.mxu0 0.0
      %4744 = vmatprep.subr.mxu0 0.0
      %4745 = vmatpush1.msra.mxu0 0.0
      %4746 = vmatprep.subr.mxu0 0.0
      %4747 = vmatpush1.msra.mxu0 0.0
      %4748 = vmatprep.subr.mxu0 0.0
      %4749 = vmatpush1.msra.mxu0 0.0
      %4750 = vmatprep.subr.mxu0 0.0
      %4751 = vmatpush1.msra.mxu0 0.0
      %4752 = vmatprep.subr.mxu0 0.0
      %4753 = vmatpush1.msra.mxu0 0.0
      %4754 = vmatprep.subr.mxu0 0.0
      %4755 = vmatpush1.msra.mxu0 0.0
      %4756 = vmatprep.subr.mxu0 0.0
      %4757 = vmatpush1.msra.mxu0 0.0
      %4758 = vmatprep.subr.mxu0 0.0
      %4759 = vmatpush1.msra.mxu0 0.0
      %4760 = vmatprep.subr.mxu0 0.0
      %4761 = vmatpush1.msra.mxu0 0.0
      %4762 = vmatprep.subr.mxu0 0.0
      %4763 = vmatpush1.msra.mxu0 0.0
      %4764 = vmatprep.subr.mxu0 0.0
      %4765 = vmatpush1.msra.mxu0 0.0
      %4766 = vmatprep.subr.mxu0 0.0
      %4767 = vmatpush1.msra.mxu0 0.0
      %4768 = vmatprep.subr.mxu0 0.0
      %4769 = vmatpush1.msra.mxu0 0.0
      %4770 = vmatprep.subr.mxu0 0.0
      %4771 = vmatpush1.msra.mxu0 0.0
      %4772 = vmatprep.subr.mxu0 0.0
      %4773 = vmatpush1.msra.mxu0 0.0
      %4774 = vmatprep.subr.mxu0 0.0
      %4775 = vmatpush1.msra.mxu0 0.0
      %4776 = vmatprep.subr.mxu0 0.0
      %4777 = vmatpush1.msra.mxu0 0.0
      %4778 = vmatprep.subr.mxu0 0.0
      %4779 = vmatpush1.msra.mxu0 0.0
      %4780 = vmatprep.subr.mxu0 0.0
      %4781 = vmatpush1.msra.mxu0 0.0
      %4782 = vmatprep.subr.mxu0 0.0
      %4783 = vmatpush1.msra.mxu0 0.0
      %4784 = vmatprep.subr.mxu0 0.0
      %4785 = vmatpush1.msra.mxu0 0.0
      %4786 = vmatprep.subr.mxu0 0.0
      %4787 = vmatpush1.msra.mxu0 0.0
      %4788 = vmatprep.subr.mxu0 0.0
      %4789 = vmatpush1.msra.mxu0 0.0
      %4790 = vmatprep.subr.mxu0 0.0
      %4791 = vmatpush1.msra.mxu0 0.0
      %4792 = vmatprep.subr.mxu0 0.0
      %4793 = vmatpush1.msra.mxu0 0.0
      %4794 = vmatprep.subr.mxu0 0.0
      %4795 = vmatpush1.msra.mxu0 0.0
      %4796 = vmatprep.subr.mxu0 0.0
      %4797 = vmatpush1.msra.mxu0 0.0
      %4798 = vmatprep.mubr.f32.mxu0 0.0
      %4799 = vmatmul.mubr.f32.gmra.mrb[0].mxu0 %v4732
      %v4800 = vpop.f32.mrb[0].mxu0
      %v4801 = vadd.f32 0.0, %v4800
      %v4802 = vpop.f32.mrb[0].mxu0
      %4803 = vdwg.mxu0
      %v4804 = vsel %vm212, %v3700, 0
      %4806 = vmatprep.subr.mxu0 0.0
      %4807 = vmatpush1.msra.mxu0 %v3141
      %4808 = vmatprep.subr.mxu0 0.0
      %4809 = vmatpush1.msra.mxu0 %v3142
      %4810 = vmatprep.subr.mxu0 0.0
      %4811 = vmatpush1.msra.mxu0 0.0
      %4812 = vmatprep.subr.mxu0 0.0
      %4813 = vmatpush1.msra.mxu0 0.0
      %4814 = vmatprep.subr.mxu0 0.0
      %4815 = vmatpush1.msra.mxu0 0.0
      %4816 = vmatprep.subr.mxu0 0.0
      %4817 = vmatpush1.msra.mxu0 0.0
      %4818 = vmatprep.subr.mxu0 0.0
      %4819 = vmatpush1.msra.mxu0 0.0
      %4820 = vmatprep.subr.mxu0 0.0
      %4821 = vmatpush1.msra.mxu0 0.0
      %4822 = vmatprep.subr.mxu0 0.0
      %4823 = vmatpush1.msra.mxu0 0.0
      %4824 = vmatprep.subr.mxu0 0.0
      %4825 = vmatpush1.msra.mxu0 0.0
      %4826 = vmatprep.subr.mxu0 0.0
      %4827 = vmatpush1.msra.mxu0 0.0
      %4828 = vmatprep.subr.mxu0 0.0
      %4829 = vmatpush1.msra.mxu0 0.0
      %4830 = vmatprep.subr.mxu0 0.0
      %4831 = vmatpush1.msra.mxu0 0.0
      %4832 = vmatprep.subr.mxu0 0.0
      %4833 = vmatpush1.msra.mxu0 0.0
      %4834 = vmatprep.subr.mxu0 0.0
      %4835 = vmatpush1.msra.mxu0 0.0
      %4836 = vmatprep.subr.mxu0 0.0
      %4837 = vmatpush1.msra.mxu0 0.0
      %4838 = vmatprep.subr.mxu0 0.0
      %4839 = vmatpush1.msra.mxu0 0.0
      %4840 = vmatprep.subr.mxu0 0.0
      %4841 = vmatpush1.msra.mxu0 0.0
      %4842 = vmatprep.subr.mxu0 0.0
      %4843 = vmatpush1.msra.mxu0 0.0
      %4844 = vmatprep.subr.mxu0 0.0
      %4845 = vmatpush1.msra.mxu0 0.0
      %4846 = vmatprep.subr.mxu0 0.0
      %4847 = vmatpush1.msra.mxu0 0.0
      %4848 = vmatprep.subr.mxu0 0.0
      %4849 = vmatpush1.msra.mxu0 0.0
      %4850 = vmatprep.subr.mxu0 0.0
      %4851 = vmatpush1.msra.mxu0 0.0
      %4852 = vmatprep.subr.mxu0 0.0
      %4853 = vmatpush1.msra.mxu0 0.0
      %4854 = vmatprep.subr.mxu0 0.0
      %4855 = vmatpush1.msra.mxu0 0.0
      %4856 = vmatprep.subr.mxu0 0.0
      %4857 = vmatpush1.msra.mxu0 0.0
      %4858 = vmatprep.subr.mxu0 0.0
      %4859 = vmatpush1.msra.mxu0 0.0
      %4860 = vmatprep.subr.mxu0 0.0
      %4861 = vmatpush1.msra.mxu0 0.0
      %4862 = vmatprep.subr.mxu0 0.0
      %4863 = vmatpush1.msra.mxu0 0.0
      %4864 = vmatprep.subr.mxu0 0.0
      %4865 = vmatpush1.msra.mxu0 0.0
      %4866 = vmatprep.subr.mxu0 0.0
      %4867 = vmatpush1.msra.mxu0 0.0
      %4868 = vmatprep.subr.mxu0 0.0
      %4869 = vmatpush1.msra.mxu0 0.0
      %4870 = vmatprep.mubr.f32.mxu0 0.0
      %4871 = vmatmul.mubr.f32.gmra.mrb[0].mxu0 %v4804
      %v4872 = vpop.f32.mrb[0].mxu0
      %v4873 = vadd.f32 0.0, %v4872
      %v4874 = vpop.f32.mrb[0].mxu0
      %4875 = vdwg.mxu0
      %s4876 = scalar_lea.vmem %s2, 32
      %v4877 = vld [vmem:[%s4876] sm:$0xff]
      %v4879 = vsel %vm799, %v4877, 0
      %v4882 = vsel %vm803, %v4369, 0
      %4884 = vmatprep.subr.mxu0 0.0
      %4885 = vmatpush1.msra.mxu0 %v4882
      %4886 = vmatprep.subr.mxu0 0.0
      %4887 = vmatpush1.msra.mxu0 0.0
      %4888 = vmatprep.subr.mxu0 0.0
      %4889 = vmatpush1.msra.mxu0 0.0
      %4890 = vmatprep.subr.mxu0 0.0
      %4891 = vmatpush1.msra.mxu0 0.0
      %4892 = vmatprep.subr.mxu0 0.0
      %4893 = vmatpush1.msra.mxu0 0.0
      %4894 = vmatprep.subr.mxu0 0.0
      %4895 = vmatpush1.msra.mxu0 0.0
      %4896 = vmatprep.subr.mxu0 0.0
      %4897 = vmatpush1.msra.mxu0 0.0
      %4898 = vmatprep.subr.mxu0 0.0
      %4899 = vmatpush1.msra.mxu0 0.0
      %4900 = vmatprep.subr.mxu0 0.0
      %4901 = vmatpush1.msra.mxu0 0.0
      %4902 = vmatprep.subr.mxu0 0.0
      %4903 = vmatpush1.msra.mxu0 0.0
      %4904 = vmatprep.subr.mxu0 0.0
      %4905 = vmatpush1.msra.mxu0 0.0
      %4906 = vmatprep.subr.mxu0 0.0
      %4907 = vmatpush1.msra.mxu0 0.0
      %4908 = vmatprep.subr.mxu0 0.0
      %4909 = vmatpush1.msra.mxu0 0.0
      %4910 = vmatprep.subr.mxu0 0.0
      %4911 = vmatpush1.msra.mxu0 0.0
      %4912 = vmatprep.subr.mxu0 0.0
      %4913 = vmatpush1.msra.mxu0 0.0
      %4914 = vmatprep.subr.mxu0 0.0
      %4915 = vmatpush1.msra.mxu0 0.0
      %4916 = vmatprep.subr.mxu0 0.0
      %4917 = vmatpush1.msra.mxu0 0.0
      %4918 = vmatprep.subr.mxu0 0.0
      %4919 = vmatpush1.msra.mxu0 0.0
      %4920 = vmatprep.subr.mxu0 0.0
      %4921 = vmatpush1.msra.mxu0 0.0
      %4922 = vmatprep.subr.mxu0 0.0
      %4923 = vmatpush1.msra.mxu0 0.0
      %4924 = vmatprep.subr.mxu0 0.0
      %4925 = vmatpush1.msra.mxu0 0.0
      %4926 = vmatprep.subr.mxu0 0.0
      %4927 = vmatpush1.msra.mxu0 0.0
      %4928 = vmatprep.subr.mxu0 0.0
      %4929 = vmatpush1.msra.mxu0 0.0
      %4930 = vmatprep.subr.mxu0 0.0
      %4931 = vmatpush1.msra.mxu0 0.0
      %4932 = vmatprep.subr.mxu0 0.0
      %4933 = vmatpush1.msra.mxu0 0.0
      %4934 = vmatprep.subr.mxu0 0.0
      %4935 = vmatpush1.msra.mxu0 0.0
      %4936 = vmatprep.subr.mxu0 0.0
      %4937 = vmatpush1.msra.mxu0 0.0
      %4938 = vmatprep.subr.mxu0 0.0
      %4939 = vmatpush1.msra.mxu0 0.0
      %4940 = vmatprep.subr.mxu0 0.0
      %4941 = vmatpush1.msra.mxu0 0.0
      %4942 = vmatprep.subr.mxu0 0.0
      %4943 = vmatpush1.msra.mxu0 0.0
      %4944 = vmatprep.subr.mxu0 0.0
      %4945 = vmatpush1.msra.mxu0 0.0
      %4946 = vmatprep.subr.mxu0 0.0
      %4947 = vmatpush1.msra.mxu0 0.0
      %4948 = vmatprep.mubr.f32.mxu0 0.0
      %4949 = vmatmul.mubr.f32.gmra.mrb[0].mxu0 %v4879
      %v4950 = vpop.f32.mrb[0].mxu0
      %v4951 = vadd.f32 0.0, %v4950
      %v4952 = vpop.f32.mrb[0].mxu0
      %4953 = vdwg.mxu0
      %v4955 = vsel %vm803, %v4441, 0
      %4957 = vmatprep.subr.mxu0 0.0
      %4958 = vmatpush1.msra.mxu0 %v4955
      %4959 = vmatprep.subr.mxu0 0.0
      %4960 = vmatpush1.msra.mxu0 0.0
      %4961 = vmatprep.subr.mxu0 0.0
      %4962 = vmatpush1.msra.mxu0 0.0
      %4963 = vmatprep.subr.mxu0 0.0
      %4964 = vmatpush1.msra.mxu0 0.0
      %4965 = vmatprep.subr.mxu0 0.0
      %4966 = vmatpush1.msra.mxu0 0.0
      %4967 = vmatprep.subr.mxu0 0.0
      %4968 = vmatpush1.msra.mxu0 0.0
      %4969 = vmatprep.subr.mxu0 0.0
      %4970 = vmatpush1.msra.mxu0 0.0
      %4971 = vmatprep.subr.mxu0 0.0
      %4972 = vmatpush1.msra.mxu0 0.0
      %4973 = vmatprep.subr.mxu0 0.0
      %4974 = vmatpush1.msra.mxu0 0.0
      %4975 = vmatprep.subr.mxu0 0.0
      %4976 = vmatpush1.msra.mxu0 0.0
      %4977 = vmatprep.subr.mxu0 0.0
      %4978 = vmatpush1.msra.mxu0 0.0
      %4979 = vmatprep.subr.mxu0 0.0
      %4980 = vmatpush1.msra.mxu0 0.0
      %4981 = vmatprep.subr.mxu0 0.0
      %4982 = vmatpush1.msra.mxu0 0.0
      %4983 = vmatprep.subr.mxu0 0.0
      %4984 = vmatpush1.msra.mxu0 0.0
      %4985 = vmatprep.subr.mxu0 0.0
      %4986 = vmatpush1.msra.mxu0 0.0
      %4987 = vmatprep.subr.mxu0 0.0
      %4988 = vmatpush1.msra.mxu0 0.0
      %4989 = vmatprep.subr.mxu0 0.0
      %4990 = vmatpush1.msra.mxu0 0.0
      %4991 = vmatprep.subr.mxu0 0.0
      %4992 = vmatpush1.msra.mxu0 0.0
      %4993 = vmatprep.subr.mxu0 0.0
      %4994 = vmatpush1.msra.mxu0 0.0
      %4995 = vmatprep.subr.mxu0 0.0
      %4996 = vmatpush1.msra.mxu0 0.0
      %4997 = vmatprep.subr.mxu0 0.0
      %4998 = vmatpush1.msra.mxu0 0.0
      %4999 = vmatprep.subr.mxu0 0.0
      %5000 = vmatpush1.msra.mxu0 0.0
      %5001 = vmatprep.subr.mxu0 0.0
      %5002 = vmatpush1.msra.mxu0 0.0
      %5003 = vmatprep.subr.mxu0 0.0
      %5004 = vmatpush1.msra.mxu0 0.0
      %5005 = vmatprep.subr.mxu0 0.0
      %5006 = vmatpush1.msra.mxu0 0.0
      %5007 = vmatprep.subr.mxu0 0.0
      %5008 = vmatpush1.msra.mxu0 0.0
      %5009 = vmatprep.subr.mxu0 0.0
      %5010 = vmatpush1.msra.mxu0 0.0
      %5011 = vmatprep.subr.mxu0 0.0
      %5012 = vmatpush1.msra.mxu0 0.0
      %5013 = vmatprep.subr.mxu0 0.0
      %5014 = vmatpush1.msra.mxu0 0.0
      %5015 = vmatprep.subr.mxu0 0.0
      %5016 = vmatpush1.msra.mxu0 0.0
      %5017 = vmatprep.subr.mxu0 0.0
      %5018 = vmatpush1.msra.mxu0 0.0
      %5019 = vmatprep.subr.mxu0 0.0
      %5020 = vmatpush1.msra.mxu0 0.0
      %5021 = vmatprep.mubr.f32.mxu0 0.0
      %5022 = vmatmul.mubr.f32.gmra.mrb[0].mxu0 %v4879
      %v5023 = vpop.f32.mrb[0].mxu0
      %v5024 = vadd.f32 0.0, %v5023
      %v5025 = vpop.f32.mrb[0].mxu0
      %5026 = vdwg.mxu0
      %v5028 = vsel %vm803, %v4513, 0
      %5030 = vmatprep.subr.mxu0 0.0
      %5031 = vmatpush1.msra.mxu0 %v5028
      %5032 = vmatprep.subr.mxu0 0.0
      %5033 = vmatpush1.msra.mxu0 0.0
      %5034 = vmatprep.subr.mxu0 0.0
      %5035 = vmatpush1.msra.mxu0 0.0
      %5036 = vmatprep.subr.mxu0 0.0
      %5037 = vmatpush1.msra.mxu0 0.0
      %5038 = vmatprep.subr.mxu0 0.0
      %5039 = vmatpush1.msra.mxu0 0.0
      %5040 = vmatprep.subr.mxu0 0.0
      %5041 = vmatpush1.msra.mxu0 0.0
      %5042 = vmatprep.subr.mxu0 0.0
      %5043 = vmatpush1.msra.mxu0 0.0
      %5044 = vmatprep.subr.mxu0 0.0
      %5045 = vmatpush1.msra.mxu0 0.0
      %5046 = vmatprep.subr.mxu0 0.0
      %5047 = vmatpush1.msra.mxu0 0.0
      %5048 = vmatprep.subr.mxu0 0.0
      %5049 = vmatpush1.msra.mxu0 0.0
      %5050 = vmatprep.subr.mxu0 0.0
      %5051 = vmatpush1.msra.mxu0 0.0
      %5052 = vmatprep.subr.mxu0 0.0
      %5053 = vmatpush1.msra.mxu0 0.0
      %5054 = vmatprep.subr.mxu0 0.0
      %5055 = vmatpush1.msra.mxu0 0.0
      %5056 = vmatprep.subr.mxu0 0.0
      %5057 = vmatpush1.msra.mxu0 0.0
      %5058 = vmatprep.subr.mxu0 0.0
      %5059 = vmatpush1.msra.mxu0 0.0
      %5060 = vmatprep.subr.mxu0 0.0
      %5061 = vmatpush1.msra.mxu0 0.0
      %5062 = vmatprep.subr.mxu0 0.0
      %5063 = vmatpush1.msra.mxu0 0.0
      %5064 = vmatprep.subr.mxu0 0.0
      %5065 = vmatpush1.msra.mxu0 0.0
      %5066 = vmatprep.subr.mxu0 0.0
      %5067 = vmatpush1.msra.mxu0 0.0
      %5068 = vmatprep.subr.mxu0 0.0
      %5069 = vmatpush1.msra.mxu0 0.0
      %5070 = vmatprep.subr.mxu0 0.0
      %5071 = vmatpush1.msra.mxu0 0.0
      %5072 = vmatprep.subr.mxu0 0.0
      %5073 = vmatpush1.msra.mxu0 0.0
      %5074 = vmatprep.subr.mxu0 0.0
      %5075 = vmatpush1.msra.mxu0 0.0
      %5076 = vmatprep.subr.mxu0 0.0
      %5077 = vmatpush1.msra.mxu0 0.0
      %5078 = vmatprep.subr.mxu0 0.0
      %5079 = vmatpush1.msra.mxu0 0.0
      %5080 = vmatprep.subr.mxu0 0.0
      %5081 = vmatpush1.msra.mxu0 0.0
      %5082 = vmatprep.subr.mxu0 0.0
      %5083 = vmatpush1.msra.mxu0 0.0
      %5084 = vmatprep.subr.mxu0 0.0
      %5085 = vmatpush1.msra.mxu0 0.0
      %5086 = vmatprep.subr.mxu0 0.0
      %5087 = vmatpush1.msra.mxu0 0.0
      %5088 = vmatprep.subr.mxu0 0.0
      %5089 = vmatpush1.msra.mxu0 0.0
      %5090 = vmatprep.subr.mxu0 0.0
      %5091 = vmatpush1.msra.mxu0 0.0
      %5092 = vmatprep.subr.mxu0 0.0
      %5093 = vmatpush1.msra.mxu0 0.0
      %5094 = vmatprep.mubr.f32.mxu0 0.0
      %5095 = vmatmul.mubr.f32.gmra.mrb[0].mxu0 %v4879
      %v5096 = vpop.f32.mrb[0].mxu0
      %v5097 = vadd.f32 0.0, %v5096
      %v5098 = vpop.f32.mrb[0].mxu0
      %5099 = vdwg.mxu0
      %v5101 = vsel %vm803, %v4585, 0
      %5103 = vmatprep.subr.mxu0 0.0
      %5104 = vmatpush1.msra.mxu0 %v5101
      %5105 = vmatprep.subr.mxu0 0.0
      %5106 = vmatpush1.msra.mxu0 0.0
      %5107 = vmatprep.subr.mxu0 0.0
      %5108 = vmatpush1.msra.mxu0 0.0
      %5109 = vmatprep.subr.mxu0 0.0
      %5110 = vmatpush1.msra.mxu0 0.0
      %5111 = vmatprep.subr.mxu0 0.0
      %5112 = vmatpush1.msra.mxu0 0.0
      %5113 = vmatprep.subr.mxu0 0.0
      %5114 = vmatpush1.msra.mxu0 0.0
      %5115 = vmatprep.subr.mxu0 0.0
      %5116 = vmatpush1.msra.mxu0 0.0
      %5117 = vmatprep.subr.mxu0 0.0
      %5118 = vmatpush1.msra.mxu0 0.0
      %5119 = vmatprep.subr.mxu0 0.0
      %5120 = vmatpush1.msra.mxu0 0.0
      %5121 = vmatprep.subr.mxu0 0.0
      %5122 = vmatpush1.msra.mxu0 0.0
      %5123 = vmatprep.subr.mxu0 0.0
      %5124 = vmatpush1.msra.mxu0 0.0
      %5125 = vmatprep.subr.mxu0 0.0
      %5126 = vmatpush1.msra.mxu0 0.0
      %5127 = vmatprep.subr.mxu0 0.0
      %5128 = vmatpush1.msra.mxu0 0.0
      %5129 = vmatprep.subr.mxu0 0.0
      %5130 = vmatpush1.msra.mxu0 0.0
      %5131 = vmatprep.subr.mxu0 0.0
      %5132 = vmatpush1.msra.mxu0 0.0
      %5133 = vmatprep.subr.mxu0 0.0
      %5134 = vmatpush1.msra.mxu0 0.0
      %5135 = vmatprep.subr.mxu0 0.0
      %5136 = vmatpush1.msra.mxu0 0.0
      %5137 = vmatprep.subr.mxu0 0.0
      %5138 = vmatpush1.msra.mxu0 0.0
      %5139 = vmatprep.subr.mxu0 0.0
      %5140 = vmatpush1.msra.mxu0 0.0
      %5141 = vmatprep.subr.mxu0 0.0
      %5142 = vmatpush1.msra.mxu0 0.0
      %5143 = vmatprep.subr.mxu0 0.0
      %5144 = vmatpush1.msra.mxu0 0.0
      %5145 = vmatprep.subr.mxu0 0.0
      %5146 = vmatpush1.msra.mxu0 0.0
      %5147 = vmatprep.subr.mxu0 0.0
      %5148 = vmatpush1.msra.mxu0 0.0
      %5149 = vmatprep.subr.mxu0 0.0
      %5150 = vmatpush1.msra.mxu0 0.0
      %5151 = vmatprep.subr.mxu0 0.0
      %5152 = vmatpush1.msra.mxu0 0.0
      %5153 = vmatprep.subr.mxu0 0.0
      %5154 = vmatpush1.msra.mxu0 0.0
      %5155 = vmatprep.subr.mxu0 0.0
      %5156 = vmatpush1.msra.mxu0 0.0
      %5157 = vmatprep.subr.mxu0 0.0
      %5158 = vmatpush1.msra.mxu0 0.0
      %5159 = vmatprep.subr.mxu0 0.0
      %5160 = vmatpush1.msra.mxu0 0.0
      %5161 = vmatprep.subr.mxu0 0.0
      %5162 = vmatpush1.msra.mxu0 0.0
      %5163 = vmatprep.subr.mxu0 0.0
      %5164 = vmatpush1.msra.mxu0 0.0
      %5165 = vmatprep.subr.mxu0 0.0
      %5166 = vmatpush1.msra.mxu0 0.0
      %5167 = vmatprep.mubr.f32.mxu0 0.0
      %5168 = vmatmul.mubr.f32.gmra.mrb[0].mxu0 %v4879
      %v5169 = vpop.f32.mrb[0].mxu0
      %v5170 = vadd.f32 0.0, %v5169
      %v5171 = vpop.f32.mrb[0].mxu0
      %5172 = vdwg.mxu0
      %v5174 = vsel %vm803, %v4657, 0
      %5176 = vmatprep.subr.mxu0 0.0
      %5177 = vmatpush1.msra.mxu0 %v5174
      %5178 = vmatprep.subr.mxu0 0.0
      %5179 = vmatpush1.msra.mxu0 0.0
      %5180 = vmatprep.subr.mxu0 0.0
      %5181 = vmatpush1.msra.mxu0 0.0
      %5182 = vmatprep.subr.mxu0 0.0
      %5183 = vmatpush1.msra.mxu0 0.0
      %5184 = vmatprep.subr.mxu0 0.0
      %5185 = vmatpush1.msra.mxu0 0.0
      %5186 = vmatprep.subr.mxu0 0.0
      %5187 = vmatpush1.msra.mxu0 0.0
      %5188 = vmatprep.subr.mxu0 0.0
      %5189 = vmatpush1.msra.mxu0 0.0
      %5190 = vmatprep.subr.mxu0 0.0
      %5191 = vmatpush1.msra.mxu0 0.0
      %5192 = vmatprep.subr.mxu0 0.0
      %5193 = vmatpush1.msra.mxu0 0.0
      %5194 = vmatprep.subr.mxu0 0.0
      %5195 = vmatpush1.msra.mxu0 0.0
      %5196 = vmatprep.subr.mxu0 0.0
      %5197 = vmatpush1.msra.mxu0 0.0
      %5198 = vmatprep.subr.mxu0 0.0
      %5199 = vmatpush1.msra.mxu0 0.0
      %5200 = vmatprep.subr.mxu0 0.0
      %5201 = vmatpush1.msra.mxu0 0.0
      %5202 = vmatprep.subr.mxu0 0.0
      %5203 = vmatpush1.msra.mxu0 0.0
      %5204 = vmatprep.subr.mxu0 0.0
      %5205 = vmatpush1.msra.mxu0 0.0
      %5206 = vmatprep.subr.mxu0 0.0
      %5207 = vmatpush1.msra.mxu0 0.0
      %5208 = vmatprep.subr.mxu0 0.0
      %5209 = vmatpush1.msra.mxu0 0.0
      %5210 = vmatprep.subr.mxu0 0.0
      %5211 = vmatpush1.msra.mxu0 0.0
      %5212 = vmatprep.subr.mxu0 0.0
      %5213 = vmatpush1.msra.mxu0 0.0
      %5214 = vmatprep.subr.mxu0 0.0
      %5215 = vmatpush1.msra.mxu0 0.0
      %5216 = vmatprep.subr.mxu0 0.0
      %5217 = vmatpush1.msra.mxu0 0.0
      %5218 = vmatprep.subr.mxu0 0.0
      %5219 = vmatpush1.msra.mxu0 0.0
      %5220 = vmatprep.subr.mxu0 0.0
      %5221 = vmatpush1.msra.mxu0 0.0
      %5222 = vmatprep.subr.mxu0 0.0
      %5223 = vmatpush1.msra.mxu0 0.0
      %5224 = vmatprep.subr.mxu0 0.0
      %5225 = vmatpush1.msra.mxu0 0.0
      %5226 = vmatprep.subr.mxu0 0.0
      %5227 = vmatpush1.msra.mxu0 0.0
      %5228 = vmatprep.subr.mxu0 0.0
      %5229 = vmatpush1.msra.mxu0 0.0
      %5230 = vmatprep.subr.mxu0 0.0
      %5231 = vmatpush1.msra.mxu0 0.0
      %5232 = vmatprep.subr.mxu0 0.0
      %5233 = vmatpush1.msra.mxu0 0.0
      %5234 = vmatprep.subr.mxu0 0.0
      %5235 = vmatpush1.msra.mxu0 0.0
      %5236 = vmatprep.subr.mxu0 0.0
      %5237 = vmatpush1.msra.mxu0 0.0
      %5238 = vmatprep.subr.mxu0 0.0
      %5239 = vmatpush1.msra.mxu0 0.0
      %5240 = vmatprep.mubr.f32.mxu0 0.0
      %5241 = vmatmul.mubr.f32.gmra.mrb[0].mxu0 %v4879
      %v5242 = vpop.f32.mrb[0].mxu0
      %v5243 = vadd.f32 0.0, %v5242
      %v5244 = vpop.f32.mrb[0].mxu0
      %5245 = vdwg.mxu0
      %v5247 = vsel %vm803, %v4729, 0
      %5249 = vmatprep.subr.mxu0 0.0
      %5250 = vmatpush1.msra.mxu0 %v5247
      %5251 = vmatprep.subr.mxu0 0.0
      %5252 = vmatpush1.msra.mxu0 0.0
      %5253 = vmatprep.subr.mxu0 0.0
      %5254 = vmatpush1.msra.mxu0 0.0
      %5255 = vmatprep.subr.mxu0 0.0
      %5256 = vmatpush1.msra.mxu0 0.0
      %5257 = vmatprep.subr.mxu0 0.0
      %5258 = vmatpush1.msra.mxu0 0.0
      %5259 = vmatprep.subr.mxu0 0.0
      %5260 = vmatpush1.msra.mxu0 0.0
      %5261 = vmatprep.subr.mxu0 0.0
      %5262 = vmatpush1.msra.mxu0 0.0
      %5263 = vmatprep.subr.mxu0 0.0
      %5264 = vmatpush1.msra.mxu0 0.0
      %5265 = vmatprep.subr.mxu0 0.0
      %5266 = vmatpush1.msra.mxu0 0.0
      %5267 = vmatprep.subr.mxu0 0.0
      %5268 = vmatpush1.msra.mxu0 0.0
      %5269 = vmatprep.subr.mxu0 0.0
      %5270 = vmatpush1.msra.mxu0 0.0
      %5271 = vmatprep.subr.mxu0 0.0
      %5272 = vmatpush1.msra.mxu0 0.0
      %5273 = vmatprep.subr.mxu0 0.0
      %5274 = vmatpush1.msra.mxu0 0.0
      %5275 = vmatprep.subr.mxu0 0.0
      %5276 = vmatpush1.msra.mxu0 0.0
      %5277 = vmatprep.subr.mxu0 0.0
      %5278 = vmatpush1.msra.mxu0 0.0
      %5279 = vmatprep.subr.mxu0 0.0
      %5280 = vmatpush1.msra.mxu0 0.0
      %5281 = vmatprep.subr.mxu0 0.0
      %5282 = vmatpush1.msra.mxu0 0.0
      %5283 = vmatprep.subr.mxu0 0.0
      %5284 = vmatpush1.msra.mxu0 0.0
      %5285 = vmatprep.subr.mxu0 0.0
      %5286 = vmatpush1.msra.mxu0 0.0
      %5287 = vmatprep.subr.mxu0 0.0
      %5288 = vmatpush1.msra.mxu0 0.0
      %5289 = vmatprep.subr.mxu0 0.0
      %5290 = vmatpush1.msra.mxu0 0.0
      %5291 = vmatprep.subr.mxu0 0.0
      %5292 = vmatpush1.msra.mxu0 0.0
      %5293 = vmatprep.subr.mxu0 0.0
      %5294 = vmatpush1.msra.mxu0 0.0
      %5295 = vmatprep.subr.mxu0 0.0
      %5296 = vmatpush1.msra.mxu0 0.0
      %5297 = vmatprep.subr.mxu0 0.0
      %5298 = vmatpush1.msra.mxu0 0.0
      %5299 = vmatprep.subr.mxu0 0.0
      %5300 = vmatpush1.msra.mxu0 0.0
      %5301 = vmatprep.subr.mxu0 0.0
      %5302 = vmatpush1.msra.mxu0 0.0
      %5303 = vmatprep.subr.mxu0 0.0
      %5304 = vmatpush1.msra.mxu0 0.0
      %5305 = vmatprep.subr.mxu0 0.0
      %5306 = vmatpush1.msra.mxu0 0.0
      %5307 = vmatprep.subr.mxu0 0.0
      %5308 = vmatpush1.msra.mxu0 0.0
      %5309 = vmatprep.subr.mxu0 0.0
      %5310 = vmatpush1.msra.mxu0 0.0
      %5311 = vmatprep.subr.mxu0 0.0
      %5312 = vmatpush1.msra.mxu0 0.0
      %5313 = vmatprep.mubr.f32.mxu0 0.0
      %5314 = vmatmul.mubr.f32.gmra.mrb[0].mxu0 %v4879
      %v5315 = vpop.f32.mrb[0].mxu0
      %v5316 = vadd.f32 0.0, %v5315
      %v5317 = vpop.f32.mrb[0].mxu0
      %5318 = vdwg.mxu0
      %v5320 = vsel %vm803, %v4801, 0
      %5322 = vmatprep.subr.mxu0 0.0
      %5323 = vmatpush1.msra.mxu0 %v5320
      %5324 = vmatprep.subr.mxu0 0.0
      %5325 = vmatpush1.msra.mxu0 0.0
      %5326 = vmatprep.subr.mxu0 0.0
      %5327 = vmatpush1.msra.mxu0 0.0
      %5328 = vmatprep.subr.mxu0 0.0
      %5329 = vmatpush1.msra.mxu0 0.0
      %5330 = vmatprep.subr.mxu0 0.0
      %5331 = vmatpush1.msra.mxu0 0.0
      %5332 = vmatprep.subr.mxu0 0.0
      %5333 = vmatpush1.msra.mxu0 0.0
      %5334 = vmatprep.subr.mxu0 0.0
      %5335 = vmatpush1.msra.mxu0 0.0
      %5336 = vmatprep.subr.mxu0 0.0
      %5337 = vmatpush1.msra.mxu0 0.0
      %5338 = vmatprep.subr.mxu0 0.0
      %5339 = vmatpush1.msra.mxu0 0.0
      %5340 = vmatprep.subr.mxu0 0.0
      %5341 = vmatpush1.msra.mxu0 0.0
      %5342 = vmatprep.subr.mxu0 0.0
      %5343 = vmatpush1.msra.mxu0 0.0
      %5344 = vmatprep.subr.mxu0 0.0
      %5345 = vmatpush1.msra.mxu0 0.0
      %5346 = vmatprep.subr.mxu0 0.0
      %5347 = vmatpush1.msra.mxu0 0.0
      %5348 = vmatprep.subr.mxu0 0.0
      %5349 = vmatpush1.msra.mxu0 0.0
      %5350 = vmatprep.subr.mxu0 0.0
      %5351 = vmatpush1.msra.mxu0 0.0
      %5352 = vmatprep.subr.mxu0 0.0
      %5353 = vmatpush1.msra.mxu0 0.0
      %5354 = vmatprep.subr.mxu0 0.0
      %5355 = vmatpush1.msra.mxu0 0.0
      %5356 = vmatprep.subr.mxu0 0.0
      %5357 = vmatpush1.msra.mxu0 0.0
      %5358 = vmatprep.subr.mxu0 0.0
      %5359 = vmatpush1.msra.mxu0 0.0
      %5360 = vmatprep.subr.mxu0 0.0
      %5361 = vmatpush1.msra.mxu0 0.0
      %5362 = vmatprep.subr.mxu0 0.0
      %5363 = vmatpush1.msra.mxu0 0.0
      %5364 = vmatprep.subr.mxu0 0.0
      %5365 = vmatpush1.msra.mxu0 0.0
      %5366 = vmatprep.subr.mxu0 0.0
      %5367 = vmatpush1.msra.mxu0 0.0
      %5368 = vmatprep.subr.mxu0 0.0
      %5369 = vmatpush1.msra.mxu0 0.0
      %5370 = vmatprep.subr.mxu0 0.0
      %5371 = vmatpush1.msra.mxu0 0.0
      %5372 = vmatprep.subr.mxu0 0.0
      %5373 = vmatpush1.msra.mxu0 0.0
      %5374 = vmatprep.subr.mxu0 0.0
      %5375 = vmatpush1.msra.mxu0 0.0
      %5376 = vmatprep.subr.mxu0 0.0
      %5377 = vmatpush1.msra.mxu0 0.0
      %5378 = vmatprep.subr.mxu0 0.0
      %5379 = vmatpush1.msra.mxu0 0.0
      %5380 = vmatprep.subr.mxu0 0.0
      %5381 = vmatpush1.msra.mxu0 0.0
      %5382 = vmatprep.subr.mxu0 0.0
      %5383 = vmatpush1.msra.mxu0 0.0
      %5384 = vmatprep.subr.mxu0 0.0
      %5385 = vmatpush1.msra.mxu0 0.0
      %5386 = vmatprep.mubr.f32.mxu0 0.0
      %5387 = vmatmul.mubr.f32.gmra.mrb[0].mxu0 %v4879
      %v5388 = vpop.f32.mrb[0].mxu0
      %v5389 = vadd.f32 0.0, %v5388
      %v5390 = vpop.f32.mrb[0].mxu0
      %5391 = vdwg.mxu0
      %v5393 = vsel %vm803, %v4873, 0
      %5395 = vmatprep.subr.mxu0 0.0
      %5396 = vmatpush1.msra.mxu0 %v5393
      %5397 = vmatprep.subr.mxu0 0.0
      %5398 = vmatpush1.msra.mxu0 0.0
      %5399 = vmatprep.subr.mxu0 0.0
      %5400 = vmatpush1.msra.mxu0 0.0
      %5401 = vmatprep.subr.mxu0 0.0
      %5402 = vmatpush1.msra.mxu0 0.0
      %5403 = vmatprep.subr.mxu0 0.0
      %5404 = vmatpush1.msra.mxu0 0.0
      %5405 = vmatprep.subr.mxu0 0.0
      %5406 = vmatpush1.msra.mxu0 0.0
      %5407 = vmatprep.subr.mxu0 0.0
      %5408 = vmatpush1.msra.mxu0 0.0
      %5409 = vmatprep.subr.mxu0 0.0
      %5410 = vmatpush1.msra.mxu0 0.0
      %5411 = vmatprep.subr.mxu0 0.0
      %5412 = vmatpush1.msra.mxu0 0.0
      %5413 = vmatprep.subr.mxu0 0.0
      %5414 = vmatpush1.msra.mxu0 0.0
      %5415 = vmatprep.subr.mxu0 0.0
      %5416 = vmatpush1.msra.mxu0 0.0
      %5417 = vmatprep.subr.mxu0 0.0
      %5418 = vmatpush1.msra.mxu0 0.0
      %5419 = vmatprep.subr.mxu0 0.0
      %5420 = vmatpush1.msra.mxu0 0.0
      %5421 = vmatprep.subr.mxu0 0.0
      %5422 = vmatpush1.msra.mxu0 0.0
      %5423 = vmatprep.subr.mxu0 0.0
      %5424 = vmatpush1.msra.mxu0 0.0
      %5425 = vmatprep.subr.mxu0 0.0
      %5426 = vmatpush1.msra.mxu0 0.0
      %5427 = vmatprep.subr.mxu0 0.0
      %5428 = vmatpush1.msra.mxu0 0.0
      %5429 = vmatprep.subr.mxu0 0.0
      %5430 = vmatpush1.msra.mxu0 0.0
      %5431 = vmatprep.subr.mxu0 0.0
      %5432 = vmatpush1.msra.mxu0 0.0
      %5433 = vmatprep.subr.mxu0 0.0
      %5434 = vmatpush1.msra.mxu0 0.0
      %5435 = vmatprep.subr.mxu0 0.0
      %5436 = vmatpush1.msra.mxu0 0.0
      %5437 = vmatprep.subr.mxu0 0.0
      %5438 = vmatpush1.msra.mxu0 0.0
      %5439 = vmatprep.subr.mxu0 0.0
      %5440 = vmatpush1.msra.mxu0 0.0
      %5441 = vmatprep.subr.mxu0 0.0
      %5442 = vmatpush1.msra.mxu0 0.0
      %5443 = vmatprep.subr.mxu0 0.0
      %5444 = vmatpush1.msra.mxu0 0.0
      %5445 = vmatprep.subr.mxu0 0.0
      %5446 = vmatpush1.msra.mxu0 0.0
      %5447 = vmatprep.subr.mxu0 0.0
      %5448 = vmatpush1.msra.mxu0 0.0
      %5449 = vmatprep.subr.mxu0 0.0
      %5450 = vmatpush1.msra.mxu0 0.0
      %5451 = vmatprep.subr.mxu0 0.0
      %5452 = vmatpush1.msra.mxu0 0.0
      %5453 = vmatprep.subr.mxu0 0.0
      %5454 = vmatpush1.msra.mxu0 0.0
      %5455 = vmatprep.subr.mxu0 0.0
      %5456 = vmatpush1.msra.mxu0 0.0
      %5457 = vmatprep.subr.mxu0 0.0
      %5458 = vmatpush1.msra.mxu0 0.0
      %5459 = vmatprep.mubr.f32.mxu0 0.0
      %5460 = vmatmul.mubr.f32.gmra.mrb[0].mxu0 %v4879
      %v5461 = vpop.f32.mrb[0].mxu0
      %v5462 = vadd.f32 0.0, %v5461
      %v5463 = vpop.f32.mrb[0].mxu0
      %5464 = vdwg.mxu0
      %v5465 = vadd.f32 %v4292, %v4951
      %v5466 = vadd.f32 %v4293, %v5024
      %v5467 = vadd.f32 %v4294, %v5097
      %v5468 = vadd.f32 %v4295, %v5170
      %v5469 = vadd.f32 %v4296, %v5243
      %v5470 = vadd.f32 %v4297, %v5316
      %v5471 = vadd.f32 %v4298, %v5389
      %v5472 = vadd.f32 %v4299, %v5462
      %s5473 = scalar_lea.vmem %s1, 32
      %v5474 = vld [vmem:[%s5473] sm:$0xff]
      %v5475 = vld [vmem:[%s5473 + $0x8] sm:$0xff]
      %5476 = vmatprep.subr.mxu0 0.0
      %5477 = vmatpush1.msra.mxu0 %v5474
      %5478 = vmatprep.subr.mxu0 0.0
      %5479 = vmatpush1.msra.mxu0 %v5475
      %5480 = vmatprep.subr.mxu0 0.0
      %5481 = vmatpush1.msra.mxu0 0.0
      %5482 = vmatprep.subr.mxu0 0.0
      %5483 = vmatpush1.msra.mxu0 0.0
      %5484 = vmatprep.subr.mxu0 0.0
      %5485 = vmatpush1.msra.mxu0 0.0
      %5486 = vmatprep.subr.mxu0 0.0
      %5487 = vmatpush1.msra.mxu0 0.0
      %5488 = vmatprep.subr.mxu0 0.0
      %5489 = vmatpush1.msra.mxu0 0.0
      %5490 = vmatprep.subr.mxu0 0.0
      %5491 = vmatpush1.msra.mxu0 0.0
      %5492 = vmatprep.subr.mxu0 0.0
      %5493 = vmatpush1.msra.mxu0 0.0
      %5494 = vmatprep.subr.mxu0 0.0
      %5495 = vmatpush1.msra.mxu0 0.0
      %5496 = vmatprep.subr.mxu0 0.0
      %5497 = vmatpush1.msra.mxu0 0.0
      %5498 = vmatprep.subr.mxu0 0.0
      %5499 = vmatpush1.msra.mxu0 0.0
      %5500 = vmatprep.subr.mxu0 0.0
      %5501 = vmatpush1.msra.mxu0 0.0
      %5502 = vmatprep.subr.mxu0 0.0
      %5503 = vmatpush1.msra.mxu0 0.0
      %5504 = vmatprep.subr.mxu0 0.0
      %5505 = vmatpush1.msra.mxu0 0.0
      %5506 = vmatprep.subr.mxu0 0.0
      %5507 = vmatpush1.msra.mxu0 0.0
      %5508 = vmatprep.subr.mxu0 0.0
      %5509 = vmatpush1.msra.mxu0 0.0
      %5510 = vmatprep.subr.mxu0 0.0
      %5511 = vmatpush1.msra.mxu0 0.0
      %5512 = vmatprep.subr.mxu0 0.0
      %5513 = vmatpush1.msra.mxu0 0.0
      %5514 = vmatprep.subr.mxu0 0.0
      %5515 = vmatpush1.msra.mxu0 0.0
      %5516 = vmatprep.subr.mxu0 0.0
      %5517 = vmatpush1.msra.mxu0 0.0
      %5518 = vmatprep.subr.mxu0 0.0
      %5519 = vmatpush1.msra.mxu0 0.0
      %5520 = vmatprep.subr.mxu0 0.0
      %5521 = vmatpush1.msra.mxu0 0.0
      %5522 = vmatprep.subr.mxu0 0.0
      %5523 = vmatpush1.msra.mxu0 0.0
      %5524 = vmatprep.subr.mxu0 0.0
      %5525 = vmatpush1.msra.mxu0 0.0
      %5526 = vmatprep.subr.mxu0 0.0
      %5527 = vmatpush1.msra.mxu0 0.0
      %5528 = vmatprep.subr.mxu0 0.0
      %5529 = vmatpush1.msra.mxu0 0.0
      %5530 = vmatprep.subr.mxu0 0.0
      %5531 = vmatpush1.msra.mxu0 0.0
      %5532 = vmatprep.subr.mxu0 0.0
      %5533 = vmatpush1.msra.mxu0 0.0
      %5534 = vmatprep.subr.mxu0 0.0
      %5535 = vmatpush1.msra.mxu0 0.0
      %5536 = vmatprep.subr.mxu0 0.0
      %5537 = vmatpush1.msra.mxu0 0.0
      %5538 = vmatprep.subr.mxu0 0.0
      %5539 = vmatpush1.msra.mxu0 0.0
      %5540 = vmatprep.mubr.f32.mxu0 0.0
      %5541 = vmatmul.mubr.f32.gmra.mrb[0].mxu0 %v214
      %v5542 = vpop.f32.mrb[0].mxu0
      %v5543 = vadd.f32 0.0, %v5542
      %v5544 = vpop.f32.mrb[0].mxu0
      %5545 = vdwg.mxu0
      %5546 = vmatprep.subr.mxu0 0.0
      %5547 = vmatpush1.msra.mxu0 %v5474
      %5548 = vmatprep.subr.mxu0 0.0
      %5549 = vmatpush1.msra.mxu0 %v5475
      %5550 = vmatprep.subr.mxu0 0.0
      %5551 = vmatpush1.msra.mxu0 0.0
      %5552 = vmatprep.subr.mxu0 0.0
      %5553 = vmatpush1.msra.mxu0 0.0
      %5554 = vmatprep.subr.mxu0 0.0
      %5555 = vmatpush1.msra.mxu0 0.0
      %5556 = vmatprep.subr.mxu0 0.0
      %5557 = vmatpush1.msra.mxu0 0.0
      %5558 = vmatprep.subr.mxu0 0.0
      %5559 = vmatpush1.msra.mxu0 0.0
      %5560 = vmatprep.subr.mxu0 0.0
      %5561 = vmatpush1.msra.mxu0 0.0
      %5562 = vmatprep.subr.mxu0 0.0
      %5563 = vmatpush1.msra.mxu0 0.0
      %5564 = vmatprep.subr.mxu0 0.0
      %5565 = vmatpush1.msra.mxu0 0.0
      %5566 = vmatprep.subr.mxu0 0.0
      %5567 = vmatpush1.msra.mxu0 0.0
      %5568 = vmatprep.subr.mxu0 0.0
      %5569 = vmatpush1.msra.mxu0 0.0
      %5570 = vmatprep.subr.mxu0 0.0
      %5571 = vmatpush1.msra.mxu0 0.0
      %5572 = vmatprep.subr.mxu0 0.0
      %5573 = vmatpush1.msra.mxu0 0.0
      %5574 = vmatprep.subr.mxu0 0.0
      %5575 = vmatpush1.msra.mxu0 0.0
      %5576 = vmatprep.subr.mxu0 0.0
      %5577 = vmatpush1.msra.mxu0 0.0
      %5578 = vmatprep.subr.mxu0 0.0
      %5579 = vmatpush1.msra.mxu0 0.0
      %5580 = vmatprep.subr.mxu0 0.0
      %5581 = vmatpush1.msra.mxu0 0.0
      %5582 = vmatprep.subr.mxu0 0.0
      %5583 = vmatpush1.msra.mxu0 0.0
      %5584 = vmatprep.subr.mxu0 0.0
      %5585 = vmatpush1.msra.mxu0 0.0
      %5586 = vmatprep.subr.mxu0 0.0
      %5587 = vmatpush1.msra.mxu0 0.0
      %5588 = vmatprep.subr.mxu0 0.0
      %5589 = vmatpush1.msra.mxu0 0.0
      %5590 = vmatprep.subr.mxu0 0.0
      %5591 = vmatpush1.msra.mxu0 0.0
      %5592 = vmatprep.subr.mxu0 0.0
      %5593 = vmatpush1.msra.mxu0 0.0
      %5594 = vmatprep.subr.mxu0 0.0
      %5595 = vmatpush1.msra.mxu0 0.0
      %5596 = vmatprep.subr.mxu0 0.0
      %5597 = vmatpush1.msra.mxu0 0.0
      %5598 = vmatprep.subr.mxu0 0.0
      %5599 = vmatpush1.msra.mxu0 0.0
      %5600 = vmatprep.subr.mxu0 0.0
      %5601 = vmatpush1.msra.mxu0 0.0
      %5602 = vmatprep.subr.mxu0 0.0
      %5603 = vmatpush1.msra.mxu0 0.0
      %5604 = vmatprep.subr.mxu0 0.0
      %5605 = vmatpush1.msra.mxu0 0.0
      %5606 = vmatprep.subr.mxu0 0.0
      %5607 = vmatpush1.msra.mxu0 0.0
      %5608 = vmatprep.subr.mxu0 0.0
      %5609 = vmatpush1.msra.mxu0 0.0
      %5610 = vmatprep.mubr.f32.mxu0 0.0
      %5611 = vmatmul.mubr.f32.gmra.mrb[0].mxu0 %v287
      %v5612 = vpop.f32.mrb[0].mxu0
      %v5613 = vadd.f32 0.0, %v5612
      %v5614 = vpop.f32.mrb[0].mxu0
      %5615 = vdwg.mxu0
      %5616 = vmatprep.subr.mxu0 0.0
      %5617 = vmatpush1.msra.mxu0 %v5474
      %5618 = vmatprep.subr.mxu0 0.0
      %5619 = vmatpush1.msra.mxu0 %v5475
      %5620 = vmatprep.subr.mxu0 0.0
      %5621 = vmatpush1.msra.mxu0 0.0
      %5622 = vmatprep.subr.mxu0 0.0
      %5623 = vmatpush1.msra.mxu0 0.0
      %5624 = vmatprep.subr.mxu0 0.0
      %5625 = vmatpush1.msra.mxu0 0.0
      %5626 = vmatprep.subr.mxu0 0.0
      %5627 = vmatpush1.msra.mxu0 0.0
      %5628 = vmatprep.subr.mxu0 0.0
      %5629 = vmatpush1.msra.mxu0 0.0
      %5630 = vmatprep.subr.mxu0 0.0
      %5631 = vmatpush1.msra.mxu0 0.0
      %5632 = vmatprep.subr.mxu0 0.0
      %5633 = vmatpush1.msra.mxu0 0.0
      %5634 = vmatprep.subr.mxu0 0.0
      %5635 = vmatpush1.msra.mxu0 0.0
      %5636 = vmatprep.subr.mxu0 0.0
      %5637 = vmatpush1.msra.mxu0 0.0
      %5638 = vmatprep.subr.mxu0 0.0
      %5639 = vmatpush1.msra.mxu0 0.0
      %5640 = vmatprep.subr.mxu0 0.0
      %5641 = vmatpush1.msra.mxu0 0.0
      %5642 = vmatprep.subr.mxu0 0.0
      %5643 = vmatpush1.msra.mxu0 0.0
      %5644 = vmatprep.subr.mxu0 0.0
      %5645 = vmatpush1.msra.mxu0 0.0
      %5646 = vmatprep.subr.mxu0 0.0
      %5647 = vmatpush1.msra.mxu0 0.0
      %5648 = vmatprep.subr.mxu0 0.0
      %5649 = vmatpush1.msra.mxu0 0.0
      %5650 = vmatprep.subr.mxu0 0.0
      %5651 = vmatpush1.msra.mxu0 0.0
      %5652 = vmatprep.subr.mxu0 0.0
      %5653 = vmatpush1.msra.mxu0 0.0
      %5654 = vmatprep.subr.mxu0 0.0
      %5655 = vmatpush1.msra.mxu0 0.0
      %5656 = vmatprep.subr.mxu0 0.0
      %5657 = vmatpush1.msra.mxu0 0.0
      %5658 = vmatprep.subr.mxu0 0.0
      %5659 = vmatpush1.msra.mxu0 0.0
      %5660 = vmatprep.subr.mxu0 0.0
      %5661 = vmatpush1.msra.mxu0 0.0
      %5662 = vmatprep.subr.mxu0 0.0
      %5663 = vmatpush1.msra.mxu0 0.0
      %5664 = vmatprep.subr.mxu0 0.0
      %5665 = vmatpush1.msra.mxu0 0.0
      %5666 = vmatprep.subr.mxu0 0.0
      %5667 = vmatpush1.msra.mxu0 0.0
      %5668 = vmatprep.subr.mxu0 0.0
      %5669 = vmatpush1.msra.mxu0 0.0
      %5670 = vmatprep.subr.mxu0 0.0
      %5671 = vmatpush1.msra.mxu0 0.0
      %5672 = vmatprep.subr.mxu0 0.0
      %5673 = vmatpush1.msra.mxu0 0.0
      %5674 = vmatprep.subr.mxu0 0.0
      %5675 = vmatpush1.msra.mxu0 0.0
      %5676 = vmatprep.subr.mxu0 0.0
      %5677 = vmatpush1.msra.mxu0 0.0
      %5678 = vmatprep.subr.mxu0 0.0
      %5679 = vmatpush1.msra.mxu0 0.0
      %5680 = vmatprep.mubr.f32.mxu0 0.0
      %5681 = vmatmul.mubr.f32.gmra.mrb[0].mxu0 %v360
      %v5682 = vpop.f32.mrb[0].mxu0
      %v5683 = vadd.f32 0.0, %v5682
      %v5684 = vpop.f32.mrb[0].mxu0
      %5685 = vdwg.mxu0
      %5686 = vmatprep.subr.mxu0 0.0
      %5687 = vmatpush1.msra.mxu0 %v5474
      %5688 = vmatprep.subr.mxu0 0.0
      %5689 = vmatpush1.msra.mxu0 %v5475
      %5690 = vmatprep.subr.mxu0 0.0
      %5691 = vmatpush1.msra.mxu0 0.0
      %5692 = vmatprep.subr.mxu0 0.0
      %5693 = vmatpush1.msra.mxu0 0.0
      %5694 = vmatprep.subr.mxu0 0.0
      %5695 = vmatpush1.msra.mxu0 0.0
      %5696 = vmatprep.subr.mxu0 0.0
      %5697 = vmatpush1.msra.mxu0 0.0
      %5698 = vmatprep.subr.mxu0 0.0
      %5699 = vmatpush1.msra.mxu0 0.0
      %5700 = vmatprep.subr.mxu0 0.0
      %5701 = vmatpush1.msra.mxu0 0.0
      %5702 = vmatprep.subr.mxu0 0.0
      %5703 = vmatpush1.msra.mxu0 0.0
      %5704 = vmatprep.subr.mxu0 0.0
      %5705 = vmatpush1.msra.mxu0 0.0
      %5706 = vmatprep.subr.mxu0 0.0
      %5707 = vmatpush1.msra.mxu0 0.0
      %5708 = vmatprep.subr.mxu0 0.0
      %5709 = vmatpush1.msra.mxu0 0.0
      %5710 = vmatprep.subr.mxu0 0.0
      %5711 = vmatpush1.msra.mxu0 0.0
      %5712 = vmatprep.subr.mxu0 0.0
      %5713 = vmatpush1.msra.mxu0 0.0
      %5714 = vmatprep.subr.mxu0 0.0
      %5715 = vmatpush1.msra.mxu0 0.0
      %5716 = vmatprep.subr.mxu0 0.0
      %5717 = vmatpush1.msra.mxu0 0.0
      %5718 = vmatprep.subr.mxu0 0.0
      %5719 = vmatpush1.msra.mxu0 0.0
      %5720 = vmatprep.subr.mxu0 0.0
      %5721 = vmatpush1.msra.mxu0 0.0
      %5722 = vmatprep.subr.mxu0 0.0
      %5723 = vmatpush1.msra.mxu0 0.0
      %5724 = vmatprep.subr.mxu0 0.0
      %5725 = vmatpush1.msra.mxu0 0.0
      %5726 = vmatprep.subr.mxu0 0.0
      %5727 = vmatpush1.msra.mxu0 0.0
      %5728 = vmatprep.subr.mxu0 0.0
      %5729 = vmatpush1.msra.mxu0 0.0
      %5730 = vmatprep.subr.mxu0 0.0
      %5731 = vmatpush1.msra.mxu0 0.0
      %5732 = vmatprep.subr.mxu0 0.0
      %5733 = vmatpush1.msra.mxu0 0.0
      %5734 = vmatprep.subr.mxu0 0.0
      %5735 = vmatpush1.msra.mxu0 0.0
      %5736 = vmatprep.subr.mxu0 0.0
      %5737 = vmatpush1.msra.mxu0 0.0
      %5738 = vmatprep.subr.mxu0 0.0
      %5739 = vmatpush1.msra.mxu0 0.0
      %5740 = vmatprep.subr.mxu0 0.0
      %5741 = vmatpush1.msra.mxu0 0.0
      %5742 = vmatprep.subr.mxu0 0.0
      %5743 = vmatpush1.msra.mxu0 0.0
      %5744 = vmatprep.subr.mxu0 0.0
      %5745 = vmatpush1.msra.mxu0 0.0
      %5746 = vmatprep.subr.mxu0 0.0
      %5747 = vmatpush1.msra.mxu0 0.0
      %5748 = vmatprep.subr.mxu0 0.0
      %5749 = vmatpush1.msra.mxu0 0.0
      %5750 = vmatprep.mubr.f32.mxu0 0.0
      %5751 = vmatmul.mubr.f32.gmra.mrb[0].mxu0 %v433
      %v5752 = vpop.f32.mrb[0].mxu0
      %v5753 = vadd.f32 0.0, %v5752
      %v5754 = vpop.f32.mrb[0].mxu0
      %5755 = vdwg.mxu0
      %5756 = vmatprep.subr.mxu0 0.0
      %5757 = vmatpush1.msra.mxu0 %v5474
      %5758 = vmatprep.subr.mxu0 0.0
      %5759 = vmatpush1.msra.mxu0 %v5475
      %5760 = vmatprep.subr.mxu0 0.0
      %5761 = vmatpush1.msra.mxu0 0.0
      %5762 = vmatprep.subr.mxu0 0.0
      %5763 = vmatpush1.msra.mxu0 0.0
      %5764 = vmatprep.subr.mxu0 0.0
      %5765 = vmatpush1.msra.mxu0 0.0
      %5766 = vmatprep.subr.mxu0 0.0
      %5767 = vmatpush1.msra.mxu0 0.0
      %5768 = vmatprep.subr.mxu0 0.0
      %5769 = vmatpush1.msra.mxu0 0.0
      %5770 = vmatprep.subr.mxu0 0.0
      %5771 = vmatpush1.msra.mxu0 0.0
      %5772 = vmatprep.subr.mxu0 0.0
      %5773 = vmatpush1.msra.mxu0 0.0
      %5774 = vmatprep.subr.mxu0 0.0
      %5775 = vmatpush1.msra.mxu0 0.0
      %5776 = vmatprep.subr.mxu0 0.0
      %5777 = vmatpush1.msra.mxu0 0.0
      %5778 = vmatprep.subr.mxu0 0.0
      %5779 = vmatpush1.msra.mxu0 0.0
      %5780 = vmatprep.subr.mxu0 0.0
      %5781 = vmatpush1.msra.mxu0 0.0
      %5782 = vmatprep.subr.mxu0 0.0
      %5783 = vmatpush1.msra.mxu0 0.0
      %5784 = vmatprep.subr.mxu0 0.0
      %5785 = vmatpush1.msra.mxu0 0.0
      %5786 = vmatprep.subr.mxu0 0.0
      %5787 = vmatpush1.msra.mxu0 0.0
      %5788 = vmatprep.subr.mxu0 0.0
      %5789 = vmatpush1.msra.mxu0 0.0
      %5790 = vmatprep.subr.mxu0 0.0
      %5791 = vmatpush1.msra.mxu0 0.0
      %5792 = vmatprep.subr.mxu0 0.0
      %5793 = vmatpush1.msra.mxu0 0.0
      %5794 = vmatprep.subr.mxu0 0.0
      %5795 = vmatpush1.msra.mxu0 0.0
      %5796 = vmatprep.subr.mxu0 0.0
      %5797 = vmatpush1.msra.mxu0 0.0
      %5798 = vmatprep.subr.mxu0 0.0
      %5799 = vmatpush1.msra.mxu0 0.0
      %5800 = vmatprep.subr.mxu0 0.0
      %5801 = vmatpush1.msra.mxu0 0.0
      %5802 = vmatprep.subr.mxu0 0.0
      %5803 = vmatpush1.msra.mxu0 0.0
      %5804 = vmatprep.subr.mxu0 0.0
      %5805 = vmatpush1.msra.mxu0 0.0
      %5806 = vmatprep.subr.mxu0 0.0
      %5807 = vmatpush1.msra.mxu0 0.0
      %5808 = vmatprep.subr.mxu0 0.0
      %5809 = vmatpush1.msra.mxu0 0.0
      %5810 = vmatprep.subr.mxu0 0.0
      %5811 = vmatpush1.msra.mxu0 0.0
      %5812 = vmatprep.subr.mxu0 0.0
      %5813 = vmatpush1.msra.mxu0 0.0
      %5814 = vmatprep.subr.mxu0 0.0
      %5815 = vmatpush1.msra.mxu0 0.0
      %5816 = vmatprep.subr.mxu0 0.0
      %5817 = vmatpush1.msra.mxu0 0.0
      %5818 = vmatprep.subr.mxu0 0.0
      %5819 = vmatpush1.msra.mxu0 0.0
      %5820 = vmatprep.mubr.f32.mxu0 0.0
      %5821 = vmatmul.mubr.f32.gmra.mrb[0].mxu0 %v506
      %v5822 = vpop.f32.mrb[0].mxu0
      %v5823 = vadd.f32 0.0, %v5822
      %v5824 = vpop.f32.mrb[0].mxu0
      %5825 = vdwg.mxu0
      %5826 = vmatprep.subr.mxu0 0.0
      %5827 = vmatpush1.msra.mxu0 %v5474
      %5828 = vmatprep.subr.mxu0 0.0
      %5829 = vmatpush1.msra.mxu0 %v5475
      %5830 = vmatprep.subr.mxu0 0.0
      %5831 = vmatpush1.msra.mxu0 0.0
      %5832 = vmatprep.subr.mxu0 0.0
      %5833 = vmatpush1.msra.mxu0 0.0
      %5834 = vmatprep.subr.mxu0 0.0
      %5835 = vmatpush1.msra.mxu0 0.0
      %5836 = vmatprep.subr.mxu0 0.0
      %5837 = vmatpush1.msra.mxu0 0.0
      %5838 = vmatprep.subr.mxu0 0.0
      %5839 = vmatpush1.msra.mxu0 0.0
      %5840 = vmatprep.subr.mxu0 0.0
      %5841 = vmatpush1.msra.mxu0 0.0
      %5842 = vmatprep.subr.mxu0 0.0
      %5843 = vmatpush1.msra.mxu0 0.0
      %5844 = vmatprep.subr.mxu0 0.0
      %5845 = vmatpush1.msra.mxu0 0.0
      %5846 = vmatprep.subr.mxu0 0.0
      %5847 = vmatpush1.msra.mxu0 0.0
      %5848 = vmatprep.subr.mxu0 0.0
      %5849 = vmatpush1.msra.mxu0 0.0
      %5850 = vmatprep.subr.mxu0 0.0
      %5851 = vmatpush1.msra.mxu0 0.0
      %5852 = vmatprep.subr.mxu0 0.0
      %5853 = vmatpush1.msra.mxu0 0.0
      %5854 = vmatprep.subr.mxu0 0.0
      %5855 = vmatpush1.msra.mxu0 0.0
      %5856 = vmatprep.subr.mxu0 0.0
      %5857 = vmatpush1.msra.mxu0 0.0
      %5858 = vmatprep.subr.mxu0 0.0
      %5859 = vmatpush1.msra.mxu0 0.0
      %5860 = vmatprep.subr.mxu0 0.0
      %5861 = vmatpush1.msra.mxu0 0.0
      %5862 = vmatprep.subr.mxu0 0.0
      %5863 = vmatpush1.msra.mxu0 0.0
      %5864 = vmatprep.subr.mxu0 0.0
      %5865 = vmatpush1.msra.mxu0 0.0
      %5866 = vmatprep.subr.mxu0 0.0
      %5867 = vmatpush1.msra.mxu0 0.0
      %5868 = vmatprep.subr.mxu0 0.0
      %5869 = vmatpush1.msra.mxu0 0.0
      %5870 = vmatprep.subr.mxu0 0.0
      %5871 = vmatpush1.msra.mxu0 0.0
      %5872 = vmatprep.subr.mxu0 0.0
      %5873 = vmatpush1.msra.mxu0 0.0
      %5874 = vmatprep.subr.mxu0 0.0
      %5875 = vmatpush1.msra.mxu0 0.0
      %5876 = vmatprep.subr.mxu0 0.0
      %5877 = vmatpush1.msra.mxu0 0.0
      %5878 = vmatprep.subr.mxu0 0.0
      %5879 = vmatpush1.msra.mxu0 0.0
      %5880 = vmatprep.subr.mxu0 0.0
      %5881 = vmatpush1.msra.mxu0 0.0
      %5882 = vmatprep.subr.mxu0 0.0
      %5883 = vmatpush1.msra.mxu0 0.0
      %5884 = vmatprep.subr.mxu0 0.0
      %5885 = vmatpush1.msra.mxu0 0.0
      %5886 = vmatprep.subr.mxu0 0.0
      %5887 = vmatpush1.msra.mxu0 0.0
      %5888 = vmatprep.subr.mxu0 0.0
      %5889 = vmatpush1.msra.mxu0 0.0
      %5890 = vmatprep.mubr.f32.mxu0 0.0
      %5891 = vmatmul.mubr.f32.gmra.mrb[0].mxu0 %v579
      %v5892 = vpop.f32.mrb[0].mxu0
      %v5893 = vadd.f32 0.0, %v5892
      %v5894 = vpop.f32.mrb[0].mxu0
      %5895 = vdwg.mxu0
      %5896 = vmatprep.subr.mxu0 0.0
      %5897 = vmatpush1.msra.mxu0 %v5474
      %5898 = vmatprep.subr.mxu0 0.0
      %5899 = vmatpush1.msra.mxu0 %v5475
      %5900 = vmatprep.subr.mxu0 0.0
      %5901 = vmatpush1.msra.mxu0 0.0
      %5902 = vmatprep.subr.mxu0 0.0
      %5903 = vmatpush1.msra.mxu0 0.0
      %5904 = vmatprep.subr.mxu0 0.0
      %5905 = vmatpush1.msra.mxu0 0.0
      %5906 = vmatprep.subr.mxu0 0.0
      %5907 = vmatpush1.msra.mxu0 0.0
      %5908 = vmatprep.subr.mxu0 0.0
      %5909 = vmatpush1.msra.mxu0 0.0
      %5910 = vmatprep.subr.mxu0 0.0
      %5911 = vmatpush1.msra.mxu0 0.0
      %5912 = vmatprep.subr.mxu0 0.0
      %5913 = vmatpush1.msra.mxu0 0.0
      %5914 = vmatprep.subr.mxu0 0.0
      %5915 = vmatpush1.msra.mxu0 0.0
      %5916 = vmatprep.subr.mxu0 0.0
      %5917 = vmatpush1.msra.mxu0 0.0
      %5918 = vmatprep.subr.mxu0 0.0
      %5919 = vmatpush1.msra.mxu0 0.0
      %5920 = vmatprep.subr.mxu0 0.0
      %5921 = vmatpush1.msra.mxu0 0.0
      %5922 = vmatprep.subr.mxu0 0.0
      %5923 = vmatpush1.msra.mxu0 0.0
      %5924 = vmatprep.subr.mxu0 0.0
      %5925 = vmatpush1.msra.mxu0 0.0
      %5926 = vmatprep.subr.mxu0 0.0
      %5927 = vmatpush1.msra.mxu0 0.0
      %5928 = vmatprep.subr.mxu0 0.0
      %5929 = vmatpush1.msra.mxu0 0.0
      %5930 = vmatprep.subr.mxu0 0.0
      %5931 = vmatpush1.msra.mxu0 0.0
      %5932 = vmatprep.subr.mxu0 0.0
      %5933 = vmatpush1.msra.mxu0 0.0
      %5934 = vmatprep.subr.mxu0 0.0
      %5935 = vmatpush1.msra.mxu0 0.0
      %5936 = vmatprep.subr.mxu0 0.0
      %5937 = vmatpush1.msra.mxu0 0.0
      %5938 = vmatprep.subr.mxu0 0.0
      %5939 = vmatpush1.msra.mxu0 0.0
      %5940 = vmatprep.subr.mxu0 0.0
      %5941 = vmatpush1.msra.mxu0 0.0
      %5942 = vmatprep.subr.mxu0 0.0
      %5943 = vmatpush1.msra.mxu0 0.0
      %5944 = vmatprep.subr.mxu0 0.0
      %5945 = vmatpush1.msra.mxu0 0.0
      %5946 = vmatprep.subr.mxu0 0.0
      %5947 = vmatpush1.msra.mxu0 0.0
      %5948 = vmatprep.subr.mxu0 0.0
      %5949 = vmatpush1.msra.mxu0 0.0
      %5950 = vmatprep.subr.mxu0 0.0
      %5951 = vmatpush1.msra.mxu0 0.0
      %5952 = vmatprep.subr.mxu0 0.0
      %5953 = vmatpush1.msra.mxu0 0.0
      %5954 = vmatprep.subr.mxu0 0.0
      %5955 = vmatpush1.msra.mxu0 0.0
      %5956 = vmatprep.subr.mxu0 0.0
      %5957 = vmatpush1.msra.mxu0 0.0
      %5958 = vmatprep.subr.mxu0 0.0
      %5959 = vmatpush1.msra.mxu0 0.0
      %5960 = vmatprep.mubr.f32.mxu0 0.0
      %5961 = vmatmul.mubr.f32.gmra.mrb[0].mxu0 %v652
      %v5962 = vpop.f32.mrb[0].mxu0
      %v5963 = vadd.f32 0.0, %v5962
      %v5964 = vpop.f32.mrb[0].mxu0
      %5965 = vdwg.mxu0
      %5966 = vmatprep.subr.mxu0 0.0
      %5967 = vmatpush1.msra.mxu0 %v5474
      %5968 = vmatprep.subr.mxu0 0.0
      %5969 = vmatpush1.msra.mxu0 %v5475
      %5970 = vmatprep.subr.mxu0 0.0
      %5971 = vmatpush1.msra.mxu0 0.0
      %5972 = vmatprep.subr.mxu0 0.0
      %5973 = vmatpush1.msra.mxu0 0.0
      %5974 = vmatprep.subr.mxu0 0.0
      %5975 = vmatpush1.msra.mxu0 0.0
      %5976 = vmatprep.subr.mxu0 0.0
      %5977 = vmatpush1.msra.mxu0 0.0
      %5978 = vmatprep.subr.mxu0 0.0
      %5979 = vmatpush1.msra.mxu0 0.0
      %5980 = vmatprep.subr.mxu0 0.0
      %5981 = vmatpush1.msra.mxu0 0.0
      %5982 = vmatprep.subr.mxu0 0.0
      %5983 = vmatpush1.msra.mxu0 0.0
      %5984 = vmatprep.subr.mxu0 0.0
      %5985 = vmatpush1.msra.mxu0 0.0
      %5986 = vmatprep.subr.mxu0 0.0
      %5987 = vmatpush1.msra.mxu0 0.0
      %5988 = vmatprep.subr.mxu0 0.0
      %5989 = vmatpush1.msra.mxu0 0.0
      %5990 = vmatprep.subr.mxu0 0.0
      %5991 = vmatpush1.msra.mxu0 0.0
      %5992 = vmatprep.subr.mxu0 0.0
      %5993 = vmatpush1.msra.mxu0 0.0
      %5994 = vmatprep.subr.mxu0 0.0
      %5995 = vmatpush1.msra.mxu0 0.0
      %5996 = vmatprep.subr.mxu0 0.0
      %5997 = vmatpush1.msra.mxu0 0.0
      %5998 = vmatprep.subr.mxu0 0.0
      %5999 = vmatpush1.msra.mxu0 0.0
      %6000 = vmatprep.subr.mxu0 0.0
      %6001 = vmatpush1.msra.mxu0 0.0
      %6002 = vmatprep.subr.mxu0 0.0
      %6003 = vmatpush1.msra.mxu0 0.0
      %6004 = vmatprep.subr.mxu0 0.0
      %6005 = vmatpush1.msra.mxu0 0.0
      %6006 = vmatprep.subr.mxu0 0.0
      %6007 = vmatpush1.msra.mxu0 0.0
      %6008 = vmatprep.subr.mxu0 0.0
      %6009 = vmatpush1.msra.mxu0 0.0
      %6010 = vmatprep.subr.mxu0 0.0
      %6011 = vmatpush1.msra.mxu0 0.0
      %6012 = vmatprep.subr.mxu0 0.0
      %6013 = vmatpush1.msra.mxu0 0.0
      %6014 = vmatprep.subr.mxu0 0.0
      %6015 = vmatpush1.msra.mxu0 0.0
      %6016 = vmatprep.subr.mxu0 0.0
      %6017 = vmatpush1.msra.mxu0 0.0
      %6018 = vmatprep.subr.mxu0 0.0
      %6019 = vmatpush1.msra.mxu0 0.0
      %6020 = vmatprep.subr.mxu0 0.0
      %6021 = vmatpush1.msra.mxu0 0.0
      %6022 = vmatprep.subr.mxu0 0.0
      %6023 = vmatpush1.msra.mxu0 0.0
      %6024 = vmatprep.subr.mxu0 0.0
      %6025 = vmatpush1.msra.mxu0 0.0
      %6026 = vmatprep.subr.mxu0 0.0
      %6027 = vmatpush1.msra.mxu0 0.0
      %6028 = vmatprep.subr.mxu0 0.0
      %6029 = vmatpush1.msra.mxu0 0.0
      %6030 = vmatprep.mubr.f32.mxu0 0.0
      %6031 = vmatmul.mubr.f32.gmra.mrb[0].mxu0 %v725
      %v6032 = vpop.f32.mrb[0].mxu0
      %v6033 = vadd.f32 0.0, %v6032
      %v6034 = vpop.f32.mrb[0].mxu0
      %6035 = vdwg.mxu0
      %s6036 = scalar_lea.vmem %s2, 40
      %v6037 = vld [vmem:[%s6036] sm:$0xff]
      %v6039 = vsel %vm799, %v6037, 0
      %v6042 = vsel %vm803, %v5543, 0
      %6044 = vmatprep.subr.mxu0 0.0
      %6045 = vmatpush1.msra.mxu0 %v6042
      %6046 = vmatprep.subr.mxu0 0.0
      %6047 = vmatpush1.msra.mxu0 0.0
      %6048 = vmatprep.subr.mxu0 0.0
      %6049 = vmatpush1.msra.mxu0 0.0
      %6050 = vmatprep.subr.mxu0 0.0
      %6051 = vmatpush1.msra.mxu0 0.0
      %6052 = vmatprep.subr.mxu0 0.0
      %6053 = vmatpush1.msra.mxu0 0.0
      %6054 = vmatprep.subr.mxu0 0.0
      %6055 = vmatpush1.msra.mxu0 0.0
      %6056 = vmatprep.subr.mxu0 0.0
      %6057 = vmatpush1.msra.mxu0 0.0
      %6058 = vmatprep.subr.mxu0 0.0
      %6059 = vmatpush1.msra.mxu0 0.0
      %6060 = vmatprep.subr.mxu0 0.0
      %6061 = vmatpush1.msra.mxu0 0.0
      %6062 = vmatprep.subr.mxu0 0.0
      %6063 = vmatpush1.msra.mxu0 0.0
      %6064 = vmatprep.subr.mxu0 0.0
      %6065 = vmatpush1.msra.mxu0 0.0
      %6066 = vmatprep.subr.mxu0 0.0
      %6067 = vmatpush1.msra.mxu0 0.0
      %6068 = vmatprep.subr.mxu0 0.0
      %6069 = vmatpush1.msra.mxu0 0.0
      %6070 = vmatprep.subr.mxu0 0.0
      %6071 = vmatpush1.msra.mxu0 0.0
      %6072 = vmatprep.subr.mxu0 0.0
      %6073 = vmatpush1.msra.mxu0 0.0
      %6074 = vmatprep.subr.mxu0 0.0
      %6075 = vmatpush1.msra.mxu0 0.0
      %6076 = vmatprep.subr.mxu0 0.0
      %6077 = vmatpush1.msra.mxu0 0.0
      %6078 = vmatprep.subr.mxu0 0.0
      %6079 = vmatpush1.msra.mxu0 0.0
      %6080 = vmatprep.subr.mxu0 0.0
      %6081 = vmatpush1.msra.mxu0 0.0
      %6082 = vmatprep.subr.mxu0 0.0
      %6083 = vmatpush1.msra.mxu0 0.0
      %6084 = vmatprep.subr.mxu0 0.0
      %6085 = vmatpush1.msra.mxu0 0.0
      %6086 = vmatprep.subr.mxu0 0.0
      %6087 = vmatpush1.msra.mxu0 0.0
      %6088 = vmatprep.subr.mxu0 0.0
      %6089 = vmatpush1.msra.mxu0 0.0
      %6090 = vmatprep.subr.mxu0 0.0
      %6091 = vmatpush1.msra.mxu0 0.0
      %6092 = vmatprep.subr.mxu0 0.0
      %6093 = vmatpush1.msra.mxu0 0.0
      %6094 = vmatprep.subr.mxu0 0.0
      %6095 = vmatpush1.msra.mxu0 0.0
      %6096 = vmatprep.subr.mxu0 0.0
      %6097 = vmatpush1.msra.mxu0 0.0
      %6098 = vmatprep.subr.mxu0 0.0
      %6099 = vmatpush1.msra.mxu0 0.0
      %6100 = vmatprep.subr.mxu0 0.0
      %6101 = vmatpush1.msra.mxu0 0.0
      %6102 = vmatprep.subr.mxu0 0.0
      %6103 = vmatpush1.msra.mxu0 0.0
      %6104 = vmatprep.subr.mxu0 0.0
      %6105 = vmatpush1.msra.mxu0 0.0
      %6106 = vmatprep.subr.mxu0 0.0
      %6107 = vmatpush1.msra.mxu0 0.0
      %6108 = vmatprep.mubr.f32.mxu0 0.0
      %6109 = vmatmul.mubr.f32.gmra.mrb[0].mxu0 %v6039
      %v6110 = vpop.f32.mrb[0].mxu0
      %v6111 = vadd.f32 0.0, %v6110
      %v6112 = vpop.f32.mrb[0].mxu0
      %6113 = vdwg.mxu0
      %v6115 = vsel %vm803, %v5613, 0
      %6117 = vmatprep.subr.mxu0 0.0
      %6118 = vmatpush1.msra.mxu0 %v6115
      %6119 = vmatprep.subr.mxu0 0.0
      %6120 = vmatpush1.msra.mxu0 0.0
      %6121 = vmatprep.subr.mxu0 0.0
      %6122 = vmatpush1.msra.mxu0 0.0
      %6123 = vmatprep.subr.mxu0 0.0
      %6124 = vmatpush1.msra.mxu0 0.0
      %6125 = vmatprep.subr.mxu0 0.0
      %6126 = vmatpush1.msra.mxu0 0.0
      %6127 = vmatprep.subr.mxu0 0.0
      %6128 = vmatpush1.msra.mxu0 0.0
      %6129 = vmatprep.subr.mxu0 0.0
      %6130 = vmatpush1.msra.mxu0 0.0
      %6131 = vmatprep.subr.mxu0 0.0
      %6132 = vmatpush1.msra.mxu0 0.0
      %6133 = vmatprep.subr.mxu0 0.0
      %6134 = vmatpush1.msra.mxu0 0.0
      %6135 = vmatprep.subr.mxu0 0.0
      %6136 = vmatpush1.msra.mxu0 0.0
      %6137 = vmatprep.subr.mxu0 0.0
      %6138 = vmatpush1.msra.mxu0 0.0
      %6139 = vmatprep.subr.mxu0 0.0
      %6140 = vmatpush1.msra.mxu0 0.0
      %6141 = vmatprep.subr.mxu0 0.0
      %6142 = vmatpush1.msra.mxu0 0.0
      %6143 = vmatprep.subr.mxu0 0.0
      %6144 = vmatpush1.msra.mxu0 0.0
      %6145 = vmatprep.subr.mxu0 0.0
      %6146 = vmatpush1.msra.mxu0 0.0
      %6147 = vmatprep.subr.mxu0 0.0
      %6148 = vmatpush1.msra.mxu0 0.0
      %6149 = vmatprep.subr.mxu0 0.0
      %6150 = vmatpush1.msra.mxu0 0.0
      %6151 = vmatprep.subr.mxu0 0.0
      %6152 = vmatpush1.msra.mxu0 0.0
      %6153 = vmatprep.subr.mxu0 0.0
      %6154 = vmatpush1.msra.mxu0 0.0
      %6155 = vmatprep.subr.mxu0 0.0
      %6156 = vmatpush1.msra.mxu0 0.0
      %6157 = vmatprep.subr.mxu0 0.0
      %6158 = vmatpush1.msra.mxu0 0.0
      %6159 = vmatprep.subr.mxu0 0.0
      %6160 = vmatpush1.msra.mxu0 0.0
      %6161 = vmatprep.subr.mxu0 0.0
      %6162 = vmatpush1.msra.mxu0 0.0
      %6163 = vmatprep.subr.mxu0 0.0
      %6164 = vmatpush1.msra.mxu0 0.0
      %6165 = vmatprep.subr.mxu0 0.0
      %6166 = vmatpush1.msra.mxu0 0.0
      %6167 = vmatprep.subr.mxu0 0.0
      %6168 = vmatpush1.msra.mxu0 0.0
      %6169 = vmatprep.subr.mxu0 0.0
      %6170 = vmatpush1.msra.mxu0 0.0
      %6171 = vmatprep.subr.mxu0 0.0
      %6172 = vmatpush1.msra.mxu0 0.0
      %6173 = vmatprep.subr.mxu0 0.0
      %6174 = vmatpush1.msra.mxu0 0.0
      %6175 = vmatprep.subr.mxu0 0.0
      %6176 = vmatpush1.msra.mxu0 0.0
      %6177 = vmatprep.subr.mxu0 0.0
      %6178 = vmatpush1.msra.mxu0 0.0
      %6179 = vmatprep.subr.mxu0 0.0
      %6180 = vmatpush1.msra.mxu0 0.0
      %6181 = vmatprep.mubr.f32.mxu0 0.0
      %6182 = vmatmul.mubr.f32.gmra.mrb[0].mxu0 %v6039
      %v6183 = vpop.f32.mrb[0].mxu0
      %v6184 = vadd.f32 0.0, %v6183
      %v6185 = vpop.f32.mrb[0].mxu0
      %6186 = vdwg.mxu0
      %v6188 = vsel %vm803, %v5683, 0
      %6190 = vmatprep.subr.mxu0 0.0
      %6191 = vmatpush1.msra.mxu0 %v6188
      %6192 = vmatprep.subr.mxu0 0.0
      %6193 = vmatpush1.msra.mxu0 0.0
      %6194 = vmatprep.subr.mxu0 0.0
      %6195 = vmatpush1.msra.mxu0 0.0
      %6196 = vmatprep.subr.mxu0 0.0
      %6197 = vmatpush1.msra.mxu0 0.0
      %6198 = vmatprep.subr.mxu0 0.0
      %6199 = vmatpush1.msra.mxu0 0.0
      %6200 = vmatprep.subr.mxu0 0.0
      %6201 = vmatpush1.msra.mxu0 0.0
      %6202 = vmatprep.subr.mxu0 0.0
      %6203 = vmatpush1.msra.mxu0 0.0
      %6204 = vmatprep.subr.mxu0 0.0
      %6205 = vmatpush1.msra.mxu0 0.0
      %6206 = vmatprep.subr.mxu0 0.0
      %6207 = vmatpush1.msra.mxu0 0.0
      %6208 = vmatprep.subr.mxu0 0.0
      %6209 = vmatpush1.msra.mxu0 0.0
      %6210 = vmatprep.subr.mxu0 0.0
      %6211 = vmatpush1.msra.mxu0 0.0
      %6212 = vmatprep.subr.mxu0 0.0
      %6213 = vmatpush1.msra.mxu0 0.0
      %6214 = vmatprep.subr.mxu0 0.0
      %6215 = vmatpush1.msra.mxu0 0.0
      %6216 = vmatprep.subr.mxu0 0.0
      %6217 = vmatpush1.msra.mxu0 0.0
      %6218 = vmatprep.subr.mxu0 0.0
      %6219 = vmatpush1.msra.mxu0 0.0
      %6220 = vmatprep.subr.mxu0 0.0
      %6221 = vmatpush1.msra.mxu0 0.0
      %6222 = vmatprep.subr.mxu0 0.0
      %6223 = vmatpush1.msra.mxu0 0.0
      %6224 = vmatprep.subr.mxu0 0.0
      %6225 = vmatpush1.msra.mxu0 0.0
      %6226 = vmatprep.subr.mxu0 0.0
      %6227 = vmatpush1.msra.mxu0 0.0
      %6228 = vmatprep.subr.mxu0 0.0
      %6229 = vmatpush1.msra.mxu0 0.0
      %6230 = vmatprep.subr.mxu0 0.0
      %6231 = vmatpush1.msra.mxu0 0.0
      %6232 = vmatprep.subr.mxu0 0.0
      %6233 = vmatpush1.msra.mxu0 0.0
      %6234 = vmatprep.subr.mxu0 0.0
      %6235 = vmatpush1.msra.mxu0 0.0
      %6236 = vmatprep.subr.mxu0 0.0
      %6237 = vmatpush1.msra.mxu0 0.0
      %6238 = vmatprep.subr.mxu0 0.0
      %6239 = vmatpush1.msra.mxu0 0.0
      %6240 = vmatprep.subr.mxu0 0.0
      %6241 = vmatpush1.msra.mxu0 0.0
      %6242 = vmatprep.subr.mxu0 0.0
      %6243 = vmatpush1.msra.mxu0 0.0
      %6244 = vmatprep.subr.mxu0 0.0
      %6245 = vmatpush1.msra.mxu0 0.0
      %6246 = vmatprep.subr.mxu0 0.0
      %6247 = vmatpush1.msra.mxu0 0.0
      %6248 = vmatprep.subr.mxu0 0.0
      %6249 = vmatpush1.msra.mxu0 0.0
      %6250 = vmatprep.subr.mxu0 0.0
      %6251 = vmatpush1.msra.mxu0 0.0
      %6252 = vmatprep.subr.mxu0 0.0
      %6253 = vmatpush1.msra.mxu0 0.0
      %6254 = vmatprep.mubr.f32.mxu0 0.0
      %6255 = vmatmul.mubr.f32.gmra.mrb[0].mxu0 %v6039
      %v6256 = vpop.f32.mrb[0].mxu0
      %v6257 = vadd.f32 0.0, %v6256
      %v6258 = vpop.f32.mrb[0].mxu0
      %6259 = vdwg.mxu0
      %v6261 = vsel %vm803, %v5753, 0
      %6263 = vmatprep.subr.mxu0 0.0
      %6264 = vmatpush1.msra.mxu0 %v6261
      %6265 = vmatprep.subr.mxu0 0.0
      %6266 = vmatpush1.msra.mxu0 0.0
      %6267 = vmatprep.subr.mxu0 0.0
      %6268 = vmatpush1.msra.mxu0 0.0
      %6269 = vmatprep.subr.mxu0 0.0
      %6270 = vmatpush1.msra.mxu0 0.0
      %6271 = vmatprep.subr.mxu0 0.0
      %6272 = vmatpush1.msra.mxu0 0.0
      %6273 = vmatprep.subr.mxu0 0.0
      %6274 = vmatpush1.msra.mxu0 0.0
      %6275 = vmatprep.subr.mxu0 0.0
      %6276 = vmatpush1.msra.mxu0 0.0
      %6277 = vmatprep.subr.mxu0 0.0
      %6278 = vmatpush1.msra.mxu0 0.0
      %6279 = vmatprep.subr.mxu0 0.0
      %6280 = vmatpush1.msra.mxu0 0.0
      %6281 = vmatprep.subr.mxu0 0.0
      %6282 = vmatpush1.msra.mxu0 0.0
      %6283 = vmatprep.subr.mxu0 0.0
      %6284 = vmatpush1.msra.mxu0 0.0
      %6285 = vmatprep.subr.mxu0 0.0
      %6286 = vmatpush1.msra.mxu0 0.0
      %6287 = vmatprep.subr.mxu0 0.0
      %6288 = vmatpush1.msra.mxu0 0.0
      %6289 = vmatprep.subr.mxu0 0.0
      %6290 = vmatpush1.msra.mxu0 0.0
      %6291 = vmatprep.subr.mxu0 0.0
      %6292 = vmatpush1.msra.mxu0 0.0
      %6293 = vmatprep.subr.mxu0 0.0
      %6294 = vmatpush1.msra.mxu0 0.0
      %6295 = vmatprep.subr.mxu0 0.0
      %6296 = vmatpush1.msra.mxu0 0.0
      %6297 = vmatprep.subr.mxu0 0.0
      %6298 = vmatpush1.msra.mxu0 0.0
      %6299 = vmatprep.subr.mxu0 0.0
      %6300 = vmatpush1.msra.mxu0 0.0
      %6301 = vmatprep.subr.mxu0 0.0
      %6302 = vmatpush1.msra.mxu0 0.0
      %6303 = vmatprep.subr.mxu0 0.0
      %6304 = vmatpush1.msra.mxu0 0.0
      %6305 = vmatprep.subr.mxu0 0.0
      %6306 = vmatpush1.msra.mxu0 0.0
      %6307 = vmatprep.subr.mxu0 0.0
      %6308 = vmatpush1.msra.mxu0 0.0
      %6309 = vmatprep.subr.mxu0 0.0
      %6310 = vmatpush1.msra.mxu0 0.0
      %6311 = vmatprep.subr.mxu0 0.0
      %6312 = vmatpush1.msra.mxu0 0.0
      %6313 = vmatprep.subr.mxu0 0.0
      %6314 = vmatpush1.msra.mxu0 0.0
      %6315 = vmatprep.subr.mxu0 0.0
      %6316 = vmatpush1.msra.mxu0 0.0
      %6317 = vmatprep.subr.mxu0 0.0
      %6318 = vmatpush1.msra.mxu0 0.0
      %6319 = vmatprep.subr.mxu0 0.0
      %6320 = vmatpush1.msra.mxu0 0.0
      %6321 = vmatprep.subr.mxu0 0.0
      %6322 = vmatpush1.msra.mxu0 0.0
      %6323 = vmatprep.subr.mxu0 0.0
      %6324 = vmatpush1.msra.mxu0 0.0
      %6325 = vmatprep.subr.mxu0 0.0
      %6326 = vmatpush1.msra.mxu0 0.0
      %6327 = vmatprep.mubr.f32.mxu0 0.0
      %6328 = vmatmul.mubr.f32.gmra.mrb[0].mxu0 %v6039
      %v6329 = vpop.f32.mrb[0].mxu0
      %v6330 = vadd.f32 0.0, %v6329
      %v6331 = vpop.f32.mrb[0].mxu0
      %6332 = vdwg.mxu0
      %v6334 = vsel %vm803, %v5823, 0
      %6336 = vmatprep.subr.mxu0 0.0
      %6337 = vmatpush1.msra.mxu0 %v6334
      %6338 = vmatprep.subr.mxu0 0.0
      %6339 = vmatpush1.msra.mxu0 0.0
      %6340 = vmatprep.subr.mxu0 0.0
      %6341 = vmatpush1.msra.mxu0 0.0
      %6342 = vmatprep.subr.mxu0 0.0
      %6343 = vmatpush1.msra.mxu0 0.0
      %6344 = vmatprep.subr.mxu0 0.0
      %6345 = vmatpush1.msra.mxu0 0.0
      %6346 = vmatprep.subr.mxu0 0.0
      %6347 = vmatpush1.msra.mxu0 0.0
      %6348 = vmatprep.subr.mxu0 0.0
      %6349 = vmatpush1.msra.mxu0 0.0
      %6350 = vmatprep.subr.mxu0 0.0
      %6351 = vmatpush1.msra.mxu0 0.0
      %6352 = vmatprep.subr.mxu0 0.0
      %6353 = vmatpush1.msra.mxu0 0.0
      %6354 = vmatprep.subr.mxu0 0.0
      %6355 = vmatpush1.msra.mxu0 0.0
      %6356 = vmatprep.subr.mxu0 0.0
      %6357 = vmatpush1.msra.mxu0 0.0
      %6358 = vmatprep.subr.mxu0 0.0
      %6359 = vmatpush1.msra.mxu0 0.0
      %6360 = vmatprep.subr.mxu0 0.0
      %6361 = vmatpush1.msra.mxu0 0.0
      %6362 = vmatprep.subr.mxu0 0.0
      %6363 = vmatpush1.msra.mxu0 0.0
      %6364 = vmatprep.subr.mxu0 0.0
      %6365 = vmatpush1.msra.mxu0 0.0
      %6366 = vmatprep.subr.mxu0 0.0
      %6367 = vmatpush1.msra.mxu0 0.0
      %6368 = vmatprep.subr.mxu0 0.0
      %6369 = vmatpush1.msra.mxu0 0.0
      %6370 = vmatprep.subr.mxu0 0.0
      %6371 = vmatpush1.msra.mxu0 0.0
      %6372 = vmatprep.subr.mxu0 0.0
      %6373 = vmatpush1.msra.mxu0 0.0
      %6374 = vmatprep.subr.mxu0 0.0
      %6375 = vmatpush1.msra.mxu0 0.0
      %6376 = vmatprep.subr.mxu0 0.0
      %6377 = vmatpush1.msra.mxu0 0.0
      %6378 = vmatprep.subr.mxu0 0.0
      %6379 = vmatpush1.msra.mxu0 0.0
      %6380 = vmatprep.subr.mxu0 0.0
      %6381 = vmatpush1.msra.mxu0 0.0
      %6382 = vmatprep.subr.mxu0 0.0
      %6383 = vmatpush1.msra.mxu0 0.0
      %6384 = vmatprep.subr.mxu0 0.0
      %6385 = vmatpush1.msra.mxu0 0.0
      %6386 = vmatprep.subr.mxu0 0.0
      %6387 = vmatpush1.msra.mxu0 0.0
      %6388 = vmatprep.subr.mxu0 0.0
      %6389 = vmatpush1.msra.mxu0 0.0
      %6390 = vmatprep.subr.mxu0 0.0
      %6391 = vmatpush1.msra.mxu0 0.0
      %6392 = vmatprep.subr.mxu0 0.0
      %6393 = vmatpush1.msra.mxu0 0.0
      %6394 = vmatprep.subr.mxu0 0.0
      %6395 = vmatpush1.msra.mxu0 0.0
      %6396 = vmatprep.subr.mxu0 0.0
      %6397 = vmatpush1.msra.mxu0 0.0
      %6398 = vmatprep.subr.mxu0 0.0
      %6399 = vmatpush1.msra.mxu0 0.0
      %6400 = vmatprep.mubr.f32.mxu0 0.0
      %6401 = vmatmul.mubr.f32.gmra.mrb[0].mxu0 %v6039
      %v6402 = vpop.f32.mrb[0].mxu0
      %v6403 = vadd.f32 0.0, %v6402
      %v6404 = vpop.f32.mrb[0].mxu0
      %6405 = vdwg.mxu0
      %v6407 = vsel %vm803, %v5893, 0
      %6409 = vmatprep.subr.mxu0 0.0
      %6410 = vmatpush1.msra.mxu0 %v6407
      %6411 = vmatprep.subr.mxu0 0.0
      %6412 = vmatpush1.msra.mxu0 0.0
      %6413 = vmatprep.subr.mxu0 0.0
      %6414 = vmatpush1.msra.mxu0 0.0
      %6415 = vmatprep.subr.mxu0 0.0
      %6416 = vmatpush1.msra.mxu0 0.0
      %6417 = vmatprep.subr.mxu0 0.0
      %6418 = vmatpush1.msra.mxu0 0.0
      %6419 = vmatprep.subr.mxu0 0.0
      %6420 = vmatpush1.msra.mxu0 0.0
      %6421 = vmatprep.subr.mxu0 0.0
      %6422 = vmatpush1.msra.mxu0 0.0
      %6423 = vmatprep.subr.mxu0 0.0
      %6424 = vmatpush1.msra.mxu0 0.0
      %6425 = vmatprep.subr.mxu0 0.0
      %6426 = vmatpush1.msra.mxu0 0.0
      %6427 = vmatprep.subr.mxu0 0.0
      %6428 = vmatpush1.msra.mxu0 0.0
      %6429 = vmatprep.subr.mxu0 0.0
      %6430 = vmatpush1.msra.mxu0 0.0
      %6431 = vmatprep.subr.mxu0 0.0
      %6432 = vmatpush1.msra.mxu0 0.0
      %6433 = vmatprep.subr.mxu0 0.0
      %6434 = vmatpush1.msra.mxu0 0.0
      %6435 = vmatprep.subr.mxu0 0.0
      %6436 = vmatpush1.msra.mxu0 0.0
      %6437 = vmatprep.subr.mxu0 0.0
      %6438 = vmatpush1.msra.mxu0 0.0
      %6439 = vmatprep.subr.mxu0 0.0
      %6440 = vmatpush1.msra.mxu0 0.0
      %6441 = vmatprep.subr.mxu0 0.0
      %6442 = vmatpush1.msra.mxu0 0.0
      %6443 = vmatprep.subr.mxu0 0.0
      %6444 = vmatpush1.msra.mxu0 0.0
      %6445 = vmatprep.subr.mxu0 0.0
      %6446 = vmatpush1.msra.mxu0 0.0
      %6447 = vmatprep.subr.mxu0 0.0
      %6448 = vmatpush1.msra.mxu0 0.0
      %6449 = vmatprep.subr.mxu0 0.0
      %6450 = vmatpush1.msra.mxu0 0.0
      %6451 = vmatprep.subr.mxu0 0.0
      %6452 = vmatpush1.msra.mxu0 0.0
      %6453 = vmatprep.subr.mxu0 0.0
      %6454 = vmatpush1.msra.mxu0 0.0
      %6455 = vmatprep.subr.mxu0 0.0
      %6456 = vmatpush1.msra.mxu0 0.0
      %6457 = vmatprep.subr.mxu0 0.0
      %6458 = vmatpush1.msra.mxu0 0.0
      %6459 = vmatprep.subr.mxu0 0.0
      %6460 = vmatpush1.msra.mxu0 0.0
      %6461 = vmatprep.subr.mxu0 0.0
      %6462 = vmatpush1.msra.mxu0 0.0
      %6463 = vmatprep.subr.mxu0 0.0
      %6464 = vmatpush1.msra.mxu0 0.0
      %6465 = vmatprep.subr.mxu0 0.0
      %6466 = vmatpush1.msra.mxu0 0.0
      %6467 = vmatprep.subr.mxu0 0.0
      %6468 = vmatpush1.msra.mxu0 0.0
      %6469 = vmatprep.subr.mxu0 0.0
      %6470 = vmatpush1.msra.mxu0 0.0
      %6471 = vmatprep.subr.mxu0 0.0
      %6472 = vmatpush1.msra.mxu0 0.0
      %6473 = vmatprep.mubr.f32.mxu0 0.0
      %6474 = vmatmul.mubr.f32.gmra.mrb[0].mxu0 %v6039
      %v6475 = vpop.f32.mrb[0].mxu0
      %v6476 = vadd.f32 0.0, %v6475
      %v6477 = vpop.f32.mrb[0].mxu0
      %6478 = vdwg.mxu0
      %v6480 = vsel %vm803, %v5963, 0
      %6482 = vmatprep.subr.mxu0 0.0
      %6483 = vmatpush1.msra.mxu0 %v6480
      %6484 = vmatprep.subr.mxu0 0.0
      %6485 = vmatpush1.msra.mxu0 0.0
      %6486 = vmatprep.subr.mxu0 0.0
      %6487 = vmatpush1.msra.mxu0 0.0
      %6488 = vmatprep.subr.mxu0 0.0
      %6489 = vmatpush1.msra.mxu0 0.0
      %6490 = vmatprep.subr.mxu0 0.0
      %6491 = vmatpush1.msra.mxu0 0.0
      %6492 = vmatprep.subr.mxu0 0.0
      %6493 = vmatpush1.msra.mxu0 0.0
      %6494 = vmatprep.subr.mxu0 0.0
      %6495 = vmatpush1.msra.mxu0 0.0
      %6496 = vmatprep.subr.mxu0 0.0
      %6497 = vmatpush1.msra.mxu0 0.0
      %6498 = vmatprep.subr.mxu0 0.0
      %6499 = vmatpush1.msra.mxu0 0.0
      %6500 = vmatprep.subr.mxu0 0.0
      %6501 = vmatpush1.msra.mxu0 0.0
      %6502 = vmatprep.subr.mxu0 0.0
      %6503 = vmatpush1.msra.mxu0 0.0
      %6504 = vmatprep.subr.mxu0 0.0
      %6505 = vmatpush1.msra.mxu0 0.0
      %6506 = vmatprep.subr.mxu0 0.0
      %6507 = vmatpush1.msra.mxu0 0.0
      %6508 = vmatprep.subr.mxu0 0.0
      %6509 = vmatpush1.msra.mxu0 0.0
      %6510 = vmatprep.subr.mxu0 0.0
      %6511 = vmatpush1.msra.mxu0 0.0
      %6512 = vmatprep.subr.mxu0 0.0
      %6513 = vmatpush1.msra.mxu0 0.0
      %6514 = vmatprep.subr.mxu0 0.0
      %6515 = vmatpush1.msra.mxu0 0.0
      %6516 = vmatprep.subr.mxu0 0.0
      %6517 = vmatpush1.msra.mxu0 0.0
      %6518 = vmatprep.subr.mxu0 0.0
      %6519 = vmatpush1.msra.mxu0 0.0
      %6520 = vmatprep.subr.mxu0 0.0
      %6521 = vmatpush1.msra.mxu0 0.0
      %6522 = vmatprep.subr.mxu0 0.0
      %6523 = vmatpush1.msra.mxu0 0.0
      %6524 = vmatprep.subr.mxu0 0.0
      %6525 = vmatpush1.msra.mxu0 0.0
      %6526 = vmatprep.subr.mxu0 0.0
      %6527 = vmatpush1.msra.mxu0 0.0
      %6528 = vmatprep.subr.mxu0 0.0
      %6529 = vmatpush1.msra.mxu0 0.0
      %6530 = vmatprep.subr.mxu0 0.0
      %6531 = vmatpush1.msra.mxu0 0.0
      %6532 = vmatprep.subr.mxu0 0.0
      %6533 = vmatpush1.msra.mxu0 0.0
      %6534 = vmatprep.subr.mxu0 0.0
      %6535 = vmatpush1.msra.mxu0 0.0
      %6536 = vmatprep.subr.mxu0 0.0
      %6537 = vmatpush1.msra.mxu0 0.0
      %6538 = vmatprep.subr.mxu0 0.0
      %6539 = vmatpush1.msra.mxu0 0.0
      %6540 = vmatprep.subr.mxu0 0.0
      %6541 = vmatpush1.msra.mxu0 0.0
      %6542 = vmatprep.subr.mxu0 0.0
      %6543 = vmatpush1.msra.mxu0 0.0
      %6544 = vmatprep.subr.mxu0 0.0
      %6545 = vmatpush1.msra.mxu0 0.0
      %6546 = vmatprep.mubr.f32.mxu0 0.0
      %6547 = vmatmul.mubr.f32.gmra.mrb[0].mxu0 %v6039
      %v6548 = vpop.f32.mrb[0].mxu0
      %v6549 = vadd.f32 0.0, %v6548
      %v6550 = vpop.f32.mrb[0].mxu0
      %6551 = vdwg.mxu0
      %v6553 = vsel %vm803, %v6033, 0
      %6555 = vmatprep.subr.mxu0 0.0
      %6556 = vmatpush1.msra.mxu0 %v6553
      %6557 = vmatprep.subr.mxu0 0.0
      %6558 = vmatpush1.msra.mxu0 0.0
      %6559 = vmatprep.subr.mxu0 0.0
      %6560 = vmatpush1.msra.mxu0 0.0
      %6561 = vmatprep.subr.mxu0 0.0
      %6562 = vmatpush1.msra.mxu0 0.0
      %6563 = vmatprep.subr.mxu0 0.0
      %6564 = vmatpush1.msra.mxu0 0.0
      %6565 = vmatprep.subr.mxu0 0.0
      %6566 = vmatpush1.msra.mxu0 0.0
      %6567 = vmatprep.subr.mxu0 0.0
      %6568 = vmatpush1.msra.mxu0 0.0
      %6569 = vmatprep.subr.mxu0 0.0
      %6570 = vmatpush1.msra.mxu0 0.0
      %6571 = vmatprep.subr.mxu0 0.0
      %6572 = vmatpush1.msra.mxu0 0.0
      %6573 = vmatprep.subr.mxu0 0.0
      %6574 = vmatpush1.msra.mxu0 0.0
      %6575 = vmatprep.subr.mxu0 0.0
      %6576 = vmatpush1.msra.mxu0 0.0
      %6577 = vmatprep.subr.mxu0 0.0
      %6578 = vmatpush1.msra.mxu0 0.0
      %6579 = vmatprep.subr.mxu0 0.0
      %6580 = vmatpush1.msra.mxu0 0.0
      %6581 = vmatprep.subr.mxu0 0.0
      %6582 = vmatpush1.msra.mxu0 0.0
      %6583 = vmatprep.subr.mxu0 0.0
      %6584 = vmatpush1.msra.mxu0 0.0
      %6585 = vmatprep.subr.mxu0 0.0
      %6586 = vmatpush1.msra.mxu0 0.0
      %6587 = vmatprep.subr.mxu0 0.0
      %6588 = vmatpush1.msra.mxu0 0.0
      %6589 = vmatprep.subr.mxu0 0.0
      %6590 = vmatpush1.msra.mxu0 0.0
      %6591 = vmatprep.subr.mxu0 0.0
      %6592 = vmatpush1.msra.mxu0 0.0
      %6593 = vmatprep.subr.mxu0 0.0
      %6594 = vmatpush1.msra.mxu0 0.0
      %6595 = vmatprep.subr.mxu0 0.0
      %6596 = vmatpush1.msra.mxu0 0.0
      %6597 = vmatprep.subr.mxu0 0.0
      %6598 = vmatpush1.msra.mxu0 0.0
      %6599 = vmatprep.subr.mxu0 0.0
      %6600 = vmatpush1.msra.mxu0 0.0
      %6601 = vmatprep.subr.mxu0 0.0
      %6602 = vmatpush1.msra.mxu0 0.0
      %6603 = vmatprep.subr.mxu0 0.0
      %6604 = vmatpush1.msra.mxu0 0.0
      %6605 = vmatprep.subr.mxu0 0.0
      %6606 = vmatpush1.msra.mxu0 0.0
      %6607 = vmatprep.subr.mxu0 0.0
      %6608 = vmatpush1.msra.mxu0 0.0
      %6609 = vmatprep.subr.mxu0 0.0
      %6610 = vmatpush1.msra.mxu0 0.0
      %6611 = vmatprep.subr.mxu0 0.0
      %6612 = vmatpush1.msra.mxu0 0.0
      %6613 = vmatprep.subr.mxu0 0.0
      %6614 = vmatpush1.msra.mxu0 0.0
      %6615 = vmatprep.subr.mxu0 0.0
      %6616 = vmatpush1.msra.mxu0 0.0
      %6617 = vmatprep.subr.mxu0 0.0
      %6618 = vmatpush1.msra.mxu0 0.0
      %6619 = vmatprep.mubr.f32.mxu0 0.0
      %6620 = vmatmul.mubr.f32.gmra.mrb[0].mxu0 %v6039
      %v6621 = vpop.f32.mrb[0].mxu0
      %v6622 = vadd.f32 0.0, %v6621
      %v6623 = vpop.f32.mrb[0].mxu0
      %6624 = vdwg.mxu0
      %v6625 = vadd.f32 %v5465, %v6111
      %v6626 = vadd.f32 %v5466, %v6184
      %v6627 = vadd.f32 %v5467, %v6257
      %v6628 = vadd.f32 %v5468, %v6330
      %v6629 = vadd.f32 %v5469, %v6403
      %v6630 = vadd.f32 %v5470, %v6476
      %v6631 = vadd.f32 %v5471, %v6549
      %v6632 = vadd.f32 %v5472, %v6622
      %v6633 = vsel %vm212, %v5543, 0
      %6635 = vmatprep.subr.mxu0 0.0
      %6636 = vmatpush1.msra.mxu0 %v5474
      %6637 = vmatprep.subr.mxu0 0.0
      %6638 = vmatpush1.msra.mxu0 %v5475
      %6639 = vmatprep.subr.mxu0 0.0
      %6640 = vmatpush1.msra.mxu0 0.0
      %6641 = vmatprep.subr.mxu0 0.0
      %6642 = vmatpush1.msra.mxu0 0.0
      %6643 = vmatprep.subr.mxu0 0.0
      %6644 = vmatpush1.msra.mxu0 0.0
      %6645 = vmatprep.subr.mxu0 0.0
      %6646 = vmatpush1.msra.mxu0 0.0
      %6647 = vmatprep.subr.mxu0 0.0
      %6648 = vmatpush1.msra.mxu0 0.0
      %6649 = vmatprep.subr.mxu0 0.0
      %6650 = vmatpush1.msra.mxu0 0.0
      %6651 = vmatprep.subr.mxu0 0.0
      %6652 = vmatpush1.msra.mxu0 0.0
      %6653 = vmatprep.subr.mxu0 0.0
      %6654 = vmatpush1.msra.mxu0 0.0
      %6655 = vmatprep.subr.mxu0 0.0
      %6656 = vmatpush1.msra.mxu0 0.0
      %6657 = vmatprep.subr.mxu0 0.0
      %6658 = vmatpush1.msra.mxu0 0.0
      %6659 = vmatprep.subr.mxu0 0.0
      %6660 = vmatpush1.msra.mxu0 0.0
      %6661 = vmatprep.subr.mxu0 0.0
      %6662 = vmatpush1.msra.mxu0 0.0
      %6663 = vmatprep.subr.mxu0 0.0
      %6664 = vmatpush1.msra.mxu0 0.0
      %6665 = vmatprep.subr.mxu0 0.0
      %6666 = vmatpush1.msra.mxu0 0.0
      %6667 = vmatprep.subr.mxu0 0.0
      %6668 = vmatpush1.msra.mxu0 0.0
      %6669 = vmatprep.subr.mxu0 0.0
      %6670 = vmatpush1.msra.mxu0 0.0
      %6671 = vmatprep.subr.mxu0 0.0
      %6672 = vmatpush1.msra.mxu0 0.0
      %6673 = vmatprep.subr.mxu0 0.0
      %6674 = vmatpush1.msra.mxu0 0.0
      %6675 = vmatprep.subr.mxu0 0.0
      %6676 = vmatpush1.msra.mxu0 0.0
      %6677 = vmatprep.subr.mxu0 0.0
      %6678 = vmatpush1.msra.mxu0 0.0
      %6679 = vmatprep.subr.mxu0 0.0
      %6680 = vmatpush1.msra.mxu0 0.0
      %6681 = vmatprep.subr.mxu0 0.0
      %6682 = vmatpush1.msra.mxu0 0.0
      %6683 = vmatprep.subr.mxu0 0.0
      %6684 = vmatpush1.msra.mxu0 0.0
      %6685 = vmatprep.subr.mxu0 0.0
      %6686 = vmatpush1.msra.mxu0 0.0
      %6687 = vmatprep.subr.mxu0 0.0
      %6688 = vmatpush1.msra.mxu0 0.0
      %6689 = vmatprep.subr.mxu0 0.0
      %6690 = vmatpush1.msra.mxu0 0.0
      %6691 = vmatprep.subr.mxu0 0.0
      %6692 = vmatpush1.msra.mxu0 0.0
      %6693 = vmatprep.subr.mxu0 0.0
      %6694 = vmatpush1.msra.mxu0 0.0
      %6695 = vmatprep.subr.mxu0 0.0
      %6696 = vmatpush1.msra.mxu0 0.0
      %6697 = vmatprep.subr.mxu0 0.0
      %6698 = vmatpush1.msra.mxu0 0.0
      %6699 = vmatprep.mubr.f32.mxu0 0.0
      %6700 = vmatmul.mubr.f32.gmra.mrb[0].mxu0 %v6633
      %v6701 = vpop.f32.mrb[0].mxu0
      %v6702 = vadd.f32 0.0, %v6701
      %v6703 = vpop.f32.mrb[0].mxu0
      %6704 = vdwg.mxu0
      %v6705 = vsel %vm212, %v5613, 0
      %6707 = vmatprep.subr.mxu0 0.0
      %6708 = vmatpush1.msra.mxu0 %v5474
      %6709 = vmatprep.subr.mxu0 0.0
      %6710 = vmatpush1.msra.mxu0 %v5475
      %6711 = vmatprep.subr.mxu0 0.0
      %6712 = vmatpush1.msra.mxu0 0.0
      %6713 = vmatprep.subr.mxu0 0.0
      %6714 = vmatpush1.msra.mxu0 0.0
      %6715 = vmatprep.subr.mxu0 0.0
      %6716 = vmatpush1.msra.mxu0 0.0
      %6717 = vmatprep.subr.mxu0 0.0
      %6718 = vmatpush1.msra.mxu0 0.0
      %6719 = vmatprep.subr.mxu0 0.0
      %6720 = vmatpush1.msra.mxu0 0.0
      %6721 = vmatprep.subr.mxu0 0.0
      %6722 = vmatpush1.msra.mxu0 0.0
      %6723 = vmatprep.subr.mxu0 0.0
      %6724 = vmatpush1.msra.mxu0 0.0
      %6725 = vmatprep.subr.mxu0 0.0
      %6726 = vmatpush1.msra.mxu0 0.0
      %6727 = vmatprep.subr.mxu0 0.0
      %6728 = vmatpush1.msra.mxu0 0.0
      %6729 = vmatprep.subr.mxu0 0.0
      %6730 = vmatpush1.msra.mxu0 0.0
      %6731 = vmatprep.subr.mxu0 0.0
      %6732 = vmatpush1.msra.mxu0 0.0
      %6733 = vmatprep.subr.mxu0 0.0
      %6734 = vmatpush1.msra.mxu0 0.0
      %6735 = vmatprep.subr.mxu0 0.0
      %6736 = vmatpush1.msra.mxu0 0.0
      %6737 = vmatprep.subr.mxu0 0.0
      %6738 = vmatpush1.msra.mxu0 0.0
      %6739 = vmatprep.subr.mxu0 0.0
      %6740 = vmatpush1.msra.mxu0 0.0
      %6741 = vmatprep.subr.mxu0 0.0
      %6742 = vmatpush1.msra.mxu0 0.0
      %6743 = vmatprep.subr.mxu0 0.0
      %6744 = vmatpush1.msra.mxu0 0.0
      %6745 = vmatprep.subr.mxu0 0.0
      %6746 = vmatpush1.msra.mxu0 0.0
      %6747 = vmatprep.subr.mxu0 0.0
      %6748 = vmatpush1.msra.mxu0 0.0
      %6749 = vmatprep.subr.mxu0 0.0
      %6750 = vmatpush1.msra.mxu0 0.0
      %6751 = vmatprep.subr.mxu0 0.0
      %6752 = vmatpush1.msra.mxu0 0.0
      %6753 = vmatprep.subr.mxu0 0.0
      %6754 = vmatpush1.msra.mxu0 0.0
      %6755 = vmatprep.subr.mxu0 0.0
      %6756 = vmatpush1.msra.mxu0 0.0
      %6757 = vmatprep.subr.mxu0 0.0
      %6758 = vmatpush1.msra.mxu0 0.0
      %6759 = vmatprep.subr.mxu0 0.0
      %6760 = vmatpush1.msra.mxu0 0.0
      %6761 = vmatprep.subr.mxu0 0.0
      %6762 = vmatpush1.msra.mxu0 0.0
      %6763 = vmatprep.subr.mxu0 0.0
      %6764 = vmatpush1.msra.mxu0 0.0
      %6765 = vmatprep.subr.mxu0 0.0
      %6766 = vmatpush1.msra.mxu0 0.0
      %6767 = vmatprep.subr.mxu0 0.0
      %6768 = vmatpush1.msra.mxu0 0.0
      %6769 = vmatprep.subr.mxu0 0.0
      %6770 = vmatpush1.msra.mxu0 0.0
      %6771 = vmatprep.mubr.f32.mxu0 0.0
      %6772 = vmatmul.mubr.f32.gmra.mrb[0].mxu0 %v6705
      %v6773 = vpop.f32.mrb[0].mxu0
      %v6774 = vadd.f32 0.0, %v6773
      %v6775 = vpop.f32.mrb[0].mxu0
      %6776 = vdwg.mxu0
      %v6777 = vsel %vm212, %v5683, 0
      %6779 = vmatprep.subr.mxu0 0.0
      %6780 = vmatpush1.msra.mxu0 %v5474
      %6781 = vmatprep.subr.mxu0 0.0
      %6782 = vmatpush1.msra.mxu0 %v5475
      %6783 = vmatprep.subr.mxu0 0.0
      %6784 = vmatpush1.msra.mxu0 0.0
      %6785 = vmatprep.subr.mxu0 0.0
      %6786 = vmatpush1.msra.mxu0 0.0
      %6787 = vmatprep.subr.mxu0 0.0
      %6788 = vmatpush1.msra.mxu0 0.0
      %6789 = vmatprep.subr.mxu0 0.0
      %6790 = vmatpush1.msra.mxu0 0.0
      %6791 = vmatprep.subr.mxu0 0.0
      %6792 = vmatpush1.msra.mxu0 0.0
      %6793 = vmatprep.subr.mxu0 0.0
      %6794 = vmatpush1.msra.mxu0 0.0
      %6795 = vmatprep.subr.mxu0 0.0
      %6796 = vmatpush1.msra.mxu0 0.0
      %6797 = vmatprep.subr.mxu0 0.0
      %6798 = vmatpush1.msra.mxu0 0.0
      %6799 = vmatprep.subr.mxu0 0.0
      %6800 = vmatpush1.msra.mxu0 0.0
      %6801 = vmatprep.subr.mxu0 0.0
      %6802 = vmatpush1.msra.mxu0 0.0
      %6803 = vmatprep.subr.mxu0 0.0
      %6804 = vmatpush1.msra.mxu0 0.0
      %6805 = vmatprep.subr.mxu0 0.0
      %6806 = vmatpush1.msra.mxu0 0.0
      %6807 = vmatprep.subr.mxu0 0.0
      %6808 = vmatpush1.msra.mxu0 0.0
      %6809 = vmatprep.subr.mxu0 0.0
      %6810 = vmatpush1.msra.mxu0 0.0
      %6811 = vmatprep.subr.mxu0 0.0
      %6812 = vmatpush1.msra.mxu0 0.0
      %6813 = vmatprep.subr.mxu0 0.0
      %6814 = vmatpush1.msra.mxu0 0.0
      %6815 = vmatprep.subr.mxu0 0.0
      %6816 = vmatpush1.msra.mxu0 0.0
      %6817 = vmatprep.subr.mxu0 0.0
      %6818 = vmatpush1.msra.mxu0 0.0
      %6819 = vmatprep.subr.mxu0 0.0
      %6820 = vmatpush1.msra.mxu0 0.0
      %6821 = vmatprep.subr.mxu0 0.0
      %6822 = vmatpush1.msra.mxu0 0.0
      %6823 = vmatprep.subr.mxu0 0.0
      %6824 = vmatpush1.msra.mxu0 0.0
      %6825 = vmatprep.subr.mxu0 0.0
      %6826 = vmatpush1.msra.mxu0 0.0
      %6827 = vmatprep.subr.mxu0 0.0
      %6828 = vmatpush1.msra.mxu0 0.0
      %6829 = vmatprep.subr.mxu0 0.0
      %6830 = vmatpush1.msra.mxu0 0.0
      %6831 = vmatprep.subr.mxu0 0.0
      %6832 = vmatpush1.msra.mxu0 0.0
      %6833 = vmatprep.subr.mxu0 0.0
      %6834 = vmatpush1.msra.mxu0 0.0
      %6835 = vmatprep.subr.mxu0 0.0
      %6836 = vmatpush1.msra.mxu0 0.0
      %6837 = vmatprep.subr.mxu0 0.0
      %6838 = vmatpush1.msra.mxu0 0.0
      %6839 = vmatprep.subr.mxu0 0.0
      %6840 = vmatpush1.msra.mxu0 0.0
      %6841 = vmatprep.subr.mxu0 0.0
      %6842 = vmatpush1.msra.mxu0 0.0
      %6843 = vmatprep.mubr.f32.mxu0 0.0
      %6844 = vmatmul.mubr.f32.gmra.mrb[0].mxu0 %v6777
      %v6845 = vpop.f32.mrb[0].mxu0
      %v6846 = vadd.f32 0.0, %v6845
      %v6847 = vpop.f32.mrb[0].mxu0
      %6848 = vdwg.mxu0
      %v6849 = vsel %vm212, %v5753, 0
      %6851 = vmatprep.subr.mxu0 0.0
      %6852 = vmatpush1.msra.mxu0 %v5474
      %6853 = vmatprep.subr.mxu0 0.0
      %6854 = vmatpush1.msra.mxu0 %v5475
      %6855 = vmatprep.subr.mxu0 0.0
      %6856 = vmatpush1.msra.mxu0 0.0
      %6857 = vmatprep.subr.mxu0 0.0
      %6858 = vmatpush1.msra.mxu0 0.0
      %6859 = vmatprep.subr.mxu0 0.0
      %6860 = vmatpush1.msra.mxu0 0.0
      %6861 = vmatprep.subr.mxu0 0.0
      %6862 = vmatpush1.msra.mxu0 0.0
      %6863 = vmatprep.subr.mxu0 0.0
      %6864 = vmatpush1.msra.mxu0 0.0
      %6865 = vmatprep.subr.mxu0 0.0
      %6866 = vmatpush1.msra.mxu0 0.0
      %6867 = vmatprep.subr.mxu0 0.0
      %6868 = vmatpush1.msra.mxu0 0.0
      %6869 = vmatprep.subr.mxu0 0.0
      %6870 = vmatpush1.msra.mxu0 0.0
      %6871 = vmatprep.subr.mxu0 0.0
      %6872 = vmatpush1.msra.mxu0 0.0
      %6873 = vmatprep.subr.mxu0 0.0
      %6874 = vmatpush1.msra.mxu0 0.0
      %6875 = vmatprep.subr.mxu0 0.0
      %6876 = vmatpush1.msra.mxu0 0.0
      %6877 = vmatprep.subr.mxu0 0.0
      %6878 = vmatpush1.msra.mxu0 0.0
      %6879 = vmatprep.subr.mxu0 0.0
      %6880 = vmatpush1.msra.mxu0 0.0
      %6881 = vmatprep.subr.mxu0 0.0
      %6882 = vmatpush1.msra.mxu0 0.0
      %6883 = vmatprep.subr.mxu0 0.0
      %6884 = vmatpush1.msra.mxu0 0.0
      %6885 = vmatprep.subr.mxu0 0.0
      %6886 = vmatpush1.msra.mxu0 0.0
      %6887 = vmatprep.subr.mxu0 0.0
      %6888 = vmatpush1.msra.mxu0 0.0
      %6889 = vmatprep.subr.mxu0 0.0
      %6890 = vmatpush1.msra.mxu0 0.0
      %6891 = vmatprep.subr.mxu0 0.0
      %6892 = vmatpush1.msra.mxu0 0.0
      %6893 = vmatprep.subr.mxu0 0.0
      %6894 = vmatpush1.msra.mxu0 0.0
      %6895 = vmatprep.subr.mxu0 0.0
      %6896 = vmatpush1.msra.mxu0 0.0
      %6897 = vmatprep.subr.mxu0 0.0
      %6898 = vmatpush1.msra.mxu0 0.0
      %6899 = vmatprep.subr.mxu0 0.0
      %6900 = vmatpush1.msra.mxu0 0.0
      %6901 = vmatprep.subr.mxu0 0.0
      %6902 = vmatpush1.msra.mxu0 0.0
      %6903 = vmatprep.subr.mxu0 0.0
      %6904 = vmatpush1.msra.mxu0 0.0
      %6905 = vmatprep.subr.mxu0 0.0
      %6906 = vmatpush1.msra.mxu0 0.0
      %6907 = vmatprep.subr.mxu0 0.0
      %6908 = vmatpush1.msra.mxu0 0.0
      %6909 = vmatprep.subr.mxu0 0.0
      %6910 = vmatpush1.msra.mxu0 0.0
      %6911 = vmatprep.subr.mxu0 0.0
      %6912 = vmatpush1.msra.mxu0 0.0
      %6913 = vmatprep.subr.mxu0 0.0
      %6914 = vmatpush1.msra.mxu0 0.0
      %6915 = vmatprep.mubr.f32.mxu0 0.0
      %6916 = vmatmul.mubr.f32.gmra.mrb[0].mxu0 %v6849
      %v6917 = vpop.f32.mrb[0].mxu0
      %v6918 = vadd.f32 0.0, %v6917
      %v6919 = vpop.f32.mrb[0].mxu0
      %6920 = vdwg.mxu0
      %v6921 = vsel %vm212, %v5823, 0
      %6923 = vmatprep.subr.mxu0 0.0
      %6924 = vmatpush1.msra.mxu0 %v5474
      %6925 = vmatprep.subr.mxu0 0.0
      %6926 = vmatpush1.msra.mxu0 %v5475
      %6927 = vmatprep.subr.mxu0 0.0
      %6928 = vmatpush1.msra.mxu0 0.0
      %6929 = vmatprep.subr.mxu0 0.0
      %6930 = vmatpush1.msra.mxu0 0.0
      %6931 = vmatprep.subr.mxu0 0.0
      %6932 = vmatpush1.msra.mxu0 0.0
      %6933 = vmatprep.subr.mxu0 0.0
      %6934 = vmatpush1.msra.mxu0 0.0
      %6935 = vmatprep.subr.mxu0 0.0
      %6936 = vmatpush1.msra.mxu0 0.0
      %6937 = vmatprep.subr.mxu0 0.0
      %6938 = vmatpush1.msra.mxu0 0.0
      %6939 = vmatprep.subr.mxu0 0.0
      %6940 = vmatpush1.msra.mxu0 0.0
      %6941 = vmatprep.subr.mxu0 0.0
      %6942 = vmatpush1.msra.mxu0 0.0
      %6943 = vmatprep.subr.mxu0 0.0
      %6944 = vmatpush1.msra.mxu0 0.0
      %6945 = vmatprep.subr.mxu0 0.0
      %6946 = vmatpush1.msra.mxu0 0.0
      %6947 = vmatprep.subr.mxu0 0.0
      %6948 = vmatpush1.msra.mxu0 0.0
      %6949 = vmatprep.subr.mxu0 0.0
      %6950 = vmatpush1.msra.mxu0 0.0
      %6951 = vmatprep.subr.mxu0 0.0
      %6952 = vmatpush1.msra.mxu0 0.0
      %6953 = vmatprep.subr.mxu0 0.0
      %6954 = vmatpush1.msra.mxu0 0.0
      %6955 = vmatprep.subr.mxu0 0.0
      %6956 = vmatpush1.msra.mxu0 0.0
      %6957 = vmatprep.subr.mxu0 0.0
      %6958 = vmatpush1.msra.mxu0 0.0
      %6959 = vmatprep.subr.mxu0 0.0
      %6960 = vmatpush1.msra.mxu0 0.0
      %6961 = vmatprep.subr.mxu0 0.0
      %6962 = vmatpush1.msra.mxu0 0.0
      %6963 = vmatprep.subr.mxu0 0.0
      %6964 = vmatpush1.msra.mxu0 0.0
      %6965 = vmatprep.subr.mxu0 0.0
      %6966 = vmatpush1.msra.mxu0 0.0
      %6967 = vmatprep.subr.mxu0 0.0
      %6968 = vmatpush1.msra.mxu0 0.0
      %6969 = vmatprep.subr.mxu0 0.0
      %6970 = vmatpush1.msra.mxu0 0.0
      %6971 = vmatprep.subr.mxu0 0.0
      %6972 = vmatpush1.msra.mxu0 0.0
      %6973 = vmatprep.subr.mxu0 0.0
      %6974 = vmatpush1.msra.mxu0 0.0
      %6975 = vmatprep.subr.mxu0 0.0
      %6976 = vmatpush1.msra.mxu0 0.0
      %6977 = vmatprep.subr.mxu0 0.0
      %6978 = vmatpush1.msra.mxu0 0.0
      %6979 = vmatprep.subr.mxu0 0.0
      %6980 = vmatpush1.msra.mxu0 0.0
      %6981 = vmatprep.subr.mxu0 0.0
      %6982 = vmatpush1.msra.mxu0 0.0
      %6983 = vmatprep.subr.mxu0 0.0
      %6984 = vmatpush1.msra.mxu0 0.0
      %6985 = vmatprep.subr.mxu0 0.0
      %6986 = vmatpush1.msra.mxu0 0.0
      %6987 = vmatprep.mubr.f32.mxu0 0.0
      %6988 = vmatmul.mubr.f32.gmra.mrb[0].mxu0 %v6921
      %v6989 = vpop.f32.mrb[0].mxu0
      %v6990 = vadd.f32 0.0, %v6989
      %v6991 = vpop.f32.mrb[0].mxu0
      %6992 = vdwg.mxu0
      %v6993 = vsel %vm212, %v5893, 0
      %6995 = vmatprep.subr.mxu0 0.0
      %6996 = vmatpush1.msra.mxu0 %v5474
      %6997 = vmatprep.subr.mxu0 0.0
      %6998 = vmatpush1.msra.mxu0 %v5475
      %6999 = vmatprep.subr.mxu0 0.0
      %7000 = vmatpush1.msra.mxu0 0.0
      %7001 = vmatprep.subr.mxu0 0.0
      %7002 = vmatpush1.msra.mxu0 0.0
      %7003 = vmatprep.subr.mxu0 0.0
      %7004 = vmatpush1.msra.mxu0 0.0
      %7005 = vmatprep.subr.mxu0 0.0
      %7006 = vmatpush1.msra.mxu0 0.0
      %7007 = vmatprep.subr.mxu0 0.0
      %7008 = vmatpush1.msra.mxu0 0.0
      %7009 = vmatprep.subr.mxu0 0.0
      %7010 = vmatpush1.msra.mxu0 0.0
      %7011 = vmatprep.subr.mxu0 0.0
      %7012 = vmatpush1.msra.mxu0 0.0
      %7013 = vmatprep.subr.mxu0 0.0
      %7014 = vmatpush1.msra.mxu0 0.0
      %7015 = vmatprep.subr.mxu0 0.0
      %7016 = vmatpush1.msra.mxu0 0.0
      %7017 = vmatprep.subr.mxu0 0.0
      %7018 = vmatpush1.msra.mxu0 0.0
      %7019 = vmatprep.subr.mxu0 0.0
      %7020 = vmatpush1.msra.mxu0 0.0
      %7021 = vmatprep.subr.mxu0 0.0
      %7022 = vmatpush1.msra.mxu0 0.0
      %7023 = vmatprep.subr.mxu0 0.0
      %7024 = vmatpush1.msra.mxu0 0.0
      %7025 = vmatprep.subr.mxu0 0.0
      %7026 = vmatpush1.msra.mxu0 0.0
      %7027 = vmatprep.subr.mxu0 0.0
      %7028 = vmatpush1.msra.mxu0 0.0
      %7029 = vmatprep.subr.mxu0 0.0
      %7030 = vmatpush1.msra.mxu0 0.0
      %7031 = vmatprep.subr.mxu0 0.0
      %7032 = vmatpush1.msra.mxu0 0.0
      %7033 = vmatprep.subr.mxu0 0.0
      %7034 = vmatpush1.msra.mxu0 0.0
      %7035 = vmatprep.subr.mxu0 0.0
      %7036 = vmatpush1.msra.mxu0 0.0
      %7037 = vmatprep.subr.mxu0 0.0
      %7038 = vmatpush1.msra.mxu0 0.0
      %7039 = vmatprep.subr.mxu0 0.0
      %7040 = vmatpush1.msra.mxu0 0.0
      %7041 = vmatprep.subr.mxu0 0.0
      %7042 = vmatpush1.msra.mxu0 0.0
      %7043 = vmatprep.subr.mxu0 0.0
      %7044 = vmatpush1.msra.mxu0 0.0
      %7045 = vmatprep.subr.mxu0 0.0
      %7046 = vmatpush1.msra.mxu0 0.0
      %7047 = vmatprep.subr.mxu0 0.0
      %7048 = vmatpush1.msra.mxu0 0.0
      %7049 = vmatprep.subr.mxu0 0.0
      %7050 = vmatpush1.msra.mxu0 0.0
      %7051 = vmatprep.subr.mxu0 0.0
      %7052 = vmatpush1.msra.mxu0 0.0
      %7053 = vmatprep.subr.mxu0 0.0
      %7054 = vmatpush1.msra.mxu0 0.0
      %7055 = vmatprep.subr.mxu0 0.0
      %7056 = vmatpush1.msra.mxu0 0.0
      %7057 = vmatprep.subr.mxu0 0.0
      %7058 = vmatpush1.msra.mxu0 0.0
      %7059 = vmatprep.mubr.f32.mxu0 0.0
      %7060 = vmatmul.mubr.f32.gmra.mrb[0].mxu0 %v6993
      %v7061 = vpop.f32.mrb[0].mxu0
      %v7062 = vadd.f32 0.0, %v7061
      %v7063 = vpop.f32.mrb[0].mxu0
      %7064 = vdwg.mxu0
      %v7065 = vsel %vm212, %v5963, 0
      %7067 = vmatprep.subr.mxu0 0.0
      %7068 = vmatpush1.msra.mxu0 %v5474
      %7069 = vmatprep.subr.mxu0 0.0
      %7070 = vmatpush1.msra.mxu0 %v5475
      %7071 = vmatprep.subr.mxu0 0.0
      %7072 = vmatpush1.msra.mxu0 0.0
      %7073 = vmatprep.subr.mxu0 0.0
      %7074 = vmatpush1.msra.mxu0 0.0
      %7075 = vmatprep.subr.mxu0 0.0
      %7076 = vmatpush1.msra.mxu0 0.0
      %7077 = vmatprep.subr.mxu0 0.0
      %7078 = vmatpush1.msra.mxu0 0.0
      %7079 = vmatprep.subr.mxu0 0.0
      %7080 = vmatpush1.msra.mxu0 0.0
      %7081 = vmatprep.subr.mxu0 0.0
      %7082 = vmatpush1.msra.mxu0 0.0
      %7083 = vmatprep.subr.mxu0 0.0
      %7084 = vmatpush1.msra.mxu0 0.0
      %7085 = vmatprep.subr.mxu0 0.0
      %7086 = vmatpush1.msra.mxu0 0.0
      %7087 = vmatprep.subr.mxu0 0.0
      %7088 = vmatpush1.msra.mxu0 0.0
      %7089 = vmatprep.subr.mxu0 0.0
      %7090 = vmatpush1.msra.mxu0 0.0
      %7091 = vmatprep.subr.mxu0 0.0
      %7092 = vmatpush1.msra.mxu0 0.0
      %7093 = vmatprep.subr.mxu0 0.0
      %7094 = vmatpush1.msra.mxu0 0.0
      %7095 = vmatprep.subr.mxu0 0.0
      %7096 = vmatpush1.msra.mxu0 0.0
      %7097 = vmatprep.subr.mxu0 0.0
      %7098 = vmatpush1.msra.mxu0 0.0
      %7099 = vmatprep.subr.mxu0 0.0
      %7100 = vmatpush1.msra.mxu0 0.0
      %7101 = vmatprep.subr.mxu0 0.0
      %7102 = vmatpush1.msra.mxu0 0.0
      %7103 = vmatprep.subr.mxu0 0.0
      %7104 = vmatpush1.msra.mxu0 0.0
      %7105 = vmatprep.subr.mxu0 0.0
      %7106 = vmatpush1.msra.mxu0 0.0
      %7107 = vmatprep.subr.mxu0 0.0
      %7108 = vmatpush1.msra.mxu0 0.0
      %7109 = vmatprep.subr.mxu0 0.0
      %7110 = vmatpush1.msra.mxu0 0.0
      %7111 = vmatprep.subr.mxu0 0.0
      %7112 = vmatpush1.msra.mxu0 0.0
      %7113 = vmatprep.subr.mxu0 0.0
      %7114 = vmatpush1.msra.mxu0 0.0
      %7115 = vmatprep.subr.mxu0 0.0
      %7116 = vmatpush1.msra.mxu0 0.0
      %7117 = vmatprep.subr.mxu0 0.0
      %7118 = vmatpush1.msra.mxu0 0.0
      %7119 = vmatprep.subr.mxu0 0.0
      %7120 = vmatpush1.msra.mxu0 0.0
      %7121 = vmatprep.subr.mxu0 0.0
      %7122 = vmatpush1.msra.mxu0 0.0
      %7123 = vmatprep.subr.mxu0 0.0
      %7124 = vmatpush1.msra.mxu0 0.0
      %7125 = vmatprep.subr.mxu0 0.0
      %7126 = vmatpush1.msra.mxu0 0.0
      %7127 = vmatprep.subr.mxu0 0.0
      %7128 = vmatpush1.msra.mxu0 0.0
      %7129 = vmatprep.subr.mxu0 0.0
      %7130 = vmatpush1.msra.mxu0 0.0
      %7131 = vmatprep.mubr.f32.mxu0 0.0
      %7132 = vmatmul.mubr.f32.gmra.mrb[0].mxu0 %v7065
      %v7133 = vpop.f32.mrb[0].mxu0
      %v7134 = vadd.f32 0.0, %v7133
      %v7135 = vpop.f32.mrb[0].mxu0
      %7136 = vdwg.mxu0
      %v7137 = vsel %vm212, %v6033, 0
      %7139 = vmatprep.subr.mxu0 0.0
      %7140 = vmatpush1.msra.mxu0 %v5474
      %7141 = vmatprep.subr.mxu0 0.0
      %7142 = vmatpush1.msra.mxu0 %v5475
      %7143 = vmatprep.subr.mxu0 0.0
      %7144 = vmatpush1.msra.mxu0 0.0
      %7145 = vmatprep.subr.mxu0 0.0
      %7146 = vmatpush1.msra.mxu0 0.0
      %7147 = vmatprep.subr.mxu0 0.0
      %7148 = vmatpush1.msra.mxu0 0.0
      %7149 = vmatprep.subr.mxu0 0.0
      %7150 = vmatpush1.msra.mxu0 0.0
      %7151 = vmatprep.subr.mxu0 0.0
      %7152 = vmatpush1.msra.mxu0 0.0
      %7153 = vmatprep.subr.mxu0 0.0
      %7154 = vmatpush1.msra.mxu0 0.0
      %7155 = vmatprep.subr.mxu0 0.0
      %7156 = vmatpush1.msra.mxu0 0.0
      %7157 = vmatprep.subr.mxu0 0.0
      %7158 = vmatpush1.msra.mxu0 0.0
      %7159 = vmatprep.subr.mxu0 0.0
      %7160 = vmatpush1.msra.mxu0 0.0
      %7161 = vmatprep.subr.mxu0 0.0
      %7162 = vmatpush1.msra.mxu0 0.0
      %7163 = vmatprep.subr.mxu0 0.0
      %7164 = vmatpush1.msra.mxu0 0.0
      %7165 = vmatprep.subr.mxu0 0.0
      %7166 = vmatpush1.msra.mxu0 0.0
      %7167 = vmatprep.subr.mxu0 0.0
      %7168 = vmatpush1.msra.mxu0 0.0
      %7169 = vmatprep.subr.mxu0 0.0
      %7170 = vmatpush1.msra.mxu0 0.0
      %7171 = vmatprep.subr.mxu0 0.0
      %7172 = vmatpush1.msra.mxu0 0.0
      %7173 = vmatprep.subr.mxu0 0.0
      %7174 = vmatpush1.msra.mxu0 0.0
      %7175 = vmatprep.subr.mxu0 0.0
      %7176 = vmatpush1.msra.mxu0 0.0
      %7177 = vmatprep.subr.mxu0 0.0
      %7178 = vmatpush1.msra.mxu0 0.0
      %7179 = vmatprep.subr.mxu0 0.0
      %7180 = vmatpush1.msra.mxu0 0.0
      %7181 = vmatprep.subr.mxu0 0.0
      %7182 = vmatpush1.msra.mxu0 0.0
      %7183 = vmatprep.subr.mxu0 0.0
      %7184 = vmatpush1.msra.mxu0 0.0
      %7185 = vmatprep.subr.mxu0 0.0
      %7186 = vmatpush1.msra.mxu0 0.0
      %7187 = vmatprep.subr.mxu0 0.0
      %7188 = vmatpush1.msra.mxu0 0.0
      %7189 = vmatprep.subr.mxu0 0.0
      %7190 = vmatpush1.msra.mxu0 0.0
      %7191 = vmatprep.subr.mxu0 0.0
      %7192 = vmatpush1.msra.mxu0 0.0
      %7193 = vmatprep.subr.mxu0 0.0
      %7194 = vmatpush1.msra.mxu0 0.0
      %7195 = vmatprep.subr.mxu0 0.0
      %7196 = vmatpush1.msra.mxu0 0.0
      %7197 = vmatprep.subr.mxu0 0.0
      %7198 = vmatpush1.msra.mxu0 0.0
      %7199 = vmatprep.subr.mxu0 0.0
      %7200 = vmatpush1.msra.mxu0 0.0
      %7201 = vmatprep.subr.mxu0 0.0
      %7202 = vmatpush1.msra.mxu0 0.0
      %7203 = vmatprep.mubr.f32.mxu0 0.0
      %7204 = vmatmul.mubr.f32.gmra.mrb[0].mxu0 %v7137
      %v7205 = vpop.f32.mrb[0].mxu0
      %v7206 = vadd.f32 0.0, %v7205
      %v7207 = vpop.f32.mrb[0].mxu0
      %7208 = vdwg.mxu0
      %s7209 = scalar_lea.vmem %s2, 48
      %v7210 = vld [vmem:[%s7209] sm:$0xff]
      %v7212 = vsel %vm799, %v7210, 0
      %v7215 = vsel %vm803, %v6702, 0
      %7217 = vmatprep.subr.mxu0 0.0
      %7218 = vmatpush1.msra.mxu0 %v7215
      %7219 = vmatprep.subr.mxu0 0.0
      %7220 = vmatpush1.msra.mxu0 0.0
      %7221 = vmatprep.subr.mxu0 0.0
      %7222 = vmatpush1.msra.mxu0 0.0
      %7223 = vmatprep.subr.mxu0 0.0
      %7224 = vmatpush1.msra.mxu0 0.0
      %7225 = vmatprep.subr.mxu0 0.0
      %7226 = vmatpush1.msra.mxu0 0.0
      %7227 = vmatprep.subr.mxu0 0.0
      %7228 = vmatpush1.msra.mxu0 0.0
      %7229 = vmatprep.subr.mxu0 0.0
      %7230 = vmatpush1.msra.mxu0 0.0
      %7231 = vmatprep.subr.mxu0 0.0
      %7232 = vmatpush1.msra.mxu0 0.0
      %7233 = vmatprep.subr.mxu0 0.0
      %7234 = vmatpush1.msra.mxu0 0.0
      %7235 = vmatprep.subr.mxu0 0.0
      %7236 = vmatpush1.msra.mxu0 0.0
      %7237 = vmatprep.subr.mxu0 0.0
      %7238 = vmatpush1.msra.mxu0 0.0
      %7239 = vmatprep.subr.mxu0 0.0
      %7240 = vmatpush1.msra.mxu0 0.0
      %7241 = vmatprep.subr.mxu0 0.0
      %7242 = vmatpush1.msra.mxu0 0.0
      %7243 = vmatprep.subr.mxu0 0.0
      %7244 = vmatpush1.msra.mxu0 0.0
      %7245 = vmatprep.subr.mxu0 0.0
      %7246 = vmatpush1.msra.mxu0 0.0
      %7247 = vmatprep.subr.mxu0 0.0
      %7248 = vmatpush1.msra.mxu0 0.0
      %7249 = vmatprep.subr.mxu0 0.0
      %7250 = vmatpush1.msra.mxu0 0.0
      %7251 = vmatprep.subr.mxu0 0.0
      %7252 = vmatpush1.msra.mxu0 0.0
      %7253 = vmatprep.subr.mxu0 0.0
      %7254 = vmatpush1.msra.mxu0 0.0
      %7255 = vmatprep.subr.mxu0 0.0
      %7256 = vmatpush1.msra.mxu0 0.0
      %7257 = vmatprep.subr.mxu0 0.0
      %7258 = vmatpush1.msra.mxu0 0.0
      %7259 = vmatprep.subr.mxu0 0.0
      %7260 = vmatpush1.msra.mxu0 0.0
      %7261 = vmatprep.subr.mxu0 0.0
      %7262 = vmatpush1.msra.mxu0 0.0
      %7263 = vmatprep.subr.mxu0 0.0
      %7264 = vmatpush1.msra.mxu0 0.0
      %7265 = vmatprep.subr.mxu0 0.0
      %7266 = vmatpush1.msra.mxu0 0.0
      %7267 = vmatprep.subr.mxu0 0.0
      %7268 = vmatpush1.msra.mxu0 0.0
      %7269 = vmatprep.subr.mxu0 0.0
      %7270 = vmatpush1.msra.mxu0 0.0
      %7271 = vmatprep.subr.mxu0 0.0
      %7272 = vmatpush1.msra.mxu0 0.0
      %7273 = vmatprep.subr.mxu0 0.0
      %7274 = vmatpush1.msra.mxu0 0.0
      %7275 = vmatprep.subr.mxu0 0.0
      %7276 = vmatpush1.msra.mxu0 0.0
      %7277 = vmatprep.subr.mxu0 0.0
      %7278 = vmatpush1.msra.mxu0 0.0
      %7279 = vmatprep.subr.mxu0 0.0
      %7280 = vmatpush1.msra.mxu0 0.0
      %7281 = vmatprep.mubr.f32.mxu0 0.0
      %7282 = vmatmul.mubr.f32.gmra.mrb[0].mxu0 %v7212
      %v7283 = vpop.f32.mrb[0].mxu0
      %v7284 = vadd.f32 0.0, %v7283
      %v7285 = vpop.f32.mrb[0].mxu0
      %7286 = vdwg.mxu0
      %v7288 = vsel %vm803, %v6774, 0
      %7290 = vmatprep.subr.mxu0 0.0
      %7291 = vmatpush1.msra.mxu0 %v7288
      %7292 = vmatprep.subr.mxu0 0.0
      %7293 = vmatpush1.msra.mxu0 0.0
      %7294 = vmatprep.subr.mxu0 0.0
      %7295 = vmatpush1.msra.mxu0 0.0
      %7296 = vmatprep.subr.mxu0 0.0
      %7297 = vmatpush1.msra.mxu0 0.0
      %7298 = vmatprep.subr.mxu0 0.0
      %7299 = vmatpush1.msra.mxu0 0.0
      %7300 = vmatprep.subr.mxu0 0.0
      %7301 = vmatpush1.msra.mxu0 0.0
      %7302 = vmatprep.subr.mxu0 0.0
      %7303 = vmatpush1.msra.mxu0 0.0
      %7304 = vmatprep.subr.mxu0 0.0
      %7305 = vmatpush1.msra.mxu0 0.0
      %7306 = vmatprep.subr.mxu0 0.0
      %7307 = vmatpush1.msra.mxu0 0.0
      %7308 = vmatprep.subr.mxu0 0.0
      %7309 = vmatpush1.msra.mxu0 0.0
      %7310 = vmatprep.subr.mxu0 0.0
      %7311 = vmatpush1.msra.mxu0 0.0
      %7312 = vmatprep.subr.mxu0 0.0
      %7313 = vmatpush1.msra.mxu0 0.0
      %7314 = vmatprep.subr.mxu0 0.0
      %7315 = vmatpush1.msra.mxu0 0.0
      %7316 = vmatprep.subr.mxu0 0.0
      %7317 = vmatpush1.msra.mxu0 0.0
      %7318 = vmatprep.subr.mxu0 0.0
      %7319 = vmatpush1.msra.mxu0 0.0
      %7320 = vmatprep.subr.mxu0 0.0
      %7321 = vmatpush1.msra.mxu0 0.0
      %7322 = vmatprep.subr.mxu0 0.0
      %7323 = vmatpush1.msra.mxu0 0.0
      %7324 = vmatprep.subr.mxu0 0.0
      %7325 = vmatpush1.msra.mxu0 0.0
      %7326 = vmatprep.subr.mxu0 0.0
      %7327 = vmatpush1.msra.mxu0 0.0
      %7328 = vmatprep.subr.mxu0 0.0
      %7329 = vmatpush1.msra.mxu0 0.0
      %7330 = vmatprep.subr.mxu0 0.0
      %7331 = vmatpush1.msra.mxu0 0.0
      %7332 = vmatprep.subr.mxu0 0.0
      %7333 = vmatpush1.msra.mxu0 0.0
      %7334 = vmatprep.subr.mxu0 0.0
      %7335 = vmatpush1.msra.mxu0 0.0
      %7336 = vmatprep.subr.mxu0 0.0
      %7337 = vmatpush1.msra.mxu0 0.0
      %7338 = vmatprep.subr.mxu0 0.0
      %7339 = vmatpush1.msra.mxu0 0.0
      %7340 = vmatprep.subr.mxu0 0.0
      %7341 = vmatpush1.msra.mxu0 0.0
      %7342 = vmatprep.subr.mxu0 0.0
      %7343 = vmatpush1.msra.mxu0 0.0
      %7344 = vmatprep.subr.mxu0 0.0
      %7345 = vmatpush1.msra.mxu0 0.0
      %7346 = vmatprep.subr.mxu0 0.0
      %7347 = vmatpush1.msra.mxu0 0.0
      %7348 = vmatprep.subr.mxu0 0.0
      %7349 = vmatpush1.msra.mxu0 0.0
      %7350 = vmatprep.subr.mxu0 0.0
      %7351 = vmatpush1.msra.mxu0 0.0
      %7352 = vmatprep.subr.mxu0 0.0
      %7353 = vmatpush1.msra.mxu0 0.0
      %7354 = vmatprep.mubr.f32.mxu0 0.0
      %7355 = vmatmul.mubr.f32.gmra.mrb[0].mxu0 %v7212
      %v7356 = vpop.f32.mrb[0].mxu0
      %v7357 = vadd.f32 0.0, %v7356
      %v7358 = vpop.f32.mrb[0].mxu0
      %7359 = vdwg.mxu0
      %v7361 = vsel %vm803, %v6846, 0
      %7363 = vmatprep.subr.mxu0 0.0
      %7364 = vmatpush1.msra.mxu0 %v7361
      %7365 = vmatprep.subr.mxu0 0.0
      %7366 = vmatpush1.msra.mxu0 0.0
      %7367 = vmatprep.subr.mxu0 0.0
      %7368 = vmatpush1.msra.mxu0 0.0
      %7369 = vmatprep.subr.mxu0 0.0
      %7370 = vmatpush1.msra.mxu0 0.0
      %7371 = vmatprep.subr.mxu0 0.0
      %7372 = vmatpush1.msra.mxu0 0.0
      %7373 = vmatprep.subr.mxu0 0.0
      %7374 = vmatpush1.msra.mxu0 0.0
      %7375 = vmatprep.subr.mxu0 0.0
      %7376 = vmatpush1.msra.mxu0 0.0
      %7377 = vmatprep.subr.mxu0 0.0
      %7378 = vmatpush1.msra.mxu0 0.0
      %7379 = vmatprep.subr.mxu0 0.0
      %7380 = vmatpush1.msra.mxu0 0.0
      %7381 = vmatprep.subr.mxu0 0.0
      %7382 = vmatpush1.msra.mxu0 0.0
      %7383 = vmatprep.subr.mxu0 0.0
      %7384 = vmatpush1.msra.mxu0 0.0
      %7385 = vmatprep.subr.mxu0 0.0
      %7386 = vmatpush1.msra.mxu0 0.0
      %7387 = vmatprep.subr.mxu0 0.0
      %7388 = vmatpush1.msra.mxu0 0.0
      %7389 = vmatprep.subr.mxu0 0.0
      %7390 = vmatpush1.msra.mxu0 0.0
      %7391 = vmatprep.subr.mxu0 0.0
      %7392 = vmatpush1.msra.mxu0 0.0
      %7393 = vmatprep.subr.mxu0 0.0
      %7394 = vmatpush1.msra.mxu0 0.0
      %7395 = vmatprep.subr.mxu0 0.0
      %7396 = vmatpush1.msra.mxu0 0.0
      %7397 = vmatprep.subr.mxu0 0.0
      %7398 = vmatpush1.msra.mxu0 0.0
      %7399 = vmatprep.subr.mxu0 0.0
      %7400 = vmatpush1.msra.mxu0 0.0
      %7401 = vmatprep.subr.mxu0 0.0
      %7402 = vmatpush1.msra.mxu0 0.0
      %7403 = vmatprep.subr.mxu0 0.0
      %7404 = vmatpush1.msra.mxu0 0.0
      %7405 = vmatprep.subr.mxu0 0.0
      %7406 = vmatpush1.msra.mxu0 0.0
      %7407 = vmatprep.subr.mxu0 0.0
      %7408 = vmatpush1.msra.mxu0 0.0
      %7409 = vmatprep.subr.mxu0 0.0
      %7410 = vmatpush1.msra.mxu0 0.0
      %7411 = vmatprep.subr.mxu0 0.0
      %7412 = vmatpush1.msra.mxu0 0.0
      %7413 = vmatprep.subr.mxu0 0.0
      %7414 = vmatpush1.msra.mxu0 0.0
      %7415 = vmatprep.subr.mxu0 0.0
      %7416 = vmatpush1.msra.mxu0 0.0
      %7417 = vmatprep.subr.mxu0 0.0
      %7418 = vmatpush1.msra.mxu0 0.0
      %7419 = vmatprep.subr.mxu0 0.0
      %7420 = vmatpush1.msra.mxu0 0.0
      %7421 = vmatprep.subr.mxu0 0.0
      %7422 = vmatpush1.msra.mxu0 0.0
      %7423 = vmatprep.subr.mxu0 0.0
      %7424 = vmatpush1.msra.mxu0 0.0
      %7425 = vmatprep.subr.mxu0 0.0
      %7426 = vmatpush1.msra.mxu0 0.0
      %7427 = vmatprep.mubr.f32.mxu0 0.0
      %7428 = vmatmul.mubr.f32.gmra.mrb[0].mxu0 %v7212
      %v7429 = vpop.f32.mrb[0].mxu0
      %v7430 = vadd.f32 0.0, %v7429
      %v7431 = vpop.f32.mrb[0].mxu0
      %7432 = vdwg.mxu0
      %v7434 = vsel %vm803, %v6918, 0
      %7436 = vmatprep.subr.mxu0 0.0
      %7437 = vmatpush1.msra.mxu0 %v7434
      %7438 = vmatprep.subr.mxu0 0.0
      %7439 = vmatpush1.msra.mxu0 0.0
      %7440 = vmatprep.subr.mxu0 0.0
      %7441 = vmatpush1.msra.mxu0 0.0
      %7442 = vmatprep.subr.mxu0 0.0
      %7443 = vmatpush1.msra.mxu0 0.0
      %7444 = vmatprep.subr.mxu0 0.0
      %7445 = vmatpush1.msra.mxu0 0.0
      %7446 = vmatprep.subr.mxu0 0.0
      %7447 = vmatpush1.msra.mxu0 0.0
      %7448 = vmatprep.subr.mxu0 0.0
      %7449 = vmatpush1.msra.mxu0 0.0
      %7450 = vmatprep.subr.mxu0 0.0
      %7451 = vmatpush1.msra.mxu0 0.0
      %7452 = vmatprep.subr.mxu0 0.0
      %7453 = vmatpush1.msra.mxu0 0.0
      %7454 = vmatprep.subr.mxu0 0.0
      %7455 = vmatpush1.msra.mxu0 0.0
      %7456 = vmatprep.subr.mxu0 0.0
      %7457 = vmatpush1.msra.mxu0 0.0
      %7458 = vmatprep.subr.mxu0 0.0
      %7459 = vmatpush1.msra.mxu0 0.0
      %7460 = vmatprep.subr.mxu0 0.0
      %7461 = vmatpush1.msra.mxu0 0.0
      %7462 = vmatprep.subr.mxu0 0.0
      %7463 = vmatpush1.msra.mxu0 0.0
      %7464 = vmatprep.subr.mxu0 0.0
      %7465 = vmatpush1.msra.mxu0 0.0
      %7466 = vmatprep.subr.mxu0 0.0
      %7467 = vmatpush1.msra.mxu0 0.0
      %7468 = vmatprep.subr.mxu0 0.0
      %7469 = vmatpush1.msra.mxu0 0.0
      %7470 = vmatprep.subr.mxu0 0.0
      %7471 = vmatpush1.msra.mxu0 0.0
      %7472 = vmatprep.subr.mxu0 0.0
      %7473 = vmatpush1.msra.mxu0 0.0
      %7474 = vmatprep.subr.mxu0 0.0
      %7475 = vmatpush1.msra.mxu0 0.0
      %7476 = vmatprep.subr.mxu0 0.0
      %7477 = vmatpush1.msra.mxu0 0.0
      %7478 = vmatprep.subr.mxu0 0.0
      %7479 = vmatpush1.msra.mxu0 0.0
      %7480 = vmatprep.subr.mxu0 0.0
      %7481 = vmatpush1.msra.mxu0 0.0
      %7482 = vmatprep.subr.mxu0 0.0
      %7483 = vmatpush1.msra.mxu0 0.0
      %7484 = vmatprep.subr.mxu0 0.0
      %7485 = vmatpush1.msra.mxu0 0.0
      %7486 = vmatprep.subr.mxu0 0.0
      %7487 = vmatpush1.msra.mxu0 0.0
      %7488 = vmatprep.subr.mxu0 0.0
      %7489 = vmatpush1.msra.mxu0 0.0
      %7490 = vmatprep.subr.mxu0 0.0
      %7491 = vmatpush1.msra.mxu0 0.0
      %7492 = vmatprep.subr.mxu0 0.0
      %7493 = vmatpush1.msra.mxu0 0.0
      %7494 = vmatprep.subr.mxu0 0.0
      %7495 = vmatpush1.msra.mxu0 0.0
      %7496 = vmatprep.subr.mxu0 0.0
      %7497 = vmatpush1.msra.mxu0 0.0
      %7498 = vmatprep.subr.mxu0 0.0
      %7499 = vmatpush1.msra.mxu0 0.0
      %7500 = vmatprep.mubr.f32.mxu0 0.0
      %7501 = vmatmul.mubr.f32.gmra.mrb[0].mxu0 %v7212
      %v7502 = vpop.f32.mrb[0].mxu0
      %v7503 = vadd.f32 0.0, %v7502
      %v7504 = vpop.f32.mrb[0].mxu0
      %7505 = vdwg.mxu0
      %v7507 = vsel %vm803, %v6990, 0
      %7509 = vmatprep.subr.mxu0 0.0
      %7510 = vmatpush1.msra.mxu0 %v7507
      %7511 = vmatprep.subr.mxu0 0.0
      %7512 = vmatpush1.msra.mxu0 0.0
      %7513 = vmatprep.subr.mxu0 0.0
      %7514 = vmatpush1.msra.mxu0 0.0
      %7515 = vmatprep.subr.mxu0 0.0
      %7516 = vmatpush1.msra.mxu0 0.0
      %7517 = vmatprep.subr.mxu0 0.0
      %7518 = vmatpush1.msra.mxu0 0.0
      %7519 = vmatprep.subr.mxu0 0.0
      %7520 = vmatpush1.msra.mxu0 0.0
      %7521 = vmatprep.subr.mxu0 0.0
      %7522 = vmatpush1.msra.mxu0 0.0
      %7523 = vmatprep.subr.mxu0 0.0
      %7524 = vmatpush1.msra.mxu0 0.0
      %7525 = vmatprep.subr.mxu0 0.0
      %7526 = vmatpush1.msra.mxu0 0.0
      %7527 = vmatprep.subr.mxu0 0.0
      %7528 = vmatpush1.msra.mxu0 0.0
      %7529 = vmatprep.subr.mxu0 0.0
      %7530 = vmatpush1.msra.mxu0 0.0
      %7531 = vmatprep.subr.mxu0 0.0
      %7532 = vmatpush1.msra.mxu0 0.0
      %7533 = vmatprep.subr.mxu0 0.0
      %7534 = vmatpush1.msra.mxu0 0.0
      %7535 = vmatprep.subr.mxu0 0.0
      %7536 = vmatpush1.msra.mxu0 0.0
      %7537 = vmatprep.subr.mxu0 0.0
      %7538 = vmatpush1.msra.mxu0 0.0
      %7539 = vmatprep.subr.mxu0 0.0
      %7540 = vmatpush1.msra.mxu0 0.0
      %7541 = vmatprep.subr.mxu0 0.0
      %7542 = vmatpush1.msra.mxu0 0.0
      %7543 = vmatprep.subr.mxu0 0.0
      %7544 = vmatpush1.msra.mxu0 0.0
      %7545 = vmatprep.subr.mxu0 0.0
      %7546 = vmatpush1.msra.mxu0 0.0
      %7547 = vmatprep.subr.mxu0 0.0
      %7548 = vmatpush1.msra.mxu0 0.0
      %7549 = vmatprep.subr.mxu0 0.0
      %7550 = vmatpush1.msra.mxu0 0.0
      %7551 = vmatprep.subr.mxu0 0.0
      %7552 = vmatpush1.msra.mxu0 0.0
      %7553 = vmatprep.subr.mxu0 0.0
      %7554 = vmatpush1.msra.mxu0 0.0
      %7555 = vmatprep.subr.mxu0 0.0
      %7556 = vmatpush1.msra.mxu0 0.0
      %7557 = vmatprep.subr.mxu0 0.0
      %7558 = vmatpush1.msra.mxu0 0.0
      %7559 = vmatprep.subr.mxu0 0.0
      %7560 = vmatpush1.msra.mxu0 0.0
      %7561 = vmatprep.subr.mxu0 0.0
      %7562 = vmatpush1.msra.mxu0 0.0
      %7563 = vmatprep.subr.mxu0 0.0
      %7564 = vmatpush1.msra.mxu0 0.0
      %7565 = vmatprep.subr.mxu0 0.0
      %7566 = vmatpush1.msra.mxu0 0.0
      %7567 = vmatprep.subr.mxu0 0.0
      %7568 = vmatpush1.msra.mxu0 0.0
      %7569 = vmatprep.subr.mxu0 0.0
      %7570 = vmatpush1.msra.mxu0 0.0
      %7571 = vmatprep.subr.mxu0 0.0
      %7572 = vmatpush1.msra.mxu0 0.0
      %7573 = vmatprep.mubr.f32.mxu0 0.0
      %7574 = vmatmul.mubr.f32.gmra.mrb[0].mxu0 %v7212
      %v7575 = vpop.f32.mrb[0].mxu0
      %v7576 = vadd.f32 0.0, %v7575
      %v7577 = vpop.f32.mrb[0].mxu0
      %7578 = vdwg.mxu0
      %v7580 = vsel %vm803, %v7062, 0
      %7582 = vmatprep.subr.mxu0 0.0
      %7583 = vmatpush1.msra.mxu0 %v7580
      %7584 = vmatprep.subr.mxu0 0.0
      %7585 = vmatpush1.msra.mxu0 0.0
      %7586 = vmatprep.subr.mxu0 0.0
      %7587 = vmatpush1.msra.mxu0 0.0
      %7588 = vmatprep.subr.mxu0 0.0
      %7589 = vmatpush1.msra.mxu0 0.0
      %7590 = vmatprep.subr.mxu0 0.0
      %7591 = vmatpush1.msra.mxu0 0.0
      %7592 = vmatprep.subr.mxu0 0.0
      %7593 = vmatpush1.msra.mxu0 0.0
      %7594 = vmatprep.subr.mxu0 0.0
      %7595 = vmatpush1.msra.mxu0 0.0
      %7596 = vmatprep.subr.mxu0 0.0
      %7597 = vmatpush1.msra.mxu0 0.0
      %7598 = vmatprep.subr.mxu0 0.0
      %7599 = vmatpush1.msra.mxu0 0.0
      %7600 = vmatprep.subr.mxu0 0.0
      %7601 = vmatpush1.msra.mxu0 0.0
      %7602 = vmatprep.subr.mxu0 0.0
      %7603 = vmatpush1.msra.mxu0 0.0
      %7604 = vmatprep.subr.mxu0 0.0
      %7605 = vmatpush1.msra.mxu0 0.0
      %7606 = vmatprep.subr.mxu0 0.0
      %7607 = vmatpush1.msra.mxu0 0.0
      %7608 = vmatprep.subr.mxu0 0.0
      %7609 = vmatpush1.msra.mxu0 0.0
      %7610 = vmatprep.subr.mxu0 0.0
      %7611 = vmatpush1.msra.mxu0 0.0
      %7612 = vmatprep.subr.mxu0 0.0
      %7613 = vmatpush1.msra.mxu0 0.0
      %7614 = vmatprep.subr.mxu0 0.0
      %7615 = vmatpush1.msra.mxu0 0.0
      %7616 = vmatprep.subr.mxu0 0.0
      %7617 = vmatpush1.msra.mxu0 0.0
      %7618 = vmatprep.subr.mxu0 0.0
      %7619 = vmatpush1.msra.mxu0 0.0
      %7620 = vmatprep.subr.mxu0 0.0
      %7621 = vmatpush1.msra.mxu0 0.0
      %7622 = vmatprep.subr.mxu0 0.0
      %7623 = vmatpush1.msra.mxu0 0.0
      %7624 = vmatprep.subr.mxu0 0.0
      %7625 = vmatpush1.msra.mxu0 0.0
      %7626 = vmatprep.subr.mxu0 0.0
      %7627 = vmatpush1.msra.mxu0 0.0
      %7628 = vmatprep.subr.mxu0 0.0
      %7629 = vmatpush1.msra.mxu0 0.0
      %7630 = vmatprep.subr.mxu0 0.0
      %7631 = vmatpush1.msra.mxu0 0.0
      %7632 = vmatprep.subr.mxu0 0.0
      %7633 = vmatpush1.msra.mxu0 0.0
      %7634 = vmatprep.subr.mxu0 0.0
      %7635 = vmatpush1.msra.mxu0 0.0
      %7636 = vmatprep.subr.mxu0 0.0
      %7637 = vmatpush1.msra.mxu0 0.0
      %7638 = vmatprep.subr.mxu0 0.0
      %7639 = vmatpush1.msra.mxu0 0.0
      %7640 = vmatprep.subr.mxu0 0.0
      %7641 = vmatpush1.msra.mxu0 0.0
      %7642 = vmatprep.subr.mxu0 0.0
      %7643 = vmatpush1.msra.mxu0 0.0
      %7644 = vmatprep.subr.mxu0 0.0
      %7645 = vmatpush1.msra.mxu0 0.0
      %7646 = vmatprep.mubr.f32.mxu0 0.0
      %7647 = vmatmul.mubr.f32.gmra.mrb[0].mxu0 %v7212
      %v7648 = vpop.f32.mrb[0].mxu0
      %v7649 = vadd.f32 0.0, %v7648
      %v7650 = vpop.f32.mrb[0].mxu0
      %7651 = vdwg.mxu0
      %v7653 = vsel %vm803, %v7134, 0
      %7655 = vmatprep.subr.mxu0 0.0
      %7656 = vmatpush1.msra.mxu0 %v7653
      %7657 = vmatprep.subr.mxu0 0.0
      %7658 = vmatpush1.msra.mxu0 0.0
      %7659 = vmatprep.subr.mxu0 0.0
      %7660 = vmatpush1.msra.mxu0 0.0
      %7661 = vmatprep.subr.mxu0 0.0
      %7662 = vmatpush1.msra.mxu0 0.0
      %7663 = vmatprep.subr.mxu0 0.0
      %7664 = vmatpush1.msra.mxu0 0.0
      %7665 = vmatprep.subr.mxu0 0.0
      %7666 = vmatpush1.msra.mxu0 0.0
      %7667 = vmatprep.subr.mxu0 0.0
      %7668 = vmatpush1.msra.mxu0 0.0
      %7669 = vmatprep.subr.mxu0 0.0
      %7670 = vmatpush1.msra.mxu0 0.0
      %7671 = vmatprep.subr.mxu0 0.0
      %7672 = vmatpush1.msra.mxu0 0.0
      %7673 = vmatprep.subr.mxu0 0.0
      %7674 = vmatpush1.msra.mxu0 0.0
      %7675 = vmatprep.subr.mxu0 0.0
      %7676 = vmatpush1.msra.mxu0 0.0
      %7677 = vmatprep.subr.mxu0 0.0
      %7678 = vmatpush1.msra.mxu0 0.0
      %7679 = vmatprep.subr.mxu0 0.0
      %7680 = vmatpush1.msra.mxu0 0.0
      %7681 = vmatprep.subr.mxu0 0.0
      %7682 = vmatpush1.msra.mxu0 0.0
      %7683 = vmatprep.subr.mxu0 0.0
      %7684 = vmatpush1.msra.mxu0 0.0
      %7685 = vmatprep.subr.mxu0 0.0
      %7686 = vmatpush1.msra.mxu0 0.0
      %7687 = vmatprep.subr.mxu0 0.0
      %7688 = vmatpush1.msra.mxu0 0.0
      %7689 = vmatprep.subr.mxu0 0.0
      %7690 = vmatpush1.msra.mxu0 0.0
      %7691 = vmatprep.subr.mxu0 0.0
      %7692 = vmatpush1.msra.mxu0 0.0
      %7693 = vmatprep.subr.mxu0 0.0
      %7694 = vmatpush1.msra.mxu0 0.0
      %7695 = vmatprep.subr.mxu0 0.0
      %7696 = vmatpush1.msra.mxu0 0.0
      %7697 = vmatprep.subr.mxu0 0.0
      %7698 = vmatpush1.msra.mxu0 0.0
      %7699 = vmatprep.subr.mxu0 0.0
      %7700 = vmatpush1.msra.mxu0 0.0
      %7701 = vmatprep.subr.mxu0 0.0
      %7702 = vmatpush1.msra.mxu0 0.0
      %7703 = vmatprep.subr.mxu0 0.0
      %7704 = vmatpush1.msra.mxu0 0.0
      %7705 = vmatprep.subr.mxu0 0.0
      %7706 = vmatpush1.msra.mxu0 0.0
      %7707 = vmatprep.subr.mxu0 0.0
      %7708 = vmatpush1.msra.mxu0 0.0
      %7709 = vmatprep.subr.mxu0 0.0
      %7710 = vmatpush1.msra.mxu0 0.0
      %7711 = vmatprep.subr.mxu0 0.0
      %7712 = vmatpush1.msra.mxu0 0.0
      %7713 = vmatprep.subr.mxu0 0.0
      %7714 = vmatpush1.msra.mxu0 0.0
      %7715 = vmatprep.subr.mxu0 0.0
      %7716 = vmatpush1.msra.mxu0 0.0
      %7717 = vmatprep.subr.mxu0 0.0
      %7718 = vmatpush1.msra.mxu0 0.0
      %7719 = vmatprep.mubr.f32.mxu0 0.0
      %7720 = vmatmul.mubr.f32.gmra.mrb[0].mxu0 %v7212
      %v7721 = vpop.f32.mrb[0].mxu0
      %v7722 = vadd.f32 0.0, %v7721
      %v7723 = vpop.f32.mrb[0].mxu0
      %7724 = vdwg.mxu0
      %v7726 = vsel %vm803, %v7206, 0
      %7728 = vmatprep.subr.mxu0 0.0
      %7729 = vmatpush1.msra.mxu0 %v7726
      %7730 = vmatprep.subr.mxu0 0.0
      %7731 = vmatpush1.msra.mxu0 0.0
      %7732 = vmatprep.subr.mxu0 0.0
      %7733 = vmatpush1.msra.mxu0 0.0
      %7734 = vmatprep.subr.mxu0 0.0
      %7735 = vmatpush1.msra.mxu0 0.0
      %7736 = vmatprep.subr.mxu0 0.0
      %7737 = vmatpush1.msra.mxu0 0.0
      %7738 = vmatprep.subr.mxu0 0.0
      %7739 = vmatpush1.msra.mxu0 0.0
      %7740 = vmatprep.subr.mxu0 0.0
      %7741 = vmatpush1.msra.mxu0 0.0
      %7742 = vmatprep.subr.mxu0 0.0
      %7743 = vmatpush1.msra.mxu0 0.0
      %7744 = vmatprep.subr.mxu0 0.0
      %7745 = vmatpush1.msra.mxu0 0.0
      %7746 = vmatprep.subr.mxu0 0.0
      %7747 = vmatpush1.msra.mxu0 0.0
      %7748 = vmatprep.subr.mxu0 0.0
      %7749 = vmatpush1.msra.mxu0 0.0
      %7750 = vmatprep.subr.mxu0 0.0
      %7751 = vmatpush1.msra.mxu0 0.0
      %7752 = vmatprep.subr.mxu0 0.0
      %7753 = vmatpush1.msra.mxu0 0.0
      %7754 = vmatprep.subr.mxu0 0.0
      %7755 = vmatpush1.msra.mxu0 0.0
      %7756 = vmatprep.subr.mxu0 0.0
      %7757 = vmatpush1.msra.mxu0 0.0
      %7758 = vmatprep.subr.mxu0 0.0
      %7759 = vmatpush1.msra.mxu0 0.0
      %7760 = vmatprep.subr.mxu0 0.0
      %7761 = vmatpush1.msra.mxu0 0.0
      %7762 = vmatprep.subr.mxu0 0.0
      %7763 = vmatpush1.msra.mxu0 0.0
      %7764 = vmatprep.subr.mxu0 0.0
      %7765 = vmatpush1.msra.mxu0 0.0
      %7766 = vmatprep.subr.mxu0 0.0
      %7767 = vmatpush1.msra.mxu0 0.0
      %7768 = vmatprep.subr.mxu0 0.0
      %7769 = vmatpush1.msra.mxu0 0.0
      %7770 = vmatprep.subr.mxu0 0.0
      %7771 = vmatpush1.msra.mxu0 0.0
      %7772 = vmatprep.subr.mxu0 0.0
      %7773 = vmatpush1.msra.mxu0 0.0
      %7774 = vmatprep.subr.mxu0 0.0
      %7775 = vmatpush1.msra.mxu0 0.0
      %7776 = vmatprep.subr.mxu0 0.0
      %7777 = vmatpush1.msra.mxu0 0.0
      %7778 = vmatprep.subr.mxu0 0.0
      %7779 = vmatpush1.msra.mxu0 0.0
      %7780 = vmatprep.subr.mxu0 0.0
      %7781 = vmatpush1.msra.mxu0 0.0
      %7782 = vmatprep.subr.mxu0 0.0
      %7783 = vmatpush1.msra.mxu0 0.0
      %7784 = vmatprep.subr.mxu0 0.0
      %7785 = vmatpush1.msra.mxu0 0.0
      %7786 = vmatprep.subr.mxu0 0.0
      %7787 = vmatpush1.msra.mxu0 0.0
      %7788 = vmatprep.subr.mxu0 0.0
      %7789 = vmatpush1.msra.mxu0 0.0
      %7790 = vmatprep.subr.mxu0 0.0
      %7791 = vmatpush1.msra.mxu0 0.0
      %7792 = vmatprep.mubr.f32.mxu0 0.0
      %7793 = vmatmul.mubr.f32.gmra.mrb[0].mxu0 %v7212
      %v7794 = vpop.f32.mrb[0].mxu0
      %v7795 = vadd.f32 0.0, %v7794
      %v7796 = vpop.f32.mrb[0].mxu0
      %7797 = vdwg.mxu0
      %v7798 = vadd.f32 %v6625, %v7284
      %v7799 = vadd.f32 %v6626, %v7357
      %v7800 = vadd.f32 %v6627, %v7430
      %v7801 = vadd.f32 %v6628, %v7503
      %v7802 = vadd.f32 %v6629, %v7576
      %v7803 = vadd.f32 %v6630, %v7649
      %v7804 = vadd.f32 %v6631, %v7722
      %v7805 = vadd.f32 %v6632, %v7795
      %v7806 = vld [vmem:[%s3] sm:$0xff]
      %7808 = vset.pattern.permute.xlu0 0
      %7809 = vperm.xlu0 %7808, %v7806
      %v7810 = vpop.permute.xlu0 %7809
      %v7812 = vadd.f32 %v7798, %v7810
      %v7813 = vadd.f32 %v7799, %v7810
      %v7814 = vadd.f32 %v7800, %v7810
      %v7815 = vadd.f32 %v7801, %v7810
      %v7816 = vadd.f32 %v7802, %v7810
      %v7817 = vadd.f32 %v7803, %v7810
      %v7818 = vadd.f32 %v7804, %v7810
      %v7819 = vadd.f32 %v7805, %v7810
      %v7820 = vmax.f32 %v7812, 0.0
      %v7821 = vmax.f32 %v7813, 0.0
      %v7822 = vmax.f32 %v7814, 0.0
      %v7823 = vmax.f32 %v7815, 0.0
      %v7824 = vmax.f32 %v7816, 0.0
      %v7825 = vmax.f32 %v7817, 0.0
      %v7826 = vmax.f32 %v7818, 0.0
      %v7827 = vmax.f32 %v7819, 0.0
      %7828 = vst.msk [vmem:[%s199] sm:$0xff] %vm212, %v7820
      %7829 = vst.msk [vmem:[%s199 + $0x8] sm:$0xff] %vm212, %v7821
      %7830 = vst.msk [vmem:[%s199 + $0x10] sm:$0xff] %vm212, %v7822
      %7831 = vst.msk [vmem:[%s199 + $0x18] sm:$0xff] %vm212, %v7823
      %7832 = vst.msk [vmem:[%s199 + $0x20] sm:$0xff] %vm212, %v7824
      %7833 = vst.msk [vmem:[%s199 + $0x28] sm:$0xff] %vm212, %v7825
      %7834 = vst.msk [vmem:[%s199 + $0x30] sm:$0xff] %vm212, %v7826
      %7835 = vst.msk [vmem:[%s199 + $0x38] sm:$0xff] %vm212, %v7827
      %s7836 = smul.u32 8, %s15
      %p7837 = scmp.lt.s32.totalorder %s7836, 31
      %s7838 = scalar_select %p7837, %s7836, 31
      %s7839 = smul.addr %s7838, 8
      %s7840 = scalar_lea.vmem %s4, %s7839
      // Predicated region
      $region37: #{tpu_custom_call.1} parent=35 // pred_check
        %p7841 = pneg %p122
      $region38: #{tpu_custom_call.1} parent=35 // pred_check_branch
        %7843 = sbr.rel (%p7841) target = $region40
      $region39: #{tpu_custom_call.1} parent=35 // pred_region
        %s7844 = smul.u32 8, %s15
      $region40: #{tpu_custom_call.1} parent=35 // pred_fallthru
        _
    $region36: #{tpu_custom_call.1} parent=5 // pred_fallthru
      _
    %p7845 = scmp.le.s32.totalorder 2, %s10
    // Predicated region
    $region41: #{tpu_custom_call.1} parent=5 // pred_check
      %p7846 = pneg %p7845
    $region42: #{tpu_custom_call.1} parent=5 // pred_check_branch
      %7848 = sbr.rel (%p7846) target = $region44
    $region43: #{tpu_custom_call.1} parent=5 // pred_region
      %s7849 = ssub.s32 %s10, 2
      // Predicated region
      $region45: #{tpu_custom_call.1} parent=43 // pred_check
        %p7850 = pneg %p128
      $region46: #{tpu_custom_call.1} parent=43 // pred_check_branch
        %7852 = sbr.rel (%p7850) target = $region48
      $region47: #{tpu_custom_call.1} parent=43 // pred_region
        %s7853 = smul.u32 8, %s16
        %p7854 = scmp.lt.s32.totalorder %s7853, 31
        %s7855 = scalar_select %p7854, %s7853, 31
        %s7856 = smul.addr %s7855, 8
        %s7857 = scalar_lea.vmem %s4, %s7856
      $region48: #{tpu_custom_call.1} parent=43 // pred_fallthru
        _
    $region44: #{tpu_custom_call.1} parent=5 // pred_fallthru
      _
  $region6: #{tpu_custom_call.1} parent=0 // loop_footer
    %s14 = sadd.s32 1, %s10
  $region7: #{tpu_custom_call.1} parent=0 // loop_footer_branch
    %9 = sbr.rel target = $region3
  $region8: #{tpu_custom_call.1} parent=0 // loop_exit
    _

</llo_original>
